<compile_context>
chip_gen: v7x
topology: tpu7x:2x2x1
jax: 0.10.0
libtpu: 0.0.40
codegen_flags: <defaults>
</compile_context>

<pallas_src>
import functools
import math

import jax
import jax.numpy as jnp
from jax.experimental import pallas as pl
from jax.experimental.pallas import tpu as pltpu

EPS = 1e-3        # partial(nn.BatchNorm2d, eps=0.001)
LANE = 128        # channel padding target (lane width)


# ----------------------------------------------------------------------------
# helpers
# ----------------------------------------------------------------------------
def _round_up(x, m):
    return ((x + m - 1) // m) * m


def _make_divisible(v, divisor=8, min_value=None):
    if min_value is None:
        min_value = divisor
    new_v = max(min_value, int(v + divisor / 2) // divisor * divisor)
    if new_v < 0.9 * v:
        new_v += divisor
    return new_v


def _hardswish(x):
    return x * jnp.clip(x + 3.0, 0.0, 6.0) * (1.0 / 6.0)


def _relu(x):
    return jnp.maximum(x, 0.0)


def _identity(x):
    return x


_ACTS = {"hardswish": _hardswish, "relu": _relu, "identity": _identity}

_VMEM_LIMIT_CACHE = None


def _vmem_limit():
    """Generation-aware scoped-VMEM budget: 80 MiB on 128-MiB parts, 32 MiB on v7x."""
    global _VMEM_LIMIT_CACHE
    if _VMEM_LIMIT_CACHE is None:
        limit = 32 * 1024 * 1024
        try:
            cap = getattr(pltpu.get_tpu_info(), "vmem_capacity_bytes", None)
            if cap is not None and cap >= 96 * 1024 * 1024:
                limit = 80 * 1024 * 1024
        except Exception:
            pass
        _VMEM_LIMIT_CACHE = limit
    return _VMEM_LIMIT_CACHE


def _pick_tm(m, bytes_per_row, fixed_bytes, vmem_limit):
    """Row-tile size: 1024 when VMEM allows (v5e/v6e), 512 otherwise; shrink to fit."""
    tm = 1024 if vmem_limit >= (64 << 20) else 512
    budget = int(vmem_limit * 0.75)
    while tm > 64 and tm * bytes_per_row + fixed_bytes > budget:
        tm //= 2
    return max(8, min(tm, _round_up(max(m, 8), 8)))


def _pad_to(a, shape):
    pads = [(0, s - d) for d, s in zip(a.shape, shape)]
    return jnp.pad(a, pads)


def _im2col(x, K, stride, padding):
    """Tap concatenation along channels (only used for the tiny 3-channel stem)."""
    N, H, W, C = x.shape
    xp = jnp.pad(x, ((0, 0), (padding, padding), (padding, padding), (0, 0)))
    Ho = (H + 2 * padding - K) // stride + 1
    Wo = (W + 2 * padding - K) // stride + 1
    cols = []
    for kh in range(K):
        for kw in range(K):
            cols.append(xp[:, kh:kh + stride * Ho:stride, kw:kw + stride * Wo:stride, :])
    x2d = jnp.concatenate(cols, axis=-1).reshape(N * Ho * Wo, K * K * C)
    return x2d, Ho, Wo


# ----------------------------------------------------------------------------
# fused Conv(1x1 / im2col) + BN(batch stats) + Act (+residual), 2-sweep grid
# ----------------------------------------------------------------------------
def _conv1x1_bn_kernel(*refs, act_fn, inv_m, m_total, tm, has_res):
    if has_res:
        (x_ref, w_ref, g_ref, b_ref, r_ref, o_ref,
         sum_ref, sq_ref, scale_ref, shift_ref) = refs
    else:
        (x_ref, w_ref, g_ref, b_ref, o_ref,
         sum_ref, sq_ref, scale_ref, shift_ref) = refs
        r_ref = None

    s = pl.program_id(0)          # sweep: 0 = stats, 1 = normalize + store
    i = pl.program_id(1)          # row tile

    y = jnp.dot(x_ref[...], w_ref[...], preferred_element_type=jnp.float32)

    @pl.when(s == 0)
    def _stats():
        @pl.when(i == 0)
        def _():
            sum_ref[...] = jnp.zeros_like(sum_ref)
            sq_ref[...] = jnp.zeros_like(sq_ref)

        # mask the (possibly partial) tail tile instead of padding rows in HBM
        row = i * tm + jax.lax.broadcasted_iota(jnp.int32, (tm, 1), 0)
        ym = jnp.where(row < m_total, y, 0.0)
        sum_ref[...] += jnp.sum(ym, axis=0, keepdims=True)
        sq_ref[...] += jnp.sum(ym * ym, axis=0, keepdims=True)

        @pl.when(i == pl.num_programs(1) - 1)
        def _():
            mean = sum_ref[...] * inv_m
            var = jnp.maximum(sq_ref[...] * inv_m - mean * mean, 0.0)
            sc = g_ref[...] * jax.lax.rsqrt(var + EPS)
            scale_ref[...] = sc
            shift_ref[...] = b_ref[...] - mean * sc

    @pl.when(s == 1)
    def _apply():
        v = act_fn(y * scale_ref[...] + shift_ref[...])
        if r_ref is not None:
            v = v + r_ref[...].astype(jnp.float32)
        o_ref[...] = v.astype(o_ref.dtype)


def conv1x1_bn_act(x2d, w, gamma, beta, act, residual=None):
    """x2d: (M, K) -> (M, Cout) bf16.  Single fused pallas_call, grid=(2, tiles)."""
    m, kdim = x2d.shape
    cout = w.shape[1]
    vmem = _vmem_limit()

    bytes_per_row = 4 * kdim + 4 * cout + 12 * cout      # x/out double-buffered + f32 temps
    if residual is not None:
        bytes_per_row += 4 * cout
    fixed = 4 * kdim * cout + 64 * cout                  # weight (x2 buffers) + scalars
    tm = _pick_tm(m, bytes_per_row, fixed, vmem)
    n_tiles = pl.cdiv(m, tm)

    in_specs = [
        pl.BlockSpec((tm, kdim), lambda s, i: (i, 0)),
        pl.BlockSpec((kdim, cout), lambda s, i: (0, 0)),
        pl.BlockSpec((1, cout), lambda s, i: (0, 0)),
        pl.BlockSpec((1, cout), lambda s, i: (0, 0)),
    ]
    args = [x2d.astype(jnp.bfloat16), w.astype(jnp.bfloat16),
            gamma.reshape(1, cout).astype(jnp.float32),
            beta.reshape(1, cout).astype(jnp.float32)]
    if residual is not None:
        # i*s: residual not re-fetched during the stats sweep
        in_specs.append(pl.BlockSpec((tm, cout), lambda s, i: (i * s, 0)))
        args.append(residual.astype(jnp.bfloat16))

    kernel = functools.partial(
        _conv1x1_bn_kernel, act_fn=_ACTS[act], inv_m=1.0 / m,
        m_total=m, tm=tm, has_res=residual is not None)

    # TODO(synk): on v7x, split sweep 0 across the two TensorCores with per-core
    # partial sums; currently the whole reduction runs on a single core.
    return pl.pallas_call(
        kernel,
        out_shape=jax.ShapeDtypeStruct((m, cout), jnp.bfloat16),
        grid=(2, n_tiles),
        in_specs=in_specs,
        # constant block during sweep 0 -> no garbage writeback before sweep 1
        out_specs=pl.BlockSpec((tm, cout), lambda s, i: (i * s, 0)),
        scratch_shapes=[pltpu.VMEM((1, cout), jnp.float32) for _ in range(4)],
        compiler_params=pltpu.CompilerParams(
            dimension_semantics=("arbitrary", "arbitrary"),
            vmem_limit_bytes=vmem),
    )(*args)


# ----------------------------------------------------------------------------
# fused depthwise Conv + BN + Act + (optional) Squeeze-Excitation, 2-sweep grid
# ----------------------------------------------------------------------------
def _dw_bn_se_kernel(*refs, act_fn, inv_m, K, S, Ho, Wo, use_se):
    if use_se:
        (x_ref, w_ref, g_ref, b_ref, w1_ref, b1_ref, w2_ref, b2_ref, o_ref,
         sum_ref, sq_ref, scale_ref, shift_ref) = refs
    else:
        (x_ref, w_ref, g_ref, b_ref, o_ref,
         sum_ref, sq_ref, scale_ref, shift_ref) = refs

    s = pl.program_id(0)          # sweep
    n = pl.program_id(1)          # sample
    cp = x_ref.shape[-1]

    # depthwise MAC from phase-split taps (all slices static, lane dim = channels)
    w = w_ref[...]                                             # (K*K, cp) f32
    acc = jnp.zeros((Ho, Wo, cp), jnp.float32)
    for kh in range(K):
        for kw in range(K):
            ph = (kh % S) * S + (kw % S)
            tap = x_ref[ph, kh // S:kh // S + Ho, kw // S:kw // S + Wo, :]
            acc = acc + tap.astype(jnp.float32) * w[kh * K + kw]

    @pl.when(s == 0)
    def _stats():
        @pl.when(n == 0)
        def _():
            sum_ref[...] = jnp.zeros_like(sum_ref)
            sq_ref[...] = jnp.zeros_like(sq_ref)
        sum_ref[...] += jnp.sum(acc, axis=(0, 1))[None, :]
        sq_ref[...] += jnp.sum(acc * acc, axis=(0, 1))[None, :]

        @pl.when(n == pl.num_programs(1) - 1)
        def _():
            mean = sum_ref[...] * inv_m
            var = jnp.maximum(sq_ref[...] * inv_m - mean * mean, 0.0)
            sc = g_ref[...] * jax.lax.rsqrt(var + EPS)
            scale_ref[...] = sc
            shift_ref[...] = b_ref[...] - mean * sc

    @pl.when(s == 1)
    def _apply():
        v = act_fn(acc * scale_ref[...] + shift_ref[...])      # (Ho, Wo, cp)
        if use_se:
            pooled = jnp.sum(v, axis=(0, 1))[None, :] * (1.0 / (Ho * Wo))   # (1, cp)
            t = jnp.dot(pooled.astype(jnp.bfloat16), w1_ref[...],
                        preferred_element_type=jnp.float32) + b1_ref[...]
            t = jnp.maximum(t, 0.0)
            t = jnp.dot(t.astype(jnp.bfloat16), w2_ref[...],
                        preferred_element_type=jnp.float32) + b2_ref[...]
            gate = jnp.clip((t + 3.0) * (1.0 / 6.0), 0.0, 1.0)               # (1, cp)
            v = v * gate[None, :, :]
        o_ref[...] = v.astype(o_ref.dtype)


def dwconv_bn_act_se(x_nhwc, w_kkc, gamma, beta, K, stride, padding, act, se_params=None):
    """Depthwise conv with BN + act and SE fused in; no im2col HBM materialization."""
    N, H, W, C = x_nhwc.shape
    S = stride
    Ho = (H + 2 * padding - K) // S + 1
    Wo = (W + 2 * padding - K) // S + 1

    # cheap XLA prep: spatial pad + stride-phase split (one read+write of the map)
    xp = jnp.pad(x_nhwc.astype(jnp.bfloat16),
                 ((0, 0), (padding, padding), (padding, padding), (0, 0)))
    Hp, Wp = H + 2 * padding, W + 2 * padding
    Hph, Wph = -(-Hp // S), -(-Wp // S)
    xp = jnp.pad(xp, ((0, 0), (0, Hph * S - Hp), (0, Wph * S - Wp), (0, 0)))
    xph = xp.reshape(N, Hph, S, Wph, S, C).transpose(2, 4, 0, 1, 3, 5)
    xph = xph.reshape(S * S, N, Hph, Wph, C)

    use_se = se_params is not None
    vmem = _vmem_limit()

    in_specs = [
        pl.BlockSpec((S * S, None, Hph, Wph, C), lambda s, n: (0, n, 0, 0, 0)),
        pl.BlockSpec((K * K, C), lambda s, n: (0, 0)),
        pl.BlockSpec((1, C), lambda s, n: (0, 0)),
        pl.BlockSpec((1, C), lambda s, n: (0, 0)),
    ]
    args = [xph, w_kkc.reshape(K * K, C).astype(jnp.float32),
            gamma.reshape(1, C).astype(jnp.float32),
            beta.reshape(1, C).astype(jnp.float32)]
    if use_se:
        w1, b1, w2, b2 = se_params
        sqp = w1.shape[1]
        in_specs += [
            pl.BlockSpec((C, sqp), lambda s, n: (0, 0)),
            pl.BlockSpec((1, sqp), lambda s, n: (0, 0)),
            pl.BlockSpec((sqp, C), lambda s, n: (0, 0)),
            pl.BlockSpec((1, C), lambda s, n: (0, 0)),
        ]
        args += [w1.astype(jnp.bfloat16), b1.reshape(1, sqp).astype(jnp.float32),
                 w2.astype(jnp.bfloat16), b2.reshape(1, C).astype(jnp.float32)]

    kernel = functools.partial(
        _dw_bn_se_kernel, act_fn=_ACTS[act], inv_m=1.0 / (N * Ho * Wo),
        K=K, S=S, Ho=Ho, Wo=Wo, use_se=use_se)

    return pl.pallas_call(
        kernel,
        out_shape=jax.ShapeDtypeStruct((N, Ho, Wo, C), jnp.bfloat16),
        grid=(2, N),
        in_specs=in_specs,
        out_specs=pl.BlockSpec((None, Ho, Wo, C), lambda s, n: (n * s, 0, 0, 0)),
        scratch_shapes=[pltpu.VMEM((1, C), jnp.float32) for _ in range(4)],
        compiler_params=pltpu.CompilerParams(
            dimension_semantics=("arbitrary", "arbitrary"),
            vmem_limit_bytes=vmem),
    )(*args)


# ----------------------------------------------------------------------------
# parameter init (deterministic, kaiming-normal fan_out; channel-padded to 128)
# ----------------------------------------------------------------------------
def _kaiming_fan_out(key, shape_kkio):
    K1, K2, _, Cout = shape_kkio
    std = math.sqrt(2.0 / (Cout * K1 * K2))
    return std * jax.random.normal(key, shape_kkio, jnp.float32)


def init_params(key, cnfs):
    keys = iter(jax.random.split(key, 128))
    params = {}

    c0 = cnfs[0]["in_c"]
    c0p = _round_up(c0, LANE)
    params["stem_w"] = _pad_to(_kaiming_fan_out(next(keys), (3, 3, 3, c0)), (3, 3, 3, c0p))
    params["stem_gamma"] = jnp.ones((c0p,), jnp.float32)
    params["stem_beta"] = jnp.zeros((c0p,), jnp.float32)

    blocks = []
    for cnf in cnfs:
        p = {}
        in_c, exp_c, out_c, k = cnf["in_c"], cnf["exp_c"], cnf["out_c"], cnf["k"]
        in_p, exp_p, out_p = (_round_up(c, LANE) for c in (in_c, exp_c, out_c))
        if exp_c != in_c:
            w = _kaiming_fan_out(next(keys), (1, 1, in_c, exp_c)).reshape(in_c, exp_c)
            p["expand_w"] = _pad_to(w, (in_p, exp_p))
            p["expand_gamma"] = jnp.ones((exp_p,), jnp.float32)
            p["expand_beta"] = jnp.zeros((exp_p,), jnp.float32)
        std = math.sqrt(2.0 / (k * k))
        dw = std * jax.random.normal(next(keys), (k, k, exp_c), jnp.float32)
        p["dw_w"] = _pad_to(dw, (k, k, exp_p))
        p["dw_gamma"] = jnp.ones((exp_p,), jnp.float32)
        p["dw_beta"] = jnp.zeros((exp_p,), jnp.float32)
        if cnf["use_se"]:
            sq = _make_divisible(exp_c // 4, 8)
            sqp = _round_up(sq, LANE)
            w1 = math.sqrt(2.0 / sq) * jax.random.normal(next(keys), (exp_c, sq), jnp.float32)
            w2 = math.sqrt(2.0 / exp_c) * jax.random.normal(next(keys), (sq, exp_c), jnp.float32)
            p["se_w1"] = _pad_to(w1, (exp_p, sqp))
            p["se_b1"] = jnp.zeros((sqp,), jnp.float32)   # conv biases zeroed by module init
            p["se_w2"] = _pad_to(w2, (sqp, exp_p))
            p["se_b2"] = jnp.zeros((exp_p,), jnp.float32)
        w = _kaiming_fan_out(next(keys), (1, 1, exp_c, out_c)).reshape(exp_c, out_c)
        p["proj_w"] = _pad_to(w, (exp_p, out_p))
        p["proj_gamma"] = jnp.ones((out_p,), jnp.float32)
        p["proj_beta"] = jnp.zeros((out_p,), jnp.float32)
        blocks.append(p)
    params["blocks"] = blocks

    last_in = cnfs[-1]["out_c"]
    last_out = 6 * last_in
    lin_p, lout_p = _round_up(last_in, LANE), _round_up(last_out, LANE)
    w = _kaiming_fan_out(next(keys), (1, 1, last_in, last_out)).reshape(last_in, last_out)
    params["head_w"] = _pad_to(w, (lin_p, lout_p))
    params["head_gamma"] = jnp.ones((lout_p,), jnp.float32)
    params["head_beta"] = jnp.zeros((lout_p,), jnp.float32)
    return params


# ----------------------------------------------------------------------------
# forward
# ----------------------------------------------------------------------------
def mobilenet_v3_forward(x_nchw, params, cnfs):
    x = jnp.transpose(x_nchw, (0, 2, 3, 1))               # NCHW -> NHWC
    N = x.shape[0]

    # stem: ConvBNActivation(3 -> C0, k3, s2, Hardswish); im2col is cheap (3 channels)
    x2d, Ho, Wo = _im2col(x.astype(jnp.bfloat16), 3, 2, 1)
    c0p = params["stem_w"].shape[-1]
    y = conv1x1_bn_act(x2d, params["stem_w"].reshape(-1, c0p),
                       params["stem_gamma"], params["stem_beta"], "hardswish")
    x = y.reshape(N, Ho, Wo, c0p)

    for cnf, p in zip(cnfs, params["blocks"]):
        act = "hardswish" if cnf["use_hs"] else "relu"
        use_res = cnf["stride"] == 1 and cnf["in_c"] == cnf["out_c"]
        inp = x
        Nb, H, W, cin_p = x.shape

        if cnf["exp_c"] != cnf["in_c"]:                    # expand 1x1
            y = conv1x1_bn_act(x.reshape(Nb * H * W, cin_p),
                               p["expand_w"], p["expand_gamma"], p["expand_beta"], act)
            x = y.reshape(Nb, H, W, -1)

        # depthwise kxk (+BN+act), SE fused into the same kernel
        se_params = (p["se_w1"], p["se_b1"], p["se_w2"], p["se_b2"]) if cnf["use_se"] else None
        x = dwconv_bn_act_se(x, p["dw_w"], p["dw_gamma"], p["dw_beta"],
                             K=cnf["k"], stride=cnf["stride"],
                             padding=(cnf["k"] - 1) // 2, act=act,
                             se_params=se_params)

        # project 1x1 (Identity activation), fused residual add
        N2, H2, W2, cexp_p = x.shape
        res = inp.reshape(N2 * H2 * W2, -1) if use_res else None
        y = conv1x1_bn_act(x.reshape(N2 * H2 * W2, cexp_p),
                           p["proj_w"], p["proj_gamma"], p["proj_beta"],
                           "identity", residual=res)
        x = y.reshape(N2, H2, W2, -1)

    # head: ConvBNActivation(Clast -> 6*Clast, 1x1, Hardswish)
    Nh, Hh, Wh, cp = x.shape
    y = conv1x1_bn_act(x.reshape(Nh * Hh * Wh, cp), params["head_w"],
                       params["head_gamma"], params["head_beta"], "hardswish")
    x = y.reshape(Nh, Hh, Wh, -1)

    real_out = 6 * cnfs[-1]["out_c"]
    x = x[..., :real_out]                                  # drop channel padding
    return jnp.transpose(x, (0, 3, 1, 2)).astype(jnp.float32)   # NHWC -> NCHW


# ----------------------------------------------------------------------------
if __name__ == "__main__":
    key = jax.random.PRNGKey(0)
    k_x, k_p = jax.random.split(key)

    # small InvertedResidualConfig list (width_mult=1.0, channels already divisible by 8)
    cnfs = [
        dict(in_c=16, k=3, exp_c=16, out_c=16, use_se=True,  use_hs=False, stride=2),
        dict(in_c=16, k=3, exp_c=72, out_c=16, use_se=False, use_hs=True,  stride=1),
    ]
    params = init_params(k_p, cnfs)

    x = jax.random.normal(k_x, (2, 3, 32, 32), jnp.float32)   # NCHW, like the PyTorch module

    fwd = jax.jit(functools.partial(mobilenet_v3_forward, cnfs=cnfs))
    y = fwd(x, params)
    y = jax.block_until_ready(y)

    assert y.shape == (2, 6 * cnfs[-1]["out_c"], 8, 8), y.shape
    assert bool(jnp.all(jnp.isfinite(y)))
    print("KERNEL_OK")
</pallas_src>

<mosaic_0001>
module attributes {stable_mosaic.version = 11 : i64} {
  func.func @_conv1x1_bn_kernel(%arg0: i32, %arg1: i32, %arg2: memref<512x27xbf16, #tpu.memory_space<vmem>>, %arg3: memref<27x128xbf16, #tpu.memory_space<vmem>>, %arg4: memref<1x128xf32, #tpu.memory_space<vmem>>, %arg5: memref<1x128xf32, #tpu.memory_space<vmem>>, %arg6: memref<512x128xbf16, #tpu.memory_space<vmem>>, %arg7: memref<1x128xf32, #tpu.memory_space<vmem>>, %arg8: memref<1x128xf32, #tpu.memory_space<vmem>>, %arg9: memref<1x128xf32, #tpu.memory_space<vmem>>, %arg10: memref<1x128xf32, #tpu.memory_space<vmem>>) attributes {dimension_semantics = [#tpu.dimension_semantics<arbitrary>, #tpu.dimension_semantics<arbitrary>], iteration_bounds = array<i64: 2, 1>, scalar_prefetch = 0 : i64, scratch_operands = 4 : i64, tpu.core_type = #tpu.core_type<tc>, window_params = [{transform_indices = @transform_0, window_bounds = array<i64: 512, 27>}, {pipeline_mode = #tpu.pipeline_mode<synchronous>, transform_indices = @transform_1, window_bounds = array<i64: 27, 128>}, {pipeline_mode = #tpu.pipeline_mode<synchronous>, transform_indices = @transform_2, window_bounds = array<i64: 1, 128>}, {pipeline_mode = #tpu.pipeline_mode<synchronous>, transform_indices = @transform_3, window_bounds = array<i64: 1, 128>}, {transform_indices = @transform_4, window_bounds = array<i64: 512, 128>}]} {
    %c0 = arith.constant 0 : index
    %c0_0 = arith.constant 0 : index
    %0 = vector.load %arg2[%c0, %c0_0] : memref<512x27xbf16, #tpu.memory_space<vmem>>, vector<512x27xbf16>
    %c0_1 = arith.constant 0 : index
    %c0_2 = arith.constant 0 : index
    %1 = vector.load %arg3[%c0_1, %c0_2] : memref<27x128xbf16, #tpu.memory_space<vmem>>, vector<27x128xbf16>
    %cst = arith.constant dense<0.000000e+00> : vector<512x128xf32>
    %2 = tpu.matmul %0, %1, %cst {dimension_numbers = #tpu.dot_dimension_numbers<[1], [0], [0], [1], [0, 0, 1, 1], [], []>} : vector<512x27xbf16>, vector<27x128xbf16>, vector<512x128xf32> -> vector<512x128xf32>
    %c0_i32 = arith.constant 0 : i32
    %3 = arith.cmpi eq, %arg0, %c0_i32 : i32
    %4 = arith.extui %3 : i1 to i32
    %c0_i32_3 = arith.constant 0 : i32
    %5 = arith.cmpi ne, %4, %c0_i32_3 : i32
    scf.if %5 {
      %c0_i32_5 = arith.constant 0 : i32
      %9 = arith.cmpi eq, %arg1, %c0_i32_5 : i32
      %10 = arith.extui %9 : i1 to i32
      %c0_i32_6 = arith.constant 0 : i32
      %11 = arith.cmpi ne, %10, %c0_i32_6 : i32
      scf.if %11 {
        %cst_21 = arith.constant 0.000000e+00 : f32
        %36 = vector.broadcast %cst_21 : f32 to vector<1x128xf32>
        %c0_22 = arith.constant 0 : index
        %c0_23 = arith.constant 0 : index
        %37 = vector.load %arg7[%c0_22, %c0_23] : memref<1x128xf32, #tpu.memory_space<vmem>>, vector<1x128xf32>
        tpu.vector_store %arg7[%c0_22, %c0_23], %36 {strides = array<i32>} : memref<1x128xf32, #tpu.memory_space<vmem>>, vector<1x128xf32>,
        %cst_24 = arith.constant 0.000000e+00 : f32
        %38 = vector.broadcast %cst_24 : f32 to vector<1x128xf32>
        %c0_25 = arith.constant 0 : index
        %c0_26 = arith.constant 0 : index
        %39 = vector.load %arg8[%c0_25, %c0_26] : memref<1x128xf32, #tpu.memory_space<vmem>>, vector<1x128xf32>
        tpu.vector_store %arg8[%c0_25, %c0_26], %38 {strides = array<i32>} : memref<1x128xf32, #tpu.memory_space<vmem>>, vector<1x128xf32>,
      } else {
      }
      %c512_i32 = arith.constant 512 : i32
      %12 = arith.muli %arg1, %c512_i32 : i32
      %13 = tpu.iota {dimensions = array<i32: 0>} : vector<512x1xi32>
      %14 = vector.broadcast %12 : i32 to vector<512x1xi32>
      %15 = arith.addi %14, %13 : vector<512x1xi32>
      %c512_i32_7 = arith.constant 512 : i32
      %16 = vector.broadcast %c512_i32_7 : i32 to vector<512x1xi32>
      %17 = arith.cmpi slt, %15, %16 : vector<512x1xi32>
      %cst_8 = arith.constant 0.000000e+00 : f32
      %18 = vector.shape_cast %17 : vector<512x1xi1> to vector<512x1xi1>
      %19 = vector.broadcast %18 : vector<512x1xi1> to vector<512x128xi1>
      %20 = vector.broadcast %cst_8 : f32 to vector<512x128xf32>
      %21 = arith.select %19, %2, %20 : vector<512x128xi1>, vector<512x128xf32>
      %c0_9 = arith.constant 0 : index
      %c0_10 = arith.constant 0 : index
      %22 = vector.load %arg7[%c0_9, %c0_10] : memref<1x128xf32, #tpu.memory_space<vmem>>, vector<1x128xf32>
      %cst_11 = arith.constant dense<0.000000e+00> : vector<128xf32>
      %23 = vector.multi_reduction <add>, %21, %cst_11 [0] : vector<512x128xf32> to vector<128xf32>
      %24 = vector.shape_cast %23 : vector<128xf32> to vector<1x128xf32>
      %25 = arith.addf %22, %24 : vector<1x128xf32>
      %c0_12 = arith.constant 0 : index
      %c0_13 = arith.constant 0 : index
      %26 = vector.load %arg7[%c0_12, %c0_13] : memref<1x128xf32, #tpu.memory_space<vmem>>, vector<1x128xf32>
      tpu.vector_store %arg7[%c0_12, %c0_13], %25 {strides = array<i32>} : memref<1x128xf32, #tpu.memory_space<vmem>>, vector<1x128xf32>,
      %c0_14 = arith.constant 0 : index
      %c0_15 = arith.constant 0 : index
      %27 = vector.load %arg8[%c0_14, %c0_15] : memref<1x128xf32, #tpu.memory_space<vmem>>, vector<1x128xf32>
      %28 = arith.mulf %21, %21 : vector<512x128xf32>
      %cst_16 = arith.constant dense<0.000000e+00> : vector<128xf32>
      %29 = vector.multi_reduction <add>, %28, %cst_16 [0] : vector<512x128xf32> to vector<128xf32>
      %30 = vector.shape_cast %29 : vector<128xf32> to vector<1x128xf32>
      %31 = arith.addf %27, %30 : vector<1x128xf32>
      %c0_17 = arith.constant 0 : index
      %c0_18 = arith.constant 0 : index
      %32 = vector.load %arg8[%c0_17, %c0_18] : memref<1x128xf32, #tpu.memory_space<vmem>>, vector<1x128xf32>
      tpu.vector_store %arg8[%c0_17, %c0_18], %31 {strides = array<i32>} : memref<1x128xf32, #tpu.memory_space<vmem>>, vector<1x128xf32>,
      %c0_i32_19 = arith.constant 0 : i32
      %33 = arith.cmpi eq, %arg1, %c0_i32_19 : i32
      %34 = arith.extui %33 : i1 to i32
      %c0_i32_20 = arith.constant 0 : i32
      %35 = arith.cmpi ne, %34, %c0_i32_20 : i32
      scf.if %35 {
        %c0_21 = arith.constant 0 : index
        %c0_22 = arith.constant 0 : index
        %36 = vector.load %arg7[%c0_21, %c0_22] : memref<1x128xf32, #tpu.memory_space<vmem>>, vector<1x128xf32>
        %cst_23 = arith.constant 0.001953125 : f32
        %37 = vector.broadcast %cst_23 : f32 to vector<1x128xf32>
        %38 = arith.mulf %36, %37 : vector<1x128xf32>
        %c0_24 = arith.constant 0 : index
        %c0_25 = arith.constant 0 : index
        %39 = vector.load %arg8[%c0_24, %c0_25] : memref<1x128xf32, #tpu.memory_space<vmem>>, vector<1x128xf32>
        %cst_26 = arith.constant 0.001953125 : f32
        %40 = vector.broadcast %cst_26 : f32 to vector<1x128xf32>
        %41 = arith.mulf %39, %40 : vector<1x128xf32>
        %42 = arith.mulf %38, %38 : vector<1x128xf32>
        %43 = arith.subf %41, %42 : vector<1x128xf32>
        %cst_27 = arith.constant 0.000000e+00 : f32
        %44 = vector.broadcast %cst_27 : f32 to vector<1x128xf32>
        %45 = arith.maximumf %43, %44 : vector<1x128xf32>
        %c0_28 = arith.constant 0 : index
        %c0_29 = arith.constant 0 : index
        %46 = vector.load %arg4[%c0_28, %c0_29] : memref<1x128xf32, #tpu.memory_space<vmem>>, vector<1x128xf32>
        %cst_30 = arith.constant 1.000000e-03 : f32
        %47 = vector.broadcast %cst_30 : f32 to vector<1x128xf32>
        %48 = arith.addf %45, %47 : vector<1x128xf32>
        %49 = math.rsqrt %48 : vector<1x128xf32>
        %50 = arith.mulf %46, %49 : vector<1x128xf32>
        %c0_31 = arith.constant 0 : index
        %c0_32 = arith.constant 0 : index
        %51 = vector.load %arg9[%c0_31, %c0_32] : memref<1x128xf32, #tpu.memory_space<vmem>>, vector<1x128xf32>
        tpu.vector_store %arg9[%c0_31, %c0_32], %50 {strides = array<i32>} : memref<1x128xf32, #tpu.memory_space<vmem>>, vector<1x128xf32>,
        %c0_33 = arith.constant 0 : index
        %c0_34 = arith.constant 0 : index
        %52 = vector.load %arg5[%c0_33, %c0_34] : memref<1x128xf32, #tpu.memory_space<vmem>>, vector<1x128xf32>
        %53 = arith.mulf %38, %50 : vector<1x128xf32>
        %54 = arith.subf %52, %53 : vector<1x128xf32>
        %c0_35 = arith.constant 0 : index
        %c0_36 = arith.constant 0 : index
        %55 = vector.load %arg10[%c0_35, %c0_36] : memref<1x128xf32, #tpu.memory_space<vmem>>, vector<1x128xf32>
        tpu.vector_store %arg10[%c0_35, %c0_36], %54 {strides = array<i32>} : memref<1x128xf32, #tpu.memory_space<vmem>>, vector<1x128xf32>,
      } else {
      }
    } else {
    }
    %c1_i32 = arith.constant 1 : i32
    %6 = arith.cmpi eq, %arg0, %c1_i32 : i32
    %7 = arith.extui %6 : i1 to i32
    %c0_i32_4 = arith.constant 0 : i32
    %8 = arith.cmpi ne, %7, %c0_i32_4 : i32
    scf.if %8 {
      %c0_5 = arith.constant 0 : index
      %c0_6 = arith.constant 0 : index
      %9 = vector.load %arg9[%c0_5, %c0_6] : memref<1x128xf32, #tpu.memory_space<vmem>>, vector<1x128xf32>
      %10 = vector.broadcast %9 : vector<1x128xf32> to vector<512x128xf32>
      %11 = arith.mulf %2, %10 : vector<512x128xf32>
      %c0_7 = arith.constant 0 : index
      %c0_8 = arith.constant 0 : index
      %12 = vector.load %arg10[%c0_7, %c0_8] : memref<1x128xf32, #tpu.memory_space<vmem>>, vector<1x128xf32>
      %13 = vector.broadcast %12 : vector<1x128xf32> to vector<512x128xf32>
      %14 = arith.addf %11, %13 : vector<512x128xf32>
      %cst_9 = arith.constant 3.000000e+00 : f32
      %15 = vector.broadcast %cst_9 : f32 to vector<512x128xf32>
      %16 = arith.addf %14, %15 : vector<512x128xf32>
      %cst_10 = arith.constant 0.000000e+00 : f32
      %cst_11 = arith.constant 6.000000e+00 : f32
      %17 = vector.broadcast %cst_10 : f32 to vector<512x128xf32>
      %18 = arith.maximumf %17, %16 : vector<512x128xf32>
      %19 = vector.broadcast %cst_11 : f32 to vector<512x128xf32>
      %20 = arith.minimumf %19, %18 : vector<512x128xf32>
      %21 = arith.mulf %14, %20 : vector<512x128xf32>
      %cst_12 = arith.constant 0.166666672 : f32
      %22 = vector.broadcast %cst_12 : f32 to vector<512x128xf32>
      %23 = arith.mulf %21, %22 : vector<512x128xf32>
      %24 = arith.truncf %23 : vector<512x128xf32> to vector<512x128xbf16>
      %c0_13 = arith.constant 0 : index
      %c0_14 = arith.constant 0 : index
      %25 = vector.load %arg6[%c0_13, %c0_14] : memref<512x128xbf16, #tpu.memory_space<vmem>>, vector<512x128xbf16>
      tpu.vector_store %arg6[%c0_13, %c0_14], %24 {strides = array<i32>} : memref<512x128xbf16, #tpu.memory_space<vmem>>, vector<512x128xbf16>,
    } else {
    }
    return
  }
  func.func @transform_0(%arg0: i32, %arg1: i32) -> (i32, i32) {
    %c0_i32 = arith.constant 0 : i32
    %c0_i32_0 = arith.constant 0 : i32
    return %arg1, %c0_i32 : i32, i32
  }
  func.func @transform_1(%arg0: i32, %arg1: i32) -> (i32, i32) {
    %c0_i32 = arith.constant 0 : i32
    %c0_i32_0 = arith.constant 0 : i32
    %c0_i32_1 = arith.constant 0 : i32
    return %c0_i32, %c0_i32_0 : i32, i32
  }
  func.func @transform_2(%arg0: i32, %arg1: i32) -> (i32, i32) {
    %c0_i32 = arith.constant 0 : i32
    %c0_i32_0 = arith.constant 0 : i32
    %c0_i32_1 = arith.constant 0 : i32
    return %c0_i32, %c0_i32_0 : i32, i32
  }
  func.func @transform_3(%arg0: i32, %arg1: i32) -> (i32, i32) {
    %c0_i32 = arith.constant 0 : i32
    %c0_i32_0 = arith.constant 0 : i32
    %c0_i32_1 = arith.constant 0 : i32
    return %c0_i32, %c0_i32_0 : i32, i32
  }
  func.func @transform_4(%arg0: i32, %arg1: i32) -> (i32, i32) {
    %0 = arith.muli %arg1, %arg0 : i32
    %c0_i32 = arith.constant 0 : i32
    %c0_i32_0 = arith.constant 0 : i32
    return %0, %c0_i32 : i32, i32
  }
}

module attributes {stable_mosaic.version = 11 : i64} {
  func.func @_conv1x1_bn_kernel(%arg0: i32, %arg1: i32, %arg2: memref<128x128xbf16, #tpu.memory_space<vmem>>, %arg3: memref<128x128xbf16, #tpu.memory_space<vmem>>, %arg4: memref<1x128xf32, #tpu.memory_space<vmem>>, %arg5: memref<1x128xf32, #tpu.memory_space<vmem>>, %arg6: memref<128x128xbf16, #tpu.memory_space<vmem>>, %arg7: memref<1x128xf32, #tpu.memory_space<vmem>>, %arg8: memref<1x128xf32, #tpu.memory_space<vmem>>, %arg9: memref<1x128xf32, #tpu.memory_space<vmem>>, %arg10: memref<1x128xf32, #tpu.memory_space<vmem>>) attributes {dimension_semantics = [#tpu.dimension_semantics<arbitrary>, #tpu.dimension_semantics<arbitrary>], iteration_bounds = array<i64: 2, 1>, scalar_prefetch = 0 : i64, scratch_operands = 4 : i64, tpu.core_type = #tpu.core_type<tc>, window_params = [{transform_indices = @transform_0, window_bounds = array<i64: 128, 128>}, {pipeline_mode = #tpu.pipeline_mode<synchronous>, transform_indices = @transform_1, window_bounds = array<i64: 128, 128>}, {pipeline_mode = #tpu.pipeline_mode<synchronous>, transform_indices = @transform_2, window_bounds = array<i64: 1, 128>}, {pipeline_mode = #tpu.pipeline_mode<synchronous>, transform_indices = @transform_3, window_bounds = array<i64: 1, 128>}, {transform_indices = @transform_4, window_bounds = array<i64: 128, 128>}]} {
    %c0 = arith.constant 0 : index
    %c0_0 = arith.constant 0 : index
    %0 = vector.load %arg2[%c0, %c0_0] : memref<128x128xbf16, #tpu.memory_space<vmem>>, vector<128x128xbf16>
    %c0_1 = arith.constant 0 : index
    %c0_2 = arith.constant 0 : index
    %1 = vector.load %arg3[%c0_1, %c0_2] : memref<128x128xbf16, #tpu.memory_space<vmem>>, vector<128x128xbf16>
    %cst = arith.constant dense<0.000000e+00> : vector<128x128xf32>
    %2 = tpu.matmul %0, %1, %cst {dimension_numbers = #tpu.dot_dimension_numbers<[1], [0], [0], [1], [0, 0, 1, 1], [], []>} : vector<128x128xbf16>, vector<128x128xbf16>, vector<128x128xf32> -> vector<128x128xf32>
    %c0_i32 = arith.constant 0 : i32
    %3 = arith.cmpi eq, %arg0, %c0_i32 : i32
    %4 = arith.extui %3 : i1 to i32
    %c0_i32_3 = arith.constant 0 : i32
    %5 = arith.cmpi ne, %4, %c0_i32_3 : i32
    scf.if %5 {
      %c0_i32_5 = arith.constant 0 : i32
      %9 = arith.cmpi eq, %arg1, %c0_i32_5 : i32
      %10 = arith.extui %9 : i1 to i32
      %c0_i32_6 = arith.constant 0 : i32
      %11 = arith.cmpi ne, %10, %c0_i32_6 : i32
      scf.if %11 {
        %cst_21 = arith.constant 0.000000e+00 : f32
        %36 = vector.broadcast %cst_21 : f32 to vector<1x128xf32>
        %c0_22 = arith.constant 0 : index
        %c0_23 = arith.constant 0 : index
        %37 = vector.load %arg7[%c0_22, %c0_23] : memref<1x128xf32, #tpu.memory_space<vmem>>, vector<1x128xf32>
        tpu.vector_store %arg7[%c0_22, %c0_23], %36 {strides = array<i32>} : memref<1x128xf32, #tpu.memory_space<vmem>>, vector<1x128xf32>,
        %cst_24 = arith.constant 0.000000e+00 : f32
        %38 = vector.broadcast %cst_24 : f32 to vector<1x128xf32>
        %c0_25 = arith.constant 0 : index
        %c0_26 = arith.constant 0 : index
        %39 = vector.load %arg8[%c0_25, %c0_26] : memref<1x128xf32, #tpu.memory_space<vmem>>, vector<1x128xf32>
        tpu.vector_store %arg8[%c0_25, %c0_26], %38 {strides = array<i32>} : memref<1x128xf32, #tpu.memory_space<vmem>>, vector<1x128xf32>,
      } else {
      }
      %c128_i32 = arith.constant 128 : i32
      %12 = arith.muli %arg1, %c128_i32 : i32
      %13 = tpu.iota {dimensions = array<i32: 0>} : vector<128x1xi32>
      %14 = vector.broadcast %12 : i32 to vector<128x1xi32>
      %15 = arith.addi %14, %13 : vector<128x1xi32>
      %c128_i32_7 = arith.constant 128 : i32
      %16 = vector.broadcast %c128_i32_7 : i32 to vector<128x1xi32>
      %17 = arith.cmpi slt, %15, %16 : vector<128x1xi32>
      %cst_8 = arith.constant 0.000000e+00 : f32
      %18 = vector.shape_cast %17 : vector<128x1xi1> to vector<128x1xi1>
      %19 = vector.broadcast %18 : vector<128x1xi1> to vector<128x128xi1>
      %20 = vector.broadcast %cst_8 : f32 to vector<128x128xf32>
      %21 = arith.select %19, %2, %20 : vector<128x128xi1>, vector<128x128xf32>
      %c0_9 = arith.constant 0 : index
      %c0_10 = arith.constant 0 : index
      %22 = vector.load %arg7[%c0_9, %c0_10] : memref<1x128xf32, #tpu.memory_space<vmem>>, vector<1x128xf32>
      %cst_11 = arith.constant dense<0.000000e+00> : vector<128xf32>
      %23 = vector.multi_reduction <add>, %21, %cst_11 [0] : vector<128x128xf32> to vector<128xf32>
      %24 = vector.shape_cast %23 : vector<128xf32> to vector<1x128xf32>
      %25 = arith.addf %22, %24 : vector<1x128xf32>
      %c0_12 = arith.constant 0 : index
      %c0_13 = arith.constant 0 : index
      %26 = vector.load %arg7[%c0_12, %c0_13] : memref<1x128xf32, #tpu.memory_space<vmem>>, vector<1x128xf32>
      tpu.vector_store %arg7[%c0_12, %c0_13], %25 {strides = array<i32>} : memref<1x128xf32, #tpu.memory_space<vmem>>, vector<1x128xf32>,
      %c0_14 = arith.constant 0 : index
      %c0_15 = arith.constant 0 : index
      %27 = vector.load %arg8[%c0_14, %c0_15] : memref<1x128xf32, #tpu.memory_space<vmem>>, vector<1x128xf32>
      %28 = arith.mulf %21, %21 : vector<128x128xf32>
      %cst_16 = arith.constant dense<0.000000e+00> : vector<128xf32>
      %29 = vector.multi_reduction <add>, %28, %cst_16 [0] : vector<128x128xf32> to vector<128xf32>
      %30 = vector.shape_cast %29 : vector<128xf32> to vector<1x128xf32>
      %31 = arith.addf %27, %30 : vector<1x128xf32>
      %c0_17 = arith.constant 0 : index
      %c0_18 = arith.constant 0 : index
      %32 = vector.load %arg8[%c0_17, %c0_18] : memref<1x128xf32, #tpu.memory_space<vmem>>, vector<1x128xf32>
      tpu.vector_store %arg8[%c0_17, %c0_18], %31 {strides = array<i32>} : memref<1x128xf32, #tpu.memory_space<vmem>>, vector<1x128xf32>,
      %c0_i32_19 = arith.constant 0 : i32
      %33 = arith.cmpi eq, %arg1, %c0_i32_19 : i32
      %34 = arith.extui %33 : i1 to i32
      %c0_i32_20 = arith.constant 0 : i32
      %35 = arith.cmpi ne, %34, %c0_i32_20 : i32
      scf.if %35 {
        %c0_21 = arith.constant 0 : index
        %c0_22 = arith.constant 0 : index
        %36 = vector.load %arg7[%c0_21, %c0_22] : memref<1x128xf32, #tpu.memory_space<vmem>>, vector<1x128xf32>
        %cst_23 = arith.constant 7.812500e-03 : f32
        %37 = vector.broadcast %cst_23 : f32 to vector<1x128xf32>
        %38 = arith.mulf %36, %37 : vector<1x128xf32>
        %c0_24 = arith.constant 0 : index
        %c0_25 = arith.constant 0 : index
        %39 = vector.load %arg8[%c0_24, %c0_25] : memref<1x128xf32, #tpu.memory_space<vmem>>, vector<1x128xf32>
        %cst_26 = arith.constant 7.812500e-03 : f32
        %40 = vector.broadcast %cst_26 : f32 to vector<1x128xf32>
        %41 = arith.mulf %39, %40 : vector<1x128xf32>
        %42 = arith.mulf %38, %38 : vector<1x128xf32>
        %43 = arith.subf %41, %42 : vector<1x128xf32>
        %cst_27 = arith.constant 0.000000e+00 : f32
        %44 = vector.broadcast %cst_27 : f32 to vector<1x128xf32>
        %45 = arith.maximumf %43, %44 : vector<1x128xf32>
        %c0_28 = arith.constant 0 : index
        %c0_29 = arith.constant 0 : index
        %46 = vector.load %arg4[%c0_28, %c0_29] : memref<1x128xf32, #tpu.memory_space<vmem>>, vector<1x128xf32>
        %cst_30 = arith.constant 1.000000e-03 : f32
        %47 = vector.broadcast %cst_30 : f32 to vector<1x128xf32>
        %48 = arith.addf %45, %47 : vector<1x128xf32>
        %49 = math.rsqrt %48 : vector<1x128xf32>
        %50 = arith.mulf %46, %49 : vector<1x128xf32>
        %c0_31 = arith.constant 0 : index
        %c0_32 = arith.constant 0 : index
        %51 = vector.load %arg9[%c0_31, %c0_32] : memref<1x128xf32, #tpu.memory_space<vmem>>, vector<1x128xf32>
        tpu.vector_store %arg9[%c0_31, %c0_32], %50 {strides = array<i32>} : memref<1x128xf32, #tpu.memory_space<vmem>>, vector<1x128xf32>,
        %c0_33 = arith.constant 0 : index
        %c0_34 = arith.constant 0 : index
        %52 = vector.load %arg5[%c0_33, %c0_34] : memref<1x128xf32, #tpu.memory_space<vmem>>, vector<1x128xf32>
        %53 = arith.mulf %38, %50 : vector<1x128xf32>
        %54 = arith.subf %52, %53 : vector<1x128xf32>
        %c0_35 = arith.constant 0 : index
        %c0_36 = arith.constant 0 : index
        %55 = vector.load %arg10[%c0_35, %c0_36] : memref<1x128xf32, #tpu.memory_space<vmem>>, vector<1x128xf32>
        tpu.vector_store %arg10[%c0_35, %c0_36], %54 {strides = array<i32>} : memref<1x128xf32, #tpu.memory_space<vmem>>, vector<1x128xf32>,
      } else {
      }
    } else {
    }
    %c1_i32 = arith.constant 1 : i32
    %6 = arith.cmpi eq, %arg0, %c1_i32 : i32
    %7 = arith.extui %6 : i1 to i32
    %c0_i32_4 = arith.constant 0 : i32
    %8 = arith.cmpi ne, %7, %c0_i32_4 : i32
    scf.if %8 {
      %c0_5 = arith.constant 0 : index
      %c0_6 = arith.constant 0 : index
      %9 = vector.load %arg9[%c0_5, %c0_6] : memref<1x128xf32, #tpu.memory_space<vmem>>, vector<1x128xf32>
      %10 = vector.broadcast %9 : vector<1x128xf32> to vector<128x128xf32>
      %11 = arith.mulf %2, %10 : vector<128x128xf32>
      %c0_7 = arith.constant 0 : index
      %c0_8 = arith.constant 0 : index
      %12 = vector.load %arg10[%c0_7, %c0_8] : memref<1x128xf32, #tpu.memory_space<vmem>>, vector<1x128xf32>
      %13 = vector.broadcast %12 : vector<1x128xf32> to vector<128x128xf32>
      %14 = arith.addf %11, %13 : vector<128x128xf32>
      %cst_9 = arith.constant 3.000000e+00 : f32
      %15 = vector.broadcast %cst_9 : f32 to vector<128x128xf32>
      %16 = arith.addf %14, %15 : vector<128x128xf32>
      %cst_10 = arith.constant 0.000000e+00 : f32
      %cst_11 = arith.constant 6.000000e+00 : f32
      %17 = vector.broadcast %cst_10 : f32 to vector<128x128xf32>
      %18 = arith.maximumf %17, %16 : vector<128x128xf32>
      %19 = vector.broadcast %cst_11 : f32 to vector<128x128xf32>
      %20 = arith.minimumf %19, %18 : vector<128x128xf32>
      %21 = arith.mulf %14, %20 : vector<128x128xf32>
      %cst_12 = arith.constant 0.166666672 : f32
      %22 = vector.broadcast %cst_12 : f32 to vector<128x128xf32>
      %23 = arith.mulf %21, %22 : vector<128x128xf32>
      %24 = arith.truncf %23 : vector<128x128xf32> to vector<128x128xbf16>
      %c0_13 = arith.constant 0 : index
      %c0_14 = arith.constant 0 : index
      %25 = vector.load %arg6[%c0_13, %c0_14] : memref<128x128xbf16, #tpu.memory_space<vmem>>, vector<128x128xbf16>
      tpu.vector_store %arg6[%c0_13, %c0_14], %24 {strides = array<i32>} : memref<128x128xbf16, #tpu.memory_space<vmem>>, vector<128x128xbf16>,
    } else {
    }
    return
  }
  func.func @transform_0(%arg0: i32, %arg1: i32) -> (i32, i32) {
    %c0_i32 = arith.constant 0 : i32
    %c0_i32_0 = arith.constant 0 : i32
    return %arg1, %c0_i32 : i32, i32
  }
  func.func @transform_1(%arg0: i32, %arg1: i32) -> (i32, i32) {
    %c0_i32 = arith.constant 0 : i32
    %c0_i32_0 = arith.constant 0 : i32
    %c0_i32_1 = arith.constant 0 : i32
    return %c0_i32, %c0_i32_0 : i32, i32
  }
  func.func @transform_2(%arg0: i32, %arg1: i32) -> (i32, i32) {
    %c0_i32 = arith.constant 0 : i32
    %c0_i32_0 = arith.constant 0 : i32
    %c0_i32_1 = arith.constant 0 : i32
    return %c0_i32, %c0_i32_0 : i32, i32
  }
  func.func @transform_3(%arg0: i32, %arg1: i32) -> (i32, i32) {
    %c0_i32 = arith.constant 0 : i32
    %c0_i32_0 = arith.constant 0 : i32
    %c0_i32_1 = arith.constant 0 : i32
    return %c0_i32, %c0_i32_0 : i32, i32
  }
  func.func @transform_4(%arg0: i32, %arg1: i32) -> (i32, i32) {
    %0 = arith.muli %arg1, %arg0 : i32
    %c0_i32 = arith.constant 0 : i32
    %c0_i32_0 = arith.constant 0 : i32
    return %0, %c0_i32 : i32, i32
  }
}

module attributes {stable_mosaic.version = 11 : i64} {
  func.func @_dw_bn_se_kernel(%arg0: i32, %arg1: i32, %arg2: memref<4x1x9x9x128xbf16, #tpu.memory_space<vmem>>, %arg3: memref<9x128xf32, #tpu.memory_space<vmem>>, %arg4: memref<1x128xf32, #tpu.memory_space<vmem>>, %arg5: memref<1x128xf32, #tpu.memory_space<vmem>>, %arg6: memref<128x128xbf16, #tpu.memory_space<vmem>>, %arg7: memref<1x128xf32, #tpu.memory_space<vmem>>, %arg8: memref<128x128xbf16, #tpu.memory_space<vmem>>, %arg9: memref<1x128xf32, #tpu.memory_space<vmem>>, %arg10: memref<1x8x8x128xbf16, #tpu.memory_space<vmem>>, %arg11: memref<1x128xf32, #tpu.memory_space<vmem>>, %arg12: memref<1x128xf32, #tpu.memory_space<vmem>>, %arg13: memref<1x128xf32, #tpu.memory_space<vmem>>, %arg14: memref<1x128xf32, #tpu.memory_space<vmem>>) attributes {dimension_semantics = [#tpu.dimension_semantics<arbitrary>, #tpu.dimension_semantics<arbitrary>], iteration_bounds = array<i64: 2, 2>, scalar_prefetch = 0 : i64, scratch_operands = 4 : i64, tpu.core_type = #tpu.core_type<tc>, window_params = [{transform_indices = @transform_0, window_bounds = array<i64: 4, 1, 9, 9, 128>}, {pipeline_mode = #tpu.pipeline_mode<synchronous>, transform_indices = @transform_1, window_bounds = array<i64: 9, 128>}, {pipeline_mode = #tpu.pipeline_mode<synchronous>, transform_indices = @transform_2, window_bounds = array<i64: 1, 128>}, {pipeline_mode = #tpu.pipeline_mode<synchronous>, transform_indices = @transform_3, window_bounds = array<i64: 1, 128>}, {pipeline_mode = #tpu.pipeline_mode<synchronous>, transform_indices = @transform_4, window_bounds = array<i64: 128, 128>}, {pipeline_mode = #tpu.pipeline_mode<synchronous>, transform_indices = @transform_5, window_bounds = array<i64: 1, 128>}, {pipeline_mode = #tpu.pipeline_mode<synchronous>, transform_indices = @transform_6, window_bounds = array<i64: 128, 128>}, {pipeline_mode = #tpu.pipeline_mode<synchronous>, transform_indices = @transform_7, window_bounds = array<i64: 1, 128>}, {transform_indices = @transform_8, window_bounds = array<i64: 1, 8, 8, 128>}]} {
    %c0 = arith.constant 0 : index
    %c0_0 = arith.constant 0 : index
    %0 = vector.load %arg3[%c0, %c0_0] : memref<9x128xf32, #tpu.memory_space<vmem>>, vector<9x128xf32>
    %cst = arith.constant 0.000000e+00 : f32
    %1 = vector.broadcast %cst : f32 to vector<8x8x128xf32>
    %c0_1 = arith.constant 0 : index
    %c0_2 = arith.constant 0 : index
    %c0_3 = arith.constant 0 : index
    %c0_4 = arith.constant 0 : index
    %c0_5 = arith.constant 0 : index
    %2 = vector.load %arg2[%c0_1, %c0_2, %c0_3, %c0_4, %c0_5] : memref<4x1x9x9x128xbf16, #tpu.memory_space<vmem>>, vector<1x1x8x8x128xbf16>
    %3 = vector.shape_cast %2 : vector<1x1x8x8x128xbf16> to vector<8x8x128xbf16>
    %4 = arith.extf %3 : vector<8x8x128xbf16> to vector<8x8x128xf32>
    %5 = vector.extract_strided_slice %0 {offsets = [0, 0], sizes = [1, 128], strides = [1, 1]} : vector<9x128xf32> to vector<1x128xf32>
    %6 = vector.shape_cast %5 : vector<1x128xf32> to vector<128xf32>
    %7 = vector.shape_cast %6 : vector<128xf32> to vector<1x1x128xf32>
    %8 = vector.broadcast %7 : vector<1x1x128xf32> to vector<8x8x128xf32>
    %9 = arith.mulf %4, %8 : vector<8x8x128xf32>
    %10 = arith.addf %1, %9 : vector<8x8x128xf32>
    %c1 = arith.constant 1 : index
    %c0_6 = arith.constant 0 : index
    %c0_7 = arith.constant 0 : index
    %c0_8 = arith.constant 0 : index
    %c0_9 = arith.constant 0 : index
    %11 = vector.load %arg2[%c1, %c0_6, %c0_7, %c0_8, %c0_9] : memref<4x1x9x9x128xbf16, #tpu.memory_space<vmem>>, vector<1x1x8x8x128xbf16>
    %12 = vector.shape_cast %11 : vector<1x1x8x8x128xbf16> to vector<8x8x128xbf16>
    %13 = arith.extf %12 : vector<8x8x128xbf16> to vector<8x8x128xf32>
    %14 = vector.extract_strided_slice %0 {offsets = [1, 0], sizes = [1, 128], strides = [1, 1]} : vector<9x128xf32> to vector<1x128xf32>
    %15 = vector.shape_cast %14 : vector<1x128xf32> to vector<128xf32>
    %16 = vector.shape_cast %15 : vector<128xf32> to vector<1x1x128xf32>
    %17 = vector.broadcast %16 : vector<1x1x128xf32> to vector<8x8x128xf32>
    %18 = arith.mulf %13, %17 : vector<8x8x128xf32>
    %19 = arith.addf %10, %18 : vector<8x8x128xf32>
    %c0_10 = arith.constant 0 : index
    %c0_11 = arith.constant 0 : index
    %c0_12 = arith.constant 0 : index
    %c1_13 = arith.constant 1 : index
    %c0_14 = arith.constant 0 : index
    %20 = vector.load %arg2[%c0_10, %c0_11, %c0_12, %c1_13, %c0_14] : memref<4x1x9x9x128xbf16, #tpu.memory_space<vmem>>, vector<1x1x8x8x128xbf16>
    %21 = vector.shape_cast %20 : vector<1x1x8x8x128xbf16> to vector<8x8x128xbf16>
    %22 = arith.extf %21 : vector<8x8x128xbf16> to vector<8x8x128xf32>
    %23 = vector.extract_strided_slice %0 {offsets = [2, 0], sizes = [1, 128], strides = [1, 1]} : vector<9x128xf32> to vector<1x128xf32>
    %24 = vector.shape_cast %23 : vector<1x128xf32> to vector<128xf32>
    %25 = vector.shape_cast %24 : vector<128xf32> to vector<1x1x128xf32>
    %26 = vector.broadcast %25 : vector<1x1x128xf32> to vector<8x8x128xf32>
    %27 = arith.mulf %22, %26 : vector<8x8x128xf32>
    %28 = arith.addf %19, %27 : vector<8x8x128xf32>
    %c2 = arith.constant 2 : index
    %c0_15 = arith.constant 0 : index
    %c0_16 = arith.constant 0 : index
    %c0_17 = arith.constant 0 : index
    %c0_18 = arith.constant 0 : index
    %29 = vector.load %arg2[%c2, %c0_15, %c0_16, %c0_17, %c0_18] : memref<4x1x9x9x128xbf16, #tpu.memory_space<vmem>>, vector<1x1x8x8x128xbf16>
    %30 = vector.shape_cast %29 : vector<1x1x8x8x128xbf16> to vector<8x8x128xbf16>
    %31 = arith.extf %30 : vector<8x8x128xbf16> to vector<8x8x128xf32>
    %32 = vector.extract_strided_slice %0 {offsets = [3, 0], sizes = [1, 128], strides = [1, 1]} : vector<9x128xf32> to vector<1x128xf32>
    %33 = vector.shape_cast %32 : vector<1x128xf32> to vector<128xf32>
    %34 = vector.shape_cast %33 : vector<128xf32> to vector<1x1x128xf32>
    %35 = vector.broadcast %34 : vector<1x1x128xf32> to vector<8x8x128xf32>
    %36 = arith.mulf %31, %35 : vector<8x8x128xf32>
    %37 = arith.addf %28, %36 : vector<8x8x128xf32>
    %c3 = arith.constant 3 : index
    %c0_19 = arith.constant 0 : index
    %c0_20 = arith.constant 0 : index
    %c0_21 = arith.constant 0 : index
    %c0_22 = arith.constant 0 : index
    %38 = vector.load %arg2[%c3, %c0_19, %c0_20, %c0_21, %c0_22] : memref<4x1x9x9x128xbf16, #tpu.memory_space<vmem>>, vector<1x1x8x8x128xbf16>
    %39 = vector.shape_cast %38 : vector<1x1x8x8x128xbf16> to vector<8x8x128xbf16>
    %40 = arith.extf %39 : vector<8x8x128xbf16> to vector<8x8x128xf32>
    %41 = vector.extract_strided_slice %0 {offsets = [4, 0], sizes = [1, 128], strides = [1, 1]} : vector<9x128xf32> to vector<1x128xf32>
    %42 = vector.shape_cast %41 : vector<1x128xf32> to vector<128xf32>
    %43 = vector.shape_cast %42 : vector<128xf32> to vector<1x1x128xf32>
    %44 = vector.broadcast %43 : vector<1x1x128xf32> to vector<8x8x128xf32>
    %45 = arith.mulf %40, %44 : vector<8x8x128xf32>
    %46 = arith.addf %37, %45 : vector<8x8x128xf32>
    %c2_23 = arith.constant 2 : index
    %c0_24 = arith.constant 0 : index
    %c0_25 = arith.constant 0 : index
    %c1_26 = arith.constant 1 : index
    %c0_27 = arith.constant 0 : index
    %47 = vector.load %arg2[%c2_23, %c0_24, %c0_25, %c1_26, %c0_27] : memref<4x1x9x9x128xbf16, #tpu.memory_space<vmem>>, vector<1x1x8x8x128xbf16>
    %48 = vector.shape_cast %47 : vector<1x1x8x8x128xbf16> to vector<8x8x128xbf16>
    %49 = arith.extf %48 : vector<8x8x128xbf16> to vector<8x8x128xf32>
    %50 = vector.extract_strided_slice %0 {offsets = [5, 0], sizes = [1, 128], strides = [1, 1]} : vector<9x128xf32> to vector<1x128xf32>
    %51 = vector.shape_cast %50 : vector<1x128xf32> to vector<128xf32>
    %52 = vector.shape_cast %51 : vector<128xf32> to vector<1x1x128xf32>
    %53 = vector.broadcast %52 : vector<1x1x128xf32> to vector<8x8x128xf32>
    %54 = arith.mulf %49, %53 : vector<8x8x128xf32>
    %55 = arith.addf %46, %54 : vector<8x8x128xf32>
    %c0_28 = arith.constant 0 : index
    %c0_29 = arith.constant 0 : index
    %c1_30 = arith.constant 1 : index
    %c0_31 = arith.constant 0 : index
    %c0_32 = arith.constant 0 : index
    %56 = vector.load %arg2[%c0_28, %c0_29, %c1_30, %c0_31, %c0_32] : memref<4x1x9x9x128xbf16, #tpu.memory_space<vmem>>, vector<1x1x8x8x128xbf16>
    %57 = vector.shape_cast %56 : vector<1x1x8x8x128xbf16> to vector<8x8x128xbf16>
    %58 = arith.extf %57 : vector<8x8x128xbf16> to vector<8x8x128xf32>
    %59 = vector.extract_strided_slice %0 {offsets = [6, 0], sizes = [1, 128], strides = [1, 1]} : vector<9x128xf32> to vector<1x128xf32>
    %60 = vector.shape_cast %59 : vector<1x128xf32> to vector<128xf32>
    %61 = vector.shape_cast %60 : vector<128xf32> to vector<1x1x128xf32>
    %62 = vector.broadcast %61 : vector<1x1x128xf32> to vector<8x8x128xf32>
    %63 = arith.mulf %58, %62 : vector<8x8x128xf32>
    %64 = arith.addf %55, %63 : vector<8x8x128xf32>
    %c1_33 = arith.constant 1 : index
    %c0_34 = arith.constant 0 : index
    %c1_35 = arith.constant 1 : index
    %c0_36 = arith.constant 0 : index
    %c0_37 = arith.constant 0 : index
    %65 = vector.load %arg2[%c1_33, %c0_34, %c1_35, %c0_36, %c0_37] : memref<4x1x9x9x128xbf16, #tpu.memory_space<vmem>>, vector<1x1x8x8x128xbf16>
    %66 = vector.shape_cast %65 : vector<1x1x8x8x128xbf16> to vector<8x8x128xbf16>
    %67 = arith.extf %66 : vector<8x8x128xbf16> to vector<8x8x128xf32>
    %68 = vector.extract_strided_slice %0 {offsets = [7, 0], sizes = [1, 128], strides = [1, 1]} : vector<9x128xf32> to vector<1x128xf32>
    %69 = vector.shape_cast %68 : vector<1x128xf32> to vector<128xf32>
    %70 = vector.shape_cast %69 : vector<128xf32> to vector<1x1x128xf32>
    %71 = vector.broadcast %70 : vector<1x1x128xf32> to vector<8x8x128xf32>
    %72 = arith.mulf %67, %71 : vector<8x8x128xf32>
    %73 = arith.addf %64, %72 : vector<8x8x128xf32>
    %c0_38 = arith.constant 0 : index
    %c0_39 = arith.constant 0 : index
    %c1_40 = arith.constant 1 : index
    %c1_41 = arith.constant 1 : index
    %c0_42 = arith.constant 0 : index
    %74 = vector.load %arg2[%c0_38, %c0_39, %c1_40, %c1_41, %c0_42] : memref<4x1x9x9x128xbf16, #tpu.memory_space<vmem>>, vector<1x1x8x8x128xbf16>
    %75 = vector.shape_cast %74 : vector<1x1x8x8x128xbf16> to vector<8x8x128xbf16>
    %76 = arith.extf %75 : vector<8x8x128xbf16> to vector<8x8x128xf32>
    %77 = vector.extract_strided_slice %0 {offsets = [8, 0], sizes = [1, 128], strides = [1, 1]} : vector<9x128xf32> to vector<1x128xf32>
    %78 = vector.shape_cast %77 : vector<1x128xf32> to vector<128xf32>
    %79 = vector.shape_cast %78 : vector<128xf32> to vector<1x1x128xf32>
    %80 = vector.broadcast %79 : vector<1x1x128xf32> to vector<8x8x128xf32>
    %81 = arith.mulf %76, %80 : vector<8x8x128xf32>
    %82 = arith.addf %73, %81 : vector<8x8x128xf32>
    %c0_i32 = arith.constant 0 : i32
    %83 = arith.cmpi eq, %arg0, %c0_i32 : i32
    %84 = arith.extui %83 : i1 to i32
    %c0_i32_43 = arith.constant 0 : i32
    %85 = arith.cmpi ne, %84, %c0_i32_43 : i32
    scf.if %85 {
      %c0_i32_45 = arith.constant 0 : i32
      %89 = arith.cmpi eq, %arg1, %c0_i32_45 : i32
      %90 = arith.extui %89 : i1 to i32
      %c0_i32_46 = arith.constant 0 : i32
      %91 = arith.cmpi ne, %90, %c0_i32_46 : i32
      scf.if %91 {
        %cst_59 = arith.constant 0.000000e+00 : f32
        %106 = vector.broadcast %cst_59 : f32 to vector<1x128xf32>
        %c0_60 = arith.constant 0 : index
        %c0_61 = arith.constant 0 : index
        %107 = vector.load %arg11[%c0_60, %c0_61] : memref<1x128xf32, #tpu.memory_space<vmem>>, vector<1x128xf32>
        tpu.vector_store %arg11[%c0_60, %c0_61], %106 {strides = array<i32>} : memref<1x128xf32, #tpu.memory_space<vmem>>, vector<1x128xf32>,
        %cst_62 = arith.constant 0.000000e+00 : f32
        %108 = vector.broadcast %cst_62 : f32 to vector<1x128xf32>
        %c0_63 = arith.constant 0 : index
        %c0_64 = arith.constant 0 : index
        %109 = vector.load %arg12[%c0_63, %c0_64] : memref<1x128xf32, #tpu.memory_space<vmem>>, vector<1x128xf32>
        tpu.vector_store %arg12[%c0_63, %c0_64], %108 {strides = array<i32>} : memref<1x128xf32, #tpu.memory_space<vmem>>, vector<1x128xf32>,
      } else {
      }
      %c0_47 = arith.constant 0 : index
      %c0_48 = arith.constant 0 : index
      %92 = vector.load %arg11[%c0_47, %c0_48] : memref<1x128xf32, #tpu.memory_space<vmem>>, vector<1x128xf32>
      %cst_49 = arith.constant dense<0.000000e+00> : vector<128xf32>
      %93 = vector.multi_reduction <add>, %82, %cst_49 [0, 1] : vector<8x8x128xf32> to vector<128xf32>
      %94 = vector.shape_cast %93 : vector<128xf32> to vector<1x128xf32>
      %95 = arith.addf %92, %94 : vector<1x128xf32>
      %c0_50 = arith.constant 0 : index
      %c0_51 = arith.constant 0 : index
      %96 = vector.load %arg11[%c0_50, %c0_51] : memref<1x128xf32, #tpu.memory_space<vmem>>, vector<1x128xf32>
      tpu.vector_store %arg11[%c0_50, %c0_51], %95 {strides = array<i32>} : memref<1x128xf32, #tpu.memory_space<vmem>>, vector<1x128xf32>,
      %c0_52 = arith.constant 0 : index
      %c0_53 = arith.constant 0 : index
      %97 = vector.load %arg12[%c0_52, %c0_53] : memref<1x128xf32, #tpu.memory_space<vmem>>, vector<1x128xf32>
      %98 = arith.mulf %82, %82 : vector<8x8x128xf32>
      %cst_54 = arith.constant dense<0.000000e+00> : vector<128xf32>
      %99 = vector.multi_reduction <add>, %98, %cst_54 [0, 1] : vector<8x8x128xf32> to vector<128xf32>
      %100 = vector.shape_cast %99 : vector<128xf32> to vector<1x128xf32>
      %101 = arith.addf %97, %100 : vector<1x128xf32>
      %c0_55 = arith.constant 0 : index
      %c0_56 = arith.constant 0 : index
      %102 = vector.load %arg12[%c0_55, %c0_56] : memref<1x128xf32, #tpu.memory_space<vmem>>, vector<1x128xf32>
      tpu.vector_store %arg12[%c0_55, %c0_56], %101 {strides = array<i32>} : memref<1x128xf32, #tpu.memory_space<vmem>>, vector<1x128xf32>,
      %c1_i32_57 = arith.constant 1 : i32
      %103 = arith.cmpi eq, %arg1, %c1_i32_57 : i32
      %104 = arith.extui %103 : i1 to i32
      %c0_i32_58 = arith.constant 0 : i32
      %105 = arith.cmpi ne, %104, %c0_i32_58 : i32
      scf.if %105 {
        %c0_59 = arith.constant 0 : index
        %c0_60 = arith.constant 0 : index
        %106 = vector.load %arg11[%c0_59, %c0_60] : memref<1x128xf32, #tpu.memory_space<vmem>>, vector<1x128xf32>
        %cst_61 = arith.constant 7.812500e-03 : f32
        %107 = vector.broadcast %cst_61 : f32 to vector<1x128xf32>
        %108 = arith.mulf %106, %107 : vector<1x128xf32>
        %c0_62 = arith.constant 0 : index
        %c0_63 = arith.constant 0 : index
        %109 = vector.load %arg12[%c0_62, %c0_63] : memref<1x128xf32, #tpu.memory_space<vmem>>, vector<1x128xf32>
        %cst_64 = arith.constant 7.812500e-03 : f32
        %110 = vector.broadcast %cst_64 : f32 to vector<1x128xf32>
        %111 = arith.mulf %109, %110 : vector<1x128xf32>
        %112 = arith.mulf %108, %108 : vector<1x128xf32>
        %113 = arith.subf %111, %112 : vector<1x128xf32>
        %cst_65 = arith.constant 0.000000e+00 : f32
        %114 = vector.broadcast %cst_65 : f32 to vector<1x128xf32>
        %115 = arith.maximumf %113, %114 : vector<1x128xf32>
        %c0_66 = arith.constant 0 : index
        %c0_67 = arith.constant 0 : index
        %116 = vector.load %arg4[%c0_66, %c0_67] : memref<1x128xf32, #tpu.memory_space<vmem>>, vector<1x128xf32>
        %cst_68 = arith.constant 1.000000e-03 : f32
        %117 = vector.broadcast %cst_68 : f32 to vector<1x128xf32>
        %118 = arith.addf %115, %117 : vector<1x128xf32>
        %119 = math.rsqrt %118 : vector<1x128xf32>
        %120 = arith.mulf %116, %119 : vector<1x128xf32>
        %c0_69 = arith.constant 0 : index
        %c0_70 = arith.constant 0 : index
        %121 = vector.load %arg13[%c0_69, %c0_70] : memref<1x128xf32, #tpu.memory_space<vmem>>, vector<1x128xf32>
        tpu.vector_store %arg13[%c0_69, %c0_70], %120 {strides = array<i32>} : memref<1x128xf32, #tpu.memory_space<vmem>>, vector<1x128xf32>,
        %c0_71 = arith.constant 0 : index
        %c0_72 = arith.constant 0 : index
        %122 = vector.load %arg5[%c0_71, %c0_72] : memref<1x128xf32, #tpu.memory_space<vmem>>, vector<1x128xf32>
        %123 = arith.mulf %108, %120 : vector<1x128xf32>
        %124 = arith.subf %122, %123 : vector<1x128xf32>
        %c0_73 = arith.constant 0 : index
        %c0_74 = arith.constant 0 : index
        %125 = vector.load %arg14[%c0_73, %c0_74] : memref<1x128xf32, #tpu.memory_space<vmem>>, vector<1x128xf32>
        tpu.vector_store %arg14[%c0_73, %c0_74], %124 {strides = array<i32>} : memref<1x128xf32, #tpu.memory_space<vmem>>, vector<1x128xf32>,
      } else {
      }
    } else {
    }
    %c1_i32 = arith.constant 1 : i32
    %86 = arith.cmpi eq, %arg0, %c1_i32 : i32
    %87 = arith.extui %86 : i1 to i32
    %c0_i32_44 = arith.constant 0 : i32
    %88 = arith.cmpi ne, %87, %c0_i32_44 : i32
    scf.if %88 {
      %c0_45 = arith.constant 0 : index
      %c0_46 = arith.constant 0 : index
      %89 = vector.load %arg13[%c0_45, %c0_46] : memref<1x128xf32, #tpu.memory_space<vmem>>, vector<1x128xf32>
      %90 = vector.shape_cast %89 : vector<1x128xf32> to vector<1x1x128xf32>
      %91 = vector.broadcast %90 : vector<1x1x128xf32> to vector<8x8x128xf32>
      %92 = arith.mulf %82, %91 : vector<8x8x128xf32>
      %c0_47 = arith.constant 0 : index
      %c0_48 = arith.constant 0 : index
      %93 = vector.load %arg14[%c0_47, %c0_48] : memref<1x128xf32, #tpu.memory_space<vmem>>, vector<1x128xf32>
      %94 = vector.shape_cast %93 : vector<1x128xf32> to vector<1x1x128xf32>
      %95 = vector.broadcast %94 : vector<1x1x128xf32> to vector<8x8x128xf32>
      %96 = arith.addf %92, %95 : vector<8x8x128xf32>
      %cst_49 = arith.constant 0.000000e+00 : f32
      %97 = vector.broadcast %cst_49 : f32 to vector<8x8x128xf32>
      %98 = arith.maximumf %96, %97 : vector<8x8x128xf32>
      %cst_50 = arith.constant dense<0.000000e+00> : vector<128xf32>
      %99 = vector.multi_reduction <add>, %98, %cst_50 [0, 1] : vector<8x8x128xf32> to vector<128xf32>
      %100 = vector.shape_cast %99 : vector<128xf32> to vector<1x128xf32>
      %cst_51 = arith.constant 1.562500e-02 : f32
      %101 = vector.broadcast %cst_51 : f32 to vector<1x128xf32>
      %102 = arith.mulf %100, %101 : vector<1x128xf32>
      %103 = arith.truncf %102 : vector<1x128xf32> to vector<1x128xbf16>
      %c0_52 = arith.constant 0 : index
      %c0_53 = arith.constant 0 : index
      %104 = vector.load %arg6[%c0_52, %c0_53] : memref<128x128xbf16, #tpu.memory_space<vmem>>, vector<128x128xbf16>
      %cst_54 = arith.constant dense<0.000000e+00> : vector<1x128xf32>
      %105 = tpu.matmul %103, %104, %cst_54 {dimension_numbers = #tpu.dot_dimension_numbers<[1], [0], [0], [1], [0, 0, 1, 1], [], []>} : vector<1x128xbf16>, vector<128x128xbf16>, vector<1x128xf32> -> vector<1x128xf32>
      %c0_55 = arith.constant 0 : index
      %c0_56 = arith.constant 0 : index
      %106 = vector.load %arg7[%c0_55, %c0_56] : memref<1x128xf32, #tpu.memory_space<vmem>>, vector<1x128xf32>
      %107 = arith.addf %105, %106 : vector<1x128xf32>
      %cst_57 = arith.constant 0.000000e+00 : f32
      %108 = vector.broadcast %cst_57 : f32 to vector<1x128xf32>
      %109 = arith.maximumf %107, %108 : vector<1x128xf32>
      %110 = arith.truncf %109 : vector<1x128xf32> to vector<1x128xbf16>
      %c0_58 = arith.constant 0 : index
      %c0_59 = arith.constant 0 : index
      %111 = vector.load %arg8[%c0_58, %c0_59] : memref<128x128xbf16, #tpu.memory_space<vmem>>, vector<128x128xbf16>
      %cst_60 = arith.constant dense<0.000000e+00> : vector<1x128xf32>
      %112 = tpu.matmul %110, %111, %cst_60 {dimension_numbers = #tpu.dot_dimension_numbers<[1], [0], [0], [1], [0, 0, 1, 1], [], []>} : vector<1x128xbf16>, vector<128x128xbf16>, vector<1x128xf32> -> vector<1x128xf32>
      %c0_61 = arith.constant 0 : index
      %c0_62 = arith.constant 0 : index
      %113 = vector.load %arg9[%c0_61, %c0_62] : memref<1x128xf32, #tpu.memory_space<vmem>>, vector<1x128xf32>
      %114 = arith.addf %112, %113 : vector<1x128xf32>
      %cst_63 = arith.constant 3.000000e+00 : f32
      %115 = vector.broadcast %cst_63 : f32 to vector<1x128xf32>
      %116 = arith.addf %114, %115 : vector<1x128xf32>
      %cst_64 = arith.constant 0.166666672 : f32
      %117 = vector.broadcast %cst_64 : f32 to vector<1x128xf32>
      %118 = arith.mulf %116, %117 : vector<1x128xf32>
      %cst_65 = arith.constant 0.000000e+00 : f32
      %cst_66 = arith.constant 1.000000e+00 : f32
      %119 = vector.broadcast %cst_65 : f32 to vector<1x128xf32>
      %120 = arith.maximumf %119, %118 : vector<1x128xf32>
      %121 = vector.broadcast %cst_66 : f32 to vector<1x128xf32>
      %122 = arith.minimumf %121, %120 : vector<1x128xf32>
      %123 = vector.shape_cast %122 : vector<1x128xf32> to vector<1x1x128xf32>
      %124 = vector.broadcast %123 : vector<1x1x128xf32> to vector<8x8x128xf32>
      %125 = arith.mulf %98, %124 : vector<8x8x128xf32>
      %126 = arith.truncf %125 : vector<8x8x128xf32> to vector<8x8x128xbf16>
      %c0_67 = arith.constant 0 : index
      %c0_68 = arith.constant 0 : index
      %c0_69 = arith.constant 0 : index
      %c0_70 = arith.constant 0 : index
      %127 = vector.load %arg10[%c0_67, %c0_68, %c0_69, %c0_70] : memref<1x8x8x128xbf16, #tpu.memory_space<vmem>>, vector<1x8x8x128xbf16>
      %128 = vector.shape_cast %127 : vector<1x8x8x128xbf16> to vector<8x8x128xbf16>
      %129 = vector.shape_cast %126 : vector<8x8x128xbf16> to vector<1x8x8x128xbf16>
      tpu.vector_store %arg10[%c0_67, %c0_68, %c0_69, %c0_70], %129 {strides = array<i32>} : memref<1x8x8x128xbf16, #tpu.memory_space<vmem>>, vector<1x8x8x128xbf16>,
    } else {
    }
    return
  }
  func.func @transform_0(%arg0: i32, %arg1: i32) -> (i32, i32, i32, i32, i32) {
    %c0_i32 = arith.constant 0 : i32
    %c0_i32_0 = arith.constant 0 : i32
    %c0_i32_1 = arith.constant 0 : i32
    %c0_i32_2 = arith.constant 0 : i32
    %c0_i32_3 = arith.constant 0 : i32
    return %c0_i32, %arg1, %c0_i32_0, %c0_i32_1, %c0_i32_2 : i32, i32, i32, i32, i32
  }
  func.func @transform_1(%arg0: i32, %arg1: i32) -> (i32, i32) {
    %c0_i32 = arith.constant 0 : i32
    %c0_i32_0 = arith.constant 0 : i32
    %c0_i32_1 = arith.constant 0 : i32
    return %c0_i32, %c0_i32_0 : i32, i32
  }
  func.func @transform_2(%arg0: i32, %arg1: i32) -> (i32, i32) {
    %c0_i32 = arith.constant 0 : i32
    %c0_i32_0 = arith.constant 0 : i32
    %c0_i32_1 = arith.constant 0 : i32
    return %c0_i32, %c0_i32_0 : i32, i32
  }
  func.func @transform_3(%arg0: i32, %arg1: i32) -> (i32, i32) {
    %c0_i32 = arith.constant 0 : i32
    %c0_i32_0 = arith.constant 0 : i32
    %c0_i32_1 = arith.constant 0 : i32
    return %c0_i32, %c0_i32_0 : i32, i32
  }
  func.func @transform_4(%arg0: i32, %arg1: i32) -> (i32, i32) {
    %c0_i32 = arith.constant 0 : i32
    %c0_i32_0 = arith.constant 0 : i32
    %c0_i32_1 = arith.constant 0 : i32
    return %c0_i32, %c0_i32_0 : i32, i32
  }
  func.func @transform_5(%arg0: i32, %arg1: i32) -> (i32, i32) {
    %c0_i32 = arith.constant 0 : i32
    %c0_i32_0 = arith.constant 0 : i32
    %c0_i32_1 = arith.constant 0 : i32
    return %c0_i32, %c0_i32_0 : i32, i32
  }
  func.func @transform_6(%arg0: i32, %arg1: i32) -> (i32, i32) {
    %c0_i32 = arith.constant 0 : i32
    %c0_i32_0 = arith.constant 0 : i32
    %c0_i32_1 = arith.constant 0 : i32
    return %c0_i32, %c0_i32_0 : i32, i32
  }
  func.func @transform_7(%arg0: i32, %arg1: i32) -> (i32, i32) {
    %c0_i32 = arith.constant 0 : i32
    %c0_i32_0 = arith.constant 0 : i32
    %c0_i32_1 = arith.constant 0 : i32
    return %c0_i32, %c0_i32_0 : i32, i32
  }
  func.func @transform_8(%arg0: i32, %arg1: i32) -> (i32, i32, i32, i32) {
    %0 = arith.muli %arg1, %arg0 : i32
    %c0_i32 = arith.constant 0 : i32
    %c0_i32_0 = arith.constant 0 : i32
    %c0_i32_1 = arith.constant 0 : i32
    %c0_i32_2 = arith.constant 0 : i32
    return %0, %c0_i32, %c0_i32_0, %c0_i32_1 : i32, i32, i32, i32
  }
}

module attributes {stable_mosaic.version = 11 : i64} {
  func.func @_conv1x1_bn_kernel(%arg0: i32, %arg1: i32, %arg2: memref<128x128xbf16, #tpu.memory_space<vmem>>, %arg3: memref<128x128xbf16, #tpu.memory_space<vmem>>, %arg4: memref<1x128xf32, #tpu.memory_space<vmem>>, %arg5: memref<1x128xf32, #tpu.memory_space<vmem>>, %arg6: memref<128x128xbf16, #tpu.memory_space<vmem>>, %arg7: memref<1x128xf32, #tpu.memory_space<vmem>>, %arg8: memref<1x128xf32, #tpu.memory_space<vmem>>, %arg9: memref<1x128xf32, #tpu.memory_space<vmem>>, %arg10: memref<1x128xf32, #tpu.memory_space<vmem>>) attributes {dimension_semantics = [#tpu.dimension_semantics<arbitrary>, #tpu.dimension_semantics<arbitrary>], iteration_bounds = array<i64: 2, 1>, scalar_prefetch = 0 : i64, scratch_operands = 4 : i64, tpu.core_type = #tpu.core_type<tc>, window_params = [{transform_indices = @transform_0, window_bounds = array<i64: 128, 128>}, {pipeline_mode = #tpu.pipeline_mode<synchronous>, transform_indices = @transform_1, window_bounds = array<i64: 128, 128>}, {pipeline_mode = #tpu.pipeline_mode<synchronous>, transform_indices = @transform_2, window_bounds = array<i64: 1, 128>}, {pipeline_mode = #tpu.pipeline_mode<synchronous>, transform_indices = @transform_3, window_bounds = array<i64: 1, 128>}, {transform_indices = @transform_4, window_bounds = array<i64: 128, 128>}]} {
    %c0 = arith.constant 0 : index
    %c0_0 = arith.constant 0 : index
    %0 = vector.load %arg2[%c0, %c0_0] : memref<128x128xbf16, #tpu.memory_space<vmem>>, vector<128x128xbf16>
    %c0_1 = arith.constant 0 : index
    %c0_2 = arith.constant 0 : index
    %1 = vector.load %arg3[%c0_1, %c0_2] : memref<128x128xbf16, #tpu.memory_space<vmem>>, vector<128x128xbf16>
    %cst = arith.constant dense<0.000000e+00> : vector<128x128xf32>
    %2 = tpu.matmul %0, %1, %cst {dimension_numbers = #tpu.dot_dimension_numbers<[1], [0], [0], [1], [0, 0, 1, 1], [], []>} : vector<128x128xbf16>, vector<128x128xbf16>, vector<128x128xf32> -> vector<128x128xf32>
    %c0_i32 = arith.constant 0 : i32
    %3 = arith.cmpi eq, %arg0, %c0_i32 : i32
    %4 = arith.extui %3 : i1 to i32
    %c0_i32_3 = arith.constant 0 : i32
    %5 = arith.cmpi ne, %4, %c0_i32_3 : i32
    scf.if %5 {
      %c0_i32_5 = arith.constant 0 : i32
      %9 = arith.cmpi eq, %arg1, %c0_i32_5 : i32
      %10 = arith.extui %9 : i1 to i32
      %c0_i32_6 = arith.constant 0 : i32
      %11 = arith.cmpi ne, %10, %c0_i32_6 : i32
      scf.if %11 {
        %cst_21 = arith.constant 0.000000e+00 : f32
        %36 = vector.broadcast %cst_21 : f32 to vector<1x128xf32>
        %c0_22 = arith.constant 0 : index
        %c0_23 = arith.constant 0 : index
        %37 = vector.load %arg7[%c0_22, %c0_23] : memref<1x128xf32, #tpu.memory_space<vmem>>, vector<1x128xf32>
        tpu.vector_store %arg7[%c0_22, %c0_23], %36 {strides = array<i32>} : memref<1x128xf32, #tpu.memory_space<vmem>>, vector<1x128xf32>,
        %cst_24 = arith.constant 0.000000e+00 : f32
        %38 = vector.broadcast %cst_24 : f32 to vector<1x128xf32>
        %c0_25 = arith.constant 0 : index
        %c0_26 = arith.constant 0 : index
        %39 = vector.load %arg8[%c0_25, %c0_26] : memref<1x128xf32, #tpu.memory_space<vmem>>, vector<1x128xf32>
        tpu.vector_store %arg8[%c0_25, %c0_26], %38 {strides = array<i32>} : memref<1x128xf32, #tpu.memory_space<vmem>>, vector<1x128xf32>,
      } else {
      }
      %c128_i32 = arith.constant 128 : i32
      %12 = arith.muli %arg1, %c128_i32 : i32
      %13 = tpu.iota {dimensions = array<i32: 0>} : vector<128x1xi32>
      %14 = vector.broadcast %12 : i32 to vector<128x1xi32>
      %15 = arith.addi %14, %13 : vector<128x1xi32>
      %c128_i32_7 = arith.constant 128 : i32
      %16 = vector.broadcast %c128_i32_7 : i32 to vector<128x1xi32>
      %17 = arith.cmpi slt, %15, %16 : vector<128x1xi32>
      %cst_8 = arith.constant 0.000000e+00 : f32
      %18 = vector.shape_cast %17 : vector<128x1xi1> to vector<128x1xi1>
      %19 = vector.broadcast %18 : vector<128x1xi1> to vector<128x128xi1>
      %20 = vector.broadcast %cst_8 : f32 to vector<128x128xf32>
      %21 = arith.select %19, %2, %20 : vector<128x128xi1>, vector<128x128xf32>
      %c0_9 = arith.constant 0 : index
      %c0_10 = arith.constant 0 : index
      %22 = vector.load %arg7[%c0_9, %c0_10] : memref<1x128xf32, #tpu.memory_space<vmem>>, vector<1x128xf32>
      %cst_11 = arith.constant dense<0.000000e+00> : vector<128xf32>
      %23 = vector.multi_reduction <add>, %21, %cst_11 [0] : vector<128x128xf32> to vector<128xf32>
      %24 = vector.shape_cast %23 : vector<128xf32> to vector<1x128xf32>
      %25 = arith.addf %22, %24 : vector<1x128xf32>
      %c0_12 = arith.constant 0 : index
      %c0_13 = arith.constant 0 : index
      %26 = vector.load %arg7[%c0_12, %c0_13] : memref<1x128xf32, #tpu.memory_space<vmem>>, vector<1x128xf32>
      tpu.vector_store %arg7[%c0_12, %c0_13], %25 {strides = array<i32>} : memref<1x128xf32, #tpu.memory_space<vmem>>, vector<1x128xf32>,
      %c0_14 = arith.constant 0 : index
      %c0_15 = arith.constant 0 : index
      %27 = vector.load %arg8[%c0_14, %c0_15] : memref<1x128xf32, #tpu.memory_space<vmem>>, vector<1x128xf32>
      %28 = arith.mulf %21, %21 : vector<128x128xf32>
      %cst_16 = arith.constant dense<0.000000e+00> : vector<128xf32>
      %29 = vector.multi_reduction <add>, %28, %cst_16 [0] : vector<128x128xf32> to vector<128xf32>
      %30 = vector.shape_cast %29 : vector<128xf32> to vector<1x128xf32>
      %31 = arith.addf %27, %30 : vector<1x128xf32>
      %c0_17 = arith.constant 0 : index
      %c0_18 = arith.constant 0 : index
      %32 = vector.load %arg8[%c0_17, %c0_18] : memref<1x128xf32, #tpu.memory_space<vmem>>, vector<1x128xf32>
      tpu.vector_store %arg8[%c0_17, %c0_18], %31 {strides = array<i32>} : memref<1x128xf32, #tpu.memory_space<vmem>>, vector<1x128xf32>,
      %c0_i32_19 = arith.constant 0 : i32
      %33 = arith.cmpi eq, %arg1, %c0_i32_19 : i32
      %34 = arith.extui %33 : i1 to i32
      %c0_i32_20 = arith.constant 0 : i32
      %35 = arith.cmpi ne, %34, %c0_i32_20 : i32
      scf.if %35 {
        %c0_21 = arith.constant 0 : index
        %c0_22 = arith.constant 0 : index
        %36 = vector.load %arg7[%c0_21, %c0_22] : memref<1x128xf32, #tpu.memory_space<vmem>>, vector<1x128xf32>
        %cst_23 = arith.constant 7.812500e-03 : f32
        %37 = vector.broadcast %cst_23 : f32 to vector<1x128xf32>
        %38 = arith.mulf %36, %37 : vector<1x128xf32>
        %c0_24 = arith.constant 0 : index
        %c0_25 = arith.constant 0 : index
        %39 = vector.load %arg8[%c0_24, %c0_25] : memref<1x128xf32, #tpu.memory_space<vmem>>, vector<1x128xf32>
        %cst_26 = arith.constant 7.812500e-03 : f32
        %40 = vector.broadcast %cst_26 : f32 to vector<1x128xf32>
        %41 = arith.mulf %39, %40 : vector<1x128xf32>
        %42 = arith.mulf %38, %38 : vector<1x128xf32>
        %43 = arith.subf %41, %42 : vector<1x128xf32>
        %cst_27 = arith.constant 0.000000e+00 : f32
        %44 = vector.broadcast %cst_27 : f32 to vector<1x128xf32>
        %45 = arith.maximumf %43, %44 : vector<1x128xf32>
        %c0_28 = arith.constant 0 : index
        %c0_29 = arith.constant 0 : index
        %46 = vector.load %arg4[%c0_28, %c0_29] : memref<1x128xf32, #tpu.memory_space<vmem>>, vector<1x128xf32>
        %cst_30 = arith.constant 1.000000e-03 : f32
        %47 = vector.broadcast %cst_30 : f32 to vector<1x128xf32>
        %48 = arith.addf %45, %47 : vector<1x128xf32>
        %49 = math.rsqrt %48 : vector<1x128xf32>
        %50 = arith.mulf %46, %49 : vector<1x128xf32>
        %c0_31 = arith.constant 0 : index
        %c0_32 = arith.constant 0 : index
        %51 = vector.load %arg9[%c0_31, %c0_32] : memref<1x128xf32, #tpu.memory_space<vmem>>, vector<1x128xf32>
        tpu.vector_store %arg9[%c0_31, %c0_32], %50 {strides = array<i32>} : memref<1x128xf32, #tpu.memory_space<vmem>>, vector<1x128xf32>,
        %c0_33 = arith.constant 0 : index
        %c0_34 = arith.constant 0 : index
        %52 = vector.load %arg5[%c0_33, %c0_34] : memref<1x128xf32, #tpu.memory_space<vmem>>, vector<1x128xf32>
        %53 = arith.mulf %38, %50 : vector<1x128xf32>
        %54 = arith.subf %52, %53 : vector<1x128xf32>
        %c0_35 = arith.constant 0 : index
        %c0_36 = arith.constant 0 : index
        %55 = vector.load %arg10[%c0_35, %c0_36] : memref<1x128xf32, #tpu.memory_space<vmem>>, vector<1x128xf32>
        tpu.vector_store %arg10[%c0_35, %c0_36], %54 {strides = array<i32>} : memref<1x128xf32, #tpu.memory_space<vmem>>, vector<1x128xf32>,
      } else {
      }
    } else {
    }
    %c1_i32 = arith.constant 1 : i32
    %6 = arith.cmpi eq, %arg0, %c1_i32 : i32
    %7 = arith.extui %6 : i1 to i32
    %c0_i32_4 = arith.constant 0 : i32
    %8 = arith.cmpi ne, %7, %c0_i32_4 : i32
    scf.if %8 {
      %c0_5 = arith.constant 0 : index
      %c0_6 = arith.constant 0 : index
      %9 = vector.load %arg9[%c0_5, %c0_6] : memref<1x128xf32, #tpu.memory_space<vmem>>, vector<1x128xf32>
      %10 = vector.broadcast %9 : vector<1x128xf32> to vector<128x128xf32>
      %11 = arith.mulf %2, %10 : vector<128x128xf32>
      %c0_7 = arith.constant 0 : index
      %c0_8 = arith.constant 0 : index
      %12 = vector.load %arg10[%c0_7, %c0_8] : memref<1x128xf32, #tpu.memory_space<vmem>>, vector<1x128xf32>
      %13 = vector.broadcast %12 : vector<1x128xf32> to vector<128x128xf32>
      %14 = arith.addf %11, %13 : vector<128x128xf32>
      %15 = arith.truncf %14 : vector<128x128xf32> to vector<128x128xbf16>
      %c0_9 = arith.constant 0 : index
      %c0_10 = arith.constant 0 : index
      %16 = vector.load %arg6[%c0_9, %c0_10] : memref<128x128xbf16, #tpu.memory_space<vmem>>, vector<128x128xbf16>
      tpu.vector_store %arg6[%c0_9, %c0_10], %15 {strides = array<i32>} : memref<128x128xbf16, #tpu.memory_space<vmem>>, vector<128x128xbf16>,
    } else {
    }
    return
  }
  func.func @transform_0(%arg0: i32, %arg1: i32) -> (i32, i32) {
    %c0_i32 = arith.constant 0 : i32
    %c0_i32_0 = arith.constant 0 : i32
    return %arg1, %c0_i32 : i32, i32
  }
  func.func @transform_1(%arg0: i32, %arg1: i32) -> (i32, i32) {
    %c0_i32 = arith.constant 0 : i32
    %c0_i32_0 = arith.constant 0 : i32
    %c0_i32_1 = arith.constant 0 : i32
    return %c0_i32, %c0_i32_0 : i32, i32
  }
  func.func @transform_2(%arg0: i32, %arg1: i32) -> (i32, i32) {
    %c0_i32 = arith.constant 0 : i32
    %c0_i32_0 = arith.constant 0 : i32
    %c0_i32_1 = arith.constant 0 : i32
    return %c0_i32, %c0_i32_0 : i32, i32
  }
  func.func @transform_3(%arg0: i32, %arg1: i32) -> (i32, i32) {
    %c0_i32 = arith.constant 0 : i32
    %c0_i32_0 = arith.constant 0 : i32
    %c0_i32_1 = arith.constant 0 : i32
    return %c0_i32, %c0_i32_0 : i32, i32
  }
  func.func @transform_4(%arg0: i32, %arg1: i32) -> (i32, i32) {
    %0 = arith.muli %arg1, %arg0 : i32
    %c0_i32 = arith.constant 0 : i32
    %c0_i32_0 = arith.constant 0 : i32
    return %0, %c0_i32 : i32, i32
  }
}

module attributes {stable_mosaic.version = 11 : i64} {
  func.func @_conv1x1_bn_kernel(%arg0: i32, %arg1: i32, %arg2: memref<128x128xbf16, #tpu.memory_space<vmem>>, %arg3: memref<128x128xbf16, #tpu.memory_space<vmem>>, %arg4: memref<1x128xf32, #tpu.memory_space<vmem>>, %arg5: memref<1x128xf32, #tpu.memory_space<vmem>>, %arg6: memref<128x128xbf16, #tpu.memory_space<vmem>>, %arg7: memref<128x128xbf16, #tpu.memory_space<vmem>>, %arg8: memref<1x128xf32, #tpu.memory_space<vmem>>, %arg9: memref<1x128xf32, #tpu.memory_space<vmem>>, %arg10: memref<1x128xf32, #tpu.memory_space<vmem>>, %arg11: memref<1x128xf32, #tpu.memory_space<vmem>>) attributes {dimension_semantics = [#tpu.dimension_semantics<arbitrary>, #tpu.dimension_semantics<arbitrary>], iteration_bounds = array<i64: 2, 1>, scalar_prefetch = 0 : i64, scratch_operands = 4 : i64, tpu.core_type = #tpu.core_type<tc>, window_params = [{transform_indices = @transform_0, window_bounds = array<i64: 128, 128>}, {pipeline_mode = #tpu.pipeline_mode<synchronous>, transform_indices = @transform_1, window_bounds = array<i64: 128, 128>}, {pipeline_mode = #tpu.pipeline_mode<synchronous>, transform_indices = @transform_2, window_bounds = array<i64: 1, 128>}, {pipeline_mode = #tpu.pipeline_mode<synchronous>, transform_indices = @transform_3, window_bounds = array<i64: 1, 128>}, {transform_indices = @transform_4, window_bounds = array<i64: 128, 128>}, {transform_indices = @transform_5, window_bounds = array<i64: 128, 128>}]} {
    %c0 = arith.constant 0 : index
    %c0_0 = arith.constant 0 : index
    %0 = vector.load %arg2[%c0, %c0_0] : memref<128x128xbf16, #tpu.memory_space<vmem>>, vector<128x128xbf16>
    %c0_1 = arith.constant 0 : index
    %c0_2 = arith.constant 0 : index
    %1 = vector.load %arg3[%c0_1, %c0_2] : memref<128x128xbf16, #tpu.memory_space<vmem>>, vector<128x128xbf16>
    %cst = arith.constant dense<0.000000e+00> : vector<128x128xf32>
    %2 = tpu.matmul %0, %1, %cst {dimension_numbers = #tpu.dot_dimension_numbers<[1], [0], [0], [1], [0, 0, 1, 1], [], []>} : vector<128x128xbf16>, vector<128x128xbf16>, vector<128x128xf32> -> vector<128x128xf32>
    %c0_i32 = arith.constant 0 : i32
    %3 = arith.cmpi eq, %arg0, %c0_i32 : i32
    %4 = arith.extui %3 : i1 to i32
    %c0_i32_3 = arith.constant 0 : i32
    %5 = arith.cmpi ne, %4, %c0_i32_3 : i32
    scf.if %5 {
      %c0_i32_5 = arith.constant 0 : i32
      %9 = arith.cmpi eq, %arg1, %c0_i32_5 : i32
      %10 = arith.extui %9 : i1 to i32
      %c0_i32_6 = arith.constant 0 : i32
      %11 = arith.cmpi ne, %10, %c0_i32_6 : i32
      scf.if %11 {
        %cst_21 = arith.constant 0.000000e+00 : f32
        %36 = vector.broadcast %cst_21 : f32 to vector<1x128xf32>
        %c0_22 = arith.constant 0 : index
        %c0_23 = arith.constant 0 : index
        %37 = vector.load %arg8[%c0_22, %c0_23] : memref<1x128xf32, #tpu.memory_space<vmem>>, vector<1x128xf32>
        tpu.vector_store %arg8[%c0_22, %c0_23], %36 {strides = array<i32>} : memref<1x128xf32, #tpu.memory_space<vmem>>, vector<1x128xf32>,
        %cst_24 = arith.constant 0.000000e+00 : f32
        %38 = vector.broadcast %cst_24 : f32 to vector<1x128xf32>
        %c0_25 = arith.constant 0 : index
        %c0_26 = arith.constant 0 : index
        %39 = vector.load %arg9[%c0_25, %c0_26] : memref<1x128xf32, #tpu.memory_space<vmem>>, vector<1x128xf32>
        tpu.vector_store %arg9[%c0_25, %c0_26], %38 {strides = array<i32>} : memref<1x128xf32, #tpu.memory_space<vmem>>, vector<1x128xf32>,
      } else {
      }
      %c128_i32 = arith.constant 128 : i32
      %12 = arith.muli %arg1, %c128_i32 : i32
      %13 = tpu.iota {dimensions = array<i32: 0>} : vector<128x1xi32>
      %14 = vector.broadcast %12 : i32 to vector<128x1xi32>
      %15 = arith.addi %14, %13 : vector<128x1xi32>
      %c128_i32_7 = arith.constant 128 : i32
      %16 = vector.broadcast %c128_i32_7 : i32 to vector<128x1xi32>
      %17 = arith.cmpi slt, %15, %16 : vector<128x1xi32>
      %cst_8 = arith.constant 0.000000e+00 : f32
      %18 = vector.shape_cast %17 : vector<128x1xi1> to vector<128x1xi1>
      %19 = vector.broadcast %18 : vector<128x1xi1> to vector<128x128xi1>
      %20 = vector.broadcast %cst_8 : f32 to vector<128x128xf32>
      %21 = arith.select %19, %2, %20 : vector<128x128xi1>, vector<128x128xf32>
      %c0_9 = arith.constant 0 : index
      %c0_10 = arith.constant 0 : index
      %22 = vector.load %arg8[%c0_9, %c0_10] : memref<1x128xf32, #tpu.memory_space<vmem>>, vector<1x128xf32>
      %cst_11 = arith.constant dense<0.000000e+00> : vector<128xf32>
      %23 = vector.multi_reduction <add>, %21, %cst_11 [0] : vector<128x128xf32> to vector<128xf32>
      %24 = vector.shape_cast %23 : vector<128xf32> to vector<1x128xf32>
      %25 = arith.addf %22, %24 : vector<1x128xf32>
      %c0_12 = arith.constant 0 : index
      %c0_13 = arith.constant 0 : index
      %26 = vector.load %arg8[%c0_12, %c0_13] : memref<1x128xf32, #tpu.memory_space<vmem>>, vector<1x128xf32>
      tpu.vector_store %arg8[%c0_12, %c0_13], %25 {strides = array<i32>} : memref<1x128xf32, #tpu.memory_space<vmem>>, vector<1x128xf32>,
      %c0_14 = arith.constant 0 : index
      %c0_15 = arith.constant 0 : index
      %27 = vector.load %arg9[%c0_14, %c0_15] : memref<1x128xf32, #tpu.memory_space<vmem>>, vector<1x128xf32>
      %28 = arith.mulf %21, %21 : vector<128x128xf32>
      %cst_16 = arith.constant dense<0.000000e+00> : vector<128xf32>
      %29 = vector.multi_reduction <add>, %28, %cst_16 [0] : vector<128x128xf32> to vector<128xf32>
      %30 = vector.shape_cast %29 : vector<128xf32> to vector<1x128xf32>
      %31 = arith.addf %27, %30 : vector<1x128xf32>
      %c0_17 = arith.constant 0 : index
      %c0_18 = arith.constant 0 : index
      %32 = vector.load %arg9[%c0_17, %c0_18] : memref<1x128xf32, #tpu.memory_space<vmem>>, vector<1x128xf32>
      tpu.vector_store %arg9[%c0_17, %c0_18], %31 {strides = array<i32>} : memref<1x128xf32, #tpu.memory_space<vmem>>, vector<1x128xf32>,
      %c0_i32_19 = arith.constant 0 : i32
      %33 = arith.cmpi eq, %arg1, %c0_i32_19 : i32
      %34 = arith.extui %33 : i1 to i32
      %c0_i32_20 = arith.constant 0 : i32
      %35 = arith.cmpi ne, %34, %c0_i32_20 : i32
      scf.if %35 {
        %c0_21 = arith.constant 0 : index
        %c0_22 = arith.constant 0 : index
        %36 = vector.load %arg8[%c0_21, %c0_22] : memref<1x128xf32, #tpu.memory_space<vmem>>, vector<1x128xf32>
        %cst_23 = arith.constant 7.812500e-03 : f32
        %37 = vector.broadcast %cst_23 : f32 to vector<1x128xf32>
        %38 = arith.mulf %36, %37 : vector<1x128xf32>
        %c0_24 = arith.constant 0 : index
        %c0_25 = arith.constant 0 : index
        %39 = vector.load %arg9[%c0_24, %c0_25] : memref<1x128xf32, #tpu.memory_space<vmem>>, vector<1x128xf32>
        %cst_26 = arith.constant 7.812500e-03 : f32
        %40 = vector.broadcast %cst_26 : f32 to vector<1x128xf32>
        %41 = arith.mulf %39, %40 : vector<1x128xf32>
        %42 = arith.mulf %38, %38 : vector<1x128xf32>
        %43 = arith.subf %41, %42 : vector<1x128xf32>
        %cst_27 = arith.constant 0.000000e+00 : f32
        %44 = vector.broadcast %cst_27 : f32 to vector<1x128xf32>
        %45 = arith.maximumf %43, %44 : vector<1x128xf32>
        %c0_28 = arith.constant 0 : index
        %c0_29 = arith.constant 0 : index
        %46 = vector.load %arg4[%c0_28, %c0_29] : memref<1x128xf32, #tpu.memory_space<vmem>>, vector<1x128xf32>
        %cst_30 = arith.constant 1.000000e-03 : f32
        %47 = vector.broadcast %cst_30 : f32 to vector<1x128xf32>
        %48 = arith.addf %45, %47 : vector<1x128xf32>
        %49 = math.rsqrt %48 : vector<1x128xf32>
        %50 = arith.mulf %46, %49 : vector<1x128xf32>
        %c0_31 = arith.constant 0 : index
        %c0_32 = arith.constant 0 : index
        %51 = vector.load %arg10[%c0_31, %c0_32] : memref<1x128xf32, #tpu.memory_space<vmem>>, vector<1x128xf32>
        tpu.vector_store %arg10[%c0_31, %c0_32], %50 {strides = array<i32>} : memref<1x128xf32, #tpu.memory_space<vmem>>, vector<1x128xf32>,
        %c0_33 = arith.constant 0 : index
        %c0_34 = arith.constant 0 : index
        %52 = vector.load %arg5[%c0_33, %c0_34] : memref<1x128xf32, #tpu.memory_space<vmem>>, vector<1x128xf32>
        %53 = arith.mulf %38, %50 : vector<1x128xf32>
        %54 = arith.subf %52, %53 : vector<1x128xf32>
        %c0_35 = arith.constant 0 : index
        %c0_36 = arith.constant 0 : index
        %55 = vector.load %arg11[%c0_35, %c0_36] : memref<1x128xf32, #tpu.memory_space<vmem>>, vector<1x128xf32>
        tpu.vector_store %arg11[%c0_35, %c0_36], %54 {strides = array<i32>} : memref<1x128xf32, #tpu.memory_space<vmem>>, vector<1x128xf32>,
      } else {
      }
    } else {
    }
    %c1_i32 = arith.constant 1 : i32
    %6 = arith.cmpi eq, %arg0, %c1_i32 : i32
    %7 = arith.extui %6 : i1 to i32
    %c0_i32_4 = arith.constant 0 : i32
    %8 = arith.cmpi ne, %7, %c0_i32_4 : i32
    scf.if %8 {
      %c0_5 = arith.constant 0 : index
      %c0_6 = arith.constant 0 : index
      %9 = vector.load %arg10[%c0_5, %c0_6] : memref<1x128xf32, #tpu.memory_space<vmem>>, vector<1x128xf32>
      %10 = vector.broadcast %9 : vector<1x128xf32> to vector<128x128xf32>
      %11 = arith.mulf %2, %10 : vector<128x128xf32>
      %c0_7 = arith.constant 0 : index
      %c0_8 = arith.constant 0 : index
      %12 = vector.load %arg11[%c0_7, %c0_8] : memref<1x128xf32, #tpu.memory_space<vmem>>, vector<1x128xf32>
      %13 = vector.broadcast %12 : vector<1x128xf32> to vector<128x128xf32>
      %14 = arith.addf %11, %13 : vector<128x128xf32>
      %c0_9 = arith.constant 0 : index
      %c0_10 = arith.constant 0 : index
      %15 = vector.load %arg6[%c0_9, %c0_10] : memref<128x128xbf16, #tpu.memory_space<vmem>>, vector<128x128xbf16>
      %16 = arith.extf %15 : vector<128x128xbf16> to vector<128x128xf32>
      %17 = arith.addf %14, %16 : vector<128x128xf32>
      %18 = arith.truncf %17 : vector<128x128xf32> to vector<128x128xbf16>
      %c0_11 = arith.constant 0 : index
      %c0_12 = arith.constant 0 : index
      %19 = vector.load %arg7[%c0_11, %c0_12] : memref<128x128xbf16, #tpu.memory_space<vmem>>, vector<128x128xbf16>
      tpu.vector_store %arg7[%c0_11, %c0_12], %18 {strides = array<i32>} : memref<128x128xbf16, #tpu.memory_space<vmem>>, vector<128x128xbf16>,
    } else {
    }
    return
  }
  func.func @transform_0(%arg0: i32, %arg1: i32) -> (i32, i32) {
    %c0_i32 = arith.constant 0 : i32
    %c0_i32_0 = arith.constant 0 : i32
    return %arg1, %c0_i32 : i32, i32
  }
  func.func @transform_1(%arg0: i32, %arg1: i32) -> (i32, i32) {
    %c0_i32 = arith.constant 0 : i32
    %c0_i32_0 = arith.constant 0 : i32
    %c0_i32_1 = arith.constant 0 : i32
    return %c0_i32, %c0_i32_0 : i32, i32
  }
  func.func @transform_2(%arg0: i32, %arg1: i32) -> (i32, i32) {
    %c0_i32 = arith.constant 0 : i32
    %c0_i32_0 = arith.constant 0 : i32
    %c0_i32_1 = arith.constant 0 : i32
    return %c0_i32, %c0_i32_0 : i32, i32
  }
  func.func @transform_3(%arg0: i32, %arg1: i32) -> (i32, i32) {
    %c0_i32 = arith.constant 0 : i32
    %c0_i32_0 = arith.constant 0 : i32
    %c0_i32_1 = arith.constant 0 : i32
    return %c0_i32, %c0_i32_0 : i32, i32
  }
  func.func @transform_4(%arg0: i32, %arg1: i32) -> (i32, i32) {
    %0 = arith.muli %arg1, %arg0 : i32
    %c0_i32 = arith.constant 0 : i32
    %c0_i32_0 = arith.constant 0 : i32
    return %0, %c0_i32 : i32, i32
  }
  func.func @transform_5(%arg0: i32, %arg1: i32) -> (i32, i32) {
    %0 = arith.muli %arg1, %arg0 : i32
    %c0_i32 = arith.constant 0 : i32
    %c0_i32_0 = arith.constant 0 : i32
    return %0, %c0_i32 : i32, i32
  }
}

module attributes {stable_mosaic.version = 11 : i64} {
  func.func @_dw_bn_se_kernel(%arg0: i32, %arg1: i32, %arg2: memref<1x1x10x10x128xbf16, #tpu.memory_space<vmem>>, %arg3: memref<9x128xf32, #tpu.memory_space<vmem>>, %arg4: memref<1x128xf32, #tpu.memory_space<vmem>>, %arg5: memref<1x128xf32, #tpu.memory_space<vmem>>, %arg6: memref<1x8x8x128xbf16, #tpu.memory_space<vmem>>, %arg7: memref<1x128xf32, #tpu.memory_space<vmem>>, %arg8: memref<1x128xf32, #tpu.memory_space<vmem>>, %arg9: memref<1x128xf32, #tpu.memory_space<vmem>>, %arg10: memref<1x128xf32, #tpu.memory_space<vmem>>) attributes {dimension_semantics = [#tpu.dimension_semantics<arbitrary>, #tpu.dimension_semantics<arbitrary>], iteration_bounds = array<i64: 2, 2>, scalar_prefetch = 0 : i64, scratch_operands = 4 : i64, tpu.core_type = #tpu.core_type<tc>, window_params = [{transform_indices = @transform_0, window_bounds = array<i64: 1, 1, 10, 10, 128>}, {pipeline_mode = #tpu.pipeline_mode<synchronous>, transform_indices = @transform_1, window_bounds = array<i64: 9, 128>}, {pipeline_mode = #tpu.pipeline_mode<synchronous>, transform_indices = @transform_2, window_bounds = array<i64: 1, 128>}, {pipeline_mode = #tpu.pipeline_mode<synchronous>, transform_indices = @transform_3, window_bounds = array<i64: 1, 128>}, {transform_indices = @transform_4, window_bounds = array<i64: 1, 8, 8, 128>}]} {
    %c0 = arith.constant 0 : index
    %c0_0 = arith.constant 0 : index
    %0 = vector.load %arg3[%c0, %c0_0] : memref<9x128xf32, #tpu.memory_space<vmem>>, vector<9x128xf32>
    %cst = arith.constant 0.000000e+00 : f32
    %1 = vector.broadcast %cst : f32 to vector<8x8x128xf32>
    %c0_1 = arith.constant 0 : index
    %c0_2 = arith.constant 0 : index
    %c0_3 = arith.constant 0 : index
    %c0_4 = arith.constant 0 : index
    %c0_5 = arith.constant 0 : index
    %2 = vector.load %arg2[%c0_1, %c0_2, %c0_3, %c0_4, %c0_5] : memref<1x1x10x10x128xbf16, #tpu.memory_space<vmem>>, vector<1x1x8x8x128xbf16>
    %3 = vector.shape_cast %2 : vector<1x1x8x8x128xbf16> to vector<8x8x128xbf16>
    %4 = arith.extf %3 : vector<8x8x128xbf16> to vector<8x8x128xf32>
    %5 = vector.extract_strided_slice %0 {offsets = [0, 0], sizes = [1, 128], strides = [1, 1]} : vector<9x128xf32> to vector<1x128xf32>
    %6 = vector.shape_cast %5 : vector<1x128xf32> to vector<128xf32>
    %7 = vector.shape_cast %6 : vector<128xf32> to vector<1x1x128xf32>
    %8 = vector.broadcast %7 : vector<1x1x128xf32> to vector<8x8x128xf32>
    %9 = arith.mulf %4, %8 : vector<8x8x128xf32>
    %10 = arith.addf %1, %9 : vector<8x8x128xf32>
    %c0_6 = arith.constant 0 : index
    %c0_7 = arith.constant 0 : index
    %c0_8 = arith.constant 0 : index
    %c1 = arith.constant 1 : index
    %c0_9 = arith.constant 0 : index
    %11 = vector.load %arg2[%c0_6, %c0_7, %c0_8, %c1, %c0_9] : memref<1x1x10x10x128xbf16, #tpu.memory_space<vmem>>, vector<1x1x8x8x128xbf16>
    %12 = vector.shape_cast %11 : vector<1x1x8x8x128xbf16> to vector<8x8x128xbf16>
    %13 = arith.extf %12 : vector<8x8x128xbf16> to vector<8x8x128xf32>
    %14 = vector.extract_strided_slice %0 {offsets = [1, 0], sizes = [1, 128], strides = [1, 1]} : vector<9x128xf32> to vector<1x128xf32>
    %15 = vector.shape_cast %14 : vector<1x128xf32> to vector<128xf32>
    %16 = vector.shape_cast %15 : vector<128xf32> to vector<1x1x128xf32>
    %17 = vector.broadcast %16 : vector<1x1x128xf32> to vector<8x8x128xf32>
    %18 = arith.mulf %13, %17 : vector<8x8x128xf32>
    %19 = arith.addf %10, %18 : vector<8x8x128xf32>
    %c0_10 = arith.constant 0 : index
    %c0_11 = arith.constant 0 : index
    %c0_12 = arith.constant 0 : index
    %c2 = arith.constant 2 : index
    %c0_13 = arith.constant 0 : index
    %20 = vector.load %arg2[%c0_10, %c0_11, %c0_12, %c2, %c0_13] : memref<1x1x10x10x128xbf16, #tpu.memory_space<vmem>>, vector<1x1x8x8x128xbf16>
    %21 = vector.shape_cast %20 : vector<1x1x8x8x128xbf16> to vector<8x8x128xbf16>
    %22 = arith.extf %21 : vector<8x8x128xbf16> to vector<8x8x128xf32>
    %23 = vector.extract_strided_slice %0 {offsets = [2, 0], sizes = [1, 128], strides = [1, 1]} : vector<9x128xf32> to vector<1x128xf32>
    %24 = vector.shape_cast %23 : vector<1x128xf32> to vector<128xf32>
    %25 = vector.shape_cast %24 : vector<128xf32> to vector<1x1x128xf32>
    %26 = vector.broadcast %25 : vector<1x1x128xf32> to vector<8x8x128xf32>
    %27 = arith.mulf %22, %26 : vector<8x8x128xf32>
    %28 = arith.addf %19, %27 : vector<8x8x128xf32>
    %c0_14 = arith.constant 0 : index
    %c0_15 = arith.constant 0 : index
    %c1_16 = arith.constant 1 : index
    %c0_17 = arith.constant 0 : index
    %c0_18 = arith.constant 0 : index
    %29 = vector.load %arg2[%c0_14, %c0_15, %c1_16, %c0_17, %c0_18] : memref<1x1x10x10x128xbf16, #tpu.memory_space<vmem>>, vector<1x1x8x8x128xbf16>
    %30 = vector.shape_cast %29 : vector<1x1x8x8x128xbf16> to vector<8x8x128xbf16>
    %31 = arith.extf %30 : vector<8x8x128xbf16> to vector<8x8x128xf32>
    %32 = vector.extract_strided_slice %0 {offsets = [3, 0], sizes = [1, 128], strides = [1, 1]} : vector<9x128xf32> to vector<1x128xf32>
    %33 = vector.shape_cast %32 : vector<1x128xf32> to vector<128xf32>
    %34 = vector.shape_cast %33 : vector<128xf32> to vector<1x1x128xf32>
    %35 = vector.broadcast %34 : vector<1x1x128xf32> to vector<8x8x128xf32>
    %36 = arith.mulf %31, %35 : vector<8x8x128xf32>
    %37 = arith.addf %28, %36 : vector<8x8x128xf32>
    %c0_19 = arith.constant 0 : index
    %c0_20 = arith.constant 0 : index
    %c1_21 = arith.constant 1 : index
    %c1_22 = arith.constant 1 : index
    %c0_23 = arith.constant 0 : index
    %38 = vector.load %arg2[%c0_19, %c0_20, %c1_21, %c1_22, %c0_23] : memref<1x1x10x10x128xbf16, #tpu.memory_space<vmem>>, vector<1x1x8x8x128xbf16>
    %39 = vector.shape_cast %38 : vector<1x1x8x8x128xbf16> to vector<8x8x128xbf16>
    %40 = arith.extf %39 : vector<8x8x128xbf16> to vector<8x8x128xf32>
    %41 = vector.extract_strided_slice %0 {offsets = [4, 0], sizes = [1, 128], strides = [1, 1]} : vector<9x128xf32> to vector<1x128xf32>
    %42 = vector.shape_cast %41 : vector<1x128xf32> to vector<128xf32>
    %43 = vector.shape_cast %42 : vector<128xf32> to vector<1x1x128xf32>
    %44 = vector.broadcast %43 : vector<1x1x128xf32> to vector<8x8x128xf32>
    %45 = arith.mulf %40, %44 : vector<8x8x128xf32>
    %46 = arith.addf %37, %45 : vector<8x8x128xf32>
    %c0_24 = arith.constant 0 : index
    %c0_25 = arith.constant 0 : index
    %c1_26 = arith.constant 1 : index
    %c2_27 = arith.constant 2 : index
    %c0_28 = arith.constant 0 : index
    %47 = vector.load %arg2[%c0_24, %c0_25, %c1_26, %c2_27, %c0_28] : memref<1x1x10x10x128xbf16, #tpu.memory_space<vmem>>, vector<1x1x8x8x128xbf16>
    %48 = vector.shape_cast %47 : vector<1x1x8x8x128xbf16> to vector<8x8x128xbf16>
    %49 = arith.extf %48 : vector<8x8x128xbf16> to vector<8x8x128xf32>
    %50 = vector.extract_strided_slice %0 {offsets = [5, 0], sizes = [1, 128], strides = [1, 1]} : vector<9x128xf32> to vector<1x128xf32>
    %51 = vector.shape_cast %50 : vector<1x128xf32> to vector<128xf32>
    %52 = vector.shape_cast %51 : vector<128xf32> to vector<1x1x128xf32>
    %53 = vector.broadcast %52 : vector<1x1x128xf32> to vector<8x8x128xf32>
    %54 = arith.mulf %49, %53 : vector<8x8x128xf32>
    %55 = arith.addf %46, %54 : vector<8x8x128xf32>
    %c0_29 = arith.constant 0 : index
    %c0_30 = arith.constant 0 : index
    %c2_31 = arith.constant 2 : index
    %c0_32 = arith.constant 0 : index
    %c0_33 = arith.constant 0 : index
    %56 = vector.load %arg2[%c0_29, %c0_30, %c2_31, %c0_32, %c0_33] : memref<1x1x10x10x128xbf16, #tpu.memory_space<vmem>>, vector<1x1x8x8x128xbf16>
    %57 = vector.shape_cast %56 : vector<1x1x8x8x128xbf16> to vector<8x8x128xbf16>
    %58 = arith.extf %57 : vector<8x8x128xbf16> to vector<8x8x128xf32>
    %59 = vector.extract_strided_slice %0 {offsets = [6, 0], sizes = [1, 128], strides = [1, 1]} : vector<9x128xf32> to vector<1x128xf32>
    %60 = vector.shape_cast %59 : vector<1x128xf32> to vector<128xf32>
    %61 = vector.shape_cast %60 : vector<128xf32> to vector<1x1x128xf32>
    %62 = vector.broadcast %61 : vector<1x1x128xf32> to vector<8x8x128xf32>
    %63 = arith.mulf %58, %62 : vector<8x8x128xf32>
    %64 = arith.addf %55, %63 : vector<8x8x128xf32>
    %c0_34 = arith.constant 0 : index
    %c0_35 = arith.constant 0 : index
    %c2_36 = arith.constant 2 : index
    %c1_37 = arith.constant 1 : index
    %c0_38 = arith.constant 0 : index
    %65 = vector.load %arg2[%c0_34, %c0_35, %c2_36, %c1_37, %c0_38] : memref<1x1x10x10x128xbf16, #tpu.memory_space<vmem>>, vector<1x1x8x8x128xbf16>
    %66 = vector.shape_cast %65 : vector<1x1x8x8x128xbf16> to vector<8x8x128xbf16>
    %67 = arith.extf %66 : vector<8x8x128xbf16> to vector<8x8x128xf32>
    %68 = vector.extract_strided_slice %0 {offsets = [7, 0], sizes = [1, 128], strides = [1, 1]} : vector<9x128xf32> to vector<1x128xf32>
    %69 = vector.shape_cast %68 : vector<1x128xf32> to vector<128xf32>
    %70 = vector.shape_cast %69 : vector<128xf32> to vector<1x1x128xf32>
    %71 = vector.broadcast %70 : vector<1x1x128xf32> to vector<8x8x128xf32>
    %72 = arith.mulf %67, %71 : vector<8x8x128xf32>
    %73 = arith.addf %64, %72 : vector<8x8x128xf32>
    %c0_39 = arith.constant 0 : index
    %c0_40 = arith.constant 0 : index
    %c2_41 = arith.constant 2 : index
    %c2_42 = arith.constant 2 : index
    %c0_43 = arith.constant 0 : index
    %74 = vector.load %arg2[%c0_39, %c0_40, %c2_41, %c2_42, %c0_43] : memref<1x1x10x10x128xbf16, #tpu.memory_space<vmem>>, vector<1x1x8x8x128xbf16>
    %75 = vector.shape_cast %74 : vector<1x1x8x8x128xbf16> to vector<8x8x128xbf16>
    %76 = arith.extf %75 : vector<8x8x128xbf16> to vector<8x8x128xf32>
    %77 = vector.extract_strided_slice %0 {offsets = [8, 0], sizes = [1, 128], strides = [1, 1]} : vector<9x128xf32> to vector<1x128xf32>
    %78 = vector.shape_cast %77 : vector<1x128xf32> to vector<128xf32>
    %79 = vector.shape_cast %78 : vector<128xf32> to vector<1x1x128xf32>
    %80 = vector.broadcast %79 : vector<1x1x128xf32> to vector<8x8x128xf32>
    %81 = arith.mulf %76, %80 : vector<8x8x128xf32>
    %82 = arith.addf %73, %81 : vector<8x8x128xf32>
    %c0_i32 = arith.constant 0 : i32
    %83 = arith.cmpi eq, %arg0, %c0_i32 : i32
    %84 = arith.extui %83 : i1 to i32
    %c0_i32_44 = arith.constant 0 : i32
    %85 = arith.cmpi ne, %84, %c0_i32_44 : i32
    scf.if %85 {
      %c0_i32_46 = arith.constant 0 : i32
      %89 = arith.cmpi eq, %arg1, %c0_i32_46 : i32
      %90 = arith.extui %89 : i1 to i32
      %c0_i32_47 = arith.constant 0 : i32
      %91 = arith.cmpi ne, %90, %c0_i32_47 : i32
      scf.if %91 {
        %cst_60 = arith.constant 0.000000e+00 : f32
        %106 = vector.broadcast %cst_60 : f32 to vector<1x128xf32>
        %c0_61 = arith.constant 0 : index
        %c0_62 = arith.constant 0 : index
        %107 = vector.load %arg7[%c0_61, %c0_62] : memref<1x128xf32, #tpu.memory_space<vmem>>, vector<1x128xf32>
        tpu.vector_store %arg7[%c0_61, %c0_62], %106 {strides = array<i32>} : memref<1x128xf32, #tpu.memory_space<vmem>>, vector<1x128xf32>,
        %cst_63 = arith.constant 0.000000e+00 : f32
        %108 = vector.broadcast %cst_63 : f32 to vector<1x128xf32>
        %c0_64 = arith.constant 0 : index
        %c0_65 = arith.constant 0 : index
        %109 = vector.load %arg8[%c0_64, %c0_65] : memref<1x128xf32, #tpu.memory_space<vmem>>, vector<1x128xf32>
        tpu.vector_store %arg8[%c0_64, %c0_65], %108 {strides = array<i32>} : memref<1x128xf32, #tpu.memory_space<vmem>>, vector<1x128xf32>,
      } else {
      }
      %c0_48 = arith.constant 0 : index
      %c0_49 = arith.constant 0 : index
      %92 = vector.load %arg7[%c0_48, %c0_49] : memref<1x128xf32, #tpu.memory_space<vmem>>, vector<1x128xf32>
      %cst_50 = arith.constant dense<0.000000e+00> : vector<128xf32>
      %93 = vector.multi_reduction <add>, %82, %cst_50 [0, 1] : vector<8x8x128xf32> to vector<128xf32>
      %94 = vector.shape_cast %93 : vector<128xf32> to vector<1x128xf32>
      %95 = arith.addf %92, %94 : vector<1x128xf32>
      %c0_51 = arith.constant 0 : index
      %c0_52 = arith.constant 0 : index
      %96 = vector.load %arg7[%c0_51, %c0_52] : memref<1x128xf32, #tpu.memory_space<vmem>>, vector<1x128xf32>
      tpu.vector_store %arg7[%c0_51, %c0_52], %95 {strides = array<i32>} : memref<1x128xf32, #tpu.memory_space<vmem>>, vector<1x128xf32>,
      %c0_53 = arith.constant 0 : index
      %c0_54 = arith.constant 0 : index
      %97 = vector.load %arg8[%c0_53, %c0_54] : memref<1x128xf32, #tpu.memory_space<vmem>>, vector<1x128xf32>
      %98 = arith.mulf %82, %82 : vector<8x8x128xf32>
      %cst_55 = arith.constant dense<0.000000e+00> : vector<128xf32>
      %99 = vector.multi_reduction <add>, %98, %cst_55 [0, 1] : vector<8x8x128xf32> to vector<128xf32>
      %100 = vector.shape_cast %99 : vector<128xf32> to vector<1x128xf32>
      %101 = arith.addf %97, %100 : vector<1x128xf32>
      %c0_56 = arith.constant 0 : index
      %c0_57 = arith.constant 0 : index
      %102 = vector.load %arg8[%c0_56, %c0_57] : memref<1x128xf32, #tpu.memory_space<vmem>>, vector<1x128xf32>
      tpu.vector_store %arg8[%c0_56, %c0_57], %101 {strides = array<i32>} : memref<1x128xf32, #tpu.memory_space<vmem>>, vector<1x128xf32>,
      %c1_i32_58 = arith.constant 1 : i32
      %103 = arith.cmpi eq, %arg1, %c1_i32_58 : i32
      %104 = arith.extui %103 : i1 to i32
      %c0_i32_59 = arith.constant 0 : i32
      %105 = arith.cmpi ne, %104, %c0_i32_59 : i32
      scf.if %105 {
        %c0_60 = arith.constant 0 : index
        %c0_61 = arith.constant 0 : index
        %106 = vector.load %arg7[%c0_60, %c0_61] : memref<1x128xf32, #tpu.memory_space<vmem>>, vector<1x128xf32>
        %cst_62 = arith.constant 7.812500e-03 : f32
        %107 = vector.broadcast %cst_62 : f32 to vector<1x128xf32>
        %108 = arith.mulf %106, %107 : vector<1x128xf32>
        %c0_63 = arith.constant 0 : index
        %c0_64 = arith.constant 0 : index
        %109 = vector.load %arg8[%c0_63, %c0_64] : memref<1x128xf32, #tpu.memory_space<vmem>>, vector<1x128xf32>
        %cst_65 = arith.constant 7.812500e-03 : f32
        %110 = vector.broadcast %cst_65 : f32 to vector<1x128xf32>
        %111 = arith.mulf %109, %110 : vector<1x128xf32>
        %112 = arith.mulf %108, %108 : vector<1x128xf32>
        %113 = arith.subf %111, %112 : vector<1x128xf32>
        %cst_66 = arith.constant 0.000000e+00 : f32
        %114 = vector.broadcast %cst_66 : f32 to vector<1x128xf32>
        %115 = arith.maximumf %113, %114 : vector<1x128xf32>
        %c0_67 = arith.constant 0 : index
        %c0_68 = arith.constant 0 : index
        %116 = vector.load %arg4[%c0_67, %c0_68] : memref<1x128xf32, #tpu.memory_space<vmem>>, vector<1x128xf32>
        %cst_69 = arith.constant 1.000000e-03 : f32
        %117 = vector.broadcast %cst_69 : f32 to vector<1x128xf32>
        %118 = arith.addf %115, %117 : vector<1x128xf32>
        %119 = math.rsqrt %118 : vector<1x128xf32>
        %120 = arith.mulf %116, %119 : vector<1x128xf32>
        %c0_70 = arith.constant 0 : index
        %c0_71 = arith.constant 0 : index
        %121 = vector.load %arg9[%c0_70, %c0_71] : memref<1x128xf32, #tpu.memory_space<vmem>>, vector<1x128xf32>
        tpu.vector_store %arg9[%c0_70, %c0_71], %120 {strides = array<i32>} : memref<1x128xf32, #tpu.memory_space<vmem>>, vector<1x128xf32>,
        %c0_72 = arith.constant 0 : index
        %c0_73 = arith.constant 0 : index
        %122 = vector.load %arg5[%c0_72, %c0_73] : memref<1x128xf32, #tpu.memory_space<vmem>>, vector<1x128xf32>
        %123 = arith.mulf %108, %120 : vector<1x128xf32>
        %124 = arith.subf %122, %123 : vector<1x128xf32>
        %c0_74 = arith.constant 0 : index
        %c0_75 = arith.constant 0 : index
        %125 = vector.load %arg10[%c0_74, %c0_75] : memref<1x128xf32, #tpu.memory_space<vmem>>, vector<1x128xf32>
        tpu.vector_store %arg10[%c0_74, %c0_75], %124 {strides = array<i32>} : memref<1x128xf32, #tpu.memory_space<vmem>>, vector<1x128xf32>,
      } else {
      }
    } else {
    }
    %c1_i32 = arith.constant 1 : i32
    %86 = arith.cmpi eq, %arg0, %c1_i32 : i32
    %87 = arith.extui %86 : i1 to i32
    %c0_i32_45 = arith.constant 0 : i32
    %88 = arith.cmpi ne, %87, %c0_i32_45 : i32
    scf.if %88 {
      %c0_46 = arith.constant 0 : index
      %c0_47 = arith.constant 0 : index
      %89 = vector.load %arg9[%c0_46, %c0_47] : memref<1x128xf32, #tpu.memory_space<vmem>>, vector<1x128xf32>
      %90 = vector.shape_cast %89 : vector<1x128xf32> to vector<1x1x128xf32>
      %91 = vector.broadcast %90 : vector<1x1x128xf32> to vector<8x8x128xf32>
      %92 = arith.mulf %82, %91 : vector<8x8x128xf32>
      %c0_48 = arith.constant 0 : index
      %c0_49 = arith.constant 0 : index
      %93 = vector.load %arg10[%c0_48, %c0_49] : memref<1x128xf32, #tpu.memory_space<vmem>>, vector<1x128xf32>
      %94 = vector.shape_cast %93 : vector<1x128xf32> to vector<1x1x128xf32>
      %95 = vector.broadcast %94 : vector<1x1x128xf32> to vector<8x8x128xf32>
      %96 = arith.addf %92, %95 : vector<8x8x128xf32>
      %cst_50 = arith.constant 3.000000e+00 : f32
      %97 = vector.broadcast %cst_50 : f32 to vector<8x8x128xf32>
      %98 = arith.addf %96, %97 : vector<8x8x128xf32>
      %cst_51 = arith.constant 0.000000e+00 : f32
      %cst_52 = arith.constant 6.000000e+00 : f32
      %99 = vector.broadcast %cst_51 : f32 to vector<8x8x128xf32>
      %100 = arith.maximumf %99, %98 : vector<8x8x128xf32>
      %101 = vector.broadcast %cst_52 : f32 to vector<8x8x128xf32>
      %102 = arith.minimumf %101, %100 : vector<8x8x128xf32>
      %103 = arith.mulf %96, %102 : vector<8x8x128xf32>
      %cst_53 = arith.constant 0.166666672 : f32
      %104 = vector.broadcast %cst_53 : f32 to vector<8x8x128xf32>
      %105 = arith.mulf %103, %104 : vector<8x8x128xf32>
      %106 = arith.truncf %105 : vector<8x8x128xf32> to vector<8x8x128xbf16>
      %c0_54 = arith.constant 0 : index
      %c0_55 = arith.constant 0 : index
      %c0_56 = arith.constant 0 : index
      %c0_57 = arith.constant 0 : index
      %107 = vector.load %arg6[%c0_54, %c0_55, %c0_56, %c0_57] : memref<1x8x8x128xbf16, #tpu.memory_space<vmem>>, vector<1x8x8x128xbf16>
      %108 = vector.shape_cast %107 : vector<1x8x8x128xbf16> to vector<8x8x128xbf16>
      %109 = vector.shape_cast %106 : vector<8x8x128xbf16> to vector<1x8x8x128xbf16>
      tpu.vector_store %arg6[%c0_54, %c0_55, %c0_56, %c0_57], %109 {strides = array<i32>} : memref<1x8x8x128xbf16, #tpu.memory_space<vmem>>, vector<1x8x8x128xbf16>,
    } else {
    }
    return
  }
  func.func @transform_0(%arg0: i32, %arg1: i32) -> (i32, i32, i32, i32, i32) {
    %c0_i32 = arith.constant 0 : i32
    %c0_i32_0 = arith.constant 0 : i32
    %c0_i32_1 = arith.constant 0 : i32
    %c0_i32_2 = arith.constant 0 : i32
    %c0_i32_3 = arith.constant 0 : i32
    return %c0_i32, %arg1, %c0_i32_0, %c0_i32_1, %c0_i32_2 : i32, i32, i32, i32, i32
  }
  func.func @transform_1(%arg0: i32, %arg1: i32) -> (i32, i32) {
    %c0_i32 = arith.constant 0 : i32
    %c0_i32_0 = arith.constant 0 : i32
    %c0_i32_1 = arith.constant 0 : i32
    return %c0_i32, %c0_i32_0 : i32, i32
  }
  func.func @transform_2(%arg0: i32, %arg1: i32) -> (i32, i32) {
    %c0_i32 = arith.constant 0 : i32
    %c0_i32_0 = arith.constant 0 : i32
    %c0_i32_1 = arith.constant 0 : i32
    return %c0_i32, %c0_i32_0 : i32, i32
  }
  func.func @transform_3(%arg0: i32, %arg1: i32) -> (i32, i32) {
    %c0_i32 = arith.constant 0 : i32
    %c0_i32_0 = arith.constant 0 : i32
    %c0_i32_1 = arith.constant 0 : i32
    return %c0_i32, %c0_i32_0 : i32, i32
  }
  func.func @transform_4(%arg0: i32, %arg1: i32) -> (i32, i32, i32, i32) {
    %0 = arith.muli %arg1, %arg0 : i32
    %c0_i32 = arith.constant 0 : i32
    %c0_i32_0 = arith.constant 0 : i32
    %c0_i32_1 = arith.constant 0 : i32
    %c0_i32_2 = arith.constant 0 : i32
    return %0, %c0_i32, %c0_i32_0, %c0_i32_1 : i32, i32, i32, i32
  }
}

</mosaic_0001>

<llo_original>
// kernel: mobilenet_v3_forward.7
$region0: #{mobilenet_v3_forward.7}
  #allocation0 [shape = 'u32[]', space=smem, size = 0x4, offset = 0x4, fixed_abs, tag = 'smem constant byte address 0x4 - core index']
  #allocation1 [shape = 'u32[144,128]{1,0:T(1,128)}', space=vmem, size = 0x12000, scoped, tag = 'internal scratch']
  #allocation2 [shape = 'f32[1,128]{1,0:T(1,128)}', space=vmem, size = 0x200, scoped, tag = 'scratch operand']
  #allocation3 [shape = 'f32[1,128]{1,0:T(1,128)}', space=vmem, size = 0x200, scoped, tag = 'scratch operand']
  #allocation4 [shape = 'f32[1,128]{1,0:T(1,128)}', space=vmem, size = 0x200, scoped, tag = 'scratch operand']
  #allocation5 [shape = 'f32[1,128]{1,0:T(1,128)}', space=vmem, size = 0x200, scoped, tag = 'scratch operand']
  %s0 = inlined_call_operand.vmem [shape: bf16[512,27], index: 0, kind: input, shape index: {}]
  %s1 = inlined_call_operand.vmem [shape: bf16[27,128], index: 1, kind: input, shape index: {}]
  %s2 = inlined_call_operand.vmem [shape: f32[1,128], index: 2, kind: input, shape index: {}]
  %s3 = inlined_call_operand.vmem [shape: f32[1,128], index: 3, kind: input, shape index: {}]
  %s4 = inlined_call_operand.vmem [shape: bf16[512,128], index: 4, kind: output, shape index: {}]
  %s5 = sld [smem:[#allocation0]]
  $region65: #{mobilenet_v3_forward.7} parent=0
    _
  %s7 = ssub.s32 1, %s5
  %s8 = scalar_select 0, %s7, %s5
  loop: start=0, step=1, limit=4
  $region2: #{mobilenet_v3_forward.7} parent=0 // loop_pre_header
    _
  $region3: #{mobilenet_v3_forward.7} parent=0 // loop_header
    %s10 = sphi 0, %s14
    %p11 = scmp.ge.s32.totalorder %s10, 4
    %s17 = sphi 0, %s29
    %s18 = sphi 0, %s25
    %s19 = sphi 0, %s17
    %s20 = sphi 0, %s18
    %s21 = sphi 0, %s19
    %s22 = sphi 0, %s20
    %s32 = sphi 0, %s34
    %s35 = sphi 0, %s32
    %s36 = sphi 0, %s35
    %s52 = sphi 0, %s36
    %s56 = sphi 0, %s56
    %s58 = sphi 0, %s56
    %s59 = sphi 0, %s58
    %s73 = sphi 0, %s59
    %s77 = sphi 0, %s77
    %s79 = sphi 0, %s77
    %s80 = sphi 0, %s79
    %s94 = sphi 0, %s80
    %s98 = sphi 0, %s98
    %s100 = sphi 0, %s98
    %s101 = sphi 0, %s100
    %s115 = sphi 0, %s101
    %s123 = sphi 0, %s125
    %s126 = sphi 0, %s123
    %s127 = sphi 0, %s126
    %s143 = sphi 0, %s127
  $region4: #{mobilenet_v3_forward.7} parent=0 // loop_header_branch
    %13 = sbr.rel (%p11) target = $region8
  $region5: #{mobilenet_v3_forward.7} parent=0 // loop_body
    %s15 = ssub.s32 %s10, 1
    %s16 = ssub.s32 %s10, 2
    %s23 = sadd.s32 1, %s18
    %p24 = scmp.ge.s32.totalorder %s23, 1
    %s25 = scalar_select %p24, 0, %s23
    %s26 = sadd.s32 1, %s17
    %s27 = scalar_select %p24, %s26, %s17
    %p28 = scmp.ge.s32.totalorder %s27, 2
    %s29 = scalar_select %p28, 0, %s27
    %s30 = ssub.s32 %s18, %s25
    %p31 = scmp.eq.s32.totalorder %s30, 0
    %s33 = sadd.s32 %s32, 1
    %s34 = scalar_select %p31, %s32, %s33
    %p37 = pneg %p31
    %p38 = scmp.eq.s32.totalorder %s10, 1
    %p39 = por %p37, %p38
    %p40 = scmp.ne.s32.totalorder %s32, %s35
    %p41 = scmp.eq.s32.totalorder %s10, 0
    %p42 = por %p40, %p41
    %p43 = scmp.ne.s32.totalorder %s32, %s35
    %p44 = scmp.eq.s32.totalorder %s15, 1
    %p45 = por %p43, %p44
    %p46 = scmp.ne.s32.totalorder %s35, %s36
    %p47 = scmp.eq.s32.totalorder %s15, 0
    %p48 = por %p46, %p47
    %p49 = scmp.ne.s32.totalorder %s35, %s36
    %p50 = scmp.eq.s32.totalorder %s16, 1
    %p51 = por %p49, %p50
    %p53 = scmp.ne.s32.totalorder %s36, %s52
    %p54 = scmp.eq.s32.totalorder %s16, 0
    %p55 = por %p53, %p54
    %s57 = sadd.s32 %s56, 1
    %p60 = scmp.eq.s32.totalorder %s10, 1
    %p61 = scmp.ne.s32.totalorder %s56, %s58
    %p62 = scmp.eq.s32.totalorder %s10, 0
    %p63 = por %p61, %p62
    %p64 = scmp.ne.s32.totalorder %s56, %s58
    %p65 = scmp.eq.s32.totalorder %s15, 1
    %p66 = por %p64, %p65
    %p67 = scmp.ne.s32.totalorder %s58, %s59
    %p68 = scmp.eq.s32.totalorder %s15, 0
    %p69 = por %p67, %p68
    %p70 = scmp.ne.s32.totalorder %s58, %s59
    %p71 = scmp.eq.s32.totalorder %s16, 1
    %p72 = por %p70, %p71
    %p74 = scmp.ne.s32.totalorder %s59, %s73
    %p75 = scmp.eq.s32.totalorder %s16, 0
    %p76 = por %p74, %p75
    %s78 = sadd.s32 %s77, 1
    %p81 = scmp.eq.s32.totalorder %s10, 1
    %p82 = scmp.ne.s32.totalorder %s77, %s79
    %p83 = scmp.eq.s32.totalorder %s10, 0
    %p84 = por %p82, %p83
    %p85 = scmp.ne.s32.totalorder %s77, %s79
    %p86 = scmp.eq.s32.totalorder %s15, 1
    %p87 = por %p85, %p86
    %p88 = scmp.ne.s32.totalorder %s79, %s80
    %p89 = scmp.eq.s32.totalorder %s15, 0
    %p90 = por %p88, %p89
    %p91 = scmp.ne.s32.totalorder %s79, %s80
    %p92 = scmp.eq.s32.totalorder %s16, 1
    %p93 = por %p91, %p92
    %p95 = scmp.ne.s32.totalorder %s80, %s94
    %p96 = scmp.eq.s32.totalorder %s16, 0
    %p97 = por %p95, %p96
    %s99 = sadd.s32 %s98, 1
    %p102 = scmp.eq.s32.totalorder %s10, 1
    %p103 = scmp.ne.s32.totalorder %s98, %s100
    %p104 = scmp.eq.s32.totalorder %s10, 0
    %p105 = por %p103, %p104
    %p106 = scmp.ne.s32.totalorder %s98, %s100
    %p107 = scmp.eq.s32.totalorder %s15, 1
    %p108 = por %p106, %p107
    %p109 = scmp.ne.s32.totalorder %s100, %s101
    %p110 = scmp.eq.s32.totalorder %s15, 0
    %p111 = por %p109, %p110
    %p112 = scmp.ne.s32.totalorder %s100, %s101
    %p113 = scmp.eq.s32.totalorder %s16, 1
    %p114 = por %p112, %p113
    %p116 = scmp.ne.s32.totalorder %s101, %s115
    %p117 = scmp.eq.s32.totalorder %s16, 0
    %p118 = por %p116, %p117
    %s119 = smul.u32 %s18, %s17
    %s120 = smul.u32 %s25, %s29
    %s121 = ssub.s32 %s119, %s120
    %p122 = scmp.eq.s32.totalorder %s121, 0
    %s124 = sadd.s32 %s123, 1
    %s125 = scalar_select %p122, %s123, %s124
    %p128 = pneg %p122
    %p129 = scmp.eq.s32.totalorder %s10, 1
    %p130 = por %p128, %p129
    %p131 = scmp.ne.s32.totalorder %s123, %s126
    %p132 = scmp.eq.s32.totalorder %s10, 0
    %p133 = por %p131, %p132
    %p134 = scmp.ne.s32.totalorder %s123, %s126
    %p135 = scmp.eq.s32.totalorder %s15, 1
    %p136 = por %p134, %p135
    %p137 = scmp.ne.s32.totalorder %s126, %s127
    %p138 = scmp.eq.s32.totalorder %s15, 0
    %p139 = por %p137, %p138
    %p140 = scmp.ne.s32.totalorder %s126, %s127
    %p141 = scmp.eq.s32.totalorder %s16, 1
    %p142 = por %p140, %p141
    %p144 = scmp.ne.s32.totalorder %s127, %s143
    %p145 = scmp.eq.s32.totalorder %s16, 0
    %p146 = por %p144, %p145
    %p147 = scmp.le.s32.totalorder 1, %s10
    %p148 = scmp.lt.s32.totalorder %s10, 3
    %p149 = pnand %p147, %p148
    %p150 = pneg %p149
    // Predicated region
    $region9: #{mobilenet_v3_forward.7} parent=5 // pred_check
      _
    $region10: #{mobilenet_v3_forward.7} parent=5 // pred_check_branch
      %152 = sbr.rel (%p149) target = $region12
    $region11: #{mobilenet_v3_forward.7} parent=5 // pred_region
      %s153 = ssub.s32 %s10, 1
      // Predicated region
      $region13: #{mobilenet_v3_forward.7} parent=11 // pred_check
        %p154 = pneg %p48
      $region14: #{mobilenet_v3_forward.7} parent=11 // pred_check_branch
        %156 = sbr.rel (%p154) target = $region16
      $region15: #{mobilenet_v3_forward.7} parent=11 // pred_region
        %s157 = smul.u32 64, %s20
        %p158 = scmp.lt.s32.totalorder %s157, 63
        %s159 = scalar_select %p158, %s157, 63
        %s160 = smul.addr %s159, 4
        %s161 = scalar_lea.vmem %s0, %s160
        %s162 = smul.u32 64, %s20
      $region16: #{mobilenet_v3_forward.7} parent=11 // pred_fallthru
        _
      // Predicated region
      $region17: #{mobilenet_v3_forward.7} parent=11 // pred_check
        %p163 = pneg %p69
      $region18: #{mobilenet_v3_forward.7} parent=11 // pred_check_branch
        %165 = sbr.rel (%p163) target = $region20
      $region19: #{mobilenet_v3_forward.7} parent=11 // pred_region
        _
      $region20: #{mobilenet_v3_forward.7} parent=11 // pred_fallthru
        _
      // Predicated region
      $region21: #{mobilenet_v3_forward.7} parent=11 // pred_check
        %p166 = pneg %p90
      $region22: #{mobilenet_v3_forward.7} parent=11 // pred_check_branch
        %168 = sbr.rel (%p166) target = $region24
      $region23: #{mobilenet_v3_forward.7} parent=11 // pred_region
        _
      $region24: #{mobilenet_v3_forward.7} parent=11 // pred_fallthru
        _
      // Predicated region
      $region25: #{mobilenet_v3_forward.7} parent=11 // pred_check
        %p169 = pneg %p111
      $region26: #{mobilenet_v3_forward.7} parent=11 // pred_check_branch
        %171 = sbr.rel (%p169) target = $region28
      $region27: #{mobilenet_v3_forward.7} parent=11 // pred_region
        _
      $region28: #{mobilenet_v3_forward.7} parent=11 // pred_fallthru
        _
    $region12: #{mobilenet_v3_forward.7} parent=5 // pred_fallthru
      _
    %p172 = scmp.lt.s32.totalorder %s10, 2
    // Predicated region
    $region29: #{mobilenet_v3_forward.7} parent=5 // pred_check
      %p173 = pneg %p172
    $region30: #{mobilenet_v3_forward.7} parent=5 // pred_check_branch
      %175 = sbr.rel (%p173) target = $region32
    $region31: #{mobilenet_v3_forward.7} parent=5 // pred_region
      _
    $region32: #{mobilenet_v3_forward.7} parent=5 // pred_fallthru
      _
    %p176 = scmp.le.s32.totalorder 1, %s10
    %p177 = scmp.lt.s32.totalorder %s10, 3
    %p178 = pnand %p176, %p177
    %p179 = pneg %p178
    // Predicated region
    $region33: #{mobilenet_v3_forward.7} parent=5 // pred_check
      _
    $region34: #{mobilenet_v3_forward.7} parent=5 // pred_check_branch
      %181 = sbr.rel (%p178) target = $region36
    $region35: #{mobilenet_v3_forward.7} parent=5 // pred_region
      %s182 = ssub.s32 %s10, 1
      %s183 = smul.u32 64, %s20
      %p184 = scmp.lt.s32.totalorder %s183, 63
      %s185 = scalar_select %p184, %s183, 63
      %s186 = smul.addr %s185, 4
      %s187 = scalar_lea.vmem %s0, %s186
      %p188 = pneg %p48
      %p189 = pneg %p45
      %p190 = pneg %p69
      %p191 = pneg %p66
      %p192 = pneg %p90
      %p193 = pneg %p87
      %p194 = pneg %p111
      %p195 = pneg %p108
      %p196 = pneg %p139
      %p197 = pneg %p136
      %s198 = smul.u32 %s20, %s19
      %s199 = smul.u32 64, %s198
      %p200 = scmp.lt.s32.totalorder %s199, 63
      %s201 = scalar_select %p200, %s199, 63
      %s202 = smul.addr %s201, 4
      %s203 = scalar_lea.vmem %s4, %s202
      %s204 = smul.u32 64, %s20
      %p205 = scmp.lt.s32.totalorder %s204, 63
      %s206 = scalar_select %p205, %s204, 63
      %s207 = smul.addr %s206, 4
      %s208 = scalar_lea.vmem %s0, %s207
      %s209 = smul.u32 64, %s20
      %s210 = smul.u32 %s20, %s19
      %s211 = smul.u32 64, %s210
      %p212 = scmp.lt.s32.totalorder %s211, 63
      %s213 = scalar_select %p212, %s211, 63
      %s214 = smul.addr %s213, 4
      %s215 = scalar_lea.vmem %s4, %s214
      %s216 = smul.u32 %s20, %s19
      %s217 = smul.u32 64, %s216
      %v219 = vld [vmem:[%s208] sm:$0xf]
      %v220 = vld [vmem:[%s208 + $0x4] sm:$0xf]
      %v221 = vld [vmem:[%s208 + $0x8] sm:$0xf]
      %v222 = vld [vmem:[%s208 + $0xc] sm:$0xf]
      %v223 = vld [vmem:[%s208 + $0x10] sm:$0xf]
      %v224 = vld [vmem:[%s208 + $0x14] sm:$0xf]
      %v225 = vld [vmem:[%s208 + $0x18] sm:$0xf]
      %v226 = vld [vmem:[%s208 + $0x1c] sm:$0xf]
      %v227 = vld [vmem:[%s208 + $0x20] sm:$0xf]
      %v228 = vld [vmem:[%s208 + $0x24] sm:$0xf]
      %v229 = vld [vmem:[%s208 + $0x28] sm:$0xf]
      %v230 = vld [vmem:[%s208 + $0x2c] sm:$0xf]
      %v231 = vld [vmem:[%s208 + $0x30] sm:$0xf]
      %v232 = vld [vmem:[%s208 + $0x34] sm:$0xf]
      %v233 = vld [vmem:[%s208 + $0x38] sm:$0xf]
      %v234 = vld [vmem:[%s208 + $0x3c] sm:$0xf]
      %v235 = vld [vmem:[%s208 + $0x40] sm:$0xf]
      %v236 = vld [vmem:[%s208 + $0x44] sm:$0xf]
      %v237 = vld [vmem:[%s208 + $0x48] sm:$0xf]
      %v238 = vld [vmem:[%s208 + $0x4c] sm:$0xf]
      %v239 = vld [vmem:[%s208 + $0x50] sm:$0xf]
      %v240 = vld [vmem:[%s208 + $0x54] sm:$0xf]
      %v241 = vld [vmem:[%s208 + $0x58] sm:$0xf]
      %v242 = vld [vmem:[%s208 + $0x5c] sm:$0xf]
      %v243 = vld [vmem:[%s208 + $0x60] sm:$0xf]
      %v244 = vld [vmem:[%s208 + $0x64] sm:$0xf]
      %v245 = vld [vmem:[%s208 + $0x68] sm:$0xf]
      %v246 = vld [vmem:[%s208 + $0x6c] sm:$0xf]
      %v247 = vld [vmem:[%s208 + $0x70] sm:$0xf]
      %v248 = vld [vmem:[%s208 + $0x74] sm:$0xf]
      %v249 = vld [vmem:[%s208 + $0x78] sm:$0xf]
      %v250 = vld [vmem:[%s208 + $0x7c] sm:$0xf]
      %v251 = vld [vmem:[%s208 + $0x80] sm:$0xf]
      %v252 = vld [vmem:[%s208 + $0x84] sm:$0xf]
      %v253 = vld [vmem:[%s208 + $0x88] sm:$0xf]
      %v254 = vld [vmem:[%s208 + $0x8c] sm:$0xf]
      %v255 = vld [vmem:[%s208 + $0x90] sm:$0xf]
      %v256 = vld [vmem:[%s208 + $0x94] sm:$0xf]
      %v257 = vld [vmem:[%s208 + $0x98] sm:$0xf]
      %v258 = vld [vmem:[%s208 + $0x9c] sm:$0xf]
      %v259 = vld [vmem:[%s208 + $0xa0] sm:$0xf]
      %v260 = vld [vmem:[%s208 + $0xa4] sm:$0xf]
      %v261 = vld [vmem:[%s208 + $0xa8] sm:$0xf]
      %v262 = vld [vmem:[%s208 + $0xac] sm:$0xf]
      %v263 = vld [vmem:[%s208 + $0xb0] sm:$0xf]
      %v264 = vld [vmem:[%s208 + $0xb4] sm:$0xf]
      %v265 = vld [vmem:[%s208 + $0xb8] sm:$0xf]
      %v266 = vld [vmem:[%s208 + $0xbc] sm:$0xf]
      %v267 = vld [vmem:[%s208 + $0xc0] sm:$0xf]
      %v268 = vld [vmem:[%s208 + $0xc4] sm:$0xf]
      %v269 = vld [vmem:[%s208 + $0xc8] sm:$0xf]
      %v270 = vld [vmem:[%s208 + $0xcc] sm:$0xf]
      %v271 = vld [vmem:[%s208 + $0xd0] sm:$0xf]
      %v272 = vld [vmem:[%s208 + $0xd4] sm:$0xf]
      %v273 = vld [vmem:[%s208 + $0xd8] sm:$0xf]
      %v274 = vld [vmem:[%s208 + $0xdc] sm:$0xf]
      %v275 = vld [vmem:[%s208 + $0xe0] sm:$0xf]
      %v276 = vld [vmem:[%s208 + $0xe4] sm:$0xf]
      %v277 = vld [vmem:[%s208 + $0xe8] sm:$0xf]
      %v278 = vld [vmem:[%s208 + $0xec] sm:$0xf]
      %v279 = vld [vmem:[%s208 + $0xf0] sm:$0xf]
      %v280 = vld [vmem:[%s208 + $0xf4] sm:$0xf]
      %v281 = vld [vmem:[%s208 + $0xf8] sm:$0xf]
      %v282 = vld [vmem:[%s208 + $0xfc] sm:$0xf]
      %v283 = vld [vmem:[%s1] sm:$0xf]
      %v284 = vld [vmem:[%s1 + $0x4] sm:$0xf]
      %v285 = vld [vmem:[%s1 + $0x8] sm:$0xf]
      %v286 = vld [vmem:[%s1 + $0xc] sm:$0x3]
      %v351 = vunpack.c.l.b16 %v219
      %v352 = vunpack.c.l.b16 %v220
      %v353 = vunpack.c.l.b16 %v221
      %v354 = vunpack.c.l.b16 %v222
      %v355 = vunpack.c.l.b16 %v223
      %v356 = vunpack.c.l.b16 %v224
      %v357 = vunpack.c.l.b16 %v225
      %v358 = vunpack.c.l.b16 %v226
      %v359 = vunpack.c.l.b16 %v227
      %v360 = vunpack.c.l.b16 %v228
      %v361 = vunpack.c.l.b16 %v229
      %v362 = vunpack.c.l.b16 %v230
      %v363 = vunpack.c.l.b16 %v231
      %v364 = vunpack.c.l.b16 %v232
      %v365 = vunpack.c.l.b16 %v233
      %v366 = vunpack.c.l.b16 %v234
      %v367 = vunpack.c.l.b16 %v235
      %v368 = vunpack.c.l.b16 %v236
      %v369 = vunpack.c.l.b16 %v237
      %v370 = vunpack.c.l.b16 %v238
      %v371 = vunpack.c.l.b16 %v239
      %v372 = vunpack.c.l.b16 %v240
      %v373 = vunpack.c.l.b16 %v241
      %v374 = vunpack.c.l.b16 %v242
      %v375 = vunpack.c.l.b16 %v243
      %v376 = vunpack.c.l.b16 %v244
      %v377 = vunpack.c.l.b16 %v245
      %v378 = vunpack.c.l.b16 %v246
      %v379 = vunpack.c.l.b16 %v247
      %v380 = vunpack.c.l.b16 %v248
      %v381 = vunpack.c.l.b16 %v249
      %v382 = vunpack.c.l.b16 %v250
      %v383 = vunpack.c.l.b16 %v251
      %v384 = vunpack.c.l.b16 %v252
      %v385 = vunpack.c.l.b16 %v253
      %v386 = vunpack.c.l.b16 %v254
      %v387 = vunpack.c.l.b16 %v255
      %v388 = vunpack.c.l.b16 %v256
      %v389 = vunpack.c.l.b16 %v257
      %v390 = vunpack.c.l.b16 %v258
      %v391 = vunpack.c.l.b16 %v259
      %v392 = vunpack.c.l.b16 %v260
      %v393 = vunpack.c.l.b16 %v261
      %v394 = vunpack.c.l.b16 %v262
      %v395 = vunpack.c.l.b16 %v263
      %v396 = vunpack.c.l.b16 %v264
      %v397 = vunpack.c.l.b16 %v265
      %v398 = vunpack.c.l.b16 %v266
      %v399 = vunpack.c.l.b16 %v267
      %v400 = vunpack.c.l.b16 %v268
      %v401 = vunpack.c.l.b16 %v269
      %v402 = vunpack.c.l.b16 %v270
      %v403 = vunpack.c.l.b16 %v271
      %v404 = vunpack.c.l.b16 %v272
      %v405 = vunpack.c.l.b16 %v273
      %v406 = vunpack.c.l.b16 %v274
      %v407 = vunpack.c.l.b16 %v275
      %v408 = vunpack.c.l.b16 %v276
      %v409 = vunpack.c.l.b16 %v277
      %v410 = vunpack.c.l.b16 %v278
      %v411 = vunpack.c.l.b16 %v279
      %v412 = vunpack.c.l.b16 %v280
      %v413 = vunpack.c.l.b16 %v281
      %v414 = vunpack.c.l.b16 %v282
      %v415 = vpack.c.b16 %v352, %v351
      %v416 = vpack.c.b16 %v354, %v353
      %v417 = vpack.c.b16 %v356, %v355
      %v418 = vpack.c.b16 %v358, %v357
      %v419 = vpack.c.b16 %v360, %v359
      %v420 = vpack.c.b16 %v362, %v361
      %v421 = vpack.c.b16 %v364, %v363
      %v422 = vpack.c.b16 %v366, %v365
      %v423 = vpack.c.b16 %v368, %v367
      %v424 = vpack.c.b16 %v370, %v369
      %v425 = vpack.c.b16 %v372, %v371
      %v426 = vpack.c.b16 %v374, %v373
      %v427 = vpack.c.b16 %v376, %v375
      %v428 = vpack.c.b16 %v378, %v377
      %v429 = vpack.c.b16 %v380, %v379
      %v430 = vpack.c.b16 %v382, %v381
      %v431 = vpack.c.b16 %v384, %v383
      %v432 = vpack.c.b16 %v386, %v385
      %v433 = vpack.c.b16 %v388, %v387
      %v434 = vpack.c.b16 %v390, %v389
      %v435 = vpack.c.b16 %v392, %v391
      %v436 = vpack.c.b16 %v394, %v393
      %v437 = vpack.c.b16 %v396, %v395
      %v438 = vpack.c.b16 %v398, %v397
      %v439 = vpack.c.b16 %v400, %v399
      %v440 = vpack.c.b16 %v402, %v401
      %v441 = vpack.c.b16 %v404, %v403
      %v442 = vpack.c.b16 %v406, %v405
      %v443 = vpack.c.b16 %v408, %v407
      %v444 = vpack.c.b16 %v410, %v409
      %v445 = vpack.c.b16 %v412, %v411
      %v446 = vpack.c.b16 %v414, %v413
      %v451 = vunpack.c.l.b16 %v283
      %v452 = vunpack.c.l.b16 %v284
      %v453 = vunpack.c.l.b16 %v285
      %v454 = vunpack.c.l.b16 %v286
      %v455 = vpack.c.b16 %v452, %v451
      %v456 = vpack.c.b16 %v454, %v453
      %vm458 = vcmask 220160
      %v460 = vsel %vm458, %v415, 0
      %v463 = vsel %vm458, %v416, 0
      %v466 = vsel %vm458, %v417, 0
      %v469 = vsel %vm458, %v418, 0
      %v472 = vsel %vm458, %v419, 0
      %v475 = vsel %vm458, %v420, 0
      %v478 = vsel %vm458, %v421, 0
      %v481 = vsel %vm458, %v422, 0
      %v484 = vsel %vm458, %v423, 0
      %v487 = vsel %vm458, %v424, 0
      %v490 = vsel %vm458, %v425, 0
      %v493 = vsel %vm458, %v426, 0
      %v496 = vsel %vm458, %v427, 0
      %v499 = vsel %vm458, %v428, 0
      %v502 = vsel %vm458, %v429, 0
      %v505 = vsel %vm458, %v430, 0
      %v508 = vsel %vm458, %v431, 0
      %v511 = vsel %vm458, %v432, 0
      %v514 = vsel %vm458, %v433, 0
      %v517 = vsel %vm458, %v434, 0
      %v520 = vsel %vm458, %v435, 0
      %v523 = vsel %vm458, %v436, 0
      %v526 = vsel %vm458, %v437, 0
      %v529 = vsel %vm458, %v438, 0
      %v532 = vsel %vm458, %v439, 0
      %v535 = vsel %vm458, %v440, 0
      %v538 = vsel %vm458, %v441, 0
      %v541 = vsel %vm458, %v442, 0
      %v544 = vsel %vm458, %v443, 0
      %v547 = vsel %vm458, %v444, 0
      %v550 = vsel %vm458, %v445, 0
      %v553 = vsel %vm458, %v446, 0
      %vm555 = vcmask 1044480
      %vm556 = vcmask 1045504
      %v557 = vsel %vm555, 4294967295, 65535
      %v558 = vsel %vm556, %v557, 0
      %v560 = vand.u32 %v456, %v558
      %562 = vmatprep.subr.bf16.mxu0 0
      %563 = vmatpush1.bf16.msra.mxu0 %v455
      %564 = vmatprep.subr.bf16.mxu0 0
      %565 = vmatpush1.bf16.msra.mxu0 %v560
      %566 = vmatprep.subr.bf16.mxu0 0
      %567 = vmatpush1.bf16.msra.mxu0 0
      %568 = vmatprep.subr.bf16.mxu0 0
      %569 = vmatpush1.bf16.msra.mxu0 0
      %570 = vmatprep.subr.bf16.mxu0 0
      %571 = vmatpush1.bf16.msra.mxu0 0
      %572 = vmatprep.subr.bf16.mxu0 0
      %573 = vmatpush1.bf16.msra.mxu0 0
      %574 = vmatprep.subr.bf16.mxu0 0
      %575 = vmatpush1.bf16.msra.mxu0 0
      %576 = vmatprep.subr.bf16.mxu0 0
      %577 = vmatpush1.bf16.msra.mxu0 0
      %578 = vmatprep.subr.bf16.mxu0 0
      %579 = vmatpush1.bf16.msra.mxu0 0
      %580 = vmatprep.subr.bf16.mxu0 0
      %581 = vmatpush1.bf16.msra.mxu0 0
      %582 = vmatprep.subr.bf16.mxu0 0
      %583 = vmatpush1.bf16.msra.mxu0 0
      %584 = vmatprep.subr.bf16.mxu0 0
      %585 = vmatpush1.bf16.msra.mxu0 0
      %586 = vmatprep.subr.bf16.mxu0 0
      %587 = vmatpush1.bf16.msra.mxu0 0
      %588 = vmatprep.subr.bf16.mxu0 0
      %589 = vmatpush1.bf16.msra.mxu0 0
      %590 = vmatprep.subr.bf16.mxu0 0
      %591 = vmatpush1.bf16.msra.mxu0 0
      %592 = vmatprep.subr.bf16.mxu0 0
      %593 = vmatpush1.bf16.msra.mxu0 0
      %594 = vmatprep.mubr.bf16.mxu0 0
      %595 = vmatmul.mubr.bf16.gmra.mrb[0].mxu0 %v460
      %v596 = vpop.f32.mrb[0].mxu0
      %v597 = vadd.f32 0.0, %v596
      %v598 = vpop.f32.mrb[0].mxu0
      %v599 = vpop.f32.mrb[0].mxu0
      %v600 = vadd.f32 0.0, %v599
      %v601 = vpop.f32.mrb[0].mxu0
      %602 = vmatprep.mubr.bf16.mxu0 0
      %603 = vmatmul.mubr.bf16.gmra.mrb[0].mxu0 %v463
      %v604 = vpop.f32.mrb[0].mxu0
      %v605 = vadd.f32 0.0, %v604
      %v606 = vpop.f32.mrb[0].mxu0
      %v607 = vpop.f32.mrb[0].mxu0
      %v608 = vadd.f32 0.0, %v607
      %v609 = vpop.f32.mrb[0].mxu0
      %610 = vmatprep.mubr.bf16.mxu0 0
      %611 = vmatmul.mubr.bf16.gmra.mrb[0].mxu0 %v466
      %v612 = vpop.f32.mrb[0].mxu0
      %v613 = vadd.f32 0.0, %v612
      %v614 = vpop.f32.mrb[0].mxu0
      %v615 = vpop.f32.mrb[0].mxu0
      %v616 = vadd.f32 0.0, %v615
      %v617 = vpop.f32.mrb[0].mxu0
      %618 = vmatprep.mubr.bf16.mxu0 0
      %619 = vmatmul.mubr.bf16.gmra.mrb[0].mxu0 %v469
      %v620 = vpop.f32.mrb[0].mxu0
      %v621 = vadd.f32 0.0, %v620
      %v622 = vpop.f32.mrb[0].mxu0
      %v623 = vpop.f32.mrb[0].mxu0
      %v624 = vadd.f32 0.0, %v623
      %v625 = vpop.f32.mrb[0].mxu0
      %626 = vmatprep.mubr.bf16.mxu0 0
      %627 = vmatmul.mubr.bf16.gmra.mrb[0].mxu0 %v472
      %v628 = vpop.f32.mrb[0].mxu0
      %v629 = vadd.f32 0.0, %v628
      %v630 = vpop.f32.mrb[0].mxu0
      %v631 = vpop.f32.mrb[0].mxu0
      %v632 = vadd.f32 0.0, %v631
      %v633 = vpop.f32.mrb[0].mxu0
      %634 = vmatprep.mubr.bf16.mxu0 0
      %635 = vmatmul.mubr.bf16.gmra.mrb[0].mxu0 %v475
      %v636 = vpop.f32.mrb[0].mxu0
      %v637 = vadd.f32 0.0, %v636
      %v638 = vpop.f32.mrb[0].mxu0
      %v639 = vpop.f32.mrb[0].mxu0
      %v640 = vadd.f32 0.0, %v639
      %v641 = vpop.f32.mrb[0].mxu0
      %642 = vmatprep.mubr.bf16.mxu0 0
      %643 = vmatmul.mubr.bf16.gmra.mrb[0].mxu0 %v478
      %v644 = vpop.f32.mrb[0].mxu0
      %v645 = vadd.f32 0.0, %v644
      %v646 = vpop.f32.mrb[0].mxu0
      %v647 = vpop.f32.mrb[0].mxu0
      %v648 = vadd.f32 0.0, %v647
      %v649 = vpop.f32.mrb[0].mxu0
      %650 = vmatprep.mubr.bf16.mxu0 0
      %651 = vmatmul.mubr.bf16.gmra.mrb[0].mxu0 %v481
      %v652 = vpop.f32.mrb[0].mxu0
      %v653 = vadd.f32 0.0, %v652
      %v654 = vpop.f32.mrb[0].mxu0
      %v655 = vpop.f32.mrb[0].mxu0
      %v656 = vadd.f32 0.0, %v655
      %v657 = vpop.f32.mrb[0].mxu0
      %658 = vmatprep.mubr.bf16.mxu0 0
      %659 = vmatmul.mubr.bf16.gmra.mrb[0].mxu0 %v484
      %v660 = vpop.f32.mrb[0].mxu0
      %v661 = vadd.f32 0.0, %v660
      %v662 = vpop.f32.mrb[0].mxu0
      %v663 = vpop.f32.mrb[0].mxu0
      %v664 = vadd.f32 0.0, %v663
      %v665 = vpop.f32.mrb[0].mxu0
      %666 = vmatprep.mubr.bf16.mxu0 0
      %667 = vmatmul.mubr.bf16.gmra.mrb[0].mxu0 %v487
      %v668 = vpop.f32.mrb[0].mxu0
      %v669 = vadd.f32 0.0, %v668
      %v670 = vpop.f32.mrb[0].mxu0
      %v671 = vpop.f32.mrb[0].mxu0
      %v672 = vadd.f32 0.0, %v671
      %v673 = vpop.f32.mrb[0].mxu0
      %674 = vmatprep.mubr.bf16.mxu0 0
      %675 = vmatmul.mubr.bf16.gmra.mrb[0].mxu0 %v490
      %v676 = vpop.f32.mrb[0].mxu0
      %v677 = vadd.f32 0.0, %v676
      %v678 = vpop.f32.mrb[0].mxu0
      %v679 = vpop.f32.mrb[0].mxu0
      %v680 = vadd.f32 0.0, %v679
      %v681 = vpop.f32.mrb[0].mxu0
      %682 = vmatprep.mubr.bf16.mxu0 0
      %683 = vmatmul.mubr.bf16.gmra.mrb[0].mxu0 %v493
      %v684 = vpop.f32.mrb[0].mxu0
      %v685 = vadd.f32 0.0, %v684
      %v686 = vpop.f32.mrb[0].mxu0
      %v687 = vpop.f32.mrb[0].mxu0
      %v688 = vadd.f32 0.0, %v687
      %v689 = vpop.f32.mrb[0].mxu0
      %690 = vmatprep.mubr.bf16.mxu0 0
      %691 = vmatmul.mubr.bf16.gmra.mrb[0].mxu0 %v496
      %v692 = vpop.f32.mrb[0].mxu0
      %v693 = vadd.f32 0.0, %v692
      %v694 = vpop.f32.mrb[0].mxu0
      %v695 = vpop.f32.mrb[0].mxu0
      %v696 = vadd.f32 0.0, %v695
      %v697 = vpop.f32.mrb[0].mxu0
      %698 = vmatprep.mubr.bf16.mxu0 0
      %699 = vmatmul.mubr.bf16.gmra.mrb[0].mxu0 %v499
      %v700 = vpop.f32.mrb[0].mxu0
      %v701 = vadd.f32 0.0, %v700
      %v702 = vpop.f32.mrb[0].mxu0
      %v703 = vpop.f32.mrb[0].mxu0
      %v704 = vadd.f32 0.0, %v703
      %v705 = vpop.f32.mrb[0].mxu0
      %706 = vmatprep.mubr.bf16.mxu0 0
      %707 = vmatmul.mubr.bf16.gmra.mrb[0].mxu0 %v502
      %v708 = vpop.f32.mrb[0].mxu0
      %v709 = vadd.f32 0.0, %v708
      %v710 = vpop.f32.mrb[0].mxu0
      %v711 = vpop.f32.mrb[0].mxu0
      %v712 = vadd.f32 0.0, %v711
      %v713 = vpop.f32.mrb[0].mxu0
      %714 = vmatprep.mubr.bf16.mxu0 0
      %715 = vmatmul.mubr.bf16.gmra.mrb[0].mxu0 %v505
      %v716 = vpop.f32.mrb[0].mxu0
      %v717 = vadd.f32 0.0, %v716
      %v718 = vpop.f32.mrb[0].mxu0
      %v719 = vpop.f32.mrb[0].mxu0
      %v720 = vadd.f32 0.0, %v719
      %v721 = vpop.f32.mrb[0].mxu0
      %722 = vmatprep.mubr.bf16.mxu0 0
      %723 = vmatmul.mubr.bf16.gmra.mrb[0].mxu0 %v508
      %v724 = vpop.f32.mrb[0].mxu0
      %v725 = vadd.f32 0.0, %v724
      %v726 = vpop.f32.mrb[0].mxu0
      %v727 = vpop.f32.mrb[0].mxu0
      %v728 = vadd.f32 0.0, %v727
      %v729 = vpop.f32.mrb[0].mxu0
      %730 = vmatprep.mubr.bf16.mxu0 0
      %731 = vmatmul.mubr.bf16.gmra.mrb[0].mxu0 %v511
      %v732 = vpop.f32.mrb[0].mxu0
      %v733 = vadd.f32 0.0, %v732
      %v734 = vpop.f32.mrb[0].mxu0
      %v735 = vpop.f32.mrb[0].mxu0
      %v736 = vadd.f32 0.0, %v735
      %v737 = vpop.f32.mrb[0].mxu0
      %738 = vmatprep.mubr.bf16.mxu0 0
      %739 = vmatmul.mubr.bf16.gmra.mrb[0].mxu0 %v514
      %v740 = vpop.f32.mrb[0].mxu0
      %v741 = vadd.f32 0.0, %v740
      %v742 = vpop.f32.mrb[0].mxu0
      %v743 = vpop.f32.mrb[0].mxu0
      %v744 = vadd.f32 0.0, %v743
      %v745 = vpop.f32.mrb[0].mxu0
      %746 = vmatprep.mubr.bf16.mxu0 0
      %747 = vmatmul.mubr.bf16.gmra.mrb[0].mxu0 %v517
      %v748 = vpop.f32.mrb[0].mxu0
      %v749 = vadd.f32 0.0, %v748
      %v750 = vpop.f32.mrb[0].mxu0
      %v751 = vpop.f32.mrb[0].mxu0
      %v752 = vadd.f32 0.0, %v751
      %v753 = vpop.f32.mrb[0].mxu0
      %754 = vmatprep.mubr.bf16.mxu0 0
      %755 = vmatmul.mubr.bf16.gmra.mrb[0].mxu0 %v520
      %v756 = vpop.f32.mrb[0].mxu0
      %v757 = vadd.f32 0.0, %v756
      %v758 = vpop.f32.mrb[0].mxu0
      %v759 = vpop.f32.mrb[0].mxu0
      %v760 = vadd.f32 0.0, %v759
      %v761 = vpop.f32.mrb[0].mxu0
      %762 = vmatprep.mubr.bf16.mxu0 0
      %763 = vmatmul.mubr.bf16.gmra.mrb[0].mxu0 %v523
      %v764 = vpop.f32.mrb[0].mxu0
      %v765 = vadd.f32 0.0, %v764
      %v766 = vpop.f32.mrb[0].mxu0
      %v767 = vpop.f32.mrb[0].mxu0
      %v768 = vadd.f32 0.0, %v767
      %v769 = vpop.f32.mrb[0].mxu0
      %770 = vmatprep.mubr.bf16.mxu0 0
      %771 = vmatmul.mubr.bf16.gmra.mrb[0].mxu0 %v526
      %v772 = vpop.f32.mrb[0].mxu0
      %v773 = vadd.f32 0.0, %v772
      %v774 = vpop.f32.mrb[0].mxu0
      %v775 = vpop.f32.mrb[0].mxu0
      %v776 = vadd.f32 0.0, %v775
      %v777 = vpop.f32.mrb[0].mxu0
      %778 = vmatprep.mubr.bf16.mxu0 0
      %779 = vmatmul.mubr.bf16.gmra.mrb[0].mxu0 %v529
      %v780 = vpop.f32.mrb[0].mxu0
      %v781 = vadd.f32 0.0, %v780
      %v782 = vpop.f32.mrb[0].mxu0
      %v783 = vpop.f32.mrb[0].mxu0
      %v784 = vadd.f32 0.0, %v783
      %v785 = vpop.f32.mrb[0].mxu0
      %786 = vmatprep.mubr.bf16.mxu0 0
      %787 = vmatmul.mubr.bf16.gmra.mrb[0].mxu0 %v532
      %v788 = vpop.f32.mrb[0].mxu0
      %v789 = vadd.f32 0.0, %v788
      %v790 = vpop.f32.mrb[0].mxu0
      %v791 = vpop.f32.mrb[0].mxu0
      %v792 = vadd.f32 0.0, %v791
      %v793 = vpop.f32.mrb[0].mxu0
      %794 = vmatprep.mubr.bf16.mxu0 0
      %795 = vmatmul.mubr.bf16.gmra.mrb[0].mxu0 %v535
      %v796 = vpop.f32.mrb[0].mxu0
      %v797 = vadd.f32 0.0, %v796
      %v798 = vpop.f32.mrb[0].mxu0
      %v799 = vpop.f32.mrb[0].mxu0
      %v800 = vadd.f32 0.0, %v799
      %v801 = vpop.f32.mrb[0].mxu0
      %802 = vmatprep.mubr.bf16.mxu0 0
      %803 = vmatmul.mubr.bf16.gmra.mrb[0].mxu0 %v538
      %v804 = vpop.f32.mrb[0].mxu0
      %v805 = vadd.f32 0.0, %v804
      %v806 = vpop.f32.mrb[0].mxu0
      %v807 = vpop.f32.mrb[0].mxu0
      %v808 = vadd.f32 0.0, %v807
      %v809 = vpop.f32.mrb[0].mxu0
      %810 = vmatprep.mubr.bf16.mxu0 0
      %811 = vmatmul.mubr.bf16.gmra.mrb[0].mxu0 %v541
      %v812 = vpop.f32.mrb[0].mxu0
      %v813 = vadd.f32 0.0, %v812
      %v814 = vpop.f32.mrb[0].mxu0
      %v815 = vpop.f32.mrb[0].mxu0
      %v816 = vadd.f32 0.0, %v815
      %v817 = vpop.f32.mrb[0].mxu0
      %818 = vmatprep.mubr.bf16.mxu0 0
      %819 = vmatmul.mubr.bf16.gmra.mrb[0].mxu0 %v544
      %v820 = vpop.f32.mrb[0].mxu0
      %v821 = vadd.f32 0.0, %v820
      %v822 = vpop.f32.mrb[0].mxu0
      %v823 = vpop.f32.mrb[0].mxu0
      %v824 = vadd.f32 0.0, %v823
      %v825 = vpop.f32.mrb[0].mxu0
      %826 = vmatprep.mubr.bf16.mxu0 0
      %827 = vmatmul.mubr.bf16.gmra.mrb[0].mxu0 %v547
      %v828 = vpop.f32.mrb[0].mxu0
      %v829 = vadd.f32 0.0, %v828
      %v830 = vpop.f32.mrb[0].mxu0
      %v831 = vpop.f32.mrb[0].mxu0
      %v832 = vadd.f32 0.0, %v831
      %v833 = vpop.f32.mrb[0].mxu0
      %834 = vmatprep.mubr.bf16.mxu0 0
      %835 = vmatmul.mubr.bf16.gmra.mrb[0].mxu0 %v550
      %v836 = vpop.f32.mrb[0].mxu0
      %v837 = vadd.f32 0.0, %v836
      %v838 = vpop.f32.mrb[0].mxu0
      %v839 = vpop.f32.mrb[0].mxu0
      %v840 = vadd.f32 0.0, %v839
      %v841 = vpop.f32.mrb[0].mxu0
      %842 = vmatprep.mubr.bf16.mxu0 0
      %843 = vmatmul.mubr.bf16.gmra.mrb[0].mxu0 %v553
      %v844 = vpop.f32.mrb[0].mxu0
      %v845 = vadd.f32 0.0, %v844
      %v846 = vpop.f32.mrb[0].mxu0
      %v847 = vpop.f32.mrb[0].mxu0
      %v848 = vadd.f32 0.0, %v847
      %v849 = vpop.f32.mrb[0].mxu0
      %850 = vdwg.mxu0
      %p851 = scmp.eq.s32.totalorder %s19, 0
      // Predicated region
      $region37: #{mobilenet_v3_forward.7} parent=35 // pred_check
        %p852 = pneg %p851
      $region38: #{mobilenet_v3_forward.7} parent=35 // pred_check_branch
        %854 = sbr.rel (%p852) target = $region40
      $region39: #{mobilenet_v3_forward.7} parent=35 // pred_region
        %p855 = scmp.eq.s32.totalorder %s20, 0
        // Predicated region
        $region41: #{mobilenet_v3_forward.7} parent=39 // pred_check
          %p856 = pneg %p855
        $region42: #{mobilenet_v3_forward.7} parent=39 // pred_check_branch
          %858 = sbr.rel (%p856) target = $region44
        $region43: #{mobilenet_v3_forward.7} parent=39 // pred_region
          %859 = vst [vmem:[#allocation2] sm:$0x1] 0.0
          %860 = vst [vmem:[#allocation3] sm:$0x1] 0.0
        $region44: #{mobilenet_v3_forward.7} parent=39 // pred_fallthru
          _
        %s861 = smul.u32 %s20, 512
        %v862 = vlaneseq
        %v863 = vshrl.u32 %v862, 7
        %v864 = vadd.s32 %v863, 8
        %v865 = vadd.s32 %v863, 16
        %v866 = vadd.s32 %v863, 24
        %v867 = vadd.s32 %v863, 32
        %v868 = vadd.s32 %v863, 40
        %v869 = vadd.s32 %v863, 48
        %v870 = vadd.s32 %v863, 56
        %v871 = vadd.s32 %v863, 64
        %v872 = vadd.s32 %v863, 72
        %v873 = vadd.s32 %v863, 80
        %v874 = vadd.s32 %v863, 88
        %v875 = vadd.s32 %v863, 96
        %v876 = vadd.s32 %v863, 104
        %v877 = vadd.s32 %v863, 112
        %v878 = vadd.s32 %v863, 120
        %v879 = vadd.s32 %v863, 128
        %v880 = vadd.s32 %v863, 136
        %v881 = vadd.s32 %v863, 144
        %v882 = vadd.s32 %v863, 152
        %v883 = vadd.s32 %v863, 160
        %v884 = vadd.s32 %v863, 168
        %v885 = vadd.s32 %v863, 176
        %v886 = vadd.s32 %v863, 184
        %v887 = vadd.s32 %v863, 192
        %v888 = vadd.s32 %v863, 200
        %v889 = vadd.s32 %v863, 208
        %v890 = vadd.s32 %v863, 216
        %v891 = vadd.s32 %v863, 224
        %v892 = vadd.s32 %v863, 232
        %v893 = vadd.s32 %v863, 240
        %v894 = vadd.s32 %v863, 248
        %v895 = vadd.s32 %v863, 256
        %v896 = vadd.s32 %v863, 264
        %v897 = vadd.s32 %v863, 272
        %v898 = vadd.s32 %v863, 280
        %v899 = vadd.s32 %v863, 288
        %v900 = vadd.s32 %v863, 296
        %v901 = vadd.s32 %v863, 304
        %v902 = vadd.s32 %v863, 312
        %v903 = vadd.s32 %v863, 320
        %v904 = vadd.s32 %v863, 328
        %v905 = vadd.s32 %v863, 336
        %v906 = vadd.s32 %v863, 344
        %v907 = vadd.s32 %v863, 352
        %v908 = vadd.s32 %v863, 360
        %v909 = vadd.s32 %v863, 368
        %v910 = vadd.s32 %v863, 376
        %v911 = vadd.s32 %v863, 384
        %v912 = vadd.s32 %v863, 392
        %v913 = vadd.s32 %v863, 400
        %v914 = vadd.s32 %v863, 408
        %v915 = vadd.s32 %v863, 416
        %v916 = vadd.s32 %v863, 424
        %v917 = vadd.s32 %v863, 432
        %v918 = vadd.s32 %v863, 440
        %v919 = vadd.s32 %v863, 448
        %v920 = vadd.s32 %v863, 456
        %v921 = vadd.s32 %v863, 464
        %v922 = vadd.s32 %v863, 472
        %v923 = vadd.s32 %v863, 480
        %v924 = vadd.s32 %v863, 488
        %v925 = vadd.s32 %v863, 496
        %v926 = vadd.s32 %v863, 504
        %v927 = vstv %s861
        %v928 = vadd.s32 %v927, %v863
        %v929 = vadd.s32 %v927, %v864
        %v930 = vadd.s32 %v927, %v865
        %v931 = vadd.s32 %v927, %v866
        %v932 = vadd.s32 %v927, %v867
        %v933 = vadd.s32 %v927, %v868
        %v934 = vadd.s32 %v927, %v869
        %v935 = vadd.s32 %v927, %v870
        %v936 = vadd.s32 %v927, %v871
        %v937 = vadd.s32 %v927, %v872
        %v938 = vadd.s32 %v927, %v873
        %v939 = vadd.s32 %v927, %v874
        %v940 = vadd.s32 %v927, %v875
        %v941 = vadd.s32 %v927, %v876
        %v942 = vadd.s32 %v927, %v877
        %v943 = vadd.s32 %v927, %v878
        %v944 = vadd.s32 %v927, %v879
        %v945 = vadd.s32 %v927, %v880
        %v946 = vadd.s32 %v927, %v881
        %v947 = vadd.s32 %v927, %v882
        %v948 = vadd.s32 %v927, %v883
        %v949 = vadd.s32 %v927, %v884
        %v950 = vadd.s32 %v927, %v885
        %v951 = vadd.s32 %v927, %v886
        %v952 = vadd.s32 %v927, %v887
        %v953 = vadd.s32 %v927, %v888
        %v954 = vadd.s32 %v927, %v889
        %v955 = vadd.s32 %v927, %v890
        %v956 = vadd.s32 %v927, %v891
        %v957 = vadd.s32 %v927, %v892
        %v958 = vadd.s32 %v927, %v893
        %v959 = vadd.s32 %v927, %v894
        %v960 = vadd.s32 %v927, %v895
        %v961 = vadd.s32 %v927, %v896
        %v962 = vadd.s32 %v927, %v897
        %v963 = vadd.s32 %v927, %v898
        %v964 = vadd.s32 %v927, %v899
        %v965 = vadd.s32 %v927, %v900
        %v966 = vadd.s32 %v927, %v901
        %v967 = vadd.s32 %v927, %v902
        %v968 = vadd.s32 %v927, %v903
        %v969 = vadd.s32 %v927, %v904
        %v970 = vadd.s32 %v927, %v905
        %v971 = vadd.s32 %v927, %v906
        %v972 = vadd.s32 %v927, %v907
        %v973 = vadd.s32 %v927, %v908
        %v974 = vadd.s32 %v927, %v909
        %v975 = vadd.s32 %v927, %v910
        %v976 = vadd.s32 %v927, %v911
        %v977 = vadd.s32 %v927, %v912
        %v978 = vadd.s32 %v927, %v913
        %v979 = vadd.s32 %v927, %v914
        %v980 = vadd.s32 %v927, %v915
        %v981 = vadd.s32 %v927, %v916
        %v982 = vadd.s32 %v927, %v917
        %v983 = vadd.s32 %v927, %v918
        %v984 = vadd.s32 %v927, %v919
        %v985 = vadd.s32 %v927, %v920
        %v986 = vadd.s32 %v927, %v921
        %v987 = vadd.s32 %v927, %v922
        %v988 = vadd.s32 %v927, %v923
        %v989 = vadd.s32 %v927, %v924
        %v990 = vadd.s32 %v927, %v925
        %v991 = vadd.s32 %v927, %v926
        %vm992 = vcmp.lt.s32.totalorder %v928, 512
        %vm993 = vcmp.lt.s32.totalorder %v929, 512
        %vm994 = vcmp.lt.s32.totalorder %v930, 512
        %vm995 = vcmp.lt.s32.totalorder %v931, 512
        %vm996 = vcmp.lt.s32.totalorder %v932, 512
        %vm997 = vcmp.lt.s32.totalorder %v933, 512
        %vm998 = vcmp.lt.s32.totalorder %v934, 512
        %vm999 = vcmp.lt.s32.totalorder %v935, 512
        %vm1000 = vcmp.lt.s32.totalorder %v936, 512
        %vm1001 = vcmp.lt.s32.totalorder %v937, 512
        %vm1002 = vcmp.lt.s32.totalorder %v938, 512
        %vm1003 = vcmp.lt.s32.totalorder %v939, 512
        %vm1004 = vcmp.lt.s32.totalorder %v940, 512
        %vm1005 = vcmp.lt.s32.totalorder %v941, 512
        %vm1006 = vcmp.lt.s32.totalorder %v942, 512
        %vm1007 = vcmp.lt.s32.totalorder %v943, 512
        %vm1008 = vcmp.lt.s32.totalorder %v944, 512
        %vm1009 = vcmp.lt.s32.totalorder %v945, 512
        %vm1010 = vcmp.lt.s32.totalorder %v946, 512
        %vm1011 = vcmp.lt.s32.totalorder %v947, 512
        %vm1012 = vcmp.lt.s32.totalorder %v948, 512
        %vm1013 = vcmp.lt.s32.totalorder %v949, 512
        %vm1014 = vcmp.lt.s32.totalorder %v950, 512
        %vm1015 = vcmp.lt.s32.totalorder %v951, 512
        %vm1016 = vcmp.lt.s32.totalorder %v952, 512
        %vm1017 = vcmp.lt.s32.totalorder %v953, 512
        %vm1018 = vcmp.lt.s32.totalorder %v954, 512
        %vm1019 = vcmp.lt.s32.totalorder %v955, 512
        %vm1020 = vcmp.lt.s32.totalorder %v956, 512
        %vm1021 = vcmp.lt.s32.totalorder %v957, 512
        %vm1022 = vcmp.lt.s32.totalorder %v958, 512
        %vm1023 = vcmp.lt.s32.totalorder %v959, 512
        %vm1024 = vcmp.lt.s32.totalorder %v960, 512
        %vm1025 = vcmp.lt.s32.totalorder %v961, 512
        %vm1026 = vcmp.lt.s32.totalorder %v962, 512
        %vm1027 = vcmp.lt.s32.totalorder %v963, 512
        %vm1028 = vcmp.lt.s32.totalorder %v964, 512
        %vm1029 = vcmp.lt.s32.totalorder %v965, 512
        %vm1030 = vcmp.lt.s32.totalorder %v966, 512
        %vm1031 = vcmp.lt.s32.totalorder %v967, 512
        %vm1032 = vcmp.lt.s32.totalorder %v968, 512
        %vm1033 = vcmp.lt.s32.totalorder %v969, 512
        %vm1034 = vcmp.lt.s32.totalorder %v970, 512
        %vm1035 = vcmp.lt.s32.totalorder %v971, 512
        %vm1036 = vcmp.lt.s32.totalorder %v972, 512
        %vm1037 = vcmp.lt.s32.totalorder %v973, 512
        %vm1038 = vcmp.lt.s32.totalorder %v974, 512
        %vm1039 = vcmp.lt.s32.totalorder %v975, 512
        %vm1040 = vcmp.lt.s32.totalorder %v976, 512
        %vm1041 = vcmp.lt.s32.totalorder %v977, 512
        %vm1042 = vcmp.lt.s32.totalorder %v978, 512
        %vm1043 = vcmp.lt.s32.totalorder %v979, 512
        %vm1044 = vcmp.lt.s32.totalorder %v980, 512
        %vm1045 = vcmp.lt.s32.totalorder %v981, 512
        %vm1046 = vcmp.lt.s32.totalorder %v982, 512
        %vm1047 = vcmp.lt.s32.totalorder %v983, 512
        %vm1048 = vcmp.lt.s32.totalorder %v984, 512
        %vm1049 = vcmp.lt.s32.totalorder %v985, 512
        %vm1050 = vcmp.lt.s32.totalorder %v986, 512
        %vm1051 = vcmp.lt.s32.totalorder %v987, 512
        %vm1052 = vcmp.lt.s32.totalorder %v988, 512
        %vm1053 = vcmp.lt.s32.totalorder %v989, 512
        %vm1054 = vcmp.lt.s32.totalorder %v990, 512
        %vm1055 = vcmp.lt.s32.totalorder %v991, 512
        %v1056 = vsel %vm992, 1, 0
        %v1057 = vsel %vm993, 1, 0
        %v1058 = vsel %vm994, 1, 0
        %v1059 = vsel %vm995, 1, 0
        %v1060 = vsel %vm996, 1, 0
        %v1061 = vsel %vm997, 1, 0
        %v1062 = vsel %vm998, 1, 0
        %v1063 = vsel %vm999, 1, 0
        %v1064 = vsel %vm1000, 1, 0
        %v1065 = vsel %vm1001, 1, 0
        %v1066 = vsel %vm1002, 1, 0
        %v1067 = vsel %vm1003, 1, 0
        %v1068 = vsel %vm1004, 1, 0
        %v1069 = vsel %vm1005, 1, 0
        %v1070 = vsel %vm1006, 1, 0
        %v1071 = vsel %vm1007, 1, 0
        %v1072 = vsel %vm1008, 1, 0
        %v1073 = vsel %vm1009, 1, 0
        %v1074 = vsel %vm1010, 1, 0
        %v1075 = vsel %vm1011, 1, 0
        %v1076 = vsel %vm1012, 1, 0
        %v1077 = vsel %vm1013, 1, 0
        %v1078 = vsel %vm1014, 1, 0
        %v1079 = vsel %vm1015, 1, 0
        %v1080 = vsel %vm1016, 1, 0
        %v1081 = vsel %vm1017, 1, 0
        %v1082 = vsel %vm1018, 1, 0
        %v1083 = vsel %vm1019, 1, 0
        %v1084 = vsel %vm1020, 1, 0
        %v1085 = vsel %vm1021, 1, 0
        %v1086 = vsel %vm1022, 1, 0
        %v1087 = vsel %vm1023, 1, 0
        %v1088 = vsel %vm1024, 1, 0
        %v1089 = vsel %vm1025, 1, 0
        %v1090 = vsel %vm1026, 1, 0
        %v1091 = vsel %vm1027, 1, 0
        %v1092 = vsel %vm1028, 1, 0
        %v1093 = vsel %vm1029, 1, 0
        %v1094 = vsel %vm1030, 1, 0
        %v1095 = vsel %vm1031, 1, 0
        %v1096 = vsel %vm1032, 1, 0
        %v1097 = vsel %vm1033, 1, 0
        %v1098 = vsel %vm1034, 1, 0
        %v1099 = vsel %vm1035, 1, 0
        %v1100 = vsel %vm1036, 1, 0
        %v1101 = vsel %vm1037, 1, 0
        %v1102 = vsel %vm1038, 1, 0
        %v1103 = vsel %vm1039, 1, 0
        %v1104 = vsel %vm1040, 1, 0
        %v1105 = vsel %vm1041, 1, 0
        %v1106 = vsel %vm1042, 1, 0
        %v1107 = vsel %vm1043, 1, 0
        %v1108 = vsel %vm1044, 1, 0
        %v1109 = vsel %vm1045, 1, 0
        %v1110 = vsel %vm1046, 1, 0
        %v1111 = vsel %vm1047, 1, 0
        %v1112 = vsel %vm1048, 1, 0
        %v1113 = vsel %vm1049, 1, 0
        %v1114 = vsel %vm1050, 1, 0
        %v1115 = vsel %vm1051, 1, 0
        %v1116 = vsel %vm1052, 1, 0
        %v1117 = vsel %vm1053, 1, 0
        %v1118 = vsel %vm1054, 1, 0
        %v1119 = vsel %vm1055, 1, 0
        %vm1120 = vcmp.eq.s32.totalorder %v1056, 1
        %vm1121 = vcmp.eq.s32.totalorder %v1057, 1
        %vm1122 = vcmp.eq.s32.totalorder %v1058, 1
        %vm1123 = vcmp.eq.s32.totalorder %v1059, 1
        %vm1124 = vcmp.eq.s32.totalorder %v1060, 1
        %vm1125 = vcmp.eq.s32.totalorder %v1061, 1
        %vm1126 = vcmp.eq.s32.totalorder %v1062, 1
        %vm1127 = vcmp.eq.s32.totalorder %v1063, 1
        %vm1128 = vcmp.eq.s32.totalorder %v1064, 1
        %vm1129 = vcmp.eq.s32.totalorder %v1065, 1
        %vm1130 = vcmp.eq.s32.totalorder %v1066, 1
        %vm1131 = vcmp.eq.s32.totalorder %v1067, 1
        %vm1132 = vcmp.eq.s32.totalorder %v1068, 1
        %vm1133 = vcmp.eq.s32.totalorder %v1069, 1
        %vm1134 = vcmp.eq.s32.totalorder %v1070, 1
        %vm1135 = vcmp.eq.s32.totalorder %v1071, 1
        %vm1136 = vcmp.eq.s32.totalorder %v1072, 1
        %vm1137 = vcmp.eq.s32.totalorder %v1073, 1
        %vm1138 = vcmp.eq.s32.totalorder %v1074, 1
        %vm1139 = vcmp.eq.s32.totalorder %v1075, 1
        %vm1140 = vcmp.eq.s32.totalorder %v1076, 1
        %vm1141 = vcmp.eq.s32.totalorder %v1077, 1
        %vm1142 = vcmp.eq.s32.totalorder %v1078, 1
        %vm1143 = vcmp.eq.s32.totalorder %v1079, 1
        %vm1144 = vcmp.eq.s32.totalorder %v1080, 1
        %vm1145 = vcmp.eq.s32.totalorder %v1081, 1
        %vm1146 = vcmp.eq.s32.totalorder %v1082, 1
        %vm1147 = vcmp.eq.s32.totalorder %v1083, 1
        %vm1148 = vcmp.eq.s32.totalorder %v1084, 1
        %vm1149 = vcmp.eq.s32.totalorder %v1085, 1
        %vm1150 = vcmp.eq.s32.totalorder %v1086, 1
        %vm1151 = vcmp.eq.s32.totalorder %v1087, 1
        %vm1152 = vcmp.eq.s32.totalorder %v1088, 1
        %vm1153 = vcmp.eq.s32.totalorder %v1089, 1
        %vm1154 = vcmp.eq.s32.totalorder %v1090, 1
        %vm1155 = vcmp.eq.s32.totalorder %v1091, 1
        %vm1156 = vcmp.eq.s32.totalorder %v1092, 1
        %vm1157 = vcmp.eq.s32.totalorder %v1093, 1
        %vm1158 = vcmp.eq.s32.totalorder %v1094, 1
        %vm1159 = vcmp.eq.s32.totalorder %v1095, 1
        %vm1160 = vcmp.eq.s32.totalorder %v1096, 1
        %vm1161 = vcmp.eq.s32.totalorder %v1097, 1
        %vm1162 = vcmp.eq.s32.totalorder %v1098, 1
        %vm1163 = vcmp.eq.s32.totalorder %v1099, 1
        %vm1164 = vcmp.eq.s32.totalorder %v1100, 1
        %vm1165 = vcmp.eq.s32.totalorder %v1101, 1
        %vm1166 = vcmp.eq.s32.totalorder %v1102, 1
        %vm1167 = vcmp.eq.s32.totalorder %v1103, 1
        %vm1168 = vcmp.eq.s32.totalorder %v1104, 1
        %vm1169 = vcmp.eq.s32.totalorder %v1105, 1
        %vm1170 = vcmp.eq.s32.totalorder %v1106, 1
        %vm1171 = vcmp.eq.s32.totalorder %v1107, 1
        %vm1172 = vcmp.eq.s32.totalorder %v1108, 1
        %vm1173 = vcmp.eq.s32.totalorder %v1109, 1
        %vm1174 = vcmp.eq.s32.totalorder %v1110, 1
        %vm1175 = vcmp.eq.s32.totalorder %v1111, 1
        %vm1176 = vcmp.eq.s32.totalorder %v1112, 1
        %vm1177 = vcmp.eq.s32.totalorder %v1113, 1
        %vm1178 = vcmp.eq.s32.totalorder %v1114, 1
        %vm1179 = vcmp.eq.s32.totalorder %v1115, 1
        %vm1180 = vcmp.eq.s32.totalorder %v1116, 1
        %vm1181 = vcmp.eq.s32.totalorder %v1117, 1
        %vm1182 = vcmp.eq.s32.totalorder %v1118, 1
        %vm1183 = vcmp.eq.s32.totalorder %v1119, 1
        %v1184 = vsel %vm1120, %v597, 0.0
        %v1185 = vsel %vm1121, %v600, 0.0
        %v1186 = vsel %vm1122, %v605, 0.0
        %v1187 = vsel %vm1123, %v608, 0.0
        %v1188 = vsel %vm1124, %v613, 0.0
        %v1189 = vsel %vm1125, %v616, 0.0
        %v1190 = vsel %vm1126, %v621, 0.0
        %v1191 = vsel %vm1127, %v624, 0.0
        %v1192 = vsel %vm1128, %v629, 0.0
        %v1193 = vsel %vm1129, %v632, 0.0
        %v1194 = vsel %vm1130, %v637, 0.0
        %v1195 = vsel %vm1131, %v640, 0.0
        %v1196 = vsel %vm1132, %v645, 0.0
        %v1197 = vsel %vm1133, %v648, 0.0
        %v1198 = vsel %vm1134, %v653, 0.0
        %v1199 = vsel %vm1135, %v656, 0.0
        %v1200 = vsel %vm1136, %v661, 0.0
        %v1201 = vsel %vm1137, %v664, 0.0
        %v1202 = vsel %vm1138, %v669, 0.0
        %v1203 = vsel %vm1139, %v672, 0.0
        %v1204 = vsel %vm1140, %v677, 0.0
        %v1205 = vsel %vm1141, %v680, 0.0
        %v1206 = vsel %vm1142, %v685, 0.0
        %v1207 = vsel %vm1143, %v688, 0.0
        %v1208 = vsel %vm1144, %v693, 0.0
        %v1209 = vsel %vm1145, %v696, 0.0
        %v1210 = vsel %vm1146, %v701, 0.0
        %v1211 = vsel %vm1147, %v704, 0.0
        %v1212 = vsel %vm1148, %v709, 0.0
        %v1213 = vsel %vm1149, %v712, 0.0
        %v1214 = vsel %vm1150, %v717, 0.0
        %v1215 = vsel %vm1151, %v720, 0.0
        %v1216 = vsel %vm1152, %v725, 0.0
        %v1217 = vsel %vm1153, %v728, 0.0
        %v1218 = vsel %vm1154, %v733, 0.0
        %v1219 = vsel %vm1155, %v736, 0.0
        %v1220 = vsel %vm1156, %v741, 0.0
        %v1221 = vsel %vm1157, %v744, 0.0
        %v1222 = vsel %vm1158, %v749, 0.0
        %v1223 = vsel %vm1159, %v752, 0.0
        %v1224 = vsel %vm1160, %v757, 0.0
        %v1225 = vsel %vm1161, %v760, 0.0
        %v1226 = vsel %vm1162, %v765, 0.0
        %v1227 = vsel %vm1163, %v768, 0.0
        %v1228 = vsel %vm1164, %v773, 0.0
        %v1229 = vsel %vm1165, %v776, 0.0
        %v1230 = vsel %vm1166, %v781, 0.0
        %v1231 = vsel %vm1167, %v784, 0.0
        %v1232 = vsel %vm1168, %v789, 0.0
        %v1233 = vsel %vm1169, %v792, 0.0
        %v1234 = vsel %vm1170, %v797, 0.0
        %v1235 = vsel %vm1171, %v800, 0.0
        %v1236 = vsel %vm1172, %v805, 0.0
        %v1237 = vsel %vm1173, %v808, 0.0
        %v1238 = vsel %vm1174, %v813, 0.0
        %v1239 = vsel %vm1175, %v816, 0.0
        %v1240 = vsel %vm1176, %v821, 0.0
        %v1241 = vsel %vm1177, %v824, 0.0
        %v1242 = vsel %vm1178, %v829, 0.0
        %v1243 = vsel %vm1179, %v832, 0.0
        %v1244 = vsel %vm1180, %v837, 0.0
        %v1245 = vsel %vm1181, %v840, 0.0
        %v1246 = vsel %vm1182, %v845, 0.0
        %v1247 = vsel %vm1183, %v848, 0.0
        %v1248 = vld [vmem:[#allocation2] sm:$0x1]
        %v1249 = vadd.f32 %v1184, %v1185
        %v1250 = vadd.f32 %v1249, %v1186
        %v1251 = vadd.f32 %v1250, %v1187
        %v1252 = vadd.f32 %v1251, %v1188
        %v1253 = vadd.f32 %v1252, %v1189
        %v1254 = vadd.f32 %v1253, %v1190
        %v1255 = vadd.f32 %v1254, %v1191
        %v1256 = vadd.f32 %v1255, %v1192
        %v1257 = vadd.f32 %v1256, %v1193
        %v1258 = vadd.f32 %v1257, %v1194
        %v1259 = vadd.f32 %v1258, %v1195
        %v1260 = vadd.f32 %v1259, %v1196
        %v1261 = vadd.f32 %v1260, %v1197
        %v1262 = vadd.f32 %v1261, %v1198
        %v1263 = vadd.f32 %v1262, %v1199
        %v1264 = vadd.f32 %v1263, %v1200
        %v1265 = vadd.f32 %v1264, %v1201
        %v1266 = vadd.f32 %v1265, %v1202
        %v1267 = vadd.f32 %v1266, %v1203
        %v1268 = vadd.f32 %v1267, %v1204
        %v1269 = vadd.f32 %v1268, %v1205
        %v1270 = vadd.f32 %v1269, %v1206
        %v1271 = vadd.f32 %v1270, %v1207
        %v1272 = vadd.f32 %v1271, %v1208
        %v1273 = vadd.f32 %v1272, %v1209
        %v1274 = vadd.f32 %v1273, %v1210
        %v1275 = vadd.f32 %v1274, %v1211
        %v1276 = vadd.f32 %v1275, %v1212
        %v1277 = vadd.f32 %v1276, %v1213
        %v1278 = vadd.f32 %v1277, %v1214
        %v1279 = vadd.f32 %v1278, %v1215
        %v1280 = vadd.f32 %v1279, %v1216
        %v1281 = vadd.f32 %v1280, %v1217
        %v1282 = vadd.f32 %v1281, %v1218
        %v1283 = vadd.f32 %v1282, %v1219
        %v1284 = vadd.f32 %v1283, %v1220
        %v1285 = vadd.f32 %v1284, %v1221
        %v1286 = vadd.f32 %v1285, %v1222
        %v1287 = vadd.f32 %v1286, %v1223
        %v1288 = vadd.f32 %v1287, %v1224
        %v1289 = vadd.f32 %v1288, %v1225
        %v1290 = vadd.f32 %v1289, %v1226
        %v1291 = vadd.f32 %v1290, %v1227
        %v1292 = vadd.f32 %v1291, %v1228
        %v1293 = vadd.f32 %v1292, %v1229
        %v1294 = vadd.f32 %v1293, %v1230
        %v1295 = vadd.f32 %v1294, %v1231
        %v1296 = vadd.f32 %v1295, %v1232
        %v1297 = vadd.f32 %v1296, %v1233
        %v1298 = vadd.f32 %v1297, %v1234
        %v1299 = vadd.f32 %v1298, %v1235
        %v1300 = vadd.f32 %v1299, %v1236
        %v1301 = vadd.f32 %v1300, %v1237
        %v1302 = vadd.f32 %v1301, %v1238
        %v1303 = vadd.f32 %v1302, %v1239
        %v1304 = vadd.f32 %v1303, %v1240
        %v1305 = vadd.f32 %v1304, %v1241
        %v1306 = vadd.f32 %v1305, %v1242
        %v1307 = vadd.f32 %v1306, %v1243
        %v1308 = vadd.f32 %v1307, %v1244
        %v1309 = vadd.f32 %v1308, %v1245
        %v1310 = vadd.f32 %v1309, %v1246
        %v1311 = vadd.f32 %v1310, %v1247
        %v1312 = vrot.slane %v1311, 4
        %v1313 = vadd.f32 %v1311, %v1312
        %v1314 = vrot.slane %v1313, 2
        %v1315 = vadd.f32 %v1313, %v1314
        %v1316 = vrot.slane %v1315, 1
        %v1317 = vadd.f32 %v1315, %v1316
        %v1318 = vadd.f32 %v1248, %v1317
        %1319 = vst [vmem:[#allocation2] sm:$0x1] %v1318
        %v1320 = vld [vmem:[#allocation3] sm:$0x1]
        %v1321 = vmul.f32 %v1184, %v1184
        %v1322 = vmul.f32 %v1185, %v1185
        %v1323 = vmul.f32 %v1186, %v1186
        %v1324 = vmul.f32 %v1187, %v1187
        %v1325 = vmul.f32 %v1188, %v1188
        %v1326 = vmul.f32 %v1189, %v1189
        %v1327 = vmul.f32 %v1190, %v1190
        %v1328 = vmul.f32 %v1191, %v1191
        %v1329 = vmul.f32 %v1192, %v1192
        %v1330 = vmul.f32 %v1193, %v1193
        %v1331 = vmul.f32 %v1194, %v1194
        %v1332 = vmul.f32 %v1195, %v1195
        %v1333 = vmul.f32 %v1196, %v1196
        %v1334 = vmul.f32 %v1197, %v1197
        %v1335 = vmul.f32 %v1198, %v1198
        %v1336 = vmul.f32 %v1199, %v1199
        %v1337 = vmul.f32 %v1200, %v1200
        %v1338 = vmul.f32 %v1201, %v1201
        %v1339 = vmul.f32 %v1202, %v1202
        %v1340 = vmul.f32 %v1203, %v1203
        %v1341 = vmul.f32 %v1204, %v1204
        %v1342 = vmul.f32 %v1205, %v1205
        %v1343 = vmul.f32 %v1206, %v1206
        %v1344 = vmul.f32 %v1207, %v1207
        %v1345 = vmul.f32 %v1208, %v1208
        %v1346 = vmul.f32 %v1209, %v1209
        %v1347 = vmul.f32 %v1210, %v1210
        %v1348 = vmul.f32 %v1211, %v1211
        %v1349 = vmul.f32 %v1212, %v1212
        %v1350 = vmul.f32 %v1213, %v1213
        %v1351 = vmul.f32 %v1214, %v1214
        %v1352 = vmul.f32 %v1215, %v1215
        %v1353 = vmul.f32 %v1216, %v1216
        %v1354 = vmul.f32 %v1217, %v1217
        %v1355 = vmul.f32 %v1218, %v1218
        %v1356 = vmul.f32 %v1219, %v1219
        %v1357 = vmul.f32 %v1220, %v1220
        %v1358 = vmul.f32 %v1221, %v1221
        %v1359 = vmul.f32 %v1222, %v1222
        %v1360 = vmul.f32 %v1223, %v1223
        %v1361 = vmul.f32 %v1224, %v1224
        %v1362 = vmul.f32 %v1225, %v1225
        %v1363 = vmul.f32 %v1226, %v1226
        %v1364 = vmul.f32 %v1227, %v1227
        %v1365 = vmul.f32 %v1228, %v1228
        %v1366 = vmul.f32 %v1229, %v1229
        %v1367 = vmul.f32 %v1230, %v1230
        %v1368 = vmul.f32 %v1231, %v1231
        %v1369 = vmul.f32 %v1232, %v1232
        %v1370 = vmul.f32 %v1233, %v1233
        %v1371 = vmul.f32 %v1234, %v1234
        %v1372 = vmul.f32 %v1235, %v1235
        %v1373 = vmul.f32 %v1236, %v1236
        %v1374 = vmul.f32 %v1237, %v1237
        %v1375 = vmul.f32 %v1238, %v1238
        %v1376 = vmul.f32 %v1239, %v1239
        %v1377 = vmul.f32 %v1240, %v1240
        %v1378 = vmul.f32 %v1241, %v1241
        %v1379 = vmul.f32 %v1242, %v1242
        %v1380 = vmul.f32 %v1243, %v1243
        %v1381 = vmul.f32 %v1244, %v1244
        %v1382 = vmul.f32 %v1245, %v1245
        %v1383 = vmul.f32 %v1246, %v1246
        %v1384 = vmul.f32 %v1247, %v1247
        %v1385 = vadd.f32 %v1321, %v1322
        %v1386 = vadd.f32 %v1385, %v1323
        %v1387 = vadd.f32 %v1386, %v1324
        %v1388 = vadd.f32 %v1387, %v1325
        %v1389 = vadd.f32 %v1388, %v1326
        %v1390 = vadd.f32 %v1389, %v1327
        %v1391 = vadd.f32 %v1390, %v1328
        %v1392 = vadd.f32 %v1391, %v1329
        %v1393 = vadd.f32 %v1392, %v1330
        %v1394 = vadd.f32 %v1393, %v1331
        %v1395 = vadd.f32 %v1394, %v1332
        %v1396 = vadd.f32 %v1395, %v1333
        %v1397 = vadd.f32 %v1396, %v1334
        %v1398 = vadd.f32 %v1397, %v1335
        %v1399 = vadd.f32 %v1398, %v1336
        %v1400 = vadd.f32 %v1399, %v1337
        %v1401 = vadd.f32 %v1400, %v1338
        %v1402 = vadd.f32 %v1401, %v1339
        %v1403 = vadd.f32 %v1402, %v1340
        %v1404 = vadd.f32 %v1403, %v1341
        %v1405 = vadd.f32 %v1404, %v1342
        %v1406 = vadd.f32 %v1405, %v1343
        %v1407 = vadd.f32 %v1406, %v1344
        %v1408 = vadd.f32 %v1407, %v1345
        %v1409 = vadd.f32 %v1408, %v1346
        %v1410 = vadd.f32 %v1409, %v1347
        %v1411 = vadd.f32 %v1410, %v1348
        %v1412 = vadd.f32 %v1411, %v1349
        %v1413 = vadd.f32 %v1412, %v1350
        %v1414 = vadd.f32 %v1413, %v1351
        %v1415 = vadd.f32 %v1414, %v1352
        %v1416 = vadd.f32 %v1415, %v1353
        %v1417 = vadd.f32 %v1416, %v1354
        %v1418 = vadd.f32 %v1417, %v1355
        %v1419 = vadd.f32 %v1418, %v1356
        %v1420 = vadd.f32 %v1419, %v1357
        %v1421 = vadd.f32 %v1420, %v1358
        %v1422 = vadd.f32 %v1421, %v1359
        %v1423 = vadd.f32 %v1422, %v1360
        %v1424 = vadd.f32 %v1423, %v1361
        %v1425 = vadd.f32 %v1424, %v1362
        %v1426 = vadd.f32 %v1425, %v1363
        %v1427 = vadd.f32 %v1426, %v1364
        %v1428 = vadd.f32 %v1427, %v1365
        %v1429 = vadd.f32 %v1428, %v1366
        %v1430 = vadd.f32 %v1429, %v1367
        %v1431 = vadd.f32 %v1430, %v1368
        %v1432 = vadd.f32 %v1431, %v1369
        %v1433 = vadd.f32 %v1432, %v1370
        %v1434 = vadd.f32 %v1433, %v1371
        %v1435 = vadd.f32 %v1434, %v1372
        %v1436 = vadd.f32 %v1435, %v1373
        %v1437 = vadd.f32 %v1436, %v1374
        %v1438 = vadd.f32 %v1437, %v1375
        %v1439 = vadd.f32 %v1438, %v1376
        %v1440 = vadd.f32 %v1439, %v1377
        %v1441 = vadd.f32 %v1440, %v1378
        %v1442 = vadd.f32 %v1441, %v1379
        %v1443 = vadd.f32 %v1442, %v1380
        %v1444 = vadd.f32 %v1443, %v1381
        %v1445 = vadd.f32 %v1444, %v1382
        %v1446 = vadd.f32 %v1445, %v1383
        %v1447 = vadd.f32 %v1446, %v1384
        %v1448 = vrot.slane %v1447, 4
        %v1449 = vadd.f32 %v1447, %v1448
        %v1450 = vrot.slane %v1449, 2
        %v1451 = vadd.f32 %v1449, %v1450
        %v1452 = vrot.slane %v1451, 1
        %v1453 = vadd.f32 %v1451, %v1452
        %v1454 = vadd.f32 %v1320, %v1453
        %1455 = vst [vmem:[#allocation3] sm:$0x1] %v1454
        // Predicated region
        $region45: #{mobilenet_v3_forward.7} parent=39 // pred_check
          %p1456 = pneg %p855
        $region46: #{mobilenet_v3_forward.7} parent=39 // pred_check_branch
          %1458 = sbr.rel (%p1456) target = $region48
        $region47: #{mobilenet_v3_forward.7} parent=39 // pred_region
          %v1459 = vld [vmem:[#allocation2] sm:$0x1]
          %v1460 = vmul.f32 %v1459, 0.001953125
          %v1461 = vld [vmem:[#allocation3] sm:$0x1]
          %v1462 = vmul.f32 %v1461, 0.001953125
          %v1463 = vmul.f32 %v1460, %v1460
          %v1464 = vsub.f32 %v1462, %v1463
          %v1465 = vmax.f32 %v1464, 0.0
          %v1466 = vld [vmem:[%s2] sm:$0x1]
          %v1467 = vadd.f32 %v1465, 0.001
          %v1468 = vrsqrt.pop %v1467
          %v1469 = vmul.f32 %v1466, %v1468
          %1470 = vst [vmem:[#allocation4] sm:$0x1] %v1469
          %v1471 = vld [vmem:[%s3] sm:$0x1]
          %v1472 = vmul.f32 %v1460, %v1469
          %v1473 = vsub.f32 %v1471, %v1472
          %1474 = vst [vmem:[#allocation5] sm:$0x1] %v1473
        $region48: #{mobilenet_v3_forward.7} parent=39 // pred_fallthru
          _
      $region40: #{mobilenet_v3_forward.7} parent=35 // pred_fallthru
        _
      %p1475 = scmp.eq.s32.totalorder %s19, 1
      // Predicated region
      $region49: #{mobilenet_v3_forward.7} parent=35 // pred_check
        %p1476 = pneg %p1475
      $region50: #{mobilenet_v3_forward.7} parent=35 // pred_check_branch
        %1478 = sbr.rel (%p1476) target = $region52
      $region51: #{mobilenet_v3_forward.7} parent=35 // pred_region
        %v1479 = vld [vmem:[#allocation4] sm:$0x1]
        %v1481 = vlaneseq
        %v1482 = vshrl.u32 %v1481, 7
        %v1483 = vsub.s32 0, %v1482
        %v1484 = vrot.slane %v1479, %v1483
        %v1486 = vmul.f32 %v597, %v1484
        %v1487 = vmul.f32 %v600, %v1484
        %v1488 = vmul.f32 %v605, %v1484
        %v1489 = vmul.f32 %v608, %v1484
        %v1490 = vmul.f32 %v613, %v1484
        %v1491 = vmul.f32 %v616, %v1484
        %v1492 = vmul.f32 %v621, %v1484
        %v1493 = vmul.f32 %v624, %v1484
        %v1494 = vmul.f32 %v629, %v1484
        %v1495 = vmul.f32 %v632, %v1484
        %v1496 = vmul.f32 %v637, %v1484
        %v1497 = vmul.f32 %v640, %v1484
        %v1498 = vmul.f32 %v645, %v1484
        %v1499 = vmul.f32 %v648, %v1484
        %v1500 = vmul.f32 %v653, %v1484
        %v1501 = vmul.f32 %v656, %v1484
        %v1502 = vmul.f32 %v661, %v1484
        %v1503 = vmul.f32 %v664, %v1484
        %v1504 = vmul.f32 %v669, %v1484
        %v1505 = vmul.f32 %v672, %v1484
        %v1506 = vmul.f32 %v677, %v1484
        %v1507 = vmul.f32 %v680, %v1484
        %v1508 = vmul.f32 %v685, %v1484
        %v1509 = vmul.f32 %v688, %v1484
        %v1510 = vmul.f32 %v693, %v1484
        %v1511 = vmul.f32 %v696, %v1484
        %v1512 = vmul.f32 %v701, %v1484
        %v1513 = vmul.f32 %v704, %v1484
        %v1514 = vmul.f32 %v709, %v1484
        %v1515 = vmul.f32 %v712, %v1484
        %v1516 = vmul.f32 %v717, %v1484
        %v1517 = vmul.f32 %v720, %v1484
        %v1518 = vmul.f32 %v725, %v1484
        %v1519 = vmul.f32 %v728, %v1484
        %v1520 = vmul.f32 %v733, %v1484
        %v1521 = vmul.f32 %v736, %v1484
        %v1522 = vmul.f32 %v741, %v1484
        %v1523 = vmul.f32 %v744, %v1484
        %v1524 = vmul.f32 %v749, %v1484
        %v1525 = vmul.f32 %v752, %v1484
        %v1526 = vmul.f32 %v757, %v1484
        %v1527 = vmul.f32 %v760, %v1484
        %v1528 = vmul.f32 %v765, %v1484
        %v1529 = vmul.f32 %v768, %v1484
        %v1530 = vmul.f32 %v773, %v1484
        %v1531 = vmul.f32 %v776, %v1484
        %v1532 = vmul.f32 %v781, %v1484
        %v1533 = vmul.f32 %v784, %v1484
        %v1534 = vmul.f32 %v789, %v1484
        %v1535 = vmul.f32 %v792, %v1484
        %v1536 = vmul.f32 %v797, %v1484
        %v1537 = vmul.f32 %v800, %v1484
        %v1538 = vmul.f32 %v805, %v1484
        %v1539 = vmul.f32 %v808, %v1484
        %v1540 = vmul.f32 %v813, %v1484
        %v1541 = vmul.f32 %v816, %v1484
        %v1542 = vmul.f32 %v821, %v1484
        %v1543 = vmul.f32 %v824, %v1484
        %v1544 = vmul.f32 %v829, %v1484
        %v1545 = vmul.f32 %v832, %v1484
        %v1546 = vmul.f32 %v837, %v1484
        %v1547 = vmul.f32 %v840, %v1484
        %v1548 = vmul.f32 %v845, %v1484
        %v1549 = vmul.f32 %v848, %v1484
        %v1550 = vld [vmem:[#allocation5] sm:$0x1]
        %v1552 = vlaneseq
        %v1553 = vshrl.u32 %v1552, 7
        %v1554 = vsub.s32 0, %v1553
        %v1555 = vrot.slane %v1550, %v1554
        %v1557 = vadd.f32 %v1486, %v1555
        %v1558 = vadd.f32 %v1487, %v1555
        %v1559 = vadd.f32 %v1488, %v1555
        %v1560 = vadd.f32 %v1489, %v1555
        %v1561 = vadd.f32 %v1490, %v1555
        %v1562 = vadd.f32 %v1491, %v1555
        %v1563 = vadd.f32 %v1492, %v1555
        %v1564 = vadd.f32 %v1493, %v1555
        %v1565 = vadd.f32 %v1494, %v1555
        %v1566 = vadd.f32 %v1495, %v1555
        %v1567 = vadd.f32 %v1496, %v1555
        %v1568 = vadd.f32 %v1497, %v1555
        %v1569 = vadd.f32 %v1498, %v1555
        %v1570 = vadd.f32 %v1499, %v1555
        %v1571 = vadd.f32 %v1500, %v1555
        %v1572 = vadd.f32 %v1501, %v1555
        %v1573 = vadd.f32 %v1502, %v1555
        %v1574 = vadd.f32 %v1503, %v1555
        %v1575 = vadd.f32 %v1504, %v1555
        %v1576 = vadd.f32 %v1505, %v1555
        %v1577 = vadd.f32 %v1506, %v1555
        %v1578 = vadd.f32 %v1507, %v1555
        %v1579 = vadd.f32 %v1508, %v1555
        %v1580 = vadd.f32 %v1509, %v1555
        %v1581 = vadd.f32 %v1510, %v1555
        %v1582 = vadd.f32 %v1511, %v1555
        %v1583 = vadd.f32 %v1512, %v1555
        %v1584 = vadd.f32 %v1513, %v1555
        %v1585 = vadd.f32 %v1514, %v1555
        %v1586 = vadd.f32 %v1515, %v1555
        %v1587 = vadd.f32 %v1516, %v1555
        %v1588 = vadd.f32 %v1517, %v1555
        %v1589 = vadd.f32 %v1518, %v1555
        %v1590 = vadd.f32 %v1519, %v1555
        %v1591 = vadd.f32 %v1520, %v1555
        %v1592 = vadd.f32 %v1521, %v1555
        %v1593 = vadd.f32 %v1522, %v1555
        %v1594 = vadd.f32 %v1523, %v1555
        %v1595 = vadd.f32 %v1524, %v1555
        %v1596 = vadd.f32 %v1525, %v1555
        %v1597 = vadd.f32 %v1526, %v1555
        %v1598 = vadd.f32 %v1527, %v1555
        %v1599 = vadd.f32 %v1528, %v1555
        %v1600 = vadd.f32 %v1529, %v1555
        %v1601 = vadd.f32 %v1530, %v1555
        %v1602 = vadd.f32 %v1531, %v1555
        %v1603 = vadd.f32 %v1532, %v1555
        %v1604 = vadd.f32 %v1533, %v1555
        %v1605 = vadd.f32 %v1534, %v1555
        %v1606 = vadd.f32 %v1535, %v1555
        %v1607 = vadd.f32 %v1536, %v1555
        %v1608 = vadd.f32 %v1537, %v1555
        %v1609 = vadd.f32 %v1538, %v1555
        %v1610 = vadd.f32 %v1539, %v1555
        %v1611 = vadd.f32 %v1540, %v1555
        %v1612 = vadd.f32 %v1541, %v1555
        %v1613 = vadd.f32 %v1542, %v1555
        %v1614 = vadd.f32 %v1543, %v1555
        %v1615 = vadd.f32 %v1544, %v1555
        %v1616 = vadd.f32 %v1545, %v1555
        %v1617 = vadd.f32 %v1546, %v1555
        %v1618 = vadd.f32 %v1547, %v1555
        %v1619 = vadd.f32 %v1548, %v1555
        %v1620 = vadd.f32 %v1549, %v1555
        %v1621 = vadd.f32 %v1557, 3.0
        %v1622 = vadd.f32 %v1558, 3.0
        %v1623 = vadd.f32 %v1559, 3.0
        %v1624 = vadd.f32 %v1560, 3.0
        %v1625 = vadd.f32 %v1561, 3.0
        %v1626 = vadd.f32 %v1562, 3.0
        %v1627 = vadd.f32 %v1563, 3.0
        %v1628 = vadd.f32 %v1564, 3.0
        %v1629 = vadd.f32 %v1565, 3.0
        %v1630 = vadd.f32 %v1566, 3.0
        %v1631 = vadd.f32 %v1567, 3.0
        %v1632 = vadd.f32 %v1568, 3.0
        %v1633 = vadd.f32 %v1569, 3.0
        %v1634 = vadd.f32 %v1570, 3.0
        %v1635 = vadd.f32 %v1571, 3.0
        %v1636 = vadd.f32 %v1572, 3.0
        %v1637 = vadd.f32 %v1573, 3.0
        %v1638 = vadd.f32 %v1574, 3.0
        %v1639 = vadd.f32 %v1575, 3.0
        %v1640 = vadd.f32 %v1576, 3.0
        %v1641 = vadd.f32 %v1577, 3.0
        %v1642 = vadd.f32 %v1578, 3.0
        %v1643 = vadd.f32 %v1579, 3.0
        %v1644 = vadd.f32 %v1580, 3.0
        %v1645 = vadd.f32 %v1581, 3.0
        %v1646 = vadd.f32 %v1582, 3.0
        %v1647 = vadd.f32 %v1583, 3.0
        %v1648 = vadd.f32 %v1584, 3.0
        %v1649 = vadd.f32 %v1585, 3.0
        %v1650 = vadd.f32 %v1586, 3.0
        %v1651 = vadd.f32 %v1587, 3.0
        %v1652 = vadd.f32 %v1588, 3.0
        %v1653 = vadd.f32 %v1589, 3.0
        %v1654 = vadd.f32 %v1590, 3.0
        %v1655 = vadd.f32 %v1591, 3.0
        %v1656 = vadd.f32 %v1592, 3.0
        %v1657 = vadd.f32 %v1593, 3.0
        %v1658 = vadd.f32 %v1594, 3.0
        %v1659 = vadd.f32 %v1595, 3.0
        %v1660 = vadd.f32 %v1596, 3.0
        %v1661 = vadd.f32 %v1597, 3.0
        %v1662 = vadd.f32 %v1598, 3.0
        %v1663 = vadd.f32 %v1599, 3.0
        %v1664 = vadd.f32 %v1600, 3.0
        %v1665 = vadd.f32 %v1601, 3.0
        %v1666 = vadd.f32 %v1602, 3.0
        %v1667 = vadd.f32 %v1603, 3.0
        %v1668 = vadd.f32 %v1604, 3.0
        %v1669 = vadd.f32 %v1605, 3.0
        %v1670 = vadd.f32 %v1606, 3.0
        %v1671 = vadd.f32 %v1607, 3.0
        %v1672 = vadd.f32 %v1608, 3.0
        %v1673 = vadd.f32 %v1609, 3.0
        %v1674 = vadd.f32 %v1610, 3.0
        %v1675 = vadd.f32 %v1611, 3.0
        %v1676 = vadd.f32 %v1612, 3.0
        %v1677 = vadd.f32 %v1613, 3.0
        %v1678 = vadd.f32 %v1614, 3.0
        %v1679 = vadd.f32 %v1615, 3.0
        %v1680 = vadd.f32 %v1616, 3.0
        %v1681 = vadd.f32 %v1617, 3.0
        %v1682 = vadd.f32 %v1618, 3.0
        %v1683 = vadd.f32 %v1619, 3.0
        %v1684 = vadd.f32 %v1620, 3.0
        %v1685 = vmax.f32 %v1621, 0.0
        %v1686 = vmax.f32 %v1622, 0.0
        %v1687 = vmax.f32 %v1623, 0.0
        %v1688 = vmax.f32 %v1624, 0.0
        %v1689 = vmax.f32 %v1625, 0.0
        %v1690 = vmax.f32 %v1626, 0.0
        %v1691 = vmax.f32 %v1627, 0.0
        %v1692 = vmax.f32 %v1628, 0.0
        %v1693 = vmax.f32 %v1629, 0.0
        %v1694 = vmax.f32 %v1630, 0.0
        %v1695 = vmax.f32 %v1631, 0.0
        %v1696 = vmax.f32 %v1632, 0.0
        %v1697 = vmax.f32 %v1633, 0.0
        %v1698 = vmax.f32 %v1634, 0.0
        %v1699 = vmax.f32 %v1635, 0.0
        %v1700 = vmax.f32 %v1636, 0.0
        %v1701 = vmax.f32 %v1637, 0.0
        %v1702 = vmax.f32 %v1638, 0.0
        %v1703 = vmax.f32 %v1639, 0.0
        %v1704 = vmax.f32 %v1640, 0.0
        %v1705 = vmax.f32 %v1641, 0.0
        %v1706 = vmax.f32 %v1642, 0.0
        %v1707 = vmax.f32 %v1643, 0.0
        %v1708 = vmax.f32 %v1644, 0.0
        %v1709 = vmax.f32 %v1645, 0.0
        %v1710 = vmax.f32 %v1646, 0.0
        %v1711 = vmax.f32 %v1647, 0.0
        %v1712 = vmax.f32 %v1648, 0.0
        %v1713 = vmax.f32 %v1649, 0.0
        %v1714 = vmax.f32 %v1650, 0.0
        %v1715 = vmax.f32 %v1651, 0.0
        %v1716 = vmax.f32 %v1652, 0.0
        %v1717 = vmax.f32 %v1653, 0.0
        %v1718 = vmax.f32 %v1654, 0.0
        %v1719 = vmax.f32 %v1655, 0.0
        %v1720 = vmax.f32 %v1656, 0.0
        %v1721 = vmax.f32 %v1657, 0.0
        %v1722 = vmax.f32 %v1658, 0.0
        %v1723 = vmax.f32 %v1659, 0.0
        %v1724 = vmax.f32 %v1660, 0.0
        %v1725 = vmax.f32 %v1661, 0.0
        %v1726 = vmax.f32 %v1662, 0.0
        %v1727 = vmax.f32 %v1663, 0.0
        %v1728 = vmax.f32 %v1664, 0.0
        %v1729 = vmax.f32 %v1665, 0.0
        %v1730 = vmax.f32 %v1666, 0.0
        %v1731 = vmax.f32 %v1667, 0.0
        %v1732 = vmax.f32 %v1668, 0.0
        %v1733 = vmax.f32 %v1669, 0.0
        %v1734 = vmax.f32 %v1670, 0.0
        %v1735 = vmax.f32 %v1671, 0.0
        %v1736 = vmax.f32 %v1672, 0.0
        %v1737 = vmax.f32 %v1673, 0.0
        %v1738 = vmax.f32 %v1674, 0.0
        %v1739 = vmax.f32 %v1675, 0.0
        %v1740 = vmax.f32 %v1676, 0.0
        %v1741 = vmax.f32 %v1677, 0.0
        %v1742 = vmax.f32 %v1678, 0.0
        %v1743 = vmax.f32 %v1679, 0.0
        %v1744 = vmax.f32 %v1680, 0.0
        %v1745 = vmax.f32 %v1681, 0.0
        %v1746 = vmax.f32 %v1682, 0.0
        %v1747 = vmax.f32 %v1683, 0.0
        %v1748 = vmax.f32 %v1684, 0.0
        %v1749 = vmin.f32 %v1685, 6.0
        %v1750 = vmin.f32 %v1686, 6.0
        %v1751 = vmin.f32 %v1687, 6.0
        %v1752 = vmin.f32 %v1688, 6.0
        %v1753 = vmin.f32 %v1689, 6.0
        %v1754 = vmin.f32 %v1690, 6.0
        %v1755 = vmin.f32 %v1691, 6.0
        %v1756 = vmin.f32 %v1692, 6.0
        %v1757 = vmin.f32 %v1693, 6.0
        %v1758 = vmin.f32 %v1694, 6.0
        %v1759 = vmin.f32 %v1695, 6.0
        %v1760 = vmin.f32 %v1696, 6.0
        %v1761 = vmin.f32 %v1697, 6.0
        %v1762 = vmin.f32 %v1698, 6.0
        %v1763 = vmin.f32 %v1699, 6.0
        %v1764 = vmin.f32 %v1700, 6.0
        %v1765 = vmin.f32 %v1701, 6.0
        %v1766 = vmin.f32 %v1702, 6.0
        %v1767 = vmin.f32 %v1703, 6.0
        %v1768 = vmin.f32 %v1704, 6.0
        %v1769 = vmin.f32 %v1705, 6.0
        %v1770 = vmin.f32 %v1706, 6.0
        %v1771 = vmin.f32 %v1707, 6.0
        %v1772 = vmin.f32 %v1708, 6.0
        %v1773 = vmin.f32 %v1709, 6.0
        %v1774 = vmin.f32 %v1710, 6.0
        %v1775 = vmin.f32 %v1711, 6.0
        %v1776 = vmin.f32 %v1712, 6.0
        %v1777 = vmin.f32 %v1713, 6.0
        %v1778 = vmin.f32 %v1714, 6.0
        %v1779 = vmin.f32 %v1715, 6.0
        %v1780 = vmin.f32 %v1716, 6.0
        %v1781 = vmin.f32 %v1717, 6.0
        %v1782 = vmin.f32 %v1718, 6.0
        %v1783 = vmin.f32 %v1719, 6.0
        %v1784 = vmin.f32 %v1720, 6.0
        %v1785 = vmin.f32 %v1721, 6.0
        %v1786 = vmin.f32 %v1722, 6.0
        %v1787 = vmin.f32 %v1723, 6.0
        %v1788 = vmin.f32 %v1724, 6.0
        %v1789 = vmin.f32 %v1725, 6.0
        %v1790 = vmin.f32 %v1726, 6.0
        %v1791 = vmin.f32 %v1727, 6.0
        %v1792 = vmin.f32 %v1728, 6.0
        %v1793 = vmin.f32 %v1729, 6.0
        %v1794 = vmin.f32 %v1730, 6.0
        %v1795 = vmin.f32 %v1731, 6.0
        %v1796 = vmin.f32 %v1732, 6.0
        %v1797 = vmin.f32 %v1733, 6.0
        %v1798 = vmin.f32 %v1734, 6.0
        %v1799 = vmin.f32 %v1735, 6.0
        %v1800 = vmin.f32 %v1736, 6.0
        %v1801 = vmin.f32 %v1737, 6.0
        %v1802 = vmin.f32 %v1738, 6.0
        %v1803 = vmin.f32 %v1739, 6.0
        %v1804 = vmin.f32 %v1740, 6.0
        %v1805 = vmin.f32 %v1741, 6.0
        %v1806 = vmin.f32 %v1742, 6.0
        %v1807 = vmin.f32 %v1743, 6.0
        %v1808 = vmin.f32 %v1744, 6.0
        %v1809 = vmin.f32 %v1745, 6.0
        %v1810 = vmin.f32 %v1746, 6.0
        %v1811 = vmin.f32 %v1747, 6.0
        %v1812 = vmin.f32 %v1748, 6.0
        %v1813 = vmul.f32 %v1557, %v1749
        %v1814 = vmul.f32 %v1558, %v1750
        %v1815 = vmul.f32 %v1559, %v1751
        %v1816 = vmul.f32 %v1560, %v1752
        %v1817 = vmul.f32 %v1561, %v1753
        %v1818 = vmul.f32 %v1562, %v1754
        %v1819 = vmul.f32 %v1563, %v1755
        %v1820 = vmul.f32 %v1564, %v1756
        %v1821 = vmul.f32 %v1565, %v1757
        %v1822 = vmul.f32 %v1566, %v1758
        %v1823 = vmul.f32 %v1567, %v1759
        %v1824 = vmul.f32 %v1568, %v1760
        %v1825 = vmul.f32 %v1569, %v1761
        %v1826 = vmul.f32 %v1570, %v1762
        %v1827 = vmul.f32 %v1571, %v1763
        %v1828 = vmul.f32 %v1572, %v1764
        %v1829 = vmul.f32 %v1573, %v1765
        %v1830 = vmul.f32 %v1574, %v1766
        %v1831 = vmul.f32 %v1575, %v1767
        %v1832 = vmul.f32 %v1576, %v1768
        %v1833 = vmul.f32 %v1577, %v1769
        %v1834 = vmul.f32 %v1578, %v1770
        %v1835 = vmul.f32 %v1579, %v1771
        %v1836 = vmul.f32 %v1580, %v1772
        %v1837 = vmul.f32 %v1581, %v1773
        %v1838 = vmul.f32 %v1582, %v1774
        %v1839 = vmul.f32 %v1583, %v1775
        %v1840 = vmul.f32 %v1584, %v1776
        %v1841 = vmul.f32 %v1585, %v1777
        %v1842 = vmul.f32 %v1586, %v1778
        %v1843 = vmul.f32 %v1587, %v1779
        %v1844 = vmul.f32 %v1588, %v1780
        %v1845 = vmul.f32 %v1589, %v1781
        %v1846 = vmul.f32 %v1590, %v1782
        %v1847 = vmul.f32 %v1591, %v1783
        %v1848 = vmul.f32 %v1592, %v1784
        %v1849 = vmul.f32 %v1593, %v1785
        %v1850 = vmul.f32 %v1594, %v1786
        %v1851 = vmul.f32 %v1595, %v1787
        %v1852 = vmul.f32 %v1596, %v1788
        %v1853 = vmul.f32 %v1597, %v1789
        %v1854 = vmul.f32 %v1598, %v1790
        %v1855 = vmul.f32 %v1599, %v1791
        %v1856 = vmul.f32 %v1600, %v1792
        %v1857 = vmul.f32 %v1601, %v1793
        %v1858 = vmul.f32 %v1602, %v1794
        %v1859 = vmul.f32 %v1603, %v1795
        %v1860 = vmul.f32 %v1604, %v1796
        %v1861 = vmul.f32 %v1605, %v1797
        %v1862 = vmul.f32 %v1606, %v1798
        %v1863 = vmul.f32 %v1607, %v1799
        %v1864 = vmul.f32 %v1608, %v1800
        %v1865 = vmul.f32 %v1609, %v1801
        %v1866 = vmul.f32 %v1610, %v1802
        %v1867 = vmul.f32 %v1611, %v1803
        %v1868 = vmul.f32 %v1612, %v1804
        %v1869 = vmul.f32 %v1613, %v1805
        %v1870 = vmul.f32 %v1614, %v1806
        %v1871 = vmul.f32 %v1615, %v1807
        %v1872 = vmul.f32 %v1616, %v1808
        %v1873 = vmul.f32 %v1617, %v1809
        %v1874 = vmul.f32 %v1618, %v1810
        %v1875 = vmul.f32 %v1619, %v1811
        %v1876 = vmul.f32 %v1620, %v1812
        %v1877 = vmul.f32 %v1813, 0.16666667
        %v1878 = vmul.f32 %v1814, 0.16666667
        %v1879 = vmul.f32 %v1815, 0.16666667
        %v1880 = vmul.f32 %v1816, 0.16666667
        %v1881 = vmul.f32 %v1817, 0.16666667
        %v1882 = vmul.f32 %v1818, 0.16666667
        %v1883 = vmul.f32 %v1819, 0.16666667
        %v1884 = vmul.f32 %v1820, 0.16666667
        %v1885 = vmul.f32 %v1821, 0.16666667
        %v1886 = vmul.f32 %v1822, 0.16666667
        %v1887 = vmul.f32 %v1823, 0.16666667
        %v1888 = vmul.f32 %v1824, 0.16666667
        %v1889 = vmul.f32 %v1825, 0.16666667
        %v1890 = vmul.f32 %v1826, 0.16666667
        %v1891 = vmul.f32 %v1827, 0.16666667
        %v1892 = vmul.f32 %v1828, 0.16666667
        %v1893 = vmul.f32 %v1829, 0.16666667
        %v1894 = vmul.f32 %v1830, 0.16666667
        %v1895 = vmul.f32 %v1831, 0.16666667
        %v1896 = vmul.f32 %v1832, 0.16666667
        %v1897 = vmul.f32 %v1833, 0.16666667
        %v1898 = vmul.f32 %v1834, 0.16666667
        %v1899 = vmul.f32 %v1835, 0.16666667
        %v1900 = vmul.f32 %v1836, 0.16666667
        %v1901 = vmul.f32 %v1837, 0.16666667
        %v1902 = vmul.f32 %v1838, 0.16666667
        %v1903 = vmul.f32 %v1839, 0.16666667
        %v1904 = vmul.f32 %v1840, 0.16666667
        %v1905 = vmul.f32 %v1841, 0.16666667
        %v1906 = vmul.f32 %v1842, 0.16666667
        %v1907 = vmul.f32 %v1843, 0.16666667
        %v1908 = vmul.f32 %v1844, 0.16666667
        %v1909 = vmul.f32 %v1845, 0.16666667
        %v1910 = vmul.f32 %v1846, 0.16666667
        %v1911 = vmul.f32 %v1847, 0.16666667
        %v1912 = vmul.f32 %v1848, 0.16666667
        %v1913 = vmul.f32 %v1849, 0.16666667
        %v1914 = vmul.f32 %v1850, 0.16666667
        %v1915 = vmul.f32 %v1851, 0.16666667
        %v1916 = vmul.f32 %v1852, 0.16666667
        %v1917 = vmul.f32 %v1853, 0.16666667
        %v1918 = vmul.f32 %v1854, 0.16666667
        %v1919 = vmul.f32 %v1855, 0.16666667
        %v1920 = vmul.f32 %v1856, 0.16666667
        %v1921 = vmul.f32 %v1857, 0.16666667
        %v1922 = vmul.f32 %v1858, 0.16666667
        %v1923 = vmul.f32 %v1859, 0.16666667
        %v1924 = vmul.f32 %v1860, 0.16666667
        %v1925 = vmul.f32 %v1861, 0.16666667
        %v1926 = vmul.f32 %v1862, 0.16666667
        %v1927 = vmul.f32 %v1863, 0.16666667
        %v1928 = vmul.f32 %v1864, 0.16666667
        %v1929 = vmul.f32 %v1865, 0.16666667
        %v1930 = vmul.f32 %v1866, 0.16666667
        %v1931 = vmul.f32 %v1867, 0.16666667
        %v1932 = vmul.f32 %v1868, 0.16666667
        %v1933 = vmul.f32 %v1869, 0.16666667
        %v1934 = vmul.f32 %v1870, 0.16666667
        %v1935 = vmul.f32 %v1871, 0.16666667
        %v1936 = vmul.f32 %v1872, 0.16666667
        %v1937 = vmul.f32 %v1873, 0.16666667
        %v1938 = vmul.f32 %v1874, 0.16666667
        %v1939 = vmul.f32 %v1875, 0.16666667
        %v1940 = vmul.f32 %v1876, 0.16666667
        %v1941 = vpack.c.bf16 %v1878, %v1877
        %v1942 = vpack.c.bf16 %v1880, %v1879
        %v1943 = vpack.c.bf16 %v1882, %v1881
        %v1944 = vpack.c.bf16 %v1884, %v1883
        %v1945 = vpack.c.bf16 %v1886, %v1885
        %v1946 = vpack.c.bf16 %v1888, %v1887
        %v1947 = vpack.c.bf16 %v1890, %v1889
        %v1948 = vpack.c.bf16 %v1892, %v1891
        %v1949 = vpack.c.bf16 %v1894, %v1893
        %v1950 = vpack.c.bf16 %v1896, %v1895
        %v1951 = vpack.c.bf16 %v1898, %v1897
        %v1952 = vpack.c.bf16 %v1900, %v1899
        %v1953 = vpack.c.bf16 %v1902, %v1901
        %v1954 = vpack.c.bf16 %v1904, %v1903
        %v1955 = vpack.c.bf16 %v1906, %v1905
        %v1956 = vpack.c.bf16 %v1908, %v1907
        %v1957 = vpack.c.bf16 %v1910, %v1909
        %v1958 = vpack.c.bf16 %v1912, %v1911
        %v1959 = vpack.c.bf16 %v1914, %v1913
        %v1960 = vpack.c.bf16 %v1916, %v1915
        %v1961 = vpack.c.bf16 %v1918, %v1917
        %v1962 = vpack.c.bf16 %v1920, %v1919
        %v1963 = vpack.c.bf16 %v1922, %v1921
        %v1964 = vpack.c.bf16 %v1924, %v1923
        %v1965 = vpack.c.bf16 %v1926, %v1925
        %v1966 = vpack.c.bf16 %v1928, %v1927
        %v1967 = vpack.c.bf16 %v1930, %v1929
        %v1968 = vpack.c.bf16 %v1932, %v1931
        %v1969 = vpack.c.bf16 %v1934, %v1933
        %v1970 = vpack.c.bf16 %v1936, %v1935
        %v1971 = vpack.c.bf16 %v1938, %v1937
        %v1972 = vpack.c.bf16 %v1940, %v1939
        %v2005 = vunpack.c.l.b16 %v1941
        %v2006 = vunpack.c.h.b16 %v1941
        %v2007 = vunpack.c.l.b16 %v1942
        %v2008 = vunpack.c.h.b16 %v1942
        %v2009 = vunpack.c.l.b16 %v1943
        %v2010 = vunpack.c.h.b16 %v1943
        %v2011 = vunpack.c.l.b16 %v1944
        %v2012 = vunpack.c.h.b16 %v1944
        %v2013 = vunpack.c.l.b16 %v1945
        %v2014 = vunpack.c.h.b16 %v1945
        %v2015 = vunpack.c.l.b16 %v1946
        %v2016 = vunpack.c.h.b16 %v1946
        %v2017 = vunpack.c.l.b16 %v1947
        %v2018 = vunpack.c.h.b16 %v1947
        %v2019 = vunpack.c.l.b16 %v1948
        %v2020 = vunpack.c.h.b16 %v1948
        %v2021 = vunpack.c.l.b16 %v1949
        %v2022 = vunpack.c.h.b16 %v1949
        %v2023 = vunpack.c.l.b16 %v1950
        %v2024 = vunpack.c.h.b16 %v1950
        %v2025 = vunpack.c.l.b16 %v1951
        %v2026 = vunpack.c.h.b16 %v1951
        %v2027 = vunpack.c.l.b16 %v1952
        %v2028 = vunpack.c.h.b16 %v1952
        %v2029 = vunpack.c.l.b16 %v1953
        %v2030 = vunpack.c.h.b16 %v1953
        %v2031 = vunpack.c.l.b16 %v1954
        %v2032 = vunpack.c.h.b16 %v1954
        %v2033 = vunpack.c.l.b16 %v1955
        %v2034 = vunpack.c.h.b16 %v1955
        %v2035 = vunpack.c.l.b16 %v1956
        %v2036 = vunpack.c.h.b16 %v1956
        %v2037 = vunpack.c.l.b16 %v1957
        %v2038 = vunpack.c.h.b16 %v1957
        %v2039 = vunpack.c.l.b16 %v1958
        %v2040 = vunpack.c.h.b16 %v1958
        %v2041 = vunpack.c.l.b16 %v1959
        %v2042 = vunpack.c.h.b16 %v1959
        %v2043 = vunpack.c.l.b16 %v1960
        %v2044 = vunpack.c.h.b16 %v1960
        %v2045 = vunpack.c.l.b16 %v1961
        %v2046 = vunpack.c.h.b16 %v1961
        %v2047 = vunpack.c.l.b16 %v1962
        %v2048 = vunpack.c.h.b16 %v1962
        %v2049 = vunpack.c.l.b16 %v1963
        %v2050 = vunpack.c.h.b16 %v1963
        %v2051 = vunpack.c.l.b16 %v1964
        %v2052 = vunpack.c.h.b16 %v1964
        %v2053 = vunpack.c.l.b16 %v1965
        %v2054 = vunpack.c.h.b16 %v1965
        %v2055 = vunpack.c.l.b16 %v1966
        %v2056 = vunpack.c.h.b16 %v1966
        %v2057 = vunpack.c.l.b16 %v1967
        %v2058 = vunpack.c.h.b16 %v1967
        %v2059 = vunpack.c.l.b16 %v1968
        %v2060 = vunpack.c.h.b16 %v1968
        %v2061 = vunpack.c.l.b16 %v1969
        %v2062 = vunpack.c.h.b16 %v1969
        %v2063 = vunpack.c.l.b16 %v1970
        %v2064 = vunpack.c.h.b16 %v1970
        %v2065 = vunpack.c.l.b16 %v1971
        %v2066 = vunpack.c.h.b16 %v1971
        %v2067 = vunpack.c.l.b16 %v1972
        %v2068 = vunpack.c.h.b16 %v1972
        %v2069 = vpack.c.b16 %v2005, %v2005
        %v2070 = vpack.c.b16 %v2006, %v2006
        %v2071 = vpack.c.b16 %v2007, %v2007
        %v2072 = vpack.c.b16 %v2008, %v2008
        %v2073 = vpack.c.b16 %v2009, %v2009
        %v2074 = vpack.c.b16 %v2010, %v2010
        %v2075 = vpack.c.b16 %v2011, %v2011
        %v2076 = vpack.c.b16 %v2012, %v2012
        %v2077 = vpack.c.b16 %v2013, %v2013
        %v2078 = vpack.c.b16 %v2014, %v2014
        %v2079 = vpack.c.b16 %v2015, %v2015
        %v2080 = vpack.c.b16 %v2016, %v2016
        %v2081 = vpack.c.b16 %v2017, %v2017
        %v2082 = vpack.c.b16 %v2018, %v2018
        %v2083 = vpack.c.b16 %v2019, %v2019
        %v2084 = vpack.c.b16 %v2020, %v2020
        %v2085 = vpack.c.b16 %v2021, %v2021
        %v2086 = vpack.c.b16 %v2022, %v2022
        %v2087 = vpack.c.b16 %v2023, %v2023
        %v2088 = vpack.c.b16 %v2024, %v2024
        %v2089 = vpack.c.b16 %v2025, %v2025
        %v2090 = vpack.c.b16 %v2026, %v2026
        %v2091 = vpack.c.b16 %v2027, %v2027
        %v2092 = vpack.c.b16 %v2028, %v2028
        %v2093 = vpack.c.b16 %v2029, %v2029
        %v2094 = vpack.c.b16 %v2030, %v2030
        %v2095 = vpack.c.b16 %v2031, %v2031
        %v2096 = vpack.c.b16 %v2032, %v2032
        %v2097 = vpack.c.b16 %v2033, %v2033
        %v2098 = vpack.c.b16 %v2034, %v2034
        %v2099 = vpack.c.b16 %v2035, %v2035
        %v2100 = vpack.c.b16 %v2036, %v2036
        %v2101 = vpack.c.b16 %v2037, %v2037
        %v2102 = vpack.c.b16 %v2038, %v2038
        %v2103 = vpack.c.b16 %v2039, %v2039
        %v2104 = vpack.c.b16 %v2040, %v2040
        %v2105 = vpack.c.b16 %v2041, %v2041
        %v2106 = vpack.c.b16 %v2042, %v2042
        %v2107 = vpack.c.b16 %v2043, %v2043
        %v2108 = vpack.c.b16 %v2044, %v2044
        %v2109 = vpack.c.b16 %v2045, %v2045
        %v2110 = vpack.c.b16 %v2046, %v2046
        %v2111 = vpack.c.b16 %v2047, %v2047
        %v2112 = vpack.c.b16 %v2048, %v2048
        %v2113 = vpack.c.b16 %v2049, %v2049
        %v2114 = vpack.c.b16 %v2050, %v2050
        %v2115 = vpack.c.b16 %v2051, %v2051
        %v2116 = vpack.c.b16 %v2052, %v2052
        %v2117 = vpack.c.b16 %v2053, %v2053
        %v2118 = vpack.c.b16 %v2054, %v2054
        %v2119 = vpack.c.b16 %v2055, %v2055
        %v2120 = vpack.c.b16 %v2056, %v2056
        %v2121 = vpack.c.b16 %v2057, %v2057
        %v2122 = vpack.c.b16 %v2058, %v2058
        %v2123 = vpack.c.b16 %v2059, %v2059
        %v2124 = vpack.c.b16 %v2060, %v2060
        %v2125 = vpack.c.b16 %v2061, %v2061
        %v2126 = vpack.c.b16 %v2062, %v2062
        %v2127 = vpack.c.b16 %v2063, %v2063
        %v2128 = vpack.c.b16 %v2064, %v2064
        %v2129 = vpack.c.b16 %v2065, %v2065
        %v2130 = vpack.c.b16 %v2066, %v2066
        %v2131 = vpack.c.b16 %v2067, %v2067
        %v2132 = vpack.c.b16 %v2068, %v2068
        %2197 = vst [vmem:[%s215] sm:$0xf] %v2069
        %2198 = vst [vmem:[%s215 + $0x4] sm:$0xf] %v2070
        %2199 = vst [vmem:[%s215 + $0x8] sm:$0xf] %v2071
        %2200 = vst [vmem:[%s215 + $0xc] sm:$0xf] %v2072
        %2201 = vst [vmem:[%s215 + $0x10] sm:$0xf] %v2073
        %2202 = vst [vmem:[%s215 + $0x14] sm:$0xf] %v2074
        %2203 = vst [vmem:[%s215 + $0x18] sm:$0xf] %v2075
        %2204 = vst [vmem:[%s215 + $0x1c] sm:$0xf] %v2076
        %2205 = vst [vmem:[%s215 + $0x20] sm:$0xf] %v2077
        %2206 = vst [vmem:[%s215 + $0x24] sm:$0xf] %v2078
        %2207 = vst [vmem:[%s215 + $0x28] sm:$0xf] %v2079
        %2208 = vst [vmem:[%s215 + $0x2c] sm:$0xf] %v2080
        %2209 = vst [vmem:[%s215 + $0x30] sm:$0xf] %v2081
        %2210 = vst [vmem:[%s215 + $0x34] sm:$0xf] %v2082
        %2211 = vst [vmem:[%s215 + $0x38] sm:$0xf] %v2083
        %2212 = vst [vmem:[%s215 + $0x3c] sm:$0xf] %v2084
        %2213 = vst [vmem:[%s215 + $0x40] sm:$0xf] %v2085
        %2214 = vst [vmem:[%s215 + $0x44] sm:$0xf] %v2086
        %2215 = vst [vmem:[%s215 + $0x48] sm:$0xf] %v2087
        %2216 = vst [vmem:[%s215 + $0x4c] sm:$0xf] %v2088
        %2217 = vst [vmem:[%s215 + $0x50] sm:$0xf] %v2089
        %2218 = vst [vmem:[%s215 + $0x54] sm:$0xf] %v2090
        %2219 = vst [vmem:[%s215 + $0x58] sm:$0xf] %v2091
        %2220 = vst [vmem:[%s215 + $0x5c] sm:$0xf] %v2092
        %2221 = vst [vmem:[%s215 + $0x60] sm:$0xf] %v2093
        %2222 = vst [vmem:[%s215 + $0x64] sm:$0xf] %v2094
        %2223 = vst [vmem:[%s215 + $0x68] sm:$0xf] %v2095
        %2224 = vst [vmem:[%s215 + $0x6c] sm:$0xf] %v2096
        %2225 = vst [vmem:[%s215 + $0x70] sm:$0xf] %v2097
        %2226 = vst [vmem:[%s215 + $0x74] sm:$0xf] %v2098
        %2227 = vst [vmem:[%s215 + $0x78] sm:$0xf] %v2099
        %2228 = vst [vmem:[%s215 + $0x7c] sm:$0xf] %v2100
        %2229 = vst [vmem:[%s215 + $0x80] sm:$0xf] %v2101
        %2230 = vst [vmem:[%s215 + $0x84] sm:$0xf] %v2102
        %2231 = vst [vmem:[%s215 + $0x88] sm:$0xf] %v2103
        %2232 = vst [vmem:[%s215 + $0x8c] sm:$0xf] %v2104
        %2233 = vst [vmem:[%s215 + $0x90] sm:$0xf] %v2105
        %2234 = vst [vmem:[%s215 + $0x94] sm:$0xf] %v2106
        %2235 = vst [vmem:[%s215 + $0x98] sm:$0xf] %v2107
        %2236 = vst [vmem:[%s215 + $0x9c] sm:$0xf] %v2108
        %2237 = vst [vmem:[%s215 + $0xa0] sm:$0xf] %v2109
        %2238 = vst [vmem:[%s215 + $0xa4] sm:$0xf] %v2110
        %2239 = vst [vmem:[%s215 + $0xa8] sm:$0xf] %v2111
        %2240 = vst [vmem:[%s215 + $0xac] sm:$0xf] %v2112
        %2241 = vst [vmem:[%s215 + $0xb0] sm:$0xf] %v2113
        %2242 = vst [vmem:[%s215 + $0xb4] sm:$0xf] %v2114
        %2243 = vst [vmem:[%s215 + $0xb8] sm:$0xf] %v2115
        %2244 = vst [vmem:[%s215 + $0xbc] sm:$0xf] %v2116
        %2245 = vst [vmem:[%s215 + $0xc0] sm:$0xf] %v2117
        %2246 = vst [vmem:[%s215 + $0xc4] sm:$0xf] %v2118
        %2247 = vst [vmem:[%s215 + $0xc8] sm:$0xf] %v2119
        %2248 = vst [vmem:[%s215 + $0xcc] sm:$0xf] %v2120
        %2249 = vst [vmem:[%s215 + $0xd0] sm:$0xf] %v2121
        %2250 = vst [vmem:[%s215 + $0xd4] sm:$0xf] %v2122
        %2251 = vst [vmem:[%s215 + $0xd8] sm:$0xf] %v2123
        %2252 = vst [vmem:[%s215 + $0xdc] sm:$0xf] %v2124
        %2253 = vst [vmem:[%s215 + $0xe0] sm:$0xf] %v2125
        %2254 = vst [vmem:[%s215 + $0xe4] sm:$0xf] %v2126
        %2255 = vst [vmem:[%s215 + $0xe8] sm:$0xf] %v2127
        %2256 = vst [vmem:[%s215 + $0xec] sm:$0xf] %v2128
        %2257 = vst [vmem:[%s215 + $0xf0] sm:$0xf] %v2129
        %2258 = vst [vmem:[%s215 + $0xf4] sm:$0xf] %v2130
        %2259 = vst [vmem:[%s215 + $0xf8] sm:$0xf] %v2131
        %2260 = vst [vmem:[%s215 + $0xfc] sm:$0xf] %v2132
      $region52: #{mobilenet_v3_forward.7} parent=35 // pred_fallthru
        _
      %s2261 = smul.u32 %s20, %s19
      %s2262 = smul.u32 64, %s2261
      %p2263 = scmp.lt.s32.totalorder %s2262, 63
      %s2264 = scalar_select %p2263, %s2262, 63
      %s2265 = smul.addr %s2264, 4
      %s2266 = scalar_lea.vmem %s4, %s2265
      // Predicated region
      $region53: #{mobilenet_v3_forward.7} parent=35 // pred_check
        %p2267 = pneg %p136
      $region54: #{mobilenet_v3_forward.7} parent=35 // pred_check_branch
        %2269 = sbr.rel (%p2267) target = $region56
      $region55: #{mobilenet_v3_forward.7} parent=35 // pred_region
        %s2270 = smul.u32 %s20, %s19
        %s2271 = smul.u32 64, %s2270
      $region56: #{mobilenet_v3_forward.7} parent=35 // pred_fallthru
        _
    $region36: #{mobilenet_v3_forward.7} parent=5 // pred_fallthru
      _
    %p2272 = scmp.le.s32.totalorder 2, %s10
    // Predicated region
    $region57: #{mobilenet_v3_forward.7} parent=5 // pred_check
      %p2273 = pneg %p2272
    $region58: #{mobilenet_v3_forward.7} parent=5 // pred_check_branch
      %2275 = sbr.rel (%p2273) target = $region60
    $region59: #{mobilenet_v3_forward.7} parent=5 // pred_region
      %s2276 = ssub.s32 %s10, 2
      // Predicated region
      $region61: #{mobilenet_v3_forward.7} parent=59 // pred_check
        %p2277 = pneg %p142
      $region62: #{mobilenet_v3_forward.7} parent=59 // pred_check_branch
        %2279 = sbr.rel (%p2277) target = $region64
      $region63: #{mobilenet_v3_forward.7} parent=59 // pred_region
        %s2280 = smul.u32 %s22, %s21
        %s2281 = smul.u32 64, %s2280
        %p2282 = scmp.lt.s32.totalorder %s2281, 63
        %s2283 = scalar_select %p2282, %s2281, 63
        %s2284 = smul.addr %s2283, 4
        %s2285 = scalar_lea.vmem %s4, %s2284
      $region64: #{mobilenet_v3_forward.7} parent=59 // pred_fallthru
        _
    $region60: #{mobilenet_v3_forward.7} parent=5 // pred_fallthru
      _
  $region6: #{mobilenet_v3_forward.7} parent=0 // loop_footer
    %s14 = sadd.s32 1, %s10
  $region7: #{mobilenet_v3_forward.7} parent=0 // loop_footer_branch
    %9 = sbr.rel target = $region3
  $region8: #{mobilenet_v3_forward.7} parent=0 // loop_exit
    _

// kernel: mobilenet_v3_forward.10
$region0: #{mobilenet_v3_forward.10}
  #allocation0 [shape = 'u32[]', space=smem, size = 0x4, offset = 0x4, fixed_abs, tag = 'smem constant byte address 0x4 - core index']
  #allocation1 [shape = 'u32[144,128]{1,0:T(1,128)}', space=vmem, size = 0x12000, scoped, tag = 'internal scratch']
  #allocation2 [shape = 'f32[1,128]{1,0:T(1,128)}', space=vmem, size = 0x200, scoped, tag = 'scratch operand']
  #allocation3 [shape = 'f32[1,128]{1,0:T(1,128)}', space=vmem, size = 0x200, scoped, tag = 'scratch operand']
  #allocation4 [shape = 'f32[1,128]{1,0:T(1,128)}', space=vmem, size = 0x200, scoped, tag = 'scratch operand']
  #allocation5 [shape = 'f32[1,128]{1,0:T(1,128)}', space=vmem, size = 0x200, scoped, tag = 'scratch operand']
  %s0 = inlined_call_operand.vmem [shape: bf16[128,128], index: 0, kind: input, shape index: {}]
  %s1 = inlined_call_operand.vmem [shape: bf16[128,128], index: 1, kind: input, shape index: {}]
  %s2 = inlined_call_operand.vmem [shape: f32[1,128], index: 2, kind: input, shape index: {}]
  %s3 = inlined_call_operand.vmem [shape: f32[1,128], index: 3, kind: input, shape index: {}]
  %s4 = inlined_call_operand.vmem [shape: bf16[128,128], index: 4, kind: output, shape index: {}]
  %s5 = sld [smem:[#allocation0]]
  $region65: #{mobilenet_v3_forward.10} parent=0
    _
  %s7 = ssub.s32 1, %s5
  %s8 = scalar_select 0, %s7, %s5
  loop: start=0, step=1, limit=4
  $region2: #{mobilenet_v3_forward.10} parent=0 // loop_pre_header
    _
  $region3: #{mobilenet_v3_forward.10} parent=0 // loop_header
    %s10 = sphi 0, %s14
    %p11 = scmp.ge.s32.totalorder %s10, 4
    %s17 = sphi 0, %s29
    %s18 = sphi 0, %s25
    %s19 = sphi 0, %s17
    %s20 = sphi 0, %s18
    %s21 = sphi 0, %s19
    %s22 = sphi 0, %s20
    %s32 = sphi 0, %s34
    %s35 = sphi 0, %s32
    %s36 = sphi 0, %s35
    %s52 = sphi 0, %s36
    %s56 = sphi 0, %s56
    %s58 = sphi 0, %s56
    %s59 = sphi 0, %s58
    %s73 = sphi 0, %s59
    %s77 = sphi 0, %s77
    %s79 = sphi 0, %s77
    %s80 = sphi 0, %s79
    %s94 = sphi 0, %s80
    %s98 = sphi 0, %s98
    %s100 = sphi 0, %s98
    %s101 = sphi 0, %s100
    %s115 = sphi 0, %s101
    %s123 = sphi 0, %s125
    %s126 = sphi 0, %s123
    %s127 = sphi 0, %s126
    %s143 = sphi 0, %s127
  $region4: #{mobilenet_v3_forward.10} parent=0 // loop_header_branch
    %13 = sbr.rel (%p11) target = $region8
  $region5: #{mobilenet_v3_forward.10} parent=0 // loop_body
    %s15 = ssub.s32 %s10, 1
    %s16 = ssub.s32 %s10, 2
    %s23 = sadd.s32 1, %s18
    %p24 = scmp.ge.s32.totalorder %s23, 1
    %s25 = scalar_select %p24, 0, %s23
    %s26 = sadd.s32 1, %s17
    %s27 = scalar_select %p24, %s26, %s17
    %p28 = scmp.ge.s32.totalorder %s27, 2
    %s29 = scalar_select %p28, 0, %s27
    %s30 = ssub.s32 %s18, %s25
    %p31 = scmp.eq.s32.totalorder %s30, 0
    %s33 = sadd.s32 %s32, 1
    %s34 = scalar_select %p31, %s32, %s33
    %p37 = pneg %p31
    %p38 = scmp.eq.s32.totalorder %s10, 1
    %p39 = por %p37, %p38
    %p40 = scmp.ne.s32.totalorder %s32, %s35
    %p41 = scmp.eq.s32.totalorder %s10, 0
    %p42 = por %p40, %p41
    %p43 = scmp.ne.s32.totalorder %s32, %s35
    %p44 = scmp.eq.s32.totalorder %s15, 1
    %p45 = por %p43, %p44
    %p46 = scmp.ne.s32.totalorder %s35, %s36
    %p47 = scmp.eq.s32.totalorder %s15, 0
    %p48 = por %p46, %p47
    %p49 = scmp.ne.s32.totalorder %s35, %s36
    %p50 = scmp.eq.s32.totalorder %s16, 1
    %p51 = por %p49, %p50
    %p53 = scmp.ne.s32.totalorder %s36, %s52
    %p54 = scmp.eq.s32.totalorder %s16, 0
    %p55 = por %p53, %p54
    %s57 = sadd.s32 %s56, 1
    %p60 = scmp.eq.s32.totalorder %s10, 1
    %p61 = scmp.ne.s32.totalorder %s56, %s58
    %p62 = scmp.eq.s32.totalorder %s10, 0
    %p63 = por %p61, %p62
    %p64 = scmp.ne.s32.totalorder %s56, %s58
    %p65 = scmp.eq.s32.totalorder %s15, 1
    %p66 = por %p64, %p65
    %p67 = scmp.ne.s32.totalorder %s58, %s59
    %p68 = scmp.eq.s32.totalorder %s15, 0
    %p69 = por %p67, %p68
    %p70 = scmp.ne.s32.totalorder %s58, %s59
    %p71 = scmp.eq.s32.totalorder %s16, 1
    %p72 = por %p70, %p71
    %p74 = scmp.ne.s32.totalorder %s59, %s73
    %p75 = scmp.eq.s32.totalorder %s16, 0
    %p76 = por %p74, %p75
    %s78 = sadd.s32 %s77, 1
    %p81 = scmp.eq.s32.totalorder %s10, 1
    %p82 = scmp.ne.s32.totalorder %s77, %s79
    %p83 = scmp.eq.s32.totalorder %s10, 0
    %p84 = por %p82, %p83
    %p85 = scmp.ne.s32.totalorder %s77, %s79
    %p86 = scmp.eq.s32.totalorder %s15, 1
    %p87 = por %p85, %p86
    %p88 = scmp.ne.s32.totalorder %s79, %s80
    %p89 = scmp.eq.s32.totalorder %s15, 0
    %p90 = por %p88, %p89
    %p91 = scmp.ne.s32.totalorder %s79, %s80
    %p92 = scmp.eq.s32.totalorder %s16, 1
    %p93 = por %p91, %p92
    %p95 = scmp.ne.s32.totalorder %s80, %s94
    %p96 = scmp.eq.s32.totalorder %s16, 0
    %p97 = por %p95, %p96
    %s99 = sadd.s32 %s98, 1
    %p102 = scmp.eq.s32.totalorder %s10, 1
    %p103 = scmp.ne.s32.totalorder %s98, %s100
    %p104 = scmp.eq.s32.totalorder %s10, 0
    %p105 = por %p103, %p104
    %p106 = scmp.ne.s32.totalorder %s98, %s100
    %p107 = scmp.eq.s32.totalorder %s15, 1
    %p108 = por %p106, %p107
    %p109 = scmp.ne.s32.totalorder %s100, %s101
    %p110 = scmp.eq.s32.totalorder %s15, 0
    %p111 = por %p109, %p110
    %p112 = scmp.ne.s32.totalorder %s100, %s101
    %p113 = scmp.eq.s32.totalorder %s16, 1
    %p114 = por %p112, %p113
    %p116 = scmp.ne.s32.totalorder %s101, %s115
    %p117 = scmp.eq.s32.totalorder %s16, 0
    %p118 = por %p116, %p117
    %s119 = smul.u32 %s18, %s17
    %s120 = smul.u32 %s25, %s29
    %s121 = ssub.s32 %s119, %s120
    %p122 = scmp.eq.s32.totalorder %s121, 0
    %s124 = sadd.s32 %s123, 1
    %s125 = scalar_select %p122, %s123, %s124
    %p128 = pneg %p122
    %p129 = scmp.eq.s32.totalorder %s10, 1
    %p130 = por %p128, %p129
    %p131 = scmp.ne.s32.totalorder %s123, %s126
    %p132 = scmp.eq.s32.totalorder %s10, 0
    %p133 = por %p131, %p132
    %p134 = scmp.ne.s32.totalorder %s123, %s126
    %p135 = scmp.eq.s32.totalorder %s15, 1
    %p136 = por %p134, %p135
    %p137 = scmp.ne.s32.totalorder %s126, %s127
    %p138 = scmp.eq.s32.totalorder %s15, 0
    %p139 = por %p137, %p138
    %p140 = scmp.ne.s32.totalorder %s126, %s127
    %p141 = scmp.eq.s32.totalorder %s16, 1
    %p142 = por %p140, %p141
    %p144 = scmp.ne.s32.totalorder %s127, %s143
    %p145 = scmp.eq.s32.totalorder %s16, 0
    %p146 = por %p144, %p145
    %p147 = scmp.le.s32.totalorder 1, %s10
    %p148 = scmp.lt.s32.totalorder %s10, 3
    %p149 = pnand %p147, %p148
    %p150 = pneg %p149
    // Predicated region
    $region9: #{mobilenet_v3_forward.10} parent=5 // pred_check
      _
    $region10: #{mobilenet_v3_forward.10} parent=5 // pred_check_branch
      %152 = sbr.rel (%p149) target = $region12
    $region11: #{mobilenet_v3_forward.10} parent=5 // pred_region
      %s153 = ssub.s32 %s10, 1
      // Predicated region
      $region13: #{mobilenet_v3_forward.10} parent=11 // pred_check
        %p154 = pneg %p48
      $region14: #{mobilenet_v3_forward.10} parent=11 // pred_check_branch
        %156 = sbr.rel (%p154) target = $region16
      $region15: #{mobilenet_v3_forward.10} parent=11 // pred_region
        %s157 = smul.u32 16, %s20
        %p158 = scmp.lt.s32.totalorder %s157, 15
        %s159 = scalar_select %p158, %s157, 15
        %s160 = smul.addr %s159, 4
        %s161 = scalar_lea.vmem %s0, %s160
        %s162 = smul.u32 16, %s20
      $region16: #{mobilenet_v3_forward.10} parent=11 // pred_fallthru
        _
      // Predicated region
      $region17: #{mobilenet_v3_forward.10} parent=11 // pred_check
        %p163 = pneg %p69
      $region18: #{mobilenet_v3_forward.10} parent=11 // pred_check_branch
        %165 = sbr.rel (%p163) target = $region20
      $region19: #{mobilenet_v3_forward.10} parent=11 // pred_region
        _
      $region20: #{mobilenet_v3_forward.10} parent=11 // pred_fallthru
        _
      // Predicated region
      $region21: #{mobilenet_v3_forward.10} parent=11 // pred_check
        %p166 = pneg %p90
      $region22: #{mobilenet_v3_forward.10} parent=11 // pred_check_branch
        %168 = sbr.rel (%p166) target = $region24
      $region23: #{mobilenet_v3_forward.10} parent=11 // pred_region
        _
      $region24: #{mobilenet_v3_forward.10} parent=11 // pred_fallthru
        _
      // Predicated region
      $region25: #{mobilenet_v3_forward.10} parent=11 // pred_check
        %p169 = pneg %p111
      $region26: #{mobilenet_v3_forward.10} parent=11 // pred_check_branch
        %171 = sbr.rel (%p169) target = $region28
      $region27: #{mobilenet_v3_forward.10} parent=11 // pred_region
        _
      $region28: #{mobilenet_v3_forward.10} parent=11 // pred_fallthru
        _
    $region12: #{mobilenet_v3_forward.10} parent=5 // pred_fallthru
      _
    %p172 = scmp.lt.s32.totalorder %s10, 2
    // Predicated region
    $region29: #{mobilenet_v3_forward.10} parent=5 // pred_check
      %p173 = pneg %p172
    $region30: #{mobilenet_v3_forward.10} parent=5 // pred_check_branch
      %175 = sbr.rel (%p173) target = $region32
    $region31: #{mobilenet_v3_forward.10} parent=5 // pred_region
      _
    $region32: #{mobilenet_v3_forward.10} parent=5 // pred_fallthru
      _
    %p176 = scmp.le.s32.totalorder 1, %s10
    %p177 = scmp.lt.s32.totalorder %s10, 3
    %p178 = pnand %p176, %p177
    %p179 = pneg %p178
    // Predicated region
    $region33: #{mobilenet_v3_forward.10} parent=5 // pred_check
      _
    $region34: #{mobilenet_v3_forward.10} parent=5 // pred_check_branch
      %181 = sbr.rel (%p178) target = $region36
    $region35: #{mobilenet_v3_forward.10} parent=5 // pred_region
      %s182 = ssub.s32 %s10, 1
      %s183 = smul.u32 16, %s20
      %p184 = scmp.lt.s32.totalorder %s183, 15
      %s185 = scalar_select %p184, %s183, 15
      %s186 = smul.addr %s185, 4
      %s187 = scalar_lea.vmem %s0, %s186
      %p188 = pneg %p48
      %p189 = pneg %p45
      %p190 = pneg %p69
      %p191 = pneg %p66
      %p192 = pneg %p90
      %p193 = pneg %p87
      %p194 = pneg %p111
      %p195 = pneg %p108
      %p196 = pneg %p139
      %p197 = pneg %p136
      %s198 = smul.u32 %s20, %s19
      %s199 = smul.u32 16, %s198
      %p200 = scmp.lt.s32.totalorder %s199, 15
      %s201 = scalar_select %p200, %s199, 15
      %s202 = smul.addr %s201, 4
      %s203 = scalar_lea.vmem %s4, %s202
      %s204 = smul.u32 16, %s20
      %p205 = scmp.lt.s32.totalorder %s204, 15
      %s206 = scalar_select %p205, %s204, 15
      %s207 = smul.addr %s206, 4
      %s208 = scalar_lea.vmem %s0, %s207
      %s209 = smul.u32 16, %s20
      %s210 = smul.u32 %s20, %s19
      %s211 = smul.u32 16, %s210
      %p212 = scmp.lt.s32.totalorder %s211, 15
      %s213 = scalar_select %p212, %s211, 15
      %s214 = smul.addr %s213, 4
      %s215 = scalar_lea.vmem %s4, %s214
      %s216 = smul.u32 %s20, %s19
      %s217 = smul.u32 16, %s216
      %v219 = vld [vmem:[%s208] sm:$0xf]
      %v220 = vld [vmem:[%s208 + $0x4] sm:$0xf]
      %v221 = vld [vmem:[%s208 + $0x8] sm:$0xf]
      %v222 = vld [vmem:[%s208 + $0xc] sm:$0xf]
      %v223 = vld [vmem:[%s208 + $0x10] sm:$0xf]
      %v224 = vld [vmem:[%s208 + $0x14] sm:$0xf]
      %v225 = vld [vmem:[%s208 + $0x18] sm:$0xf]
      %v226 = vld [vmem:[%s208 + $0x1c] sm:$0xf]
      %v227 = vld [vmem:[%s208 + $0x20] sm:$0xf]
      %v228 = vld [vmem:[%s208 + $0x24] sm:$0xf]
      %v229 = vld [vmem:[%s208 + $0x28] sm:$0xf]
      %v230 = vld [vmem:[%s208 + $0x2c] sm:$0xf]
      %v231 = vld [vmem:[%s208 + $0x30] sm:$0xf]
      %v232 = vld [vmem:[%s208 + $0x34] sm:$0xf]
      %v233 = vld [vmem:[%s208 + $0x38] sm:$0xf]
      %v234 = vld [vmem:[%s208 + $0x3c] sm:$0xf]
      %v235 = vld [vmem:[%s1] sm:$0xf]
      %v236 = vld [vmem:[%s1 + $0x4] sm:$0xf]
      %v237 = vld [vmem:[%s1 + $0x8] sm:$0xf]
      %v238 = vld [vmem:[%s1 + $0xc] sm:$0xf]
      %v239 = vld [vmem:[%s1 + $0x10] sm:$0xf]
      %v240 = vld [vmem:[%s1 + $0x14] sm:$0xf]
      %v241 = vld [vmem:[%s1 + $0x18] sm:$0xf]
      %v242 = vld [vmem:[%s1 + $0x1c] sm:$0xf]
      %v243 = vld [vmem:[%s1 + $0x20] sm:$0xf]
      %v244 = vld [vmem:[%s1 + $0x24] sm:$0xf]
      %v245 = vld [vmem:[%s1 + $0x28] sm:$0xf]
      %v246 = vld [vmem:[%s1 + $0x2c] sm:$0xf]
      %v247 = vld [vmem:[%s1 + $0x30] sm:$0xf]
      %v248 = vld [vmem:[%s1 + $0x34] sm:$0xf]
      %v249 = vld [vmem:[%s1 + $0x38] sm:$0xf]
      %v250 = vld [vmem:[%s1 + $0x3c] sm:$0xf]
      %v267 = vunpack.c.l.b16 %v219
      %v268 = vunpack.c.l.b16 %v220
      %v269 = vunpack.c.l.b16 %v221
      %v270 = vunpack.c.l.b16 %v222
      %v271 = vunpack.c.l.b16 %v223
      %v272 = vunpack.c.l.b16 %v224
      %v273 = vunpack.c.l.b16 %v225
      %v274 = vunpack.c.l.b16 %v226
      %v275 = vunpack.c.l.b16 %v227
      %v276 = vunpack.c.l.b16 %v228
      %v277 = vunpack.c.l.b16 %v229
      %v278 = vunpack.c.l.b16 %v230
      %v279 = vunpack.c.l.b16 %v231
      %v280 = vunpack.c.l.b16 %v232
      %v281 = vunpack.c.l.b16 %v233
      %v282 = vunpack.c.l.b16 %v234
      %v283 = vpack.c.b16 %v268, %v267
      %v284 = vpack.c.b16 %v270, %v269
      %v285 = vpack.c.b16 %v272, %v271
      %v286 = vpack.c.b16 %v274, %v273
      %v287 = vpack.c.b16 %v276, %v275
      %v288 = vpack.c.b16 %v278, %v277
      %v289 = vpack.c.b16 %v280, %v279
      %v290 = vpack.c.b16 %v282, %v281
      %v315 = vunpack.c.l.b16 %v235
      %v316 = vunpack.c.l.b16 %v236
      %v317 = vunpack.c.l.b16 %v237
      %v318 = vunpack.c.l.b16 %v238
      %v319 = vunpack.c.l.b16 %v239
      %v320 = vunpack.c.l.b16 %v240
      %v321 = vunpack.c.l.b16 %v241
      %v322 = vunpack.c.l.b16 %v242
      %v323 = vunpack.c.l.b16 %v243
      %v324 = vunpack.c.l.b16 %v244
      %v325 = vunpack.c.l.b16 %v245
      %v326 = vunpack.c.l.b16 %v246
      %v327 = vunpack.c.l.b16 %v247
      %v328 = vunpack.c.l.b16 %v248
      %v329 = vunpack.c.l.b16 %v249
      %v330 = vunpack.c.l.b16 %v250
      %v331 = vpack.c.b16 %v316, %v315
      %v332 = vpack.c.b16 %v318, %v317
      %v333 = vpack.c.b16 %v320, %v319
      %v334 = vpack.c.b16 %v322, %v321
      %v335 = vpack.c.b16 %v324, %v323
      %v336 = vpack.c.b16 %v326, %v325
      %v337 = vpack.c.b16 %v328, %v327
      %v338 = vpack.c.b16 %v330, %v329
      %347 = vmatprep.subr.bf16.mxu0 0
      %348 = vmatpush1.bf16.msra.mxu0 %v331
      %349 = vmatprep.subr.bf16.mxu0 0
      %350 = vmatpush1.bf16.msra.mxu0 %v332
      %351 = vmatprep.subr.bf16.mxu0 0
      %352 = vmatpush1.bf16.msra.mxu0 %v333
      %353 = vmatprep.subr.bf16.mxu0 0
      %354 = vmatpush1.bf16.msra.mxu0 %v334
      %355 = vmatprep.subr.bf16.mxu0 0
      %356 = vmatpush1.bf16.msra.mxu0 %v335
      %357 = vmatprep.subr.bf16.mxu0 0
      %358 = vmatpush1.bf16.msra.mxu0 %v336
      %359 = vmatprep.subr.bf16.mxu0 0
      %360 = vmatpush1.bf16.msra.mxu0 %v337
      %361 = vmatprep.subr.bf16.mxu0 0
      %362 = vmatpush1.bf16.msra.mxu0 %v338
      %363 = vmatprep.subr.bf16.mxu0 0
      %364 = vmatpush1.bf16.msra.mxu0 0
      %365 = vmatprep.subr.bf16.mxu0 0
      %366 = vmatpush1.bf16.msra.mxu0 0
      %367 = vmatprep.subr.bf16.mxu0 0
      %368 = vmatpush1.bf16.msra.mxu0 0
      %369 = vmatprep.subr.bf16.mxu0 0
      %370 = vmatpush1.bf16.msra.mxu0 0
      %371 = vmatprep.subr.bf16.mxu0 0
      %372 = vmatpush1.bf16.msra.mxu0 0
      %373 = vmatprep.subr.bf16.mxu0 0
      %374 = vmatpush1.bf16.msra.mxu0 0
      %375 = vmatprep.subr.bf16.mxu0 0
      %376 = vmatpush1.bf16.msra.mxu0 0
      %377 = vmatprep.subr.bf16.mxu0 0
      %378 = vmatpush1.bf16.msra.mxu0 0
      %379 = vmatprep.mubr.bf16.mxu0 0
      %380 = vmatmul.mubr.bf16.gmra.mrb[0].mxu0 %v283
      %v381 = vpop.f32.mrb[0].mxu0
      %v382 = vadd.f32 0.0, %v381
      %v383 = vpop.f32.mrb[0].mxu0
      %v384 = vpop.f32.mrb[0].mxu0
      %v385 = vadd.f32 0.0, %v384
      %v386 = vpop.f32.mrb[0].mxu0
      %387 = vmatprep.mubr.bf16.mxu0 0
      %388 = vmatmul.mubr.bf16.gmra.mrb[0].mxu0 %v284
      %v389 = vpop.f32.mrb[0].mxu0
      %v390 = vadd.f32 0.0, %v389
      %v391 = vpop.f32.mrb[0].mxu0
      %v392 = vpop.f32.mrb[0].mxu0
      %v393 = vadd.f32 0.0, %v392
      %v394 = vpop.f32.mrb[0].mxu0
      %395 = vmatprep.mubr.bf16.mxu0 0
      %396 = vmatmul.mubr.bf16.gmra.mrb[0].mxu0 %v285
      %v397 = vpop.f32.mrb[0].mxu0
      %v398 = vadd.f32 0.0, %v397
      %v399 = vpop.f32.mrb[0].mxu0
      %v400 = vpop.f32.mrb[0].mxu0
      %v401 = vadd.f32 0.0, %v400
      %v402 = vpop.f32.mrb[0].mxu0
      %403 = vmatprep.mubr.bf16.mxu0 0
      %404 = vmatmul.mubr.bf16.gmra.mrb[0].mxu0 %v286
      %v405 = vpop.f32.mrb[0].mxu0
      %v406 = vadd.f32 0.0, %v405
      %v407 = vpop.f32.mrb[0].mxu0
      %v408 = vpop.f32.mrb[0].mxu0
      %v409 = vadd.f32 0.0, %v408
      %v410 = vpop.f32.mrb[0].mxu0
      %411 = vmatprep.mubr.bf16.mxu0 0
      %412 = vmatmul.mubr.bf16.gmra.mrb[0].mxu0 %v287
      %v413 = vpop.f32.mrb[0].mxu0
      %v414 = vadd.f32 0.0, %v413
      %v415 = vpop.f32.mrb[0].mxu0
      %v416 = vpop.f32.mrb[0].mxu0
      %v417 = vadd.f32 0.0, %v416
      %v418 = vpop.f32.mrb[0].mxu0
      %419 = vmatprep.mubr.bf16.mxu0 0
      %420 = vmatmul.mubr.bf16.gmra.mrb[0].mxu0 %v288
      %v421 = vpop.f32.mrb[0].mxu0
      %v422 = vadd.f32 0.0, %v421
      %v423 = vpop.f32.mrb[0].mxu0
      %v424 = vpop.f32.mrb[0].mxu0
      %v425 = vadd.f32 0.0, %v424
      %v426 = vpop.f32.mrb[0].mxu0
      %427 = vmatprep.mubr.bf16.mxu0 0
      %428 = vmatmul.mubr.bf16.gmra.mrb[0].mxu0 %v289
      %v429 = vpop.f32.mrb[0].mxu0
      %v430 = vadd.f32 0.0, %v429
      %v431 = vpop.f32.mrb[0].mxu0
      %v432 = vpop.f32.mrb[0].mxu0
      %v433 = vadd.f32 0.0, %v432
      %v434 = vpop.f32.mrb[0].mxu0
      %435 = vmatprep.mubr.bf16.mxu0 0
      %436 = vmatmul.mubr.bf16.gmra.mrb[0].mxu0 %v290
      %v437 = vpop.f32.mrb[0].mxu0
      %v438 = vadd.f32 0.0, %v437
      %v439 = vpop.f32.mrb[0].mxu0
      %v440 = vpop.f32.mrb[0].mxu0
      %v441 = vadd.f32 0.0, %v440
      %v442 = vpop.f32.mrb[0].mxu0
      %443 = vdwg.mxu0
      %p444 = scmp.eq.s32.totalorder %s19, 0
      // Predicated region
      $region37: #{mobilenet_v3_forward.10} parent=35 // pred_check
        %p445 = pneg %p444
      $region38: #{mobilenet_v3_forward.10} parent=35 // pred_check_branch
        %447 = sbr.rel (%p445) target = $region40
      $region39: #{mobilenet_v3_forward.10} parent=35 // pred_region
        %p448 = scmp.eq.s32.totalorder %s20, 0
        // Predicated region
        $region41: #{mobilenet_v3_forward.10} parent=39 // pred_check
          %p449 = pneg %p448
        $region42: #{mobilenet_v3_forward.10} parent=39 // pred_check_branch
          %451 = sbr.rel (%p449) target = $region44
        $region43: #{mobilenet_v3_forward.10} parent=39 // pred_region
          %452 = vst [vmem:[#allocation2] sm:$0x1] 0.0
          %453 = vst [vmem:[#allocation3] sm:$0x1] 0.0
        $region44: #{mobilenet_v3_forward.10} parent=39 // pred_fallthru
          _
        %s454 = smul.u32 %s20, 128
        %v455 = vlaneseq
        %v456 = vshrl.u32 %v455, 7
        %v457 = vadd.s32 %v456, 8
        %v458 = vadd.s32 %v456, 16
        %v459 = vadd.s32 %v456, 24
        %v460 = vadd.s32 %v456, 32
        %v461 = vadd.s32 %v456, 40
        %v462 = vadd.s32 %v456, 48
        %v463 = vadd.s32 %v456, 56
        %v464 = vadd.s32 %v456, 64
        %v465 = vadd.s32 %v456, 72
        %v466 = vadd.s32 %v456, 80
        %v467 = vadd.s32 %v456, 88
        %v468 = vadd.s32 %v456, 96
        %v469 = vadd.s32 %v456, 104
        %v470 = vadd.s32 %v456, 112
        %v471 = vadd.s32 %v456, 120
        %v472 = vstv %s454
        %v473 = vadd.s32 %v472, %v456
        %v474 = vadd.s32 %v472, %v457
        %v475 = vadd.s32 %v472, %v458
        %v476 = vadd.s32 %v472, %v459
        %v477 = vadd.s32 %v472, %v460
        %v478 = vadd.s32 %v472, %v461
        %v479 = vadd.s32 %v472, %v462
        %v480 = vadd.s32 %v472, %v463
        %v481 = vadd.s32 %v472, %v464
        %v482 = vadd.s32 %v472, %v465
        %v483 = vadd.s32 %v472, %v466
        %v484 = vadd.s32 %v472, %v467
        %v485 = vadd.s32 %v472, %v468
        %v486 = vadd.s32 %v472, %v469
        %v487 = vadd.s32 %v472, %v470
        %v488 = vadd.s32 %v472, %v471
        %vm489 = vcmp.lt.s32.totalorder %v473, 128
        %vm490 = vcmp.lt.s32.totalorder %v474, 128
        %vm491 = vcmp.lt.s32.totalorder %v475, 128
        %vm492 = vcmp.lt.s32.totalorder %v476, 128
        %vm493 = vcmp.lt.s32.totalorder %v477, 128
        %vm494 = vcmp.lt.s32.totalorder %v478, 128
        %vm495 = vcmp.lt.s32.totalorder %v479, 128
        %vm496 = vcmp.lt.s32.totalorder %v480, 128
        %vm497 = vcmp.lt.s32.totalorder %v481, 128
        %vm498 = vcmp.lt.s32.totalorder %v482, 128
        %vm499 = vcmp.lt.s32.totalorder %v483, 128
        %vm500 = vcmp.lt.s32.totalorder %v484, 128
        %vm501 = vcmp.lt.s32.totalorder %v485, 128
        %vm502 = vcmp.lt.s32.totalorder %v486, 128
        %vm503 = vcmp.lt.s32.totalorder %v487, 128
        %vm504 = vcmp.lt.s32.totalorder %v488, 128
        %v505 = vsel %vm489, 1, 0
        %v506 = vsel %vm490, 1, 0
        %v507 = vsel %vm491, 1, 0
        %v508 = vsel %vm492, 1, 0
        %v509 = vsel %vm493, 1, 0
        %v510 = vsel %vm494, 1, 0
        %v511 = vsel %vm495, 1, 0
        %v512 = vsel %vm496, 1, 0
        %v513 = vsel %vm497, 1, 0
        %v514 = vsel %vm498, 1, 0
        %v515 = vsel %vm499, 1, 0
        %v516 = vsel %vm500, 1, 0
        %v517 = vsel %vm501, 1, 0
        %v518 = vsel %vm502, 1, 0
        %v519 = vsel %vm503, 1, 0
        %v520 = vsel %vm504, 1, 0
        %vm521 = vcmp.eq.s32.totalorder %v505, 1
        %vm522 = vcmp.eq.s32.totalorder %v506, 1
        %vm523 = vcmp.eq.s32.totalorder %v507, 1
        %vm524 = vcmp.eq.s32.totalorder %v508, 1
        %vm525 = vcmp.eq.s32.totalorder %v509, 1
        %vm526 = vcmp.eq.s32.totalorder %v510, 1
        %vm527 = vcmp.eq.s32.totalorder %v511, 1
        %vm528 = vcmp.eq.s32.totalorder %v512, 1
        %vm529 = vcmp.eq.s32.totalorder %v513, 1
        %vm530 = vcmp.eq.s32.totalorder %v514, 1
        %vm531 = vcmp.eq.s32.totalorder %v515, 1
        %vm532 = vcmp.eq.s32.totalorder %v516, 1
        %vm533 = vcmp.eq.s32.totalorder %v517, 1
        %vm534 = vcmp.eq.s32.totalorder %v518, 1
        %vm535 = vcmp.eq.s32.totalorder %v519, 1
        %vm536 = vcmp.eq.s32.totalorder %v520, 1
        %v537 = vsel %vm521, %v382, 0.0
        %v538 = vsel %vm522, %v385, 0.0
        %v539 = vsel %vm523, %v390, 0.0
        %v540 = vsel %vm524, %v393, 0.0
        %v541 = vsel %vm525, %v398, 0.0
        %v542 = vsel %vm526, %v401, 0.0
        %v543 = vsel %vm527, %v406, 0.0
        %v544 = vsel %vm528, %v409, 0.0
        %v545 = vsel %vm529, %v414, 0.0
        %v546 = vsel %vm530, %v417, 0.0
        %v547 = vsel %vm531, %v422, 0.0
        %v548 = vsel %vm532, %v425, 0.0
        %v549 = vsel %vm533, %v430, 0.0
        %v550 = vsel %vm534, %v433, 0.0
        %v551 = vsel %vm535, %v438, 0.0
        %v552 = vsel %vm536, %v441, 0.0
        %v553 = vld [vmem:[#allocation2] sm:$0x1]
        %v554 = vadd.f32 %v537, %v538
        %v555 = vadd.f32 %v554, %v539
        %v556 = vadd.f32 %v555, %v540
        %v557 = vadd.f32 %v556, %v541
        %v558 = vadd.f32 %v557, %v542
        %v559 = vadd.f32 %v558, %v543
        %v560 = vadd.f32 %v559, %v544
        %v561 = vadd.f32 %v560, %v545
        %v562 = vadd.f32 %v561, %v546
        %v563 = vadd.f32 %v562, %v547
        %v564 = vadd.f32 %v563, %v548
        %v565 = vadd.f32 %v564, %v549
        %v566 = vadd.f32 %v565, %v550
        %v567 = vadd.f32 %v566, %v551
        %v568 = vadd.f32 %v567, %v552
        %v569 = vrot.slane %v568, 4
        %v570 = vadd.f32 %v568, %v569
        %v571 = vrot.slane %v570, 2
        %v572 = vadd.f32 %v570, %v571
        %v573 = vrot.slane %v572, 1
        %v574 = vadd.f32 %v572, %v573
        %v575 = vadd.f32 %v553, %v574
        %576 = vst [vmem:[#allocation2] sm:$0x1] %v575
        %v577 = vld [vmem:[#allocation3] sm:$0x1]
        %v578 = vmul.f32 %v537, %v537
        %v579 = vmul.f32 %v538, %v538
        %v580 = vmul.f32 %v539, %v539
        %v581 = vmul.f32 %v540, %v540
        %v582 = vmul.f32 %v541, %v541
        %v583 = vmul.f32 %v542, %v542
        %v584 = vmul.f32 %v543, %v543
        %v585 = vmul.f32 %v544, %v544
        %v586 = vmul.f32 %v545, %v545
        %v587 = vmul.f32 %v546, %v546
        %v588 = vmul.f32 %v547, %v547
        %v589 = vmul.f32 %v548, %v548
        %v590 = vmul.f32 %v549, %v549
        %v591 = vmul.f32 %v550, %v550
        %v592 = vmul.f32 %v551, %v551
        %v593 = vmul.f32 %v552, %v552
        %v594 = vadd.f32 %v578, %v579
        %v595 = vadd.f32 %v594, %v580
        %v596 = vadd.f32 %v595, %v581
        %v597 = vadd.f32 %v596, %v582
        %v598 = vadd.f32 %v597, %v583
        %v599 = vadd.f32 %v598, %v584
        %v600 = vadd.f32 %v599, %v585
        %v601 = vadd.f32 %v600, %v586
        %v602 = vadd.f32 %v601, %v587
        %v603 = vadd.f32 %v602, %v588
        %v604 = vadd.f32 %v603, %v589
        %v605 = vadd.f32 %v604, %v590
        %v606 = vadd.f32 %v605, %v591
        %v607 = vadd.f32 %v606, %v592
        %v608 = vadd.f32 %v607, %v593
        %v609 = vrot.slane %v608, 4
        %v610 = vadd.f32 %v608, %v609
        %v611 = vrot.slane %v610, 2
        %v612 = vadd.f32 %v610, %v611
        %v613 = vrot.slane %v612, 1
        %v614 = vadd.f32 %v612, %v613
        %v615 = vadd.f32 %v577, %v614
        %616 = vst [vmem:[#allocation3] sm:$0x1] %v615
        // Predicated region
        $region45: #{mobilenet_v3_forward.10} parent=39 // pred_check
          %p617 = pneg %p448
        $region46: #{mobilenet_v3_forward.10} parent=39 // pred_check_branch
          %619 = sbr.rel (%p617) target = $region48
        $region47: #{mobilenet_v3_forward.10} parent=39 // pred_region
          %v620 = vld [vmem:[#allocation2] sm:$0x1]
          %v621 = vmul.f32 %v620, 0.0078125
          %v622 = vld [vmem:[#allocation3] sm:$0x1]
          %v623 = vmul.f32 %v622, 0.0078125
          %v624 = vmul.f32 %v621, %v621
          %v625 = vsub.f32 %v623, %v624
          %v626 = vmax.f32 %v625, 0.0
          %v627 = vld [vmem:[%s2] sm:$0x1]
          %v628 = vadd.f32 %v626, 0.001
          %v629 = vrsqrt.pop %v628
          %v630 = vmul.f32 %v627, %v629
          %631 = vst [vmem:[#allocation4] sm:$0x1] %v630
          %v632 = vld [vmem:[%s3] sm:$0x1]
          %v633 = vmul.f32 %v621, %v630
          %v634 = vsub.f32 %v632, %v633
          %635 = vst [vmem:[#allocation5] sm:$0x1] %v634
        $region48: #{mobilenet_v3_forward.10} parent=39 // pred_fallthru
          _
      $region40: #{mobilenet_v3_forward.10} parent=35 // pred_fallthru
        _
      %p636 = scmp.eq.s32.totalorder %s19, 1
      // Predicated region
      $region49: #{mobilenet_v3_forward.10} parent=35 // pred_check
        %p637 = pneg %p636
      $region50: #{mobilenet_v3_forward.10} parent=35 // pred_check_branch
        %639 = sbr.rel (%p637) target = $region52
      $region51: #{mobilenet_v3_forward.10} parent=35 // pred_region
        %v640 = vld [vmem:[#allocation4] sm:$0x1]
        %v642 = vlaneseq
        %v643 = vshrl.u32 %v642, 7
        %v644 = vsub.s32 0, %v643
        %v645 = vrot.slane %v640, %v644
        %v647 = vmul.f32 %v382, %v645
        %v648 = vmul.f32 %v385, %v645
        %v649 = vmul.f32 %v390, %v645
        %v650 = vmul.f32 %v393, %v645
        %v651 = vmul.f32 %v398, %v645
        %v652 = vmul.f32 %v401, %v645
        %v653 = vmul.f32 %v406, %v645
        %v654 = vmul.f32 %v409, %v645
        %v655 = vmul.f32 %v414, %v645
        %v656 = vmul.f32 %v417, %v645
        %v657 = vmul.f32 %v422, %v645
        %v658 = vmul.f32 %v425, %v645
        %v659 = vmul.f32 %v430, %v645
        %v660 = vmul.f32 %v433, %v645
        %v661 = vmul.f32 %v438, %v645
        %v662 = vmul.f32 %v441, %v645
        %v663 = vld [vmem:[#allocation5] sm:$0x1]
        %v665 = vlaneseq
        %v666 = vshrl.u32 %v665, 7
        %v667 = vsub.s32 0, %v666
        %v668 = vrot.slane %v663, %v667
        %v670 = vadd.f32 %v647, %v668
        %v671 = vadd.f32 %v648, %v668
        %v672 = vadd.f32 %v649, %v668
        %v673 = vadd.f32 %v650, %v668
        %v674 = vadd.f32 %v651, %v668
        %v675 = vadd.f32 %v652, %v668
        %v676 = vadd.f32 %v653, %v668
        %v677 = vadd.f32 %v654, %v668
        %v678 = vadd.f32 %v655, %v668
        %v679 = vadd.f32 %v656, %v668
        %v680 = vadd.f32 %v657, %v668
        %v681 = vadd.f32 %v658, %v668
        %v682 = vadd.f32 %v659, %v668
        %v683 = vadd.f32 %v660, %v668
        %v684 = vadd.f32 %v661, %v668
        %v685 = vadd.f32 %v662, %v668
        %v686 = vadd.f32 %v670, 3.0
        %v687 = vadd.f32 %v671, 3.0
        %v688 = vadd.f32 %v672, 3.0
        %v689 = vadd.f32 %v673, 3.0
        %v690 = vadd.f32 %v674, 3.0
        %v691 = vadd.f32 %v675, 3.0
        %v692 = vadd.f32 %v676, 3.0
        %v693 = vadd.f32 %v677, 3.0
        %v694 = vadd.f32 %v678, 3.0
        %v695 = vadd.f32 %v679, 3.0
        %v696 = vadd.f32 %v680, 3.0
        %v697 = vadd.f32 %v681, 3.0
        %v698 = vadd.f32 %v682, 3.0
        %v699 = vadd.f32 %v683, 3.0
        %v700 = vadd.f32 %v684, 3.0
        %v701 = vadd.f32 %v685, 3.0
        %v702 = vmax.f32 %v686, 0.0
        %v703 = vmax.f32 %v687, 0.0
        %v704 = vmax.f32 %v688, 0.0
        %v705 = vmax.f32 %v689, 0.0
        %v706 = vmax.f32 %v690, 0.0
        %v707 = vmax.f32 %v691, 0.0
        %v708 = vmax.f32 %v692, 0.0
        %v709 = vmax.f32 %v693, 0.0
        %v710 = vmax.f32 %v694, 0.0
        %v711 = vmax.f32 %v695, 0.0
        %v712 = vmax.f32 %v696, 0.0
        %v713 = vmax.f32 %v697, 0.0
        %v714 = vmax.f32 %v698, 0.0
        %v715 = vmax.f32 %v699, 0.0
        %v716 = vmax.f32 %v700, 0.0
        %v717 = vmax.f32 %v701, 0.0
        %v718 = vmin.f32 %v702, 6.0
        %v719 = vmin.f32 %v703, 6.0
        %v720 = vmin.f32 %v704, 6.0
        %v721 = vmin.f32 %v705, 6.0
        %v722 = vmin.f32 %v706, 6.0
        %v723 = vmin.f32 %v707, 6.0
        %v724 = vmin.f32 %v708, 6.0
        %v725 = vmin.f32 %v709, 6.0
        %v726 = vmin.f32 %v710, 6.0
        %v727 = vmin.f32 %v711, 6.0
        %v728 = vmin.f32 %v712, 6.0
        %v729 = vmin.f32 %v713, 6.0
        %v730 = vmin.f32 %v714, 6.0
        %v731 = vmin.f32 %v715, 6.0
        %v732 = vmin.f32 %v716, 6.0
        %v733 = vmin.f32 %v717, 6.0
        %v734 = vmul.f32 %v670, %v718
        %v735 = vmul.f32 %v671, %v719
        %v736 = vmul.f32 %v672, %v720
        %v737 = vmul.f32 %v673, %v721
        %v738 = vmul.f32 %v674, %v722
        %v739 = vmul.f32 %v675, %v723
        %v740 = vmul.f32 %v676, %v724
        %v741 = vmul.f32 %v677, %v725
        %v742 = vmul.f32 %v678, %v726
        %v743 = vmul.f32 %v679, %v727
        %v744 = vmul.f32 %v680, %v728
        %v745 = vmul.f32 %v681, %v729
        %v746 = vmul.f32 %v682, %v730
        %v747 = vmul.f32 %v683, %v731
        %v748 = vmul.f32 %v684, %v732
        %v749 = vmul.f32 %v685, %v733
        %v750 = vmul.f32 %v734, 0.16666667
        %v751 = vmul.f32 %v735, 0.16666667
        %v752 = vmul.f32 %v736, 0.16666667
        %v753 = vmul.f32 %v737, 0.16666667
        %v754 = vmul.f32 %v738, 0.16666667
        %v755 = vmul.f32 %v739, 0.16666667
        %v756 = vmul.f32 %v740, 0.16666667
        %v757 = vmul.f32 %v741, 0.16666667
        %v758 = vmul.f32 %v742, 0.16666667
        %v759 = vmul.f32 %v743, 0.16666667
        %v760 = vmul.f32 %v744, 0.16666667
        %v761 = vmul.f32 %v745, 0.16666667
        %v762 = vmul.f32 %v746, 0.16666667
        %v763 = vmul.f32 %v747, 0.16666667
        %v764 = vmul.f32 %v748, 0.16666667
        %v765 = vmul.f32 %v749, 0.16666667
        %v766 = vpack.c.bf16 %v751, %v750
        %v767 = vpack.c.bf16 %v753, %v752
        %v768 = vpack.c.bf16 %v755, %v754
        %v769 = vpack.c.bf16 %v757, %v756
        %v770 = vpack.c.bf16 %v759, %v758
        %v771 = vpack.c.bf16 %v761, %v760
        %v772 = vpack.c.bf16 %v763, %v762
        %v773 = vpack.c.bf16 %v765, %v764
        %v782 = vunpack.c.l.b16 %v766
        %v783 = vunpack.c.h.b16 %v766
        %v784 = vunpack.c.l.b16 %v767
        %v785 = vunpack.c.h.b16 %v767
        %v786 = vunpack.c.l.b16 %v768
        %v787 = vunpack.c.h.b16 %v768
        %v788 = vunpack.c.l.b16 %v769
        %v789 = vunpack.c.h.b16 %v769
        %v790 = vunpack.c.l.b16 %v770
        %v791 = vunpack.c.h.b16 %v770
        %v792 = vunpack.c.l.b16 %v771
        %v793 = vunpack.c.h.b16 %v771
        %v794 = vunpack.c.l.b16 %v772
        %v795 = vunpack.c.h.b16 %v772
        %v796 = vunpack.c.l.b16 %v773
        %v797 = vunpack.c.h.b16 %v773
        %v798 = vpack.c.b16 %v782, %v782
        %v799 = vpack.c.b16 %v783, %v783
        %v800 = vpack.c.b16 %v784, %v784
        %v801 = vpack.c.b16 %v785, %v785
        %v802 = vpack.c.b16 %v786, %v786
        %v803 = vpack.c.b16 %v787, %v787
        %v804 = vpack.c.b16 %v788, %v788
        %v805 = vpack.c.b16 %v789, %v789
        %v806 = vpack.c.b16 %v790, %v790
        %v807 = vpack.c.b16 %v791, %v791
        %v808 = vpack.c.b16 %v792, %v792
        %v809 = vpack.c.b16 %v793, %v793
        %v810 = vpack.c.b16 %v794, %v794
        %v811 = vpack.c.b16 %v795, %v795
        %v812 = vpack.c.b16 %v796, %v796
        %v813 = vpack.c.b16 %v797, %v797
        %830 = vst [vmem:[%s215] sm:$0xf] %v798
        %831 = vst [vmem:[%s215 + $0x4] sm:$0xf] %v799
        %832 = vst [vmem:[%s215 + $0x8] sm:$0xf] %v800
        %833 = vst [vmem:[%s215 + $0xc] sm:$0xf] %v801
        %834 = vst [vmem:[%s215 + $0x10] sm:$0xf] %v802
        %835 = vst [vmem:[%s215 + $0x14] sm:$0xf] %v803
        %836 = vst [vmem:[%s215 + $0x18] sm:$0xf] %v804
        %837 = vst [vmem:[%s215 + $0x1c] sm:$0xf] %v805
        %838 = vst [vmem:[%s215 + $0x20] sm:$0xf] %v806
        %839 = vst [vmem:[%s215 + $0x24] sm:$0xf] %v807
        %840 = vst [vmem:[%s215 + $0x28] sm:$0xf] %v808
        %841 = vst [vmem:[%s215 + $0x2c] sm:$0xf] %v809
        %842 = vst [vmem:[%s215 + $0x30] sm:$0xf] %v810
        %843 = vst [vmem:[%s215 + $0x34] sm:$0xf] %v811
        %844 = vst [vmem:[%s215 + $0x38] sm:$0xf] %v812
        %845 = vst [vmem:[%s215 + $0x3c] sm:$0xf] %v813
      $region52: #{mobilenet_v3_forward.10} parent=35 // pred_fallthru
        _
      %s846 = smul.u32 %s20, %s19
      %s847 = smul.u32 16, %s846
      %p848 = scmp.lt.s32.totalorder %s847, 15
      %s849 = scalar_select %p848, %s847, 15
      %s850 = smul.addr %s849, 4
      %s851 = scalar_lea.vmem %s4, %s850
      // Predicated region
      $region53: #{mobilenet_v3_forward.10} parent=35 // pred_check
        %p852 = pneg %p136
      $region54: #{mobilenet_v3_forward.10} parent=35 // pred_check_branch
        %854 = sbr.rel (%p852) target = $region56
      $region55: #{mobilenet_v3_forward.10} parent=35 // pred_region
        %s855 = smul.u32 %s20, %s19
        %s856 = smul.u32 16, %s855
      $region56: #{mobilenet_v3_forward.10} parent=35 // pred_fallthru
        _
    $region36: #{mobilenet_v3_forward.10} parent=5 // pred_fallthru
      _
    %p857 = scmp.le.s32.totalorder 2, %s10
    // Predicated region
    $region57: #{mobilenet_v3_forward.10} parent=5 // pred_check
      %p858 = pneg %p857
    $region58: #{mobilenet_v3_forward.10} parent=5 // pred_check_branch
      %860 = sbr.rel (%p858) target = $region60
    $region59: #{mobilenet_v3_forward.10} parent=5 // pred_region
      %s861 = ssub.s32 %s10, 2
      // Predicated region
      $region61: #{mobilenet_v3_forward.10} parent=59 // pred_check
        %p862 = pneg %p142
      $region62: #{mobilenet_v3_forward.10} parent=59 // pred_check_branch
        %864 = sbr.rel (%p862) target = $region64
      $region63: #{mobilenet_v3_forward.10} parent=59 // pred_region
        %s865 = smul.u32 %s22, %s21
        %s866 = smul.u32 16, %s865
        %p867 = scmp.lt.s32.totalorder %s866, 15
        %s868 = scalar_select %p867, %s866, 15
        %s869 = smul.addr %s868, 4
        %s870 = scalar_lea.vmem %s4, %s869
      $region64: #{mobilenet_v3_forward.10} parent=59 // pred_fallthru
        _
    $region60: #{mobilenet_v3_forward.10} parent=5 // pred_fallthru
      _
  $region6: #{mobilenet_v3_forward.10} parent=0 // loop_footer
    %s14 = sadd.s32 1, %s10
  $region7: #{mobilenet_v3_forward.10} parent=0 // loop_footer_branch
    %9 = sbr.rel target = $region3
  $region8: #{mobilenet_v3_forward.10} parent=0 // loop_exit
    _

// kernel: mobilenet_v3_forward.8
$region0: #{mobilenet_v3_forward.8}
  #allocation0 [shape = 'u32[]', space=smem, size = 0x4, offset = 0x4, fixed_abs, tag = 'smem constant byte address 0x4 - core index']
  #allocation1 [shape = 'u32[144,128]{1,0:T(1,128)}', space=vmem, size = 0x12000, scoped, tag = 'internal scratch']
  #allocation2 [shape = 'f32[1,128]{1,0:T(1,128)}', space=vmem, size = 0x200, scoped, tag = 'scratch operand']
  #allocation3 [shape = 'f32[1,128]{1,0:T(1,128)}', space=vmem, size = 0x200, scoped, tag = 'scratch operand']
  #allocation4 [shape = 'f32[1,128]{1,0:T(1,128)}', space=vmem, size = 0x200, scoped, tag = 'scratch operand']
  #allocation5 [shape = 'f32[1,128]{1,0:T(1,128)}', space=vmem, size = 0x200, scoped, tag = 'scratch operand']
  %s0 = inlined_call_operand.vmem [shape: bf16[4,2,9,9,128], index: 0, kind: input, shape index: {}]
  %s1 = inlined_call_operand.vmem [shape: f32[9,128], index: 1, kind: input, shape index: {}]
  %s2 = inlined_call_operand.vmem [shape: f32[1,128], index: 2, kind: input, shape index: {}]
  %s3 = inlined_call_operand.vmem [shape: f32[1,128], index: 3, kind: input, shape index: {}]
  %s4 = inlined_call_operand.vmem [shape: bf16[128,128], index: 4, kind: input, shape index: {}]
  %s5 = inlined_call_operand.vmem [shape: f32[1,128], index: 5, kind: input, shape index: {}]
  %s6 = inlined_call_operand.vmem [shape: bf16[128,128], index: 6, kind: input, shape index: {}]
  %s7 = inlined_call_operand.vmem [shape: f32[1,128], index: 7, kind: input, shape index: {}]
  %s8 = inlined_call_operand.vmem [shape: bf16[2,8,8,128], index: 8, kind: output, shape index: {}]
  %s9 = sld [smem:[#allocation0]]
  $region122: #{mobilenet_v3_forward.8} parent=0
    _
  %s11 = ssub.s32 1, %s9
  %s12 = scalar_select 0, %s11, %s9
  $region1: #{mobilenet_v3_forward.8} parent=0
    #allocation6 [shape = 'u8[294912]{0}', space=vmem, size = 0x48000, scoped, tag = 'input window, operand 0']
    loop: start=0, step=1, limit=6
    $region2: #{mobilenet_v3_forward.8} parent=1 // loop_pre_header
      _
    $region3: #{mobilenet_v3_forward.8} parent=1 // loop_header
      %s14 = sphi 0, %s18
      %p15 = scmp.ge.s32.totalorder %s14, 6
      %s21 = sphi 0, %s33
      %s22 = sphi 0, %s29
      %s23 = sphi 0, %s21
      %s24 = sphi 0, %s22
      %s25 = sphi 0, %s23
      %s26 = sphi 0, %s24
      %s36 = sphi 0, %s38
      %s39 = sphi 0, %s36
      %s40 = sphi 0, %s39
      %s56 = sphi 0, %s40
      %s60 = sphi 0, %s60
      %s62 = sphi 0, %s60
      %s63 = sphi 0, %s62
      %s77 = sphi 0, %s63
      %s81 = sphi 0, %s81
      %s83 = sphi 0, %s81
      %s84 = sphi 0, %s83
      %s98 = sphi 0, %s84
      %s102 = sphi 0, %s102
      %s104 = sphi 0, %s102
      %s105 = sphi 0, %s104
      %s119 = sphi 0, %s105
      %s123 = sphi 0, %s123
      %s125 = sphi 0, %s123
      %s126 = sphi 0, %s125
      %s140 = sphi 0, %s126
      %s144 = sphi 0, %s144
      %s146 = sphi 0, %s144
      %s147 = sphi 0, %s146
      %s161 = sphi 0, %s147
      %s165 = sphi 0, %s165
      %s167 = sphi 0, %s165
      %s168 = sphi 0, %s167
      %s182 = sphi 0, %s168
      %s186 = sphi 0, %s186
      %s188 = sphi 0, %s186
      %s189 = sphi 0, %s188
      %s203 = sphi 0, %s189
      %s211 = sphi 0, %s213
      %s214 = sphi 0, %s211
      %s215 = sphi 0, %s214
      %s231 = sphi 0, %s215
    $region4: #{mobilenet_v3_forward.8} parent=1 // loop_header_branch
      %17 = sbr.rel (%p15) target = $region8
    $region5: #{mobilenet_v3_forward.8} parent=1 // loop_body
      %s19 = ssub.s32 %s14, 1
      %s20 = ssub.s32 %s14, 2
      %s27 = sadd.s32 1, %s22
      %p28 = scmp.ge.s32.totalorder %s27, 2
      %s29 = scalar_select %p28, 0, %s27
      %s30 = sadd.s32 1, %s21
      %s31 = scalar_select %p28, %s30, %s21
      %p32 = scmp.ge.s32.totalorder %s31, 2
      %s33 = scalar_select %p32, 0, %s31
      %s34 = ssub.s32 %s22, %s29
      %p35 = scmp.eq.s32.totalorder %s34, 0
      %s37 = sadd.s32 %s36, 1
      %s38 = scalar_select %p35, %s36, %s37
      %p41 = pneg %p35
      %p42 = scmp.eq.s32.totalorder %s14, 3
      %p43 = por %p41, %p42
      %p44 = scmp.ne.s32.totalorder %s36, %s39
      %p45 = scmp.eq.s32.totalorder %s14, 0
      %p46 = por %p44, %p45
      %p47 = scmp.ne.s32.totalorder %s36, %s39
      %p48 = scmp.eq.s32.totalorder %s19, 3
      %p49 = por %p47, %p48
      %p50 = scmp.ne.s32.totalorder %s39, %s40
      %p51 = scmp.eq.s32.totalorder %s19, 0
      %p52 = por %p50, %p51
      %p53 = scmp.ne.s32.totalorder %s39, %s40
      %p54 = scmp.eq.s32.totalorder %s20, 3
      %p55 = por %p53, %p54
      %p57 = scmp.ne.s32.totalorder %s40, %s56
      %p58 = scmp.eq.s32.totalorder %s20, 0
      %p59 = por %p57, %p58
      %s61 = sadd.s32 %s60, 1
      %p64 = scmp.eq.s32.totalorder %s14, 3
      %p65 = scmp.ne.s32.totalorder %s60, %s62
      %p66 = scmp.eq.s32.totalorder %s14, 0
      %p67 = por %p65, %p66
      %p68 = scmp.ne.s32.totalorder %s60, %s62
      %p69 = scmp.eq.s32.totalorder %s19, 3
      %p70 = por %p68, %p69
      %p71 = scmp.ne.s32.totalorder %s62, %s63
      %p72 = scmp.eq.s32.totalorder %s19, 0
      %p73 = por %p71, %p72
      %p74 = scmp.ne.s32.totalorder %s62, %s63
      %p75 = scmp.eq.s32.totalorder %s20, 3
      %p76 = por %p74, %p75
      %p78 = scmp.ne.s32.totalorder %s63, %s77
      %p79 = scmp.eq.s32.totalorder %s20, 0
      %p80 = por %p78, %p79
      %s82 = sadd.s32 %s81, 1
      %p85 = scmp.eq.s32.totalorder %s14, 3
      %p86 = scmp.ne.s32.totalorder %s81, %s83
      %p87 = scmp.eq.s32.totalorder %s14, 0
      %p88 = por %p86, %p87
      %p89 = scmp.ne.s32.totalorder %s81, %s83
      %p90 = scmp.eq.s32.totalorder %s19, 3
      %p91 = por %p89, %p90
      %p92 = scmp.ne.s32.totalorder %s83, %s84
      %p93 = scmp.eq.s32.totalorder %s19, 0
      %p94 = por %p92, %p93
      %p95 = scmp.ne.s32.totalorder %s83, %s84
      %p96 = scmp.eq.s32.totalorder %s20, 3
      %p97 = por %p95, %p96
      %p99 = scmp.ne.s32.totalorder %s84, %s98
      %p100 = scmp.eq.s32.totalorder %s20, 0
      %p101 = por %p99, %p100
      %s103 = sadd.s32 %s102, 1
      %p106 = scmp.eq.s32.totalorder %s14, 3
      %p107 = scmp.ne.s32.totalorder %s102, %s104
      %p108 = scmp.eq.s32.totalorder %s14, 0
      %p109 = por %p107, %p108
      %p110 = scmp.ne.s32.totalorder %s102, %s104
      %p111 = scmp.eq.s32.totalorder %s19, 3
      %p112 = por %p110, %p111
      %p113 = scmp.ne.s32.totalorder %s104, %s105
      %p114 = scmp.eq.s32.totalorder %s19, 0
      %p115 = por %p113, %p114
      %p116 = scmp.ne.s32.totalorder %s104, %s105
      %p117 = scmp.eq.s32.totalorder %s20, 3
      %p118 = por %p116, %p117
      %p120 = scmp.ne.s32.totalorder %s105, %s119
      %p121 = scmp.eq.s32.totalorder %s20, 0
      %p122 = por %p120, %p121
      %s124 = sadd.s32 %s123, 1
      %p127 = scmp.eq.s32.totalorder %s14, 3
      %p128 = scmp.ne.s32.totalorder %s123, %s125
      %p129 = scmp.eq.s32.totalorder %s14, 0
      %p130 = por %p128, %p129
      %p131 = scmp.ne.s32.totalorder %s123, %s125
      %p132 = scmp.eq.s32.totalorder %s19, 3
      %p133 = por %p131, %p132
      %p134 = scmp.ne.s32.totalorder %s125, %s126
      %p135 = scmp.eq.s32.totalorder %s19, 0
      %p136 = por %p134, %p135
      %p137 = scmp.ne.s32.totalorder %s125, %s126
      %p138 = scmp.eq.s32.totalorder %s20, 3
      %p139 = por %p137, %p138
      %p141 = scmp.ne.s32.totalorder %s126, %s140
      %p142 = scmp.eq.s32.totalorder %s20, 0
      %p143 = por %p141, %p142
      %s145 = sadd.s32 %s144, 1
      %p148 = scmp.eq.s32.totalorder %s14, 3
      %p149 = scmp.ne.s32.totalorder %s144, %s146
      %p150 = scmp.eq.s32.totalorder %s14, 0
      %p151 = por %p149, %p150
      %p152 = scmp.ne.s32.totalorder %s144, %s146
      %p153 = scmp.eq.s32.totalorder %s19, 3
      %p154 = por %p152, %p153
      %p155 = scmp.ne.s32.totalorder %s146, %s147
      %p156 = scmp.eq.s32.totalorder %s19, 0
      %p157 = por %p155, %p156
      %p158 = scmp.ne.s32.totalorder %s146, %s147
      %p159 = scmp.eq.s32.totalorder %s20, 3
      %p160 = por %p158, %p159
      %p162 = scmp.ne.s32.totalorder %s147, %s161
      %p163 = scmp.eq.s32.totalorder %s20, 0
      %p164 = por %p162, %p163
      %s166 = sadd.s32 %s165, 1
      %p169 = scmp.eq.s32.totalorder %s14, 3
      %p170 = scmp.ne.s32.totalorder %s165, %s167
      %p171 = scmp.eq.s32.totalorder %s14, 0
      %p172 = por %p170, %p171
      %p173 = scmp.ne.s32.totalorder %s165, %s167
      %p174 = scmp.eq.s32.totalorder %s19, 3
      %p175 = por %p173, %p174
      %p176 = scmp.ne.s32.totalorder %s167, %s168
      %p177 = scmp.eq.s32.totalorder %s19, 0
      %p178 = por %p176, %p177
      %p179 = scmp.ne.s32.totalorder %s167, %s168
      %p180 = scmp.eq.s32.totalorder %s20, 3
      %p181 = por %p179, %p180
      %p183 = scmp.ne.s32.totalorder %s168, %s182
      %p184 = scmp.eq.s32.totalorder %s20, 0
      %p185 = por %p183, %p184
      %s187 = sadd.s32 %s186, 1
      %p190 = scmp.eq.s32.totalorder %s14, 3
      %p191 = scmp.ne.s32.totalorder %s186, %s188
      %p192 = scmp.eq.s32.totalorder %s14, 0
      %p193 = por %p191, %p192
      %p194 = scmp.ne.s32.totalorder %s186, %s188
      %p195 = scmp.eq.s32.totalorder %s19, 3
      %p196 = por %p194, %p195
      %p197 = scmp.ne.s32.totalorder %s188, %s189
      %p198 = scmp.eq.s32.totalorder %s19, 0
      %p199 = por %p197, %p198
      %p200 = scmp.ne.s32.totalorder %s188, %s189
      %p201 = scmp.eq.s32.totalorder %s20, 3
      %p202 = por %p200, %p201
      %p204 = scmp.ne.s32.totalorder %s189, %s203
      %p205 = scmp.eq.s32.totalorder %s20, 0
      %p206 = por %p204, %p205
      %s207 = smul.u32 %s22, %s21
      %s208 = smul.u32 %s29, %s33
      %s209 = ssub.s32 %s207, %s208
      %p210 = scmp.eq.s32.totalorder %s209, 0
      %s212 = sadd.s32 %s211, 1
      %s213 = scalar_select %p210, %s211, %s212
      %p216 = pneg %p210
      %p217 = scmp.eq.s32.totalorder %s14, 3
      %p218 = por %p216, %p217
      %p219 = scmp.ne.s32.totalorder %s211, %s214
      %p220 = scmp.eq.s32.totalorder %s14, 0
      %p221 = por %p219, %p220
      %p222 = scmp.ne.s32.totalorder %s211, %s214
      %p223 = scmp.eq.s32.totalorder %s19, 3
      %p224 = por %p222, %p223
      %p225 = scmp.ne.s32.totalorder %s214, %s215
      %p226 = scmp.eq.s32.totalorder %s19, 0
      %p227 = por %p225, %p226
      %p228 = scmp.ne.s32.totalorder %s214, %s215
      %p229 = scmp.eq.s32.totalorder %s20, 3
      %p230 = por %p228, %p229
      %p232 = scmp.ne.s32.totalorder %s215, %s231
      %p233 = scmp.eq.s32.totalorder %s20, 0
      %p234 = por %p232, %p233
      %p235 = scmp.le.s32.totalorder 1, %s14
      %p236 = scmp.lt.s32.totalorder %s14, 5
      %p237 = pnand %p235, %p236
      %p238 = pneg %p237
      // Predicated region
      $region9: #{mobilenet_v3_forward.8} parent=5 // pred_check
        _
      $region10: #{mobilenet_v3_forward.8} parent=5 // pred_check_branch
        %240 = sbr.rel (%p237) target = $region12
      $region11: #{mobilenet_v3_forward.8} parent=5 // pred_region
        %s241 = ssub.s32 %s14, 1
        // Predicated region
        $region13: #{mobilenet_v3_forward.8} parent=11 // pred_check
          %p242 = pneg %p73
        $region14: #{mobilenet_v3_forward.8} parent=11 // pred_check_branch
          %244 = sbr.rel (%p242) target = $region16
        $region15: #{mobilenet_v3_forward.8} parent=11 // pred_region
          _
        $region16: #{mobilenet_v3_forward.8} parent=11 // pred_fallthru
          _
        // Predicated region
        $region17: #{mobilenet_v3_forward.8} parent=11 // pred_check
          %p245 = pneg %p94
        $region18: #{mobilenet_v3_forward.8} parent=11 // pred_check_branch
          %247 = sbr.rel (%p245) target = $region20
        $region19: #{mobilenet_v3_forward.8} parent=11 // pred_region
          _
        $region20: #{mobilenet_v3_forward.8} parent=11 // pred_fallthru
          _
        // Predicated region
        $region21: #{mobilenet_v3_forward.8} parent=11 // pred_check
          %p248 = pneg %p115
        $region22: #{mobilenet_v3_forward.8} parent=11 // pred_check_branch
          %250 = sbr.rel (%p248) target = $region24
        $region23: #{mobilenet_v3_forward.8} parent=11 // pred_region
          _
        $region24: #{mobilenet_v3_forward.8} parent=11 // pred_fallthru
          _
        // Predicated region
        $region25: #{mobilenet_v3_forward.8} parent=11 // pred_check
          %p251 = pneg %p136
        $region26: #{mobilenet_v3_forward.8} parent=11 // pred_check_branch
          %253 = sbr.rel (%p251) target = $region28
        $region27: #{mobilenet_v3_forward.8} parent=11 // pred_region
          _
        $region28: #{mobilenet_v3_forward.8} parent=11 // pred_fallthru
          _
        // Predicated region
        $region29: #{mobilenet_v3_forward.8} parent=11 // pred_check
          %p254 = pneg %p157
        $region30: #{mobilenet_v3_forward.8} parent=11 // pred_check_branch
          %256 = sbr.rel (%p254) target = $region32
        $region31: #{mobilenet_v3_forward.8} parent=11 // pred_region
          _
        $region32: #{mobilenet_v3_forward.8} parent=11 // pred_fallthru
          _
        // Predicated region
        $region33: #{mobilenet_v3_forward.8} parent=11 // pred_check
          %p257 = pneg %p178
        $region34: #{mobilenet_v3_forward.8} parent=11 // pred_check_branch
          %259 = sbr.rel (%p257) target = $region36
        $region35: #{mobilenet_v3_forward.8} parent=11 // pred_region
          _
        $region36: #{mobilenet_v3_forward.8} parent=11 // pred_fallthru
          _
        // Predicated region
        $region37: #{mobilenet_v3_forward.8} parent=11 // pred_check
          %p260 = pneg %p199
        $region38: #{mobilenet_v3_forward.8} parent=11 // pred_check_branch
          %262 = sbr.rel (%p260) target = $region40
        $region39: #{mobilenet_v3_forward.8} parent=11 // pred_region
          _
        $region40: #{mobilenet_v3_forward.8} parent=11 // pred_fallthru
          _
      $region12: #{mobilenet_v3_forward.8} parent=5 // pred_fallthru
        _
      %p263 = scmp.lt.s32.totalorder %s14, 4
      // Predicated region
      $region41: #{mobilenet_v3_forward.8} parent=5 // pred_check
        %p264 = pneg %p263
      $region42: #{mobilenet_v3_forward.8} parent=5 // pred_check_branch
        %266 = sbr.rel (%p264) target = $region44
      $region43: #{mobilenet_v3_forward.8} parent=5 // pred_region
        // Predicated region
        $region45: #{mobilenet_v3_forward.8} parent=43 // pred_check
          %p267 = pneg %p46
        $region46: #{mobilenet_v3_forward.8} parent=43 // pred_check_branch
          %269 = sbr.rel (%p267) target = $region48
        $region47: #{mobilenet_v3_forward.8} parent=43 // pred_region
          %s270 = sand.u32 %s36, 1
          %s271 = sand.u32 %s36, 1
          %s272 = smul.addr %s271, 288
          %s273 = scalar_lea.vmem [#allocation6], %s272
          %s274 = smul.addr %s22, 18
          %s275 = smul.addr %s274, 4
          %s276 = scalar_lea.vmem %s0, %s275
          // Predicated region
          $region49: #{mobilenet_v3_forward.8} parent=47 // pred_check
            _
          $region50: #{mobilenet_v3_forward.8} parent=47 // pred_check_branch
            %278 = sbr.rel (0) target = $region52
          $region51: #{mobilenet_v3_forward.8} parent=47 // pred_region
            // Predicated region
            $region53: #{mobilenet_v3_forward.8} parent=51 // pred_check
              _
            $region54: #{mobilenet_v3_forward.8} parent=51 // pred_check_branch
              %280 = sbr.rel target = $region56
            $region55: #{mobilenet_v3_forward.8} parent=51 // pred_region
              // Predicated region
              $region68: #{mobilenet_v3_forward.8} parent=55 // pred_check
                _
              $region69: #{mobilenet_v3_forward.8} parent=55 // pred_check_branch
                %437 = sbr.rel (0) target = $region71
              $region70: #{mobilenet_v3_forward.8} parent=55 // pred_region
                loop: start=0, step=1, limit=1
                $region72: #{mobilenet_v3_forward.8} parent=70 // loop_pre_header
                  _
                $region73: #{mobilenet_v3_forward.8} parent=70 // loop_header
                  %s439 = sphi 0, %s443
                  %p440 = scmp.ge.s32.totalorder %s439, 1
                  %s444 = sphi %s276, %s276
                  %s445 = sphi %s273, %s273
                $region74: #{mobilenet_v3_forward.8} parent=70 // loop_header_branch
                  %442 = sbr.rel (%p440) target = $region78
                $region75: #{mobilenet_v3_forward.8} parent=70 // loop_body
                  _
                $region76: #{mobilenet_v3_forward.8} parent=70 // loop_footer
                  %s443 = sadd.s32 1, %s439
                $region77: #{mobilenet_v3_forward.8} parent=70 // loop_footer_branch
                  %438 = sbr.rel target = $region73
                $region78: #{mobilenet_v3_forward.8} parent=70 // loop_exit
                  _
                loop: start=0, step=1, limit=1
                $region79: #{mobilenet_v3_forward.8} parent=70 // loop_pre_header
                  _
                $region80: #{mobilenet_v3_forward.8} parent=70 // loop_header
                  %s448 = sphi 0, %s452
                  %p449 = scmp.ge.s32.totalorder %s448, 1
                  %s453 = sphi %s276, %s276
                  %s454 = sphi %s273, %s273
                $region81: #{mobilenet_v3_forward.8} parent=70 // loop_header_branch
                  %451 = sbr.rel (%p449) target = $region85
                $region82: #{mobilenet_v3_forward.8} parent=70 // loop_body
                  %v455 = vld [vmem:[%s453] sm:$0xf]
                  %456 = vst [vmem:[%s454] sm:$0xf] %v455
                  %v457 = vld [vmem:[%s453 + $0x4] sm:$0xf]
                  %458 = vst [vmem:[%s454 + $0x4] sm:$0xf] %v457
                  %v459 = vld [vmem:[%s453 + $0x8] sm:$0xf]
                  %460 = vst [vmem:[%s454 + $0x8] sm:$0xf] %v459
                  %v461 = vld [vmem:[%s453 + $0xc] sm:$0xf]
                  %462 = vst [vmem:[%s454 + $0xc] sm:$0xf] %v461
                  %v463 = vld [vmem:[%s453 + $0x10] sm:$0xf]
                  %464 = vst [vmem:[%s454 + $0x10] sm:$0xf] %v463
                  %v465 = vld [vmem:[%s453 + $0x14] sm:$0xf]
                  %466 = vst [vmem:[%s454 + $0x14] sm:$0xf] %v465
                  %v467 = vld [vmem:[%s453 + $0x18] sm:$0xf]
                  %468 = vst [vmem:[%s454 + $0x18] sm:$0xf] %v467
                  %v469 = vld [vmem:[%s453 + $0x1c] sm:$0xf]
                  %470 = vst [vmem:[%s454 + $0x1c] sm:$0xf] %v469
                  %v471 = vld [vmem:[%s453 + $0x20] sm:$0xf]
                  %472 = vst [vmem:[%s454 + $0x20] sm:$0xf] %v471
                  %v473 = vld [vmem:[%s453 + $0x24] sm:$0xf]
                  %474 = vst [vmem:[%s454 + $0x24] sm:$0xf] %v473
                  %v475 = vld [vmem:[%s453 + $0x28] sm:$0xf]
                  %476 = vst [vmem:[%s454 + $0x28] sm:$0xf] %v475
                  %v477 = vld [vmem:[%s453 + $0x2c] sm:$0xf]
                  %478 = vst [vmem:[%s454 + $0x2c] sm:$0xf] %v477
                  %v479 = vld [vmem:[%s453 + $0x30] sm:$0xf]
                  %480 = vst [vmem:[%s454 + $0x30] sm:$0xf] %v479
                  %v481 = vld [vmem:[%s453 + $0x34] sm:$0xf]
                  %482 = vst [vmem:[%s454 + $0x34] sm:$0xf] %v481
                  %v483 = vld [vmem:[%s453 + $0x38] sm:$0xf]
                  %484 = vst [vmem:[%s454 + $0x38] sm:$0xf] %v483
                  %v485 = vld [vmem:[%s453 + $0x3c] sm:$0xf]
                  %486 = vst [vmem:[%s454 + $0x3c] sm:$0xf] %v485
                  %v487 = vld [vmem:[%s453 + $0x40] sm:$0xf]
                  %488 = vst [vmem:[%s454 + $0x40] sm:$0xf] %v487
                  %v489 = vld [vmem:[%s453 + $0x44] sm:$0xf]
                  %490 = vst [vmem:[%s454 + $0x44] sm:$0xf] %v489
                  %v491 = vld [vmem:[%s453 + $0x90] sm:$0xf]
                  %492 = vst [vmem:[%s454 + $0x48] sm:$0xf] %v491
                  %v493 = vld [vmem:[%s453 + $0x94] sm:$0xf]
                  %494 = vst [vmem:[%s454 + $0x4c] sm:$0xf] %v493
                  %v495 = vld [vmem:[%s453 + $0x98] sm:$0xf]
                  %496 = vst [vmem:[%s454 + $0x50] sm:$0xf] %v495
                  %v497 = vld [vmem:[%s453 + $0x9c] sm:$0xf]
                  %498 = vst [vmem:[%s454 + $0x54] sm:$0xf] %v497
                  %v499 = vld [vmem:[%s453 + $0xa0] sm:$0xf]
                  %500 = vst [vmem:[%s454 + $0x58] sm:$0xf] %v499
                  %v501 = vld [vmem:[%s453 + $0xa4] sm:$0xf]
                  %502 = vst [vmem:[%s454 + $0x5c] sm:$0xf] %v501
                  %v503 = vld [vmem:[%s453 + $0xa8] sm:$0xf]
                  %504 = vst [vmem:[%s454 + $0x60] sm:$0xf] %v503
                  %v505 = vld [vmem:[%s453 + $0xac] sm:$0xf]
                  %506 = vst [vmem:[%s454 + $0x64] sm:$0xf] %v505
                  %v507 = vld [vmem:[%s453 + $0xb0] sm:$0xf]
                  %508 = vst [vmem:[%s454 + $0x68] sm:$0xf] %v507
                  %v509 = vld [vmem:[%s453 + $0xb4] sm:$0xf]
                  %510 = vst [vmem:[%s454 + $0x6c] sm:$0xf] %v509
                  %v511 = vld [vmem:[%s453 + $0xb8] sm:$0xf]
                  %512 = vst [vmem:[%s454 + $0x70] sm:$0xf] %v511
                  %v513 = vld [vmem:[%s453 + $0xbc] sm:$0xf]
                  %514 = vst [vmem:[%s454 + $0x74] sm:$0xf] %v513
                  %v515 = vld [vmem:[%s453 + $0xc0] sm:$0xf]
                  %516 = vst [vmem:[%s454 + $0x78] sm:$0xf] %v515
                  %v517 = vld [vmem:[%s453 + $0xc4] sm:$0xf]
                  %518 = vst [vmem:[%s454 + $0x7c] sm:$0xf] %v517
                  %v519 = vld [vmem:[%s453 + $0xc8] sm:$0xf]
                  %520 = vst [vmem:[%s454 + $0x80] sm:$0xf] %v519
                  %v521 = vld [vmem:[%s453 + $0xcc] sm:$0xf]
                  %522 = vst [vmem:[%s454 + $0x84] sm:$0xf] %v521
                  %v523 = vld [vmem:[%s453 + $0xd0] sm:$0xf]
                  %524 = vst [vmem:[%s454 + $0x88] sm:$0xf] %v523
                  %v525 = vld [vmem:[%s453 + $0xd4] sm:$0xf]
                  %526 = vst [vmem:[%s454 + $0x8c] sm:$0xf] %v525
                  %v527 = vld [vmem:[%s453 + $0x120] sm:$0xf]
                  %528 = vst [vmem:[%s454 + $0x90] sm:$0xf] %v527
                  %v529 = vld [vmem:[%s453 + $0x124] sm:$0xf]
                  %530 = vst [vmem:[%s454 + $0x94] sm:$0xf] %v529
                  %v531 = vld [vmem:[%s453 + $0x128] sm:$0xf]
                  %532 = vst [vmem:[%s454 + $0x98] sm:$0xf] %v531
                  %v533 = vld [vmem:[%s453 + $0x12c] sm:$0xf]
                  %534 = vst [vmem:[%s454 + $0x9c] sm:$0xf] %v533
                  %v535 = vld [vmem:[%s453 + $0x130] sm:$0xf]
                  %536 = vst [vmem:[%s454 + $0xa0] sm:$0xf] %v535
                  %v537 = vld [vmem:[%s453 + $0x134] sm:$0xf]
                  %538 = vst [vmem:[%s454 + $0xa4] sm:$0xf] %v537
                  %v539 = vld [vmem:[%s453 + $0x138] sm:$0xf]
                  %540 = vst [vmem:[%s454 + $0xa8] sm:$0xf] %v539
                  %v541 = vld [vmem:[%s453 + $0x13c] sm:$0xf]
                  %542 = vst [vmem:[%s454 + $0xac] sm:$0xf] %v541
                  %v543 = vld [vmem:[%s453 + $0x140] sm:$0xf]
                  %544 = vst [vmem:[%s454 + $0xb0] sm:$0xf] %v543
                  %v545 = vld [vmem:[%s453 + $0x144] sm:$0xf]
                  %546 = vst [vmem:[%s454 + $0xb4] sm:$0xf] %v545
                  %v547 = vld [vmem:[%s453 + $0x148] sm:$0xf]
                  %548 = vst [vmem:[%s454 + $0xb8] sm:$0xf] %v547
                  %v549 = vld [vmem:[%s453 + $0x14c] sm:$0xf]
                  %550 = vst [vmem:[%s454 + $0xbc] sm:$0xf] %v549
                  %v551 = vld [vmem:[%s453 + $0x150] sm:$0xf]
                  %552 = vst [vmem:[%s454 + $0xc0] sm:$0xf] %v551
                  %v553 = vld [vmem:[%s453 + $0x154] sm:$0xf]
                  %554 = vst [vmem:[%s454 + $0xc4] sm:$0xf] %v553
                  %v555 = vld [vmem:[%s453 + $0x158] sm:$0xf]
                  %556 = vst [vmem:[%s454 + $0xc8] sm:$0xf] %v555
                  %v557 = vld [vmem:[%s453 + $0x15c] sm:$0xf]
                  %558 = vst [vmem:[%s454 + $0xcc] sm:$0xf] %v557
                  %v559 = vld [vmem:[%s453 + $0x160] sm:$0xf]
                  %560 = vst [vmem:[%s454 + $0xd0] sm:$0xf] %v559
                  %v561 = vld [vmem:[%s453 + $0x164] sm:$0xf]
                  %562 = vst [vmem:[%s454 + $0xd4] sm:$0xf] %v561
                  %v563 = vld [vmem:[%s453 + $0x1b0] sm:$0xf]
                  %564 = vst [vmem:[%s454 + $0xd8] sm:$0xf] %v563
                  %v565 = vld [vmem:[%s453 + $0x1b4] sm:$0xf]
                  %566 = vst [vmem:[%s454 + $0xdc] sm:$0xf] %v565
                  %v567 = vld [vmem:[%s453 + $0x1b8] sm:$0xf]
                  %568 = vst [vmem:[%s454 + $0xe0] sm:$0xf] %v567
                  %v569 = vld [vmem:[%s453 + $0x1bc] sm:$0xf]
                  %570 = vst [vmem:[%s454 + $0xe4] sm:$0xf] %v569
                  %v571 = vld [vmem:[%s453 + $0x1c0] sm:$0xf]
                  %572 = vst [vmem:[%s454 + $0xe8] sm:$0xf] %v571
                  %v573 = vld [vmem:[%s453 + $0x1c4] sm:$0xf]
                  %574 = vst [vmem:[%s454 + $0xec] sm:$0xf] %v573
                  %v575 = vld [vmem:[%s453 + $0x1c8] sm:$0xf]
                  %576 = vst [vmem:[%s454 + $0xf0] sm:$0xf] %v575
                  %v577 = vld [vmem:[%s453 + $0x1cc] sm:$0xf]
                  %578 = vst [vmem:[%s454 + $0xf4] sm:$0xf] %v577
                  %v579 = vld [vmem:[%s453 + $0x1d0] sm:$0xf]
                  %580 = vst [vmem:[%s454 + $0xf8] sm:$0xf] %v579
                  %v581 = vld [vmem:[%s453 + $0x1d4] sm:$0xf]
                  %582 = vst [vmem:[%s454 + $0xfc] sm:$0xf] %v581
                  %v583 = vld [vmem:[%s453 + $0x1d8] sm:$0xf]
                  %584 = vst [vmem:[%s454 + $0x100] sm:$0xf] %v583
                  %v585 = vld [vmem:[%s453 + $0x1dc] sm:$0xf]
                  %586 = vst [vmem:[%s454 + $0x104] sm:$0xf] %v585
                  %v587 = vld [vmem:[%s453 + $0x1e0] sm:$0xf]
                  %588 = vst [vmem:[%s454 + $0x108] sm:$0xf] %v587
                  %v589 = vld [vmem:[%s453 + $0x1e4] sm:$0xf]
                  %590 = vst [vmem:[%s454 + $0x10c] sm:$0xf] %v589
                  %v591 = vld [vmem:[%s453 + $0x1e8] sm:$0xf]
                  %592 = vst [vmem:[%s454 + $0x110] sm:$0xf] %v591
                  %v593 = vld [vmem:[%s453 + $0x1ec] sm:$0xf]
                  %594 = vst [vmem:[%s454 + $0x114] sm:$0xf] %v593
                  %v595 = vld [vmem:[%s453 + $0x1f0] sm:$0xf]
                  %596 = vst [vmem:[%s454 + $0x118] sm:$0xf] %v595
                  %v597 = vld [vmem:[%s453 + $0x1f4] sm:$0xf]
                  %598 = vst [vmem:[%s454 + $0x11c] sm:$0xf] %v597
                $region83: #{mobilenet_v3_forward.8} parent=70 // loop_footer
                  %s452 = sadd.s32 1, %s448
                $region84: #{mobilenet_v3_forward.8} parent=70 // loop_footer_branch
                  %447 = sbr.rel target = $region80
                $region85: #{mobilenet_v3_forward.8} parent=70 // loop_exit
                  _
              $region71: #{mobilenet_v3_forward.8} parent=55 // pred_fallthru
                _
            $region56: #{mobilenet_v3_forward.8} parent=51 // pred_fallthru
              _
            // Predicated region
            $region57: #{mobilenet_v3_forward.8} parent=51 // pred_check
              _
            $region58: #{mobilenet_v3_forward.8} parent=51 // pred_check_branch
              %282 = sbr.rel (0) target = $region60
            $region59: #{mobilenet_v3_forward.8} parent=51 // pred_region
              loop: start=0, step=1, limit=1
              $region61: #{mobilenet_v3_forward.8} parent=59 // loop_pre_header
                _
              $region62: #{mobilenet_v3_forward.8} parent=59 // loop_header
                %s285 = sphi 0, %s289
                %p286 = scmp.ge.s32.totalorder %s285, 1
                %s290 = sphi %s276, %s276
                %s291 = sphi %s273, %s273
              $region63: #{mobilenet_v3_forward.8} parent=59 // loop_header_branch
                %288 = sbr.rel (%p286) target = $region67
              $region64: #{mobilenet_v3_forward.8} parent=59 // loop_body
                %v292 = vld [vmem:[%s290] sm:$0xf]
                %293 = vst [vmem:[%s291] sm:$0xf] %v292
                %v294 = vld [vmem:[%s290 + $0x4] sm:$0xf]
                %295 = vst [vmem:[%s291 + $0x4] sm:$0xf] %v294
                %v296 = vld [vmem:[%s290 + $0x8] sm:$0xf]
                %297 = vst [vmem:[%s291 + $0x8] sm:$0xf] %v296
                %v298 = vld [vmem:[%s290 + $0xc] sm:$0xf]
                %299 = vst [vmem:[%s291 + $0xc] sm:$0xf] %v298
                %v300 = vld [vmem:[%s290 + $0x10] sm:$0xf]
                %301 = vst [vmem:[%s291 + $0x10] sm:$0xf] %v300
                %v302 = vld [vmem:[%s290 + $0x14] sm:$0xf]
                %303 = vst [vmem:[%s291 + $0x14] sm:$0xf] %v302
                %v304 = vld [vmem:[%s290 + $0x18] sm:$0xf]
                %305 = vst [vmem:[%s291 + $0x18] sm:$0xf] %v304
                %v306 = vld [vmem:[%s290 + $0x1c] sm:$0xf]
                %307 = vst [vmem:[%s291 + $0x1c] sm:$0xf] %v306
                %v308 = vld [vmem:[%s290 + $0x20] sm:$0xf]
                %309 = vst [vmem:[%s291 + $0x20] sm:$0xf] %v308
                %v310 = vld [vmem:[%s290 + $0x24] sm:$0xf]
                %311 = vst [vmem:[%s291 + $0x24] sm:$0xf] %v310
                %v312 = vld [vmem:[%s290 + $0x28] sm:$0xf]
                %313 = vst [vmem:[%s291 + $0x28] sm:$0xf] %v312
                %v314 = vld [vmem:[%s290 + $0x2c] sm:$0xf]
                %315 = vst [vmem:[%s291 + $0x2c] sm:$0xf] %v314
                %v316 = vld [vmem:[%s290 + $0x30] sm:$0xf]
                %317 = vst [vmem:[%s291 + $0x30] sm:$0xf] %v316
                %v318 = vld [vmem:[%s290 + $0x34] sm:$0xf]
                %319 = vst [vmem:[%s291 + $0x34] sm:$0xf] %v318
                %v320 = vld [vmem:[%s290 + $0x38] sm:$0xf]
                %321 = vst [vmem:[%s291 + $0x38] sm:$0xf] %v320
                %v322 = vld [vmem:[%s290 + $0x3c] sm:$0xf]
                %323 = vst [vmem:[%s291 + $0x3c] sm:$0xf] %v322
                %v324 = vld [vmem:[%s290 + $0x40] sm:$0xf]
                %325 = vst [vmem:[%s291 + $0x40] sm:$0xf] %v324
                %v326 = vld [vmem:[%s290 + $0x44] sm:$0xf]
                %327 = vst [vmem:[%s291 + $0x44] sm:$0xf] %v326
                %v328 = vld [vmem:[%s290 + $0x90] sm:$0xf]
                %329 = vst [vmem:[%s291 + $0x48] sm:$0xf] %v328
                %v330 = vld [vmem:[%s290 + $0x94] sm:$0xf]
                %331 = vst [vmem:[%s291 + $0x4c] sm:$0xf] %v330
                %v332 = vld [vmem:[%s290 + $0x98] sm:$0xf]
                %333 = vst [vmem:[%s291 + $0x50] sm:$0xf] %v332
                %v334 = vld [vmem:[%s290 + $0x9c] sm:$0xf]
                %335 = vst [vmem:[%s291 + $0x54] sm:$0xf] %v334
                %v336 = vld [vmem:[%s290 + $0xa0] sm:$0xf]
                %337 = vst [vmem:[%s291 + $0x58] sm:$0xf] %v336
                %v338 = vld [vmem:[%s290 + $0xa4] sm:$0xf]
                %339 = vst [vmem:[%s291 + $0x5c] sm:$0xf] %v338
                %v340 = vld [vmem:[%s290 + $0xa8] sm:$0xf]
                %341 = vst [vmem:[%s291 + $0x60] sm:$0xf] %v340
                %v342 = vld [vmem:[%s290 + $0xac] sm:$0xf]
                %343 = vst [vmem:[%s291 + $0x64] sm:$0xf] %v342
                %v344 = vld [vmem:[%s290 + $0xb0] sm:$0xf]
                %345 = vst [vmem:[%s291 + $0x68] sm:$0xf] %v344
                %v346 = vld [vmem:[%s290 + $0xb4] sm:$0xf]
                %347 = vst [vmem:[%s291 + $0x6c] sm:$0xf] %v346
                %v348 = vld [vmem:[%s290 + $0xb8] sm:$0xf]
                %349 = vst [vmem:[%s291 + $0x70] sm:$0xf] %v348
                %v350 = vld [vmem:[%s290 + $0xbc] sm:$0xf]
                %351 = vst [vmem:[%s291 + $0x74] sm:$0xf] %v350
                %v352 = vld [vmem:[%s290 + $0xc0] sm:$0xf]
                %353 = vst [vmem:[%s291 + $0x78] sm:$0xf] %v352
                %v354 = vld [vmem:[%s290 + $0xc4] sm:$0xf]
                %355 = vst [vmem:[%s291 + $0x7c] sm:$0xf] %v354
                %v356 = vld [vmem:[%s290 + $0xc8] sm:$0xf]
                %357 = vst [vmem:[%s291 + $0x80] sm:$0xf] %v356
                %v358 = vld [vmem:[%s290 + $0xcc] sm:$0xf]
                %359 = vst [vmem:[%s291 + $0x84] sm:$0xf] %v358
                %v360 = vld [vmem:[%s290 + $0xd0] sm:$0xf]
                %361 = vst [vmem:[%s291 + $0x88] sm:$0xf] %v360
                %v362 = vld [vmem:[%s290 + $0xd4] sm:$0xf]
                %363 = vst [vmem:[%s291 + $0x8c] sm:$0xf] %v362
                %v364 = vld [vmem:[%s290 + $0x120] sm:$0xf]
                %365 = vst [vmem:[%s291 + $0x90] sm:$0xf] %v364
                %v366 = vld [vmem:[%s290 + $0x124] sm:$0xf]
                %367 = vst [vmem:[%s291 + $0x94] sm:$0xf] %v366
                %v368 = vld [vmem:[%s290 + $0x128] sm:$0xf]
                %369 = vst [vmem:[%s291 + $0x98] sm:$0xf] %v368
                %v370 = vld [vmem:[%s290 + $0x12c] sm:$0xf]
                %371 = vst [vmem:[%s291 + $0x9c] sm:$0xf] %v370
                %v372 = vld [vmem:[%s290 + $0x130] sm:$0xf]
                %373 = vst [vmem:[%s291 + $0xa0] sm:$0xf] %v372
                %v374 = vld [vmem:[%s290 + $0x134] sm:$0xf]
                %375 = vst [vmem:[%s291 + $0xa4] sm:$0xf] %v374
                %v376 = vld [vmem:[%s290 + $0x138] sm:$0xf]
                %377 = vst [vmem:[%s291 + $0xa8] sm:$0xf] %v376
                %v378 = vld [vmem:[%s290 + $0x13c] sm:$0xf]
                %379 = vst [vmem:[%s291 + $0xac] sm:$0xf] %v378
                %v380 = vld [vmem:[%s290 + $0x140] sm:$0xf]
                %381 = vst [vmem:[%s291 + $0xb0] sm:$0xf] %v380
                %v382 = vld [vmem:[%s290 + $0x144] sm:$0xf]
                %383 = vst [vmem:[%s291 + $0xb4] sm:$0xf] %v382
                %v384 = vld [vmem:[%s290 + $0x148] sm:$0xf]
                %385 = vst [vmem:[%s291 + $0xb8] sm:$0xf] %v384
                %v386 = vld [vmem:[%s290 + $0x14c] sm:$0xf]
                %387 = vst [vmem:[%s291 + $0xbc] sm:$0xf] %v386
                %v388 = vld [vmem:[%s290 + $0x150] sm:$0xf]
                %389 = vst [vmem:[%s291 + $0xc0] sm:$0xf] %v388
                %v390 = vld [vmem:[%s290 + $0x154] sm:$0xf]
                %391 = vst [vmem:[%s291 + $0xc4] sm:$0xf] %v390
                %v392 = vld [vmem:[%s290 + $0x158] sm:$0xf]
                %393 = vst [vmem:[%s291 + $0xc8] sm:$0xf] %v392
                %v394 = vld [vmem:[%s290 + $0x15c] sm:$0xf]
                %395 = vst [vmem:[%s291 + $0xcc] sm:$0xf] %v394
                %v396 = vld [vmem:[%s290 + $0x160] sm:$0xf]
                %397 = vst [vmem:[%s291 + $0xd0] sm:$0xf] %v396
                %v398 = vld [vmem:[%s290 + $0x164] sm:$0xf]
                %399 = vst [vmem:[%s291 + $0xd4] sm:$0xf] %v398
                %v400 = vld [vmem:[%s290 + $0x1b0] sm:$0xf]
                %401 = vst [vmem:[%s291 + $0xd8] sm:$0xf] %v400
                %v402 = vld [vmem:[%s290 + $0x1b4] sm:$0xf]
                %403 = vst [vmem:[%s291 + $0xdc] sm:$0xf] %v402
                %v404 = vld [vmem:[%s290 + $0x1b8] sm:$0xf]
                %405 = vst [vmem:[%s291 + $0xe0] sm:$0xf] %v404
                %v406 = vld [vmem:[%s290 + $0x1bc] sm:$0xf]
                %407 = vst [vmem:[%s291 + $0xe4] sm:$0xf] %v406
                %v408 = vld [vmem:[%s290 + $0x1c0] sm:$0xf]
                %409 = vst [vmem:[%s291 + $0xe8] sm:$0xf] %v408
                %v410 = vld [vmem:[%s290 + $0x1c4] sm:$0xf]
                %411 = vst [vmem:[%s291 + $0xec] sm:$0xf] %v410
                %v412 = vld [vmem:[%s290 + $0x1c8] sm:$0xf]
                %413 = vst [vmem:[%s291 + $0xf0] sm:$0xf] %v412
                %v414 = vld [vmem:[%s290 + $0x1cc] sm:$0xf]
                %415 = vst [vmem:[%s291 + $0xf4] sm:$0xf] %v414
                %v416 = vld [vmem:[%s290 + $0x1d0] sm:$0xf]
                %417 = vst [vmem:[%s291 + $0xf8] sm:$0xf] %v416
                %v418 = vld [vmem:[%s290 + $0x1d4] sm:$0xf]
                %419 = vst [vmem:[%s291 + $0xfc] sm:$0xf] %v418
                %v420 = vld [vmem:[%s290 + $0x1d8] sm:$0xf]
                %421 = vst [vmem:[%s291 + $0x100] sm:$0xf] %v420
                %v422 = vld [vmem:[%s290 + $0x1dc] sm:$0xf]
                %423 = vst [vmem:[%s291 + $0x104] sm:$0xf] %v422
                %v424 = vld [vmem:[%s290 + $0x1e0] sm:$0xf]
                %425 = vst [vmem:[%s291 + $0x108] sm:$0xf] %v424
                %v426 = vld [vmem:[%s290 + $0x1e4] sm:$0xf]
                %427 = vst [vmem:[%s291 + $0x10c] sm:$0xf] %v426
                %v428 = vld [vmem:[%s290 + $0x1e8] sm:$0xf]
                %429 = vst [vmem:[%s291 + $0x110] sm:$0xf] %v428
                %v430 = vld [vmem:[%s290 + $0x1ec] sm:$0xf]
                %431 = vst [vmem:[%s291 + $0x114] sm:$0xf] %v430
                %v432 = vld [vmem:[%s290 + $0x1f0] sm:$0xf]
                %433 = vst [vmem:[%s291 + $0x118] sm:$0xf] %v432
                %v434 = vld [vmem:[%s290 + $0x1f4] sm:$0xf]
                %435 = vst [vmem:[%s291 + $0x11c] sm:$0xf] %v434
              $region65: #{mobilenet_v3_forward.8} parent=59 // loop_footer
                %s289 = sadd.s32 1, %s285
              $region66: #{mobilenet_v3_forward.8} parent=59 // loop_footer_branch
                %284 = sbr.rel target = $region62
              $region67: #{mobilenet_v3_forward.8} parent=59 // loop_exit
                _
            $region60: #{mobilenet_v3_forward.8} parent=51 // pred_fallthru
              _
          $region52: #{mobilenet_v3_forward.8} parent=47 // pred_fallthru
            _
          %599 = vnop
        $region48: #{mobilenet_v3_forward.8} parent=43 // pred_fallthru
          _
      $region44: #{mobilenet_v3_forward.8} parent=5 // pred_fallthru
        _
      %p600 = scmp.le.s32.totalorder 1, %s14
      %p601 = scmp.lt.s32.totalorder %s14, 5
      %p602 = pnand %p600, %p601
      %p603 = pneg %p602
      // Predicated region
      $region86: #{mobilenet_v3_forward.8} parent=5 // pred_check
        _
      $region87: #{mobilenet_v3_forward.8} parent=5 // pred_check_branch
        %605 = sbr.rel (%p602) target = $region89
      $region88: #{mobilenet_v3_forward.8} parent=5 // pred_region
        %s606 = ssub.s32 %s14, 1
        %s607 = sand.u32 %s39, 1
        %s608 = sand.u32 %s39, 1
        %s609 = smul.addr %s608, 288
        %s610 = scalar_lea.vmem [#allocation6], %s609
        // Predicated region
        $region90: #{mobilenet_v3_forward.8} parent=88 // pred_check
          %p611 = pneg %p52
        $region91: #{mobilenet_v3_forward.8} parent=88 // pred_check_branch
          %613 = sbr.rel (%p611) target = $region93
        $region92: #{mobilenet_v3_forward.8} parent=88 // pred_region
          _
        $region93: #{mobilenet_v3_forward.8} parent=88 // pred_fallthru
          _
        %s614 = sand.u32 %s39, 1
        %s615 = sand.u32 %s39, 1
        %s616 = smul.addr %s615, 288
        %s617 = scalar_lea.vmem [#allocation6], %s616
        %p618 = pneg %p52
        %p619 = pneg %p49
        %p620 = pneg %p73
        %p621 = pneg %p70
        %p622 = pneg %p94
        %p623 = pneg %p91
        %p624 = pneg %p115
        %p625 = pneg %p112
        %p626 = pneg %p136
        %p627 = pneg %p133
        %p628 = pneg %p157
        %p629 = pneg %p154
        %p630 = pneg %p178
        %p631 = pneg %p175
        %p632 = pneg %p199
        %p633 = pneg %p196
        %p634 = pneg %p227
        %p635 = pneg %p224
        %s636 = smul.u32 %s24, %s23
        %p637 = scmp.lt.s32.totalorder %s636, 1
        %s638 = scalar_select %p637, %s636, 1
        %s639 = smul.addr %s638, 8
        %s640 = smul.addr %s639, 4
        %s641 = scalar_lea.vmem %s8, %s640
        %s642 = smul.u32 %s24, %s23
        %p643 = scmp.lt.s32.totalorder %s642, 1
        %s644 = scalar_select %p643, %s642, 1
        %s645 = smul.addr %s644, 8
        %s646 = smul.addr %s645, 4
        %s647 = scalar_lea.vmem %s8, %s646
        %s648 = smul.u32 %s24, %s23
        %v650 = vld [vmem:[%s1] sm:$0xff]
        %v651 = vld [vmem:[%s1 + $0x8] sm:$0x1]
        %v652 = vld [vmem:[%s610] sm:$0xf]
        %v653 = vld [vmem:[%s610 + $0x8] sm:$0xf]
        %v654 = vld [vmem:[%s610 + $0x10] sm:$0xf]
        %v655 = vld [vmem:[%s610 + $0x18] sm:$0xf]
        %v656 = vld [vmem:[%s610 + $0x20] sm:$0xf]
        %v657 = vld [vmem:[%s610 + $0x28] sm:$0xf]
        %v658 = vld [vmem:[%s610 + $0x30] sm:$0xf]
        %v659 = vld [vmem:[%s610 + $0x38] sm:$0xf]
        %v660 = vunpack.c.l.bf16 %v652
        %v661 = vunpack.c.l.bf16 %v653
        %v662 = vunpack.c.l.bf16 %v654
        %v663 = vunpack.c.l.bf16 %v655
        %v664 = vunpack.c.l.bf16 %v656
        %v665 = vunpack.c.l.bf16 %v657
        %v666 = vunpack.c.l.bf16 %v658
        %v667 = vunpack.c.l.bf16 %v659
        %v668 = vlaneseq
        %v669 = vshrl.u32 %v668, 7
        %v670 = vsub.s32 0, %v669
        %v671 = vrot.slane %v650, %v670
        %v672 = vmul.f32 %v660, %v671
        %v673 = vmul.f32 %v661, %v671
        %v674 = vmul.f32 %v662, %v671
        %v675 = vmul.f32 %v663, %v671
        %v676 = vmul.f32 %v664, %v671
        %v677 = vmul.f32 %v665, %v671
        %v678 = vmul.f32 %v666, %v671
        %v679 = vmul.f32 %v667, %v671
        %v680 = vadd.f32 %v672, 0.0
        %v681 = vadd.f32 %v673, 0.0
        %v682 = vadd.f32 %v674, 0.0
        %v683 = vadd.f32 %v675, 0.0
        %v684 = vadd.f32 %v676, 0.0
        %v685 = vadd.f32 %v677, 0.0
        %v686 = vadd.f32 %v678, 0.0
        %v687 = vadd.f32 %v679, 0.0
        %s688 = scalar_lea.vmem %s610, 72 [#allocation6]
        %v689 = vld [vmem:[%s688] sm:$0xf]
        %v690 = vld [vmem:[%s688 + $0x8] sm:$0xf]
        %v691 = vld [vmem:[%s688 + $0x10] sm:$0xf]
        %v692 = vld [vmem:[%s688 + $0x18] sm:$0xf]
        %v693 = vld [vmem:[%s688 + $0x20] sm:$0xf]
        %v694 = vld [vmem:[%s688 + $0x28] sm:$0xf]
        %v695 = vld [vmem:[%s688 + $0x30] sm:$0xf]
        %v696 = vld [vmem:[%s688 + $0x38] sm:$0xf]
        %v697 = vunpack.c.l.bf16 %v689
        %v698 = vunpack.c.l.bf16 %v690
        %v699 = vunpack.c.l.bf16 %v691
        %v700 = vunpack.c.l.bf16 %v692
        %v701 = vunpack.c.l.bf16 %v693
        %v702 = vunpack.c.l.bf16 %v694
        %v703 = vunpack.c.l.bf16 %v695
        %v704 = vunpack.c.l.bf16 %v696
        %v705 = vlaneseq
        %v706 = vshrl.u32 %v705, 7
        %v707 = vsub.s32 1, %v706
        %v708 = vrot.slane %v650, %v707
        %v709 = vmul.f32 %v697, %v708
        %v710 = vmul.f32 %v698, %v708
        %v711 = vmul.f32 %v699, %v708
        %v712 = vmul.f32 %v700, %v708
        %v713 = vmul.f32 %v701, %v708
        %v714 = vmul.f32 %v702, %v708
        %v715 = vmul.f32 %v703, %v708
        %v716 = vmul.f32 %v704, %v708
        %v717 = vadd.f32 %v680, %v709
        %v718 = vadd.f32 %v681, %v710
        %v719 = vadd.f32 %v682, %v711
        %v720 = vadd.f32 %v683, %v712
        %v721 = vadd.f32 %v684, %v713
        %v722 = vadd.f32 %v685, %v714
        %v723 = vadd.f32 %v686, %v715
        %v724 = vadd.f32 %v687, %v716
        %v725 = vld [vmem:[%s610 + $0x4] sm:$0x1]
        %v726 = vld [vmem:[%s610 + $0xc] sm:$0x1]
        %v727 = vld [vmem:[%s610 + $0x14] sm:$0x1]
        %v728 = vld [vmem:[%s610 + $0x1c] sm:$0x1]
        %v729 = vld [vmem:[%s610 + $0x24] sm:$0x1]
        %v730 = vld [vmem:[%s610 + $0x2c] sm:$0x1]
        %v731 = vld [vmem:[%s610 + $0x34] sm:$0x1]
        %v732 = vld [vmem:[%s610 + $0x3c] sm:$0x1]
        %v733 = vunpack.c.l.bf16 %v725
        %v734 = vunpack.c.l.bf16 %v726
        %v735 = vunpack.c.l.bf16 %v727
        %v736 = vunpack.c.l.bf16 %v728
        %v737 = vunpack.c.l.bf16 %v729
        %v738 = vunpack.c.l.bf16 %v730
        %v739 = vunpack.c.l.bf16 %v731
        %v740 = vunpack.c.l.bf16 %v732
        %v741 = vlaneseq
        %v742 = vshrl.u32 %v741, 7
        %v743 = vsub.s32 2, %v742
        %v744 = vrot.slane %v650, %v743
        %v745 = vmul.f32 %v660, %v744
        %v746 = vmul.f32 %v733, %v744
        %v747 = vmul.f32 %v661, %v744
        %v748 = vmul.f32 %v734, %v744
        %v749 = vmul.f32 %v662, %v744
        %v750 = vmul.f32 %v735, %v744
        %v751 = vmul.f32 %v663, %v744
        %v752 = vmul.f32 %v736, %v744
        %v753 = vmul.f32 %v664, %v744
        %v754 = vmul.f32 %v737, %v744
        %v755 = vmul.f32 %v665, %v744
        %v756 = vmul.f32 %v738, %v744
        %v757 = vmul.f32 %v666, %v744
        %v758 = vmul.f32 %v739, %v744
        %v759 = vmul.f32 %v667, %v744
        %v760 = vmul.f32 %v740, %v744
        %vm777 = vcmask 1046528
        %v778 = vrot.slane %v745, 1
        %v779 = vrot.slane %v746, 1
        %v780 = vsel %vm777, %v778, %v779
        %v781 = vrot.slane %v747, 1
        %v782 = vrot.slane %v748, 1
        %v783 = vsel %vm777, %v781, %v782
        %v784 = vrot.slane %v749, 1
        %v785 = vrot.slane %v750, 1
        %v786 = vsel %vm777, %v784, %v785
        %v787 = vrot.slane %v751, 1
        %v788 = vrot.slane %v752, 1
        %v789 = vsel %vm777, %v787, %v788
        %v790 = vrot.slane %v753, 1
        %v791 = vrot.slane %v754, 1
        %v792 = vsel %vm777, %v790, %v791
        %v793 = vrot.slane %v755, 1
        %v794 = vrot.slane %v756, 1
        %v795 = vsel %vm777, %v793, %v794
        %v796 = vrot.slane %v757, 1
        %v797 = vrot.slane %v758, 1
        %v798 = vsel %vm777, %v796, %v797
        %v799 = vrot.slane %v759, 1
        %v800 = vrot.slane %v760, 1
        %v801 = vsel %vm777, %v799, %v800
        %v810 = vadd.f32 %v717, %v780
        %v811 = vadd.f32 %v718, %v783
        %v812 = vadd.f32 %v719, %v786
        %v813 = vadd.f32 %v720, %v789
        %v814 = vadd.f32 %v721, %v792
        %v815 = vadd.f32 %v722, %v795
        %v816 = vadd.f32 %v723, %v798
        %v817 = vadd.f32 %v724, %v801
        %s818 = scalar_lea.vmem %s610, 144 [#allocation6]
        %v819 = vld [vmem:[%s818] sm:$0xf]
        %v820 = vld [vmem:[%s818 + $0x8] sm:$0xf]
        %v821 = vld [vmem:[%s818 + $0x10] sm:$0xf]
        %v822 = vld [vmem:[%s818 + $0x18] sm:$0xf]
        %v823 = vld [vmem:[%s818 + $0x20] sm:$0xf]
        %v824 = vld [vmem:[%s818 + $0x28] sm:$0xf]
        %v825 = vld [vmem:[%s818 + $0x30] sm:$0xf]
        %v826 = vld [vmem:[%s818 + $0x38] sm:$0xf]
        %v827 = vunpack.c.l.bf16 %v819
        %v828 = vunpack.c.l.bf16 %v820
        %v829 = vunpack.c.l.bf16 %v821
        %v830 = vunpack.c.l.bf16 %v822
        %v831 = vunpack.c.l.bf16 %v823
        %v832 = vunpack.c.l.bf16 %v824
        %v833 = vunpack.c.l.bf16 %v825
        %v834 = vunpack.c.l.bf16 %v826
        %v835 = vlaneseq
        %v836 = vshrl.u32 %v835, 7
        %v837 = vsub.s32 3, %v836
        %v838 = vrot.slane %v650, %v837
        %v839 = vmul.f32 %v827, %v838
        %v840 = vmul.f32 %v828, %v838
        %v841 = vmul.f32 %v829, %v838
        %v842 = vmul.f32 %v830, %v838
        %v843 = vmul.f32 %v831, %v838
        %v844 = vmul.f32 %v832, %v838
        %v845 = vmul.f32 %v833, %v838
        %v846 = vmul.f32 %v834, %v838
        %v847 = vadd.f32 %v810, %v839
        %v848 = vadd.f32 %v811, %v840
        %v849 = vadd.f32 %v812, %v841
        %v850 = vadd.f32 %v813, %v842
        %v851 = vadd.f32 %v814, %v843
        %v852 = vadd.f32 %v815, %v844
        %v853 = vadd.f32 %v816, %v845
        %v854 = vadd.f32 %v817, %v846
        %s855 = scalar_lea.vmem %s610, 216 [#allocation6]
        %v856 = vld [vmem:[%s855] sm:$0xf]
        %v857 = vld [vmem:[%s855 + $0x8] sm:$0xf]
        %v858 = vld [vmem:[%s855 + $0x10] sm:$0xf]
        %v859 = vld [vmem:[%s855 + $0x18] sm:$0xf]
        %v860 = vld [vmem:[%s855 + $0x20] sm:$0xf]
        %v861 = vld [vmem:[%s855 + $0x28] sm:$0xf]
        %v862 = vld [vmem:[%s855 + $0x30] sm:$0xf]
        %v863 = vld [vmem:[%s855 + $0x38] sm:$0xf]
        %v864 = vunpack.c.l.bf16 %v856
        %v865 = vunpack.c.l.bf16 %v857
        %v866 = vunpack.c.l.bf16 %v858
        %v867 = vunpack.c.l.bf16 %v859
        %v868 = vunpack.c.l.bf16 %v860
        %v869 = vunpack.c.l.bf16 %v861
        %v870 = vunpack.c.l.bf16 %v862
        %v871 = vunpack.c.l.bf16 %v863
        %v872 = vlaneseq
        %v873 = vshrl.u32 %v872, 7
        %v874 = vsub.s32 4, %v873
        %v875 = vrot.slane %v650, %v874
        %v876 = vmul.f32 %v864, %v875
        %v877 = vmul.f32 %v865, %v875
        %v878 = vmul.f32 %v866, %v875
        %v879 = vmul.f32 %v867, %v875
        %v880 = vmul.f32 %v868, %v875
        %v881 = vmul.f32 %v869, %v875
        %v882 = vmul.f32 %v870, %v875
        %v883 = vmul.f32 %v871, %v875
        %v884 = vadd.f32 %v847, %v876
        %v885 = vadd.f32 %v848, %v877
        %v886 = vadd.f32 %v849, %v878
        %v887 = vadd.f32 %v850, %v879
        %v888 = vadd.f32 %v851, %v880
        %v889 = vadd.f32 %v852, %v881
        %v890 = vadd.f32 %v853, %v882
        %v891 = vadd.f32 %v854, %v883
        %v892 = vld [vmem:[%s818 + $0x4] sm:$0x1]
        %v893 = vld [vmem:[%s818 + $0xc] sm:$0x1]
        %v894 = vld [vmem:[%s818 + $0x14] sm:$0x1]
        %v895 = vld [vmem:[%s818 + $0x1c] sm:$0x1]
        %v896 = vld [vmem:[%s818 + $0x24] sm:$0x1]
        %v897 = vld [vmem:[%s818 + $0x2c] sm:$0x1]
        %v898 = vld [vmem:[%s818 + $0x34] sm:$0x1]
        %v899 = vld [vmem:[%s818 + $0x3c] sm:$0x1]
        %v900 = vunpack.c.l.bf16 %v892
        %v901 = vunpack.c.l.bf16 %v893
        %v902 = vunpack.c.l.bf16 %v894
        %v903 = vunpack.c.l.bf16 %v895
        %v904 = vunpack.c.l.bf16 %v896
        %v905 = vunpack.c.l.bf16 %v897
        %v906 = vunpack.c.l.bf16 %v898
        %v907 = vunpack.c.l.bf16 %v899
        %v908 = vlaneseq
        %v909 = vshrl.u32 %v908, 7
        %v910 = vsub.s32 5, %v909
        %v911 = vrot.slane %v650, %v910
        %v912 = vmul.f32 %v827, %v911
        %v913 = vmul.f32 %v900, %v911
        %v914 = vmul.f32 %v828, %v911
        %v915 = vmul.f32 %v901, %v911
        %v916 = vmul.f32 %v829, %v911
        %v917 = vmul.f32 %v902, %v911
        %v918 = vmul.f32 %v830, %v911
        %v919 = vmul.f32 %v903, %v911
        %v920 = vmul.f32 %v831, %v911
        %v921 = vmul.f32 %v904, %v911
        %v922 = vmul.f32 %v832, %v911
        %v923 = vmul.f32 %v905, %v911
        %v924 = vmul.f32 %v833, %v911
        %v925 = vmul.f32 %v906, %v911
        %v926 = vmul.f32 %v834, %v911
        %v927 = vmul.f32 %v907, %v911
        %v944 = vrot.slane %v912, 1
        %v945 = vrot.slane %v913, 1
        %v946 = vsel %vm777, %v944, %v945
        %v947 = vrot.slane %v914, 1
        %v948 = vrot.slane %v915, 1
        %v949 = vsel %vm777, %v947, %v948
        %v950 = vrot.slane %v916, 1
        %v951 = vrot.slane %v917, 1
        %v952 = vsel %vm777, %v950, %v951
        %v953 = vrot.slane %v918, 1
        %v954 = vrot.slane %v919, 1
        %v955 = vsel %vm777, %v953, %v954
        %v956 = vrot.slane %v920, 1
        %v957 = vrot.slane %v921, 1
        %v958 = vsel %vm777, %v956, %v957
        %v959 = vrot.slane %v922, 1
        %v960 = vrot.slane %v923, 1
        %v961 = vsel %vm777, %v959, %v960
        %v962 = vrot.slane %v924, 1
        %v963 = vrot.slane %v925, 1
        %v964 = vsel %vm777, %v962, %v963
        %v965 = vrot.slane %v926, 1
        %v966 = vrot.slane %v927, 1
        %v967 = vsel %vm777, %v965, %v966
        %v976 = vadd.f32 %v884, %v946
        %v977 = vadd.f32 %v885, %v949
        %v978 = vadd.f32 %v886, %v952
        %v979 = vadd.f32 %v887, %v955
        %v980 = vadd.f32 %v888, %v958
        %v981 = vadd.f32 %v889, %v961
        %v982 = vadd.f32 %v890, %v964
        %v983 = vadd.f32 %v891, %v967
        %s984 = scalar_lea.vmem %s610, 8 [#allocation6]
        %v985 = vld [vmem:[%s984] sm:$0xf]
        %v986 = vld [vmem:[%s984 + $0x8] sm:$0xf]
        %v987 = vld [vmem:[%s984 + $0x10] sm:$0xf]
        %v988 = vld [vmem:[%s984 + $0x18] sm:$0xf]
        %v989 = vld [vmem:[%s984 + $0x20] sm:$0xf]
        %v990 = vld [vmem:[%s984 + $0x28] sm:$0xf]
        %v991 = vld [vmem:[%s984 + $0x30] sm:$0xf]
        %v992 = vld [vmem:[%s984 + $0x38] sm:$0xf]
        %v993 = vunpack.c.l.bf16 %v985
        %v994 = vunpack.c.l.bf16 %v986
        %v995 = vunpack.c.l.bf16 %v987
        %v996 = vunpack.c.l.bf16 %v988
        %v997 = vunpack.c.l.bf16 %v989
        %v998 = vunpack.c.l.bf16 %v990
        %v999 = vunpack.c.l.bf16 %v991
        %v1000 = vunpack.c.l.bf16 %v992
        %v1001 = vlaneseq
        %v1002 = vshrl.u32 %v1001, 7
        %v1003 = vsub.s32 6, %v1002
        %v1004 = vrot.slane %v650, %v1003
        %v1005 = vmul.f32 %v993, %v1004
        %v1006 = vmul.f32 %v994, %v1004
        %v1007 = vmul.f32 %v995, %v1004
        %v1008 = vmul.f32 %v996, %v1004
        %v1009 = vmul.f32 %v997, %v1004
        %v1010 = vmul.f32 %v998, %v1004
        %v1011 = vmul.f32 %v999, %v1004
        %v1012 = vmul.f32 %v1000, %v1004
        %v1013 = vadd.f32 %v976, %v1005
        %v1014 = vadd.f32 %v977, %v1006
        %v1015 = vadd.f32 %v978, %v1007
        %v1016 = vadd.f32 %v979, %v1008
        %v1017 = vadd.f32 %v980, %v1009
        %v1018 = vadd.f32 %v981, %v1010
        %v1019 = vadd.f32 %v982, %v1011
        %v1020 = vadd.f32 %v983, %v1012
        %s1021 = scalar_lea.vmem %s610, 80 [#allocation6]
        %v1022 = vld [vmem:[%s1021] sm:$0xf]
        %v1023 = vld [vmem:[%s1021 + $0x8] sm:$0xf]
        %v1024 = vld [vmem:[%s1021 + $0x10] sm:$0xf]
        %v1025 = vld [vmem:[%s1021 + $0x18] sm:$0xf]
        %v1026 = vld [vmem:[%s1021 + $0x20] sm:$0xf]
        %v1027 = vld [vmem:[%s1021 + $0x28] sm:$0xf]
        %v1028 = vld [vmem:[%s1021 + $0x30] sm:$0xf]
        %v1029 = vld [vmem:[%s1021 + $0x38] sm:$0xf]
        %v1030 = vunpack.c.l.bf16 %v1022
        %v1031 = vunpack.c.l.bf16 %v1023
        %v1032 = vunpack.c.l.bf16 %v1024
        %v1033 = vunpack.c.l.bf16 %v1025
        %v1034 = vunpack.c.l.bf16 %v1026
        %v1035 = vunpack.c.l.bf16 %v1027
        %v1036 = vunpack.c.l.bf16 %v1028
        %v1037 = vunpack.c.l.bf16 %v1029
        %v1038 = vlaneseq
        %v1039 = vshrl.u32 %v1038, 7
        %v1040 = vsub.s32 7, %v1039
        %v1041 = vrot.slane %v650, %v1040
        %v1042 = vmul.f32 %v1030, %v1041
        %v1043 = vmul.f32 %v1031, %v1041
        %v1044 = vmul.f32 %v1032, %v1041
        %v1045 = vmul.f32 %v1033, %v1041
        %v1046 = vmul.f32 %v1034, %v1041
        %v1047 = vmul.f32 %v1035, %v1041
        %v1048 = vmul.f32 %v1036, %v1041
        %v1049 = vmul.f32 %v1037, %v1041
        %v1050 = vadd.f32 %v1013, %v1042
        %v1051 = vadd.f32 %v1014, %v1043
        %v1052 = vadd.f32 %v1015, %v1044
        %v1053 = vadd.f32 %v1016, %v1045
        %v1054 = vadd.f32 %v1017, %v1046
        %v1055 = vadd.f32 %v1018, %v1047
        %v1056 = vadd.f32 %v1019, %v1048
        %v1057 = vadd.f32 %v1020, %v1049
        %v1058 = vld [vmem:[%s984 + $0x4] sm:$0x1]
        %v1059 = vld [vmem:[%s984 + $0xc] sm:$0x1]
        %v1060 = vld [vmem:[%s984 + $0x14] sm:$0x1]
        %v1061 = vld [vmem:[%s984 + $0x1c] sm:$0x1]
        %v1062 = vld [vmem:[%s984 + $0x24] sm:$0x1]
        %v1063 = vld [vmem:[%s984 + $0x2c] sm:$0x1]
        %v1064 = vld [vmem:[%s984 + $0x34] sm:$0x1]
        %v1065 = vld [vmem:[%s984 + $0x3c] sm:$0x1]
        %v1066 = vunpack.c.l.bf16 %v1058
        %v1067 = vunpack.c.l.bf16 %v1059
        %v1068 = vunpack.c.l.bf16 %v1060
        %v1069 = vunpack.c.l.bf16 %v1061
        %v1070 = vunpack.c.l.bf16 %v1062
        %v1071 = vunpack.c.l.bf16 %v1063
        %v1072 = vunpack.c.l.bf16 %v1064
        %v1073 = vunpack.c.l.bf16 %v1065
        %v1074 = vlaneseq
        %v1075 = vshrl.u32 %v1074, 7
        %v1076 = vsub.s32 0, %v1075
        %v1077 = vrot.slane %v651, %v1076
        %v1078 = vmul.f32 %v993, %v1077
        %v1079 = vmul.f32 %v1066, %v1077
        %v1080 = vmul.f32 %v994, %v1077
        %v1081 = vmul.f32 %v1067, %v1077
        %v1082 = vmul.f32 %v995, %v1077
        %v1083 = vmul.f32 %v1068, %v1077
        %v1084 = vmul.f32 %v996, %v1077
        %v1085 = vmul.f32 %v1069, %v1077
        %v1086 = vmul.f32 %v997, %v1077
        %v1087 = vmul.f32 %v1070, %v1077
        %v1088 = vmul.f32 %v998, %v1077
        %v1089 = vmul.f32 %v1071, %v1077
        %v1090 = vmul.f32 %v999, %v1077
        %v1091 = vmul.f32 %v1072, %v1077
        %v1092 = vmul.f32 %v1000, %v1077
        %v1093 = vmul.f32 %v1073, %v1077
        %v1110 = vrot.slane %v1078, 1
        %v1111 = vrot.slane %v1079, 1
        %v1112 = vsel %vm777, %v1110, %v1111
        %v1113 = vrot.slane %v1080, 1
        %v1114 = vrot.slane %v1081, 1
        %v1115 = vsel %vm777, %v1113, %v1114
        %v1116 = vrot.slane %v1082, 1
        %v1117 = vrot.slane %v1083, 1
        %v1118 = vsel %vm777, %v1116, %v1117
        %v1119 = vrot.slane %v1084, 1
        %v1120 = vrot.slane %v1085, 1
        %v1121 = vsel %vm777, %v1119, %v1120
        %v1122 = vrot.slane %v1086, 1
        %v1123 = vrot.slane %v1087, 1
        %v1124 = vsel %vm777, %v1122, %v1123
        %v1125 = vrot.slane %v1088, 1
        %v1126 = vrot.slane %v1089, 1
        %v1127 = vsel %vm777, %v1125, %v1126
        %v1128 = vrot.slane %v1090, 1
        %v1129 = vrot.slane %v1091, 1
        %v1130 = vsel %vm777, %v1128, %v1129
        %v1131 = vrot.slane %v1092, 1
        %v1132 = vrot.slane %v1093, 1
        %v1133 = vsel %vm777, %v1131, %v1132
        %v1142 = vadd.f32 %v1050, %v1112
        %v1143 = vadd.f32 %v1051, %v1115
        %v1144 = vadd.f32 %v1052, %v1118
        %v1145 = vadd.f32 %v1053, %v1121
        %v1146 = vadd.f32 %v1054, %v1124
        %v1147 = vadd.f32 %v1055, %v1127
        %v1148 = vadd.f32 %v1056, %v1130
        %v1149 = vadd.f32 %v1057, %v1133
        %p1150 = scmp.eq.s32.totalorder %s23, 0
        // Predicated region
        $region94: #{mobilenet_v3_forward.8} parent=88 // pred_check
          %p1151 = pneg %p1150
        $region95: #{mobilenet_v3_forward.8} parent=88 // pred_check_branch
          %1153 = sbr.rel (%p1151) target = $region97
        $region96: #{mobilenet_v3_forward.8} parent=88 // pred_region
          %p1154 = scmp.eq.s32.totalorder %s24, 0
          // Predicated region
          $region98: #{mobilenet_v3_forward.8} parent=96 // pred_check
            %p1155 = pneg %p1154
          $region99: #{mobilenet_v3_forward.8} parent=96 // pred_check_branch
            %1157 = sbr.rel (%p1155) target = $region101
          $region100: #{mobilenet_v3_forward.8} parent=96 // pred_region
            %1158 = vst [vmem:[#allocation2] sm:$0x1] 0.0
            %1159 = vst [vmem:[#allocation3] sm:$0x1] 0.0
          $region101: #{mobilenet_v3_forward.8} parent=96 // pred_fallthru
            _
          %v1160 = vld [vmem:[#allocation2] sm:$0x1]
          %v1161 = vadd.f32 %v1142, %v1143
          %v1162 = vadd.f32 %v1161, %v1144
          %v1163 = vadd.f32 %v1162, %v1145
          %v1164 = vadd.f32 %v1163, %v1146
          %v1165 = vadd.f32 %v1164, %v1147
          %v1166 = vadd.f32 %v1165, %v1148
          %v1167 = vadd.f32 %v1166, %v1149
          %v1168 = vrot.slane %v1167, 4
          %v1169 = vadd.f32 %v1167, %v1168
          %v1170 = vrot.slane %v1169, 2
          %v1171 = vadd.f32 %v1169, %v1170
          %v1172 = vrot.slane %v1171, 1
          %v1173 = vadd.f32 %v1171, %v1172
          %v1174 = vadd.f32 %v1160, %v1173
          %1175 = vst [vmem:[#allocation2] sm:$0x1] %v1174
          %v1176 = vld [vmem:[#allocation3] sm:$0x1]
          %v1177 = vmul.f32 %v1142, %v1142
          %v1178 = vmul.f32 %v1143, %v1143
          %v1179 = vmul.f32 %v1144, %v1144
          %v1180 = vmul.f32 %v1145, %v1145
          %v1181 = vmul.f32 %v1146, %v1146
          %v1182 = vmul.f32 %v1147, %v1147
          %v1183 = vmul.f32 %v1148, %v1148
          %v1184 = vmul.f32 %v1149, %v1149
          %v1185 = vadd.f32 %v1177, %v1178
          %v1186 = vadd.f32 %v1185, %v1179
          %v1187 = vadd.f32 %v1186, %v1180
          %v1188 = vadd.f32 %v1187, %v1181
          %v1189 = vadd.f32 %v1188, %v1182
          %v1190 = vadd.f32 %v1189, %v1183
          %v1191 = vadd.f32 %v1190, %v1184
          %v1192 = vrot.slane %v1191, 4
          %v1193 = vadd.f32 %v1191, %v1192
          %v1194 = vrot.slane %v1193, 2
          %v1195 = vadd.f32 %v1193, %v1194
          %v1196 = vrot.slane %v1195, 1
          %v1197 = vadd.f32 %v1195, %v1196
          %v1198 = vadd.f32 %v1176, %v1197
          %1199 = vst [vmem:[#allocation3] sm:$0x1] %v1198
          %p1200 = scmp.eq.s32.totalorder %s24, 1
          // Predicated region
          $region102: #{mobilenet_v3_forward.8} parent=96 // pred_check
            %p1201 = pneg %p1200
          $region103: #{mobilenet_v3_forward.8} parent=96 // pred_check_branch
            %1203 = sbr.rel (%p1201) target = $region105
          $region104: #{mobilenet_v3_forward.8} parent=96 // pred_region
            %v1204 = vld [vmem:[#allocation2] sm:$0x1]
            %v1205 = vmul.f32 %v1204, 0.0078125
            %v1206 = vld [vmem:[#allocation3] sm:$0x1]
            %v1207 = vmul.f32 %v1206, 0.0078125
            %v1208 = vmul.f32 %v1205, %v1205
            %v1209 = vsub.f32 %v1207, %v1208
            %v1210 = vmax.f32 %v1209, 0.0
            %v1211 = vld [vmem:[%s2] sm:$0x1]
            %v1212 = vadd.f32 %v1210, 0.001
            %v1213 = vrsqrt.pop %v1212
            %v1214 = vmul.f32 %v1211, %v1213
            %1215 = vst [vmem:[#allocation4] sm:$0x1] %v1214
            %v1216 = vld [vmem:[%s3] sm:$0x1]
            %v1217 = vmul.f32 %v1205, %v1214
            %v1218 = vsub.f32 %v1216, %v1217
            %1219 = vst [vmem:[#allocation5] sm:$0x1] %v1218
          $region105: #{mobilenet_v3_forward.8} parent=96 // pred_fallthru
            _
        $region97: #{mobilenet_v3_forward.8} parent=88 // pred_fallthru
          _
        %p1220 = scmp.eq.s32.totalorder %s23, 1
        // Predicated region
        $region106: #{mobilenet_v3_forward.8} parent=88 // pred_check
          %p1221 = pneg %p1220
        $region107: #{mobilenet_v3_forward.8} parent=88 // pred_check_branch
          %1223 = sbr.rel (%p1221) target = $region109
        $region108: #{mobilenet_v3_forward.8} parent=88 // pred_region
          %v1224 = vld [vmem:[#allocation4] sm:$0x1]
          %v1226 = vlaneseq
          %v1227 = vshrl.u32 %v1226, 7
          %v1228 = vsub.s32 0, %v1227
          %v1229 = vrot.slane %v1224, %v1228
          %v1231 = vmul.f32 %v1142, %v1229
          %v1232 = vmul.f32 %v1143, %v1229
          %v1233 = vmul.f32 %v1144, %v1229
          %v1234 = vmul.f32 %v1145, %v1229
          %v1235 = vmul.f32 %v1146, %v1229
          %v1236 = vmul.f32 %v1147, %v1229
          %v1237 = vmul.f32 %v1148, %v1229
          %v1238 = vmul.f32 %v1149, %v1229
          %v1239 = vld [vmem:[#allocation5] sm:$0x1]
          %v1241 = vlaneseq
          %v1242 = vshrl.u32 %v1241, 7
          %v1243 = vsub.s32 0, %v1242
          %v1244 = vrot.slane %v1239, %v1243
          %v1246 = vadd.f32 %v1231, %v1244
          %v1247 = vadd.f32 %v1232, %v1244
          %v1248 = vadd.f32 %v1233, %v1244
          %v1249 = vadd.f32 %v1234, %v1244
          %v1250 = vadd.f32 %v1235, %v1244
          %v1251 = vadd.f32 %v1236, %v1244
          %v1252 = vadd.f32 %v1237, %v1244
          %v1253 = vadd.f32 %v1238, %v1244
          %v1254 = vmax.f32 %v1246, 0.0
          %v1255 = vmax.f32 %v1247, 0.0
          %v1256 = vmax.f32 %v1248, 0.0
          %v1257 = vmax.f32 %v1249, 0.0
          %v1258 = vmax.f32 %v1250, 0.0
          %v1259 = vmax.f32 %v1251, 0.0
          %v1260 = vmax.f32 %v1252, 0.0
          %v1261 = vmax.f32 %v1253, 0.0
          %v1262 = vadd.f32 %v1254, %v1255
          %v1263 = vadd.f32 %v1262, %v1256
          %v1264 = vadd.f32 %v1263, %v1257
          %v1265 = vadd.f32 %v1264, %v1258
          %v1266 = vadd.f32 %v1265, %v1259
          %v1267 = vadd.f32 %v1266, %v1260
          %v1268 = vadd.f32 %v1267, %v1261
          %v1269 = vrot.slane %v1268, 4
          %v1270 = vadd.f32 %v1268, %v1269
          %v1271 = vrot.slane %v1270, 2
          %v1272 = vadd.f32 %v1270, %v1271
          %v1273 = vrot.slane %v1272, 1
          %v1274 = vadd.f32 %v1272, %v1273
          %v1275 = vmul.f32 %v1274, 0.015625
          %v1276 = vpack.c.bf16 %v1275, %v1275
          %v1277 = vld [vmem:[%s4] sm:$0xf]
          %v1278 = vld [vmem:[%s4 + $0x4] sm:$0xf]
          %v1279 = vld [vmem:[%s4 + $0x8] sm:$0xf]
          %v1280 = vld [vmem:[%s4 + $0xc] sm:$0xf]
          %v1281 = vld [vmem:[%s4 + $0x10] sm:$0xf]
          %v1282 = vld [vmem:[%s4 + $0x14] sm:$0xf]
          %v1283 = vld [vmem:[%s4 + $0x18] sm:$0xf]
          %v1284 = vld [vmem:[%s4 + $0x1c] sm:$0xf]
          %v1285 = vld [vmem:[%s4 + $0x20] sm:$0xf]
          %v1286 = vld [vmem:[%s4 + $0x24] sm:$0xf]
          %v1287 = vld [vmem:[%s4 + $0x28] sm:$0xf]
          %v1288 = vld [vmem:[%s4 + $0x2c] sm:$0xf]
          %v1289 = vld [vmem:[%s4 + $0x30] sm:$0xf]
          %v1290 = vld [vmem:[%s4 + $0x34] sm:$0xf]
          %v1291 = vld [vmem:[%s4 + $0x38] sm:$0xf]
          %v1292 = vld [vmem:[%s4 + $0x3c] sm:$0xf]
          %v1293 = vld [vmem:[%s5] sm:$0x1]
          %v1310 = vunpack.c.l.b16 %v1277
          %v1311 = vunpack.c.l.b16 %v1278
          %v1312 = vunpack.c.l.b16 %v1279
          %v1313 = vunpack.c.l.b16 %v1280
          %v1314 = vunpack.c.l.b16 %v1281
          %v1315 = vunpack.c.l.b16 %v1282
          %v1316 = vunpack.c.l.b16 %v1283
          %v1317 = vunpack.c.l.b16 %v1284
          %v1318 = vunpack.c.l.b16 %v1285
          %v1319 = vunpack.c.l.b16 %v1286
          %v1320 = vunpack.c.l.b16 %v1287
          %v1321 = vunpack.c.l.b16 %v1288
          %v1322 = vunpack.c.l.b16 %v1289
          %v1323 = vunpack.c.l.b16 %v1290
          %v1324 = vunpack.c.l.b16 %v1291
          %v1325 = vunpack.c.l.b16 %v1292
          %v1326 = vpack.c.b16 %v1311, %v1310
          %v1327 = vpack.c.b16 %v1313, %v1312
          %v1328 = vpack.c.b16 %v1315, %v1314
          %v1329 = vpack.c.b16 %v1317, %v1316
          %v1330 = vpack.c.b16 %v1319, %v1318
          %v1331 = vpack.c.b16 %v1321, %v1320
          %v1332 = vpack.c.b16 %v1323, %v1322
          %v1333 = vpack.c.b16 %v1325, %v1324
          %1342 = vmatprep.subr.bf16.mxu0 0
          %1343 = vmatpush1.bf16.msra.mxu0 %v1326
          %1344 = vmatprep.subr.bf16.mxu0 0
          %1345 = vmatpush1.bf16.msra.mxu0 %v1327
          %1346 = vmatprep.subr.bf16.mxu0 0
          %1347 = vmatpush1.bf16.msra.mxu0 %v1328
          %1348 = vmatprep.subr.bf16.mxu0 0
          %1349 = vmatpush1.bf16.msra.mxu0 %v1329
          %1350 = vmatprep.subr.bf16.mxu0 0
          %1351 = vmatpush1.bf16.msra.mxu0 %v1330
          %1352 = vmatprep.subr.bf16.mxu0 0
          %1353 = vmatpush1.bf16.msra.mxu0 %v1331
          %1354 = vmatprep.subr.bf16.mxu0 0
          %1355 = vmatpush1.bf16.msra.mxu0 %v1332
          %1356 = vmatprep.subr.bf16.mxu0 0
          %1357 = vmatpush1.bf16.msra.mxu0 %v1333
          %1358 = vmatprep.subr.bf16.mxu0 0
          %1359 = vmatpush1.bf16.msra.mxu0 0
          %1360 = vmatprep.subr.bf16.mxu0 0
          %1361 = vmatpush1.bf16.msra.mxu0 0
          %1362 = vmatprep.subr.bf16.mxu0 0
          %1363 = vmatpush1.bf16.msra.mxu0 0
          %1364 = vmatprep.subr.bf16.mxu0 0
          %1365 = vmatpush1.bf16.msra.mxu0 0
          %1366 = vmatprep.subr.bf16.mxu0 0
          %1367 = vmatpush1.bf16.msra.mxu0 0
          %1368 = vmatprep.subr.bf16.mxu0 0
          %1369 = vmatpush1.bf16.msra.mxu0 0
          %1370 = vmatprep.subr.bf16.mxu0 0
          %1371 = vmatpush1.bf16.msra.mxu0 0
          %1372 = vmatprep.subr.bf16.mxu0 0
          %1373 = vmatpush1.bf16.msra.mxu0 0
          %1374 = vmatprep.mubr.bf16.mxu0 0
          %1375 = vmatmul.mubr.bf16.gmra.mrb[0].mxu0 %v1276
          %v1376 = vpop.f32.mrb[0].mxu0
          %v1377 = vadd.f32 %v1293, %v1376
          %v1378 = vpop.f32.mrb[0].mxu0
          %v1379 = vpop.f32.mrb[0].mxu0
          %v1380 = vpop.f32.mrb[0].mxu0
          %1381 = vdwg.mxu0
          %v1382 = vmax.f32 %v1377, 0.0
          %v1383 = vpack.c.bf16 %v1382, %v1382
          %v1384 = vld [vmem:[%s6] sm:$0xf]
          %v1385 = vld [vmem:[%s6 + $0x4] sm:$0xf]
          %v1386 = vld [vmem:[%s6 + $0x8] sm:$0xf]
          %v1387 = vld [vmem:[%s6 + $0xc] sm:$0xf]
          %v1388 = vld [vmem:[%s6 + $0x10] sm:$0xf]
          %v1389 = vld [vmem:[%s6 + $0x14] sm:$0xf]
          %v1390 = vld [vmem:[%s6 + $0x18] sm:$0xf]
          %v1391 = vld [vmem:[%s6 + $0x1c] sm:$0xf]
          %v1392 = vld [vmem:[%s6 + $0x20] sm:$0xf]
          %v1393 = vld [vmem:[%s6 + $0x24] sm:$0xf]
          %v1394 = vld [vmem:[%s6 + $0x28] sm:$0xf]
          %v1395 = vld [vmem:[%s6 + $0x2c] sm:$0xf]
          %v1396 = vld [vmem:[%s6 + $0x30] sm:$0xf]
          %v1397 = vld [vmem:[%s6 + $0x34] sm:$0xf]
          %v1398 = vld [vmem:[%s6 + $0x38] sm:$0xf]
          %v1399 = vld [vmem:[%s6 + $0x3c] sm:$0xf]
          %v1400 = vld [vmem:[%s7] sm:$0x1]
          %v1417 = vunpack.c.l.b16 %v1384
          %v1418 = vunpack.c.l.b16 %v1385
          %v1419 = vunpack.c.l.b16 %v1386
          %v1420 = vunpack.c.l.b16 %v1387
          %v1421 = vunpack.c.l.b16 %v1388
          %v1422 = vunpack.c.l.b16 %v1389
          %v1423 = vunpack.c.l.b16 %v1390
          %v1424 = vunpack.c.l.b16 %v1391
          %v1425 = vunpack.c.l.b16 %v1392
          %v1426 = vunpack.c.l.b16 %v1393
          %v1427 = vunpack.c.l.b16 %v1394
          %v1428 = vunpack.c.l.b16 %v1395
          %v1429 = vunpack.c.l.b16 %v1396
          %v1430 = vunpack.c.l.b16 %v1397
          %v1431 = vunpack.c.l.b16 %v1398
          %v1432 = vunpack.c.l.b16 %v1399
          %v1433 = vpack.c.b16 %v1418, %v1417
          %v1434 = vpack.c.b16 %v1420, %v1419
          %v1435 = vpack.c.b16 %v1422, %v1421
          %v1436 = vpack.c.b16 %v1424, %v1423
          %v1437 = vpack.c.b16 %v1426, %v1425
          %v1438 = vpack.c.b16 %v1428, %v1427
          %v1439 = vpack.c.b16 %v1430, %v1429
          %v1440 = vpack.c.b16 %v1432, %v1431
          %1449 = vmatprep.subr.bf16.mxu0 0
          %1450 = vmatpush1.bf16.msra.mxu0 %v1433
          %1451 = vmatprep.subr.bf16.mxu0 0
          %1452 = vmatpush1.bf16.msra.mxu0 %v1434
          %1453 = vmatprep.subr.bf16.mxu0 0
          %1454 = vmatpush1.bf16.msra.mxu0 %v1435
          %1455 = vmatprep.subr.bf16.mxu0 0
          %1456 = vmatpush1.bf16.msra.mxu0 %v1436
          %1457 = vmatprep.subr.bf16.mxu0 0
          %1458 = vmatpush1.bf16.msra.mxu0 %v1437
          %1459 = vmatprep.subr.bf16.mxu0 0
          %1460 = vmatpush1.bf16.msra.mxu0 %v1438
          %1461 = vmatprep.subr.bf16.mxu0 0
          %1462 = vmatpush1.bf16.msra.mxu0 %v1439
          %1463 = vmatprep.subr.bf16.mxu0 0
          %1464 = vmatpush1.bf16.msra.mxu0 %v1440
          %1465 = vmatprep.subr.bf16.mxu0 0
          %1466 = vmatpush1.bf16.msra.mxu0 0
          %1467 = vmatprep.subr.bf16.mxu0 0
          %1468 = vmatpush1.bf16.msra.mxu0 0
          %1469 = vmatprep.subr.bf16.mxu0 0
          %1470 = vmatpush1.bf16.msra.mxu0 0
          %1471 = vmatprep.subr.bf16.mxu0 0
          %1472 = vmatpush1.bf16.msra.mxu0 0
          %1473 = vmatprep.subr.bf16.mxu0 0
          %1474 = vmatpush1.bf16.msra.mxu0 0
          %1475 = vmatprep.subr.bf16.mxu0 0
          %1476 = vmatpush1.bf16.msra.mxu0 0
          %1477 = vmatprep.subr.bf16.mxu0 0
          %1478 = vmatpush1.bf16.msra.mxu0 0
          %1479 = vmatprep.subr.bf16.mxu0 0
          %1480 = vmatpush1.bf16.msra.mxu0 0
          %1481 = vmatprep.mubr.bf16.mxu0 0
          %1482 = vmatmul.mubr.bf16.gmra.mrb[0].mxu0 %v1383
          %v1483 = vpop.f32.mrb[0].mxu0
          %v1484 = vadd.f32 %v1400, %v1483
          %v1485 = vpop.f32.mrb[0].mxu0
          %v1486 = vpop.f32.mrb[0].mxu0
          %v1487 = vpop.f32.mrb[0].mxu0
          %1488 = vdwg.mxu0
          %v1489 = vadd.f32 %v1484, 3.0
          %v1490 = vmul.f32 %v1489, 0.16666667
          %v1491 = vmax.f32 %v1490, 0.0
          %v1492 = vmin.f32 %v1491, 1.0
          %v1493 = vlaneseq
          %v1494 = vshrl.u32 %v1493, 7
          %v1495 = vsub.s32 0, %v1494
          %v1496 = vrot.slane %v1492, %v1495
          %v1497 = vmul.f32 %v1254, %v1496
          %v1498 = vmul.f32 %v1255, %v1496
          %v1499 = vmul.f32 %v1256, %v1496
          %v1500 = vmul.f32 %v1257, %v1496
          %v1501 = vmul.f32 %v1258, %v1496
          %v1502 = vmul.f32 %v1259, %v1496
          %v1503 = vmul.f32 %v1260, %v1496
          %v1504 = vmul.f32 %v1261, %v1496
          %v1505 = vpack.c.bf16 %v1497, %v1497
          %v1506 = vpack.c.bf16 %v1498, %v1498
          %v1507 = vpack.c.bf16 %v1499, %v1499
          %v1508 = vpack.c.bf16 %v1500, %v1500
          %v1509 = vpack.c.bf16 %v1501, %v1501
          %v1510 = vpack.c.bf16 %v1502, %v1502
          %v1511 = vpack.c.bf16 %v1503, %v1503
          %v1512 = vpack.c.bf16 %v1504, %v1504
          %1513 = vst [vmem:[%s647] sm:$0xf] %v1505
          %1514 = vst [vmem:[%s647 + $0x4] sm:$0xf] %v1506
          %1515 = vst [vmem:[%s647 + $0x8] sm:$0xf] %v1507
          %1516 = vst [vmem:[%s647 + $0xc] sm:$0xf] %v1508
          %1517 = vst [vmem:[%s647 + $0x10] sm:$0xf] %v1509
          %1518 = vst [vmem:[%s647 + $0x14] sm:$0xf] %v1510
          %1519 = vst [vmem:[%s647 + $0x18] sm:$0xf] %v1511
          %1520 = vst [vmem:[%s647 + $0x1c] sm:$0xf] %v1512
        $region109: #{mobilenet_v3_forward.8} parent=88 // pred_fallthru
          _
        %s1521 = smul.u32 %s24, %s23
        %p1522 = scmp.lt.s32.totalorder %s1521, 1
        %s1523 = scalar_select %p1522, %s1521, 1
        %s1524 = smul.addr %s1523, 8
        %s1525 = smul.addr %s1524, 4
        %s1526 = scalar_lea.vmem %s8, %s1525
        // Predicated region
        $region110: #{mobilenet_v3_forward.8} parent=88 // pred_check
          %p1527 = pneg %p224
        $region111: #{mobilenet_v3_forward.8} parent=88 // pred_check_branch
          %1529 = sbr.rel (%p1527) target = $region113
        $region112: #{mobilenet_v3_forward.8} parent=88 // pred_region
          %s1530 = smul.u32 %s24, %s23
        $region113: #{mobilenet_v3_forward.8} parent=88 // pred_fallthru
          _
      $region89: #{mobilenet_v3_forward.8} parent=5 // pred_fallthru
        _
      %p1531 = scmp.le.s32.totalorder 2, %s14
      // Predicated region
      $region114: #{mobilenet_v3_forward.8} parent=5 // pred_check
        %p1532 = pneg %p1531
      $region115: #{mobilenet_v3_forward.8} parent=5 // pred_check_branch
        %1534 = sbr.rel (%p1532) target = $region117
      $region116: #{mobilenet_v3_forward.8} parent=5 // pred_region
        %s1535 = ssub.s32 %s14, 2
        // Predicated region
        $region118: #{mobilenet_v3_forward.8} parent=116 // pred_check
          %p1536 = pneg %p230
        $region119: #{mobilenet_v3_forward.8} parent=116 // pred_check_branch
          %1538 = sbr.rel (%p1536) target = $region121
        $region120: #{mobilenet_v3_forward.8} parent=116 // pred_region
          %s1539 = smul.u32 %s26, %s25
          %p1540 = scmp.lt.s32.totalorder %s1539, 1
          %s1541 = scalar_select %p1540, %s1539, 1
          %s1542 = smul.addr %s1541, 8
          %s1543 = smul.addr %s1542, 4
          %s1544 = scalar_lea.vmem %s8, %s1543
        $region121: #{mobilenet_v3_forward.8} parent=116 // pred_fallthru
          _
      $region117: #{mobilenet_v3_forward.8} parent=5 // pred_fallthru
        _
    $region6: #{mobilenet_v3_forward.8} parent=1 // loop_footer
      %s18 = sadd.s32 1, %s14
    $region7: #{mobilenet_v3_forward.8} parent=1 // loop_footer_branch
      %13 = sbr.rel target = $region3
    $region8: #{mobilenet_v3_forward.8} parent=1 // loop_exit
      _

// kernel: mobilenet_v3_forward.9
$region0: #{mobilenet_v3_forward.9}
  #allocation0 [shape = 'u32[]', space=smem, size = 0x4, offset = 0x4, fixed_abs, tag = 'smem constant byte address 0x4 - core index']
  #allocation1 [shape = 'u32[144,128]{1,0:T(1,128)}', space=vmem, size = 0x12000, scoped, tag = 'internal scratch']
  #allocation2 [shape = 'f32[1,128]{1,0:T(1,128)}', space=vmem, size = 0x200, scoped, tag = 'scratch operand']
  #allocation3 [shape = 'f32[1,128]{1,0:T(1,128)}', space=vmem, size = 0x200, scoped, tag = 'scratch operand']
  #allocation4 [shape = 'f32[1,128]{1,0:T(1,128)}', space=vmem, size = 0x200, scoped, tag = 'scratch operand']
  #allocation5 [shape = 'f32[1,128]{1,0:T(1,128)}', space=vmem, size = 0x200, scoped, tag = 'scratch operand']
  %s0 = inlined_call_operand.vmem [shape: bf16[128,128], index: 0, kind: input, shape index: {}]
  %s1 = inlined_call_operand.vmem [shape: bf16[128,128], index: 1, kind: input, shape index: {}]
  %s2 = inlined_call_operand.vmem [shape: f32[1,128], index: 2, kind: input, shape index: {}]
  %s3 = inlined_call_operand.vmem [shape: f32[1,128], index: 3, kind: input, shape index: {}]
  %s4 = inlined_call_operand.vmem [shape: bf16[128,128], index: 4, kind: output, shape index: {}]
  %s5 = sld [smem:[#allocation0]]
  $region65: #{mobilenet_v3_forward.9} parent=0
    _
  %s7 = ssub.s32 1, %s5
  %s8 = scalar_select 0, %s7, %s5
  loop: start=0, step=1, limit=4
  $region2: #{mobilenet_v3_forward.9} parent=0 // loop_pre_header
    _
  $region3: #{mobilenet_v3_forward.9} parent=0 // loop_header
    %s10 = sphi 0, %s14
    %p11 = scmp.ge.s32.totalorder %s10, 4
    %s17 = sphi 0, %s29
    %s18 = sphi 0, %s25
    %s19 = sphi 0, %s17
    %s20 = sphi 0, %s18
    %s21 = sphi 0, %s19
    %s22 = sphi 0, %s20
    %s32 = sphi 0, %s34
    %s35 = sphi 0, %s32
    %s36 = sphi 0, %s35
    %s52 = sphi 0, %s36
    %s56 = sphi 0, %s56
    %s58 = sphi 0, %s56
    %s59 = sphi 0, %s58
    %s73 = sphi 0, %s59
    %s77 = sphi 0, %s77
    %s79 = sphi 0, %s77
    %s80 = sphi 0, %s79
    %s94 = sphi 0, %s80
    %s98 = sphi 0, %s98
    %s100 = sphi 0, %s98
    %s101 = sphi 0, %s100
    %s115 = sphi 0, %s101
    %s123 = sphi 0, %s125
    %s126 = sphi 0, %s123
    %s127 = sphi 0, %s126
    %s143 = sphi 0, %s127
  $region4: #{mobilenet_v3_forward.9} parent=0 // loop_header_branch
    %13 = sbr.rel (%p11) target = $region8
  $region5: #{mobilenet_v3_forward.9} parent=0 // loop_body
    %s15 = ssub.s32 %s10, 1
    %s16 = ssub.s32 %s10, 2
    %s23 = sadd.s32 1, %s18
    %p24 = scmp.ge.s32.totalorder %s23, 1
    %s25 = scalar_select %p24, 0, %s23
    %s26 = sadd.s32 1, %s17
    %s27 = scalar_select %p24, %s26, %s17
    %p28 = scmp.ge.s32.totalorder %s27, 2
    %s29 = scalar_select %p28, 0, %s27
    %s30 = ssub.s32 %s18, %s25
    %p31 = scmp.eq.s32.totalorder %s30, 0
    %s33 = sadd.s32 %s32, 1
    %s34 = scalar_select %p31, %s32, %s33
    %p37 = pneg %p31
    %p38 = scmp.eq.s32.totalorder %s10, 1
    %p39 = por %p37, %p38
    %p40 = scmp.ne.s32.totalorder %s32, %s35
    %p41 = scmp.eq.s32.totalorder %s10, 0
    %p42 = por %p40, %p41
    %p43 = scmp.ne.s32.totalorder %s32, %s35
    %p44 = scmp.eq.s32.totalorder %s15, 1
    %p45 = por %p43, %p44
    %p46 = scmp.ne.s32.totalorder %s35, %s36
    %p47 = scmp.eq.s32.totalorder %s15, 0
    %p48 = por %p46, %p47
    %p49 = scmp.ne.s32.totalorder %s35, %s36
    %p50 = scmp.eq.s32.totalorder %s16, 1
    %p51 = por %p49, %p50
    %p53 = scmp.ne.s32.totalorder %s36, %s52
    %p54 = scmp.eq.s32.totalorder %s16, 0
    %p55 = por %p53, %p54
    %s57 = sadd.s32 %s56, 1
    %p60 = scmp.eq.s32.totalorder %s10, 1
    %p61 = scmp.ne.s32.totalorder %s56, %s58
    %p62 = scmp.eq.s32.totalorder %s10, 0
    %p63 = por %p61, %p62
    %p64 = scmp.ne.s32.totalorder %s56, %s58
    %p65 = scmp.eq.s32.totalorder %s15, 1
    %p66 = por %p64, %p65
    %p67 = scmp.ne.s32.totalorder %s58, %s59
    %p68 = scmp.eq.s32.totalorder %s15, 0
    %p69 = por %p67, %p68
    %p70 = scmp.ne.s32.totalorder %s58, %s59
    %p71 = scmp.eq.s32.totalorder %s16, 1
    %p72 = por %p70, %p71
    %p74 = scmp.ne.s32.totalorder %s59, %s73
    %p75 = scmp.eq.s32.totalorder %s16, 0
    %p76 = por %p74, %p75
    %s78 = sadd.s32 %s77, 1
    %p81 = scmp.eq.s32.totalorder %s10, 1
    %p82 = scmp.ne.s32.totalorder %s77, %s79
    %p83 = scmp.eq.s32.totalorder %s10, 0
    %p84 = por %p82, %p83
    %p85 = scmp.ne.s32.totalorder %s77, %s79
    %p86 = scmp.eq.s32.totalorder %s15, 1
    %p87 = por %p85, %p86
    %p88 = scmp.ne.s32.totalorder %s79, %s80
    %p89 = scmp.eq.s32.totalorder %s15, 0
    %p90 = por %p88, %p89
    %p91 = scmp.ne.s32.totalorder %s79, %s80
    %p92 = scmp.eq.s32.totalorder %s16, 1
    %p93 = por %p91, %p92
    %p95 = scmp.ne.s32.totalorder %s80, %s94
    %p96 = scmp.eq.s32.totalorder %s16, 0
    %p97 = por %p95, %p96
    %s99 = sadd.s32 %s98, 1
    %p102 = scmp.eq.s32.totalorder %s10, 1
    %p103 = scmp.ne.s32.totalorder %s98, %s100
    %p104 = scmp.eq.s32.totalorder %s10, 0
    %p105 = por %p103, %p104
    %p106 = scmp.ne.s32.totalorder %s98, %s100
    %p107 = scmp.eq.s32.totalorder %s15, 1
    %p108 = por %p106, %p107
    %p109 = scmp.ne.s32.totalorder %s100, %s101
    %p110 = scmp.eq.s32.totalorder %s15, 0
    %p111 = por %p109, %p110
    %p112 = scmp.ne.s32.totalorder %s100, %s101
    %p113 = scmp.eq.s32.totalorder %s16, 1
    %p114 = por %p112, %p113
    %p116 = scmp.ne.s32.totalorder %s101, %s115
    %p117 = scmp.eq.s32.totalorder %s16, 0
    %p118 = por %p116, %p117
    %s119 = smul.u32 %s18, %s17
    %s120 = smul.u32 %s25, %s29
    %s121 = ssub.s32 %s119, %s120
    %p122 = scmp.eq.s32.totalorder %s121, 0
    %s124 = sadd.s32 %s123, 1
    %s125 = scalar_select %p122, %s123, %s124
    %p128 = pneg %p122
    %p129 = scmp.eq.s32.totalorder %s10, 1
    %p130 = por %p128, %p129
    %p131 = scmp.ne.s32.totalorder %s123, %s126
    %p132 = scmp.eq.s32.totalorder %s10, 0
    %p133 = por %p131, %p132
    %p134 = scmp.ne.s32.totalorder %s123, %s126
    %p135 = scmp.eq.s32.totalorder %s15, 1
    %p136 = por %p134, %p135
    %p137 = scmp.ne.s32.totalorder %s126, %s127
    %p138 = scmp.eq.s32.totalorder %s15, 0
    %p139 = por %p137, %p138
    %p140 = scmp.ne.s32.totalorder %s126, %s127
    %p141 = scmp.eq.s32.totalorder %s16, 1
    %p142 = por %p140, %p141
    %p144 = scmp.ne.s32.totalorder %s127, %s143
    %p145 = scmp.eq.s32.totalorder %s16, 0
    %p146 = por %p144, %p145
    %p147 = scmp.le.s32.totalorder 1, %s10
    %p148 = scmp.lt.s32.totalorder %s10, 3
    %p149 = pnand %p147, %p148
    %p150 = pneg %p149
    // Predicated region
    $region9: #{mobilenet_v3_forward.9} parent=5 // pred_check
      _
    $region10: #{mobilenet_v3_forward.9} parent=5 // pred_check_branch
      %152 = sbr.rel (%p149) target = $region12
    $region11: #{mobilenet_v3_forward.9} parent=5 // pred_region
      %s153 = ssub.s32 %s10, 1
      // Predicated region
      $region13: #{mobilenet_v3_forward.9} parent=11 // pred_check
        %p154 = pneg %p48
      $region14: #{mobilenet_v3_forward.9} parent=11 // pred_check_branch
        %156 = sbr.rel (%p154) target = $region16
      $region15: #{mobilenet_v3_forward.9} parent=11 // pred_region
        %s157 = smul.u32 16, %s20
        %p158 = scmp.lt.s32.totalorder %s157, 15
        %s159 = scalar_select %p158, %s157, 15
        %s160 = smul.addr %s159, 4
        %s161 = scalar_lea.vmem %s0, %s160
        %s162 = smul.u32 16, %s20
      $region16: #{mobilenet_v3_forward.9} parent=11 // pred_fallthru
        _
      // Predicated region
      $region17: #{mobilenet_v3_forward.9} parent=11 // pred_check
        %p163 = pneg %p69
      $region18: #{mobilenet_v3_forward.9} parent=11 // pred_check_branch
        %165 = sbr.rel (%p163) target = $region20
      $region19: #{mobilenet_v3_forward.9} parent=11 // pred_region
        _
      $region20: #{mobilenet_v3_forward.9} parent=11 // pred_fallthru
        _
      // Predicated region
      $region21: #{mobilenet_v3_forward.9} parent=11 // pred_check
        %p166 = pneg %p90
      $region22: #{mobilenet_v3_forward.9} parent=11 // pred_check_branch
        %168 = sbr.rel (%p166) target = $region24
      $region23: #{mobilenet_v3_forward.9} parent=11 // pred_region
        _
      $region24: #{mobilenet_v3_forward.9} parent=11 // pred_fallthru
        _
      // Predicated region
      $region25: #{mobilenet_v3_forward.9} parent=11 // pred_check
        %p169 = pneg %p111
      $region26: #{mobilenet_v3_forward.9} parent=11 // pred_check_branch
        %171 = sbr.rel (%p169) target = $region28
      $region27: #{mobilenet_v3_forward.9} parent=11 // pred_region
        _
      $region28: #{mobilenet_v3_forward.9} parent=11 // pred_fallthru
        _
    $region12: #{mobilenet_v3_forward.9} parent=5 // pred_fallthru
      _
    %p172 = scmp.lt.s32.totalorder %s10, 2
    // Predicated region
    $region29: #{mobilenet_v3_forward.9} parent=5 // pred_check
      %p173 = pneg %p172
    $region30: #{mobilenet_v3_forward.9} parent=5 // pred_check_branch
      %175 = sbr.rel (%p173) target = $region32
    $region31: #{mobilenet_v3_forward.9} parent=5 // pred_region
      _
    $region32: #{mobilenet_v3_forward.9} parent=5 // pred_fallthru
      _
    %p176 = scmp.le.s32.totalorder 1, %s10
    %p177 = scmp.lt.s32.totalorder %s10, 3
    %p178 = pnand %p176, %p177
    %p179 = pneg %p178
    // Predicated region
    $region33: #{mobilenet_v3_forward.9} parent=5 // pred_check
      _
    $region34: #{mobilenet_v3_forward.9} parent=5 // pred_check_branch
      %181 = sbr.rel (%p178) target = $region36
    $region35: #{mobilenet_v3_forward.9} parent=5 // pred_region
      %s182 = ssub.s32 %s10, 1
      %s183 = smul.u32 16, %s20
      %p184 = scmp.lt.s32.totalorder %s183, 15
      %s185 = scalar_select %p184, %s183, 15
      %s186 = smul.addr %s185, 4
      %s187 = scalar_lea.vmem %s0, %s186
      %p188 = pneg %p48
      %p189 = pneg %p45
      %p190 = pneg %p69
      %p191 = pneg %p66
      %p192 = pneg %p90
      %p193 = pneg %p87
      %p194 = pneg %p111
      %p195 = pneg %p108
      %p196 = pneg %p139
      %p197 = pneg %p136
      %s198 = smul.u32 %s20, %s19
      %s199 = smul.u32 16, %s198
      %p200 = scmp.lt.s32.totalorder %s199, 15
      %s201 = scalar_select %p200, %s199, 15
      %s202 = smul.addr %s201, 4
      %s203 = scalar_lea.vmem %s4, %s202
      %s204 = smul.u32 16, %s20
      %p205 = scmp.lt.s32.totalorder %s204, 15
      %s206 = scalar_select %p205, %s204, 15
      %s207 = smul.addr %s206, 4
      %s208 = scalar_lea.vmem %s0, %s207
      %s209 = smul.u32 16, %s20
      %s210 = smul.u32 %s20, %s19
      %s211 = smul.u32 16, %s210
      %p212 = scmp.lt.s32.totalorder %s211, 15
      %s213 = scalar_select %p212, %s211, 15
      %s214 = smul.addr %s213, 4
      %s215 = scalar_lea.vmem %s4, %s214
      %s216 = smul.u32 %s20, %s19
      %s217 = smul.u32 16, %s216
      %v219 = vld [vmem:[%s208] sm:$0xf]
      %v220 = vld [vmem:[%s208 + $0x4] sm:$0xf]
      %v221 = vld [vmem:[%s208 + $0x8] sm:$0xf]
      %v222 = vld [vmem:[%s208 + $0xc] sm:$0xf]
      %v223 = vld [vmem:[%s208 + $0x10] sm:$0xf]
      %v224 = vld [vmem:[%s208 + $0x14] sm:$0xf]
      %v225 = vld [vmem:[%s208 + $0x18] sm:$0xf]
      %v226 = vld [vmem:[%s208 + $0x1c] sm:$0xf]
      %v227 = vld [vmem:[%s208 + $0x20] sm:$0xf]
      %v228 = vld [vmem:[%s208 + $0x24] sm:$0xf]
      %v229 = vld [vmem:[%s208 + $0x28] sm:$0xf]
      %v230 = vld [vmem:[%s208 + $0x2c] sm:$0xf]
      %v231 = vld [vmem:[%s208 + $0x30] sm:$0xf]
      %v232 = vld [vmem:[%s208 + $0x34] sm:$0xf]
      %v233 = vld [vmem:[%s208 + $0x38] sm:$0xf]
      %v234 = vld [vmem:[%s208 + $0x3c] sm:$0xf]
      %v235 = vld [vmem:[%s1] sm:$0xf]
      %v236 = vld [vmem:[%s1 + $0x4] sm:$0xf]
      %v237 = vld [vmem:[%s1 + $0x8] sm:$0xf]
      %v238 = vld [vmem:[%s1 + $0xc] sm:$0xf]
      %v239 = vld [vmem:[%s1 + $0x10] sm:$0xf]
      %v240 = vld [vmem:[%s1 + $0x14] sm:$0xf]
      %v241 = vld [vmem:[%s1 + $0x18] sm:$0xf]
      %v242 = vld [vmem:[%s1 + $0x1c] sm:$0xf]
      %v243 = vld [vmem:[%s1 + $0x20] sm:$0xf]
      %v244 = vld [vmem:[%s1 + $0x24] sm:$0xf]
      %v245 = vld [vmem:[%s1 + $0x28] sm:$0xf]
      %v246 = vld [vmem:[%s1 + $0x2c] sm:$0xf]
      %v247 = vld [vmem:[%s1 + $0x30] sm:$0xf]
      %v248 = vld [vmem:[%s1 + $0x34] sm:$0xf]
      %v249 = vld [vmem:[%s1 + $0x38] sm:$0xf]
      %v250 = vld [vmem:[%s1 + $0x3c] sm:$0xf]
      %v267 = vunpack.c.l.b16 %v219
      %v268 = vunpack.c.l.b16 %v220
      %v269 = vunpack.c.l.b16 %v221
      %v270 = vunpack.c.l.b16 %v222
      %v271 = vunpack.c.l.b16 %v223
      %v272 = vunpack.c.l.b16 %v224
      %v273 = vunpack.c.l.b16 %v225
      %v274 = vunpack.c.l.b16 %v226
      %v275 = vunpack.c.l.b16 %v227
      %v276 = vunpack.c.l.b16 %v228
      %v277 = vunpack.c.l.b16 %v229
      %v278 = vunpack.c.l.b16 %v230
      %v279 = vunpack.c.l.b16 %v231
      %v280 = vunpack.c.l.b16 %v232
      %v281 = vunpack.c.l.b16 %v233
      %v282 = vunpack.c.l.b16 %v234
      %v283 = vpack.c.b16 %v268, %v267
      %v284 = vpack.c.b16 %v270, %v269
      %v285 = vpack.c.b16 %v272, %v271
      %v286 = vpack.c.b16 %v274, %v273
      %v287 = vpack.c.b16 %v276, %v275
      %v288 = vpack.c.b16 %v278, %v277
      %v289 = vpack.c.b16 %v280, %v279
      %v290 = vpack.c.b16 %v282, %v281
      %v315 = vunpack.c.l.b16 %v235
      %v316 = vunpack.c.l.b16 %v236
      %v317 = vunpack.c.l.b16 %v237
      %v318 = vunpack.c.l.b16 %v238
      %v319 = vunpack.c.l.b16 %v239
      %v320 = vunpack.c.l.b16 %v240
      %v321 = vunpack.c.l.b16 %v241
      %v322 = vunpack.c.l.b16 %v242
      %v323 = vunpack.c.l.b16 %v243
      %v324 = vunpack.c.l.b16 %v244
      %v325 = vunpack.c.l.b16 %v245
      %v326 = vunpack.c.l.b16 %v246
      %v327 = vunpack.c.l.b16 %v247
      %v328 = vunpack.c.l.b16 %v248
      %v329 = vunpack.c.l.b16 %v249
      %v330 = vunpack.c.l.b16 %v250
      %v331 = vpack.c.b16 %v316, %v315
      %v332 = vpack.c.b16 %v318, %v317
      %v333 = vpack.c.b16 %v320, %v319
      %v334 = vpack.c.b16 %v322, %v321
      %v335 = vpack.c.b16 %v324, %v323
      %v336 = vpack.c.b16 %v326, %v325
      %v337 = vpack.c.b16 %v328, %v327
      %v338 = vpack.c.b16 %v330, %v329
      %347 = vmatprep.subr.bf16.mxu0 0
      %348 = vmatpush1.bf16.msra.mxu0 %v331
      %349 = vmatprep.subr.bf16.mxu0 0
      %350 = vmatpush1.bf16.msra.mxu0 %v332
      %351 = vmatprep.subr.bf16.mxu0 0
      %352 = vmatpush1.bf16.msra.mxu0 %v333
      %353 = vmatprep.subr.bf16.mxu0 0
      %354 = vmatpush1.bf16.msra.mxu0 %v334
      %355 = vmatprep.subr.bf16.mxu0 0
      %356 = vmatpush1.bf16.msra.mxu0 %v335
      %357 = vmatprep.subr.bf16.mxu0 0
      %358 = vmatpush1.bf16.msra.mxu0 %v336
      %359 = vmatprep.subr.bf16.mxu0 0
      %360 = vmatpush1.bf16.msra.mxu0 %v337
      %361 = vmatprep.subr.bf16.mxu0 0
      %362 = vmatpush1.bf16.msra.mxu0 %v338
      %363 = vmatprep.subr.bf16.mxu0 0
      %364 = vmatpush1.bf16.msra.mxu0 0
      %365 = vmatprep.subr.bf16.mxu0 0
      %366 = vmatpush1.bf16.msra.mxu0 0
      %367 = vmatprep.subr.bf16.mxu0 0
      %368 = vmatpush1.bf16.msra.mxu0 0
      %369 = vmatprep.subr.bf16.mxu0 0
      %370 = vmatpush1.bf16.msra.mxu0 0
      %371 = vmatprep.subr.bf16.mxu0 0
      %372 = vmatpush1.bf16.msra.mxu0 0
      %373 = vmatprep.subr.bf16.mxu0 0
      %374 = vmatpush1.bf16.msra.mxu0 0
      %375 = vmatprep.subr.bf16.mxu0 0
      %376 = vmatpush1.bf16.msra.mxu0 0
      %377 = vmatprep.subr.bf16.mxu0 0
      %378 = vmatpush1.bf16.msra.mxu0 0
      %379 = vmatprep.mubr.bf16.mxu0 0
      %380 = vmatmul.mubr.bf16.gmra.mrb[0].mxu0 %v283
      %v381 = vpop.f32.mrb[0].mxu0
      %v382 = vadd.f32 0.0, %v381
      %v383 = vpop.f32.mrb[0].mxu0
      %v384 = vpop.f32.mrb[0].mxu0
      %v385 = vadd.f32 0.0, %v384
      %v386 = vpop.f32.mrb[0].mxu0
      %387 = vmatprep.mubr.bf16.mxu0 0
      %388 = vmatmul.mubr.bf16.gmra.mrb[0].mxu0 %v284
      %v389 = vpop.f32.mrb[0].mxu0
      %v390 = vadd.f32 0.0, %v389
      %v391 = vpop.f32.mrb[0].mxu0
      %v392 = vpop.f32.mrb[0].mxu0
      %v393 = vadd.f32 0.0, %v392
      %v394 = vpop.f32.mrb[0].mxu0
      %395 = vmatprep.mubr.bf16.mxu0 0
      %396 = vmatmul.mubr.bf16.gmra.mrb[0].mxu0 %v285
      %v397 = vpop.f32.mrb[0].mxu0
      %v398 = vadd.f32 0.0, %v397
      %v399 = vpop.f32.mrb[0].mxu0
      %v400 = vpop.f32.mrb[0].mxu0
      %v401 = vadd.f32 0.0, %v400
      %v402 = vpop.f32.mrb[0].mxu0
      %403 = vmatprep.mubr.bf16.mxu0 0
      %404 = vmatmul.mubr.bf16.gmra.mrb[0].mxu0 %v286
      %v405 = vpop.f32.mrb[0].mxu0
      %v406 = vadd.f32 0.0, %v405
      %v407 = vpop.f32.mrb[0].mxu0
      %v408 = vpop.f32.mrb[0].mxu0
      %v409 = vadd.f32 0.0, %v408
      %v410 = vpop.f32.mrb[0].mxu0
      %411 = vmatprep.mubr.bf16.mxu0 0
      %412 = vmatmul.mubr.bf16.gmra.mrb[0].mxu0 %v287
      %v413 = vpop.f32.mrb[0].mxu0
      %v414 = vadd.f32 0.0, %v413
      %v415 = vpop.f32.mrb[0].mxu0
      %v416 = vpop.f32.mrb[0].mxu0
      %v417 = vadd.f32 0.0, %v416
      %v418 = vpop.f32.mrb[0].mxu0
      %419 = vmatprep.mubr.bf16.mxu0 0
      %420 = vmatmul.mubr.bf16.gmra.mrb[0].mxu0 %v288
      %v421 = vpop.f32.mrb[0].mxu0
      %v422 = vadd.f32 0.0, %v421
      %v423 = vpop.f32.mrb[0].mxu0
      %v424 = vpop.f32.mrb[0].mxu0
      %v425 = vadd.f32 0.0, %v424
      %v426 = vpop.f32.mrb[0].mxu0
      %427 = vmatprep.mubr.bf16.mxu0 0
      %428 = vmatmul.mubr.bf16.gmra.mrb[0].mxu0 %v289
      %v429 = vpop.f32.mrb[0].mxu0
      %v430 = vadd.f32 0.0, %v429
      %v431 = vpop.f32.mrb[0].mxu0
      %v432 = vpop.f32.mrb[0].mxu0
      %v433 = vadd.f32 0.0, %v432
      %v434 = vpop.f32.mrb[0].mxu0
      %435 = vmatprep.mubr.bf16.mxu0 0
      %436 = vmatmul.mubr.bf16.gmra.mrb[0].mxu0 %v290
      %v437 = vpop.f32.mrb[0].mxu0
      %v438 = vadd.f32 0.0, %v437
      %v439 = vpop.f32.mrb[0].mxu0
      %v440 = vpop.f32.mrb[0].mxu0
      %v441 = vadd.f32 0.0, %v440
      %v442 = vpop.f32.mrb[0].mxu0
      %443 = vdwg.mxu0
      %p444 = scmp.eq.s32.totalorder %s19, 0
      // Predicated region
      $region37: #{mobilenet_v3_forward.9} parent=35 // pred_check
        %p445 = pneg %p444
      $region38: #{mobilenet_v3_forward.9} parent=35 // pred_check_branch
        %447 = sbr.rel (%p445) target = $region40
      $region39: #{mobilenet_v3_forward.9} parent=35 // pred_region
        %p448 = scmp.eq.s32.totalorder %s20, 0
        // Predicated region
        $region41: #{mobilenet_v3_forward.9} parent=39 // pred_check
          %p449 = pneg %p448
        $region42: #{mobilenet_v3_forward.9} parent=39 // pred_check_branch
          %451 = sbr.rel (%p449) target = $region44
        $region43: #{mobilenet_v3_forward.9} parent=39 // pred_region
          %452 = vst [vmem:[#allocation2] sm:$0x1] 0.0
          %453 = vst [vmem:[#allocation3] sm:$0x1] 0.0
        $region44: #{mobilenet_v3_forward.9} parent=39 // pred_fallthru
          _
        %s454 = smul.u32 %s20, 128
        %v455 = vlaneseq
        %v456 = vshrl.u32 %v455, 7
        %v457 = vadd.s32 %v456, 8
        %v458 = vadd.s32 %v456, 16
        %v459 = vadd.s32 %v456, 24
        %v460 = vadd.s32 %v456, 32
        %v461 = vadd.s32 %v456, 40
        %v462 = vadd.s32 %v456, 48
        %v463 = vadd.s32 %v456, 56
        %v464 = vadd.s32 %v456, 64
        %v465 = vadd.s32 %v456, 72
        %v466 = vadd.s32 %v456, 80
        %v467 = vadd.s32 %v456, 88
        %v468 = vadd.s32 %v456, 96
        %v469 = vadd.s32 %v456, 104
        %v470 = vadd.s32 %v456, 112
        %v471 = vadd.s32 %v456, 120
        %v472 = vstv %s454
        %v473 = vadd.s32 %v472, %v456
        %v474 = vadd.s32 %v472, %v457
        %v475 = vadd.s32 %v472, %v458
        %v476 = vadd.s32 %v472, %v459
        %v477 = vadd.s32 %v472, %v460
        %v478 = vadd.s32 %v472, %v461
        %v479 = vadd.s32 %v472, %v462
        %v480 = vadd.s32 %v472, %v463
        %v481 = vadd.s32 %v472, %v464
        %v482 = vadd.s32 %v472, %v465
        %v483 = vadd.s32 %v472, %v466
        %v484 = vadd.s32 %v472, %v467
        %v485 = vadd.s32 %v472, %v468
        %v486 = vadd.s32 %v472, %v469
        %v487 = vadd.s32 %v472, %v470
        %v488 = vadd.s32 %v472, %v471
        %vm489 = vcmp.lt.s32.totalorder %v473, 128
        %vm490 = vcmp.lt.s32.totalorder %v474, 128
        %vm491 = vcmp.lt.s32.totalorder %v475, 128
        %vm492 = vcmp.lt.s32.totalorder %v476, 128
        %vm493 = vcmp.lt.s32.totalorder %v477, 128
        %vm494 = vcmp.lt.s32.totalorder %v478, 128
        %vm495 = vcmp.lt.s32.totalorder %v479, 128
        %vm496 = vcmp.lt.s32.totalorder %v480, 128
        %vm497 = vcmp.lt.s32.totalorder %v481, 128
        %vm498 = vcmp.lt.s32.totalorder %v482, 128
        %vm499 = vcmp.lt.s32.totalorder %v483, 128
        %vm500 = vcmp.lt.s32.totalorder %v484, 128
        %vm501 = vcmp.lt.s32.totalorder %v485, 128
        %vm502 = vcmp.lt.s32.totalorder %v486, 128
        %vm503 = vcmp.lt.s32.totalorder %v487, 128
        %vm504 = vcmp.lt.s32.totalorder %v488, 128
        %v505 = vsel %vm489, 1, 0
        %v506 = vsel %vm490, 1, 0
        %v507 = vsel %vm491, 1, 0
        %v508 = vsel %vm492, 1, 0
        %v509 = vsel %vm493, 1, 0
        %v510 = vsel %vm494, 1, 0
        %v511 = vsel %vm495, 1, 0
        %v512 = vsel %vm496, 1, 0
        %v513 = vsel %vm497, 1, 0
        %v514 = vsel %vm498, 1, 0
        %v515 = vsel %vm499, 1, 0
        %v516 = vsel %vm500, 1, 0
        %v517 = vsel %vm501, 1, 0
        %v518 = vsel %vm502, 1, 0
        %v519 = vsel %vm503, 1, 0
        %v520 = vsel %vm504, 1, 0
        %vm521 = vcmp.eq.s32.totalorder %v505, 1
        %vm522 = vcmp.eq.s32.totalorder %v506, 1
        %vm523 = vcmp.eq.s32.totalorder %v507, 1
        %vm524 = vcmp.eq.s32.totalorder %v508, 1
        %vm525 = vcmp.eq.s32.totalorder %v509, 1
        %vm526 = vcmp.eq.s32.totalorder %v510, 1
        %vm527 = vcmp.eq.s32.totalorder %v511, 1
        %vm528 = vcmp.eq.s32.totalorder %v512, 1
        %vm529 = vcmp.eq.s32.totalorder %v513, 1
        %vm530 = vcmp.eq.s32.totalorder %v514, 1
        %vm531 = vcmp.eq.s32.totalorder %v515, 1
        %vm532 = vcmp.eq.s32.totalorder %v516, 1
        %vm533 = vcmp.eq.s32.totalorder %v517, 1
        %vm534 = vcmp.eq.s32.totalorder %v518, 1
        %vm535 = vcmp.eq.s32.totalorder %v519, 1
        %vm536 = vcmp.eq.s32.totalorder %v520, 1
        %v537 = vsel %vm521, %v382, 0.0
        %v538 = vsel %vm522, %v385, 0.0
        %v539 = vsel %vm523, %v390, 0.0
        %v540 = vsel %vm524, %v393, 0.0
        %v541 = vsel %vm525, %v398, 0.0
        %v542 = vsel %vm526, %v401, 0.0
        %v543 = vsel %vm527, %v406, 0.0
        %v544 = vsel %vm528, %v409, 0.0
        %v545 = vsel %vm529, %v414, 0.0
        %v546 = vsel %vm530, %v417, 0.0
        %v547 = vsel %vm531, %v422, 0.0
        %v548 = vsel %vm532, %v425, 0.0
        %v549 = vsel %vm533, %v430, 0.0
        %v550 = vsel %vm534, %v433, 0.0
        %v551 = vsel %vm535, %v438, 0.0
        %v552 = vsel %vm536, %v441, 0.0
        %v553 = vld [vmem:[#allocation2] sm:$0x1]
        %v554 = vadd.f32 %v537, %v538
        %v555 = vadd.f32 %v554, %v539
        %v556 = vadd.f32 %v555, %v540
        %v557 = vadd.f32 %v556, %v541
        %v558 = vadd.f32 %v557, %v542
        %v559 = vadd.f32 %v558, %v543
        %v560 = vadd.f32 %v559, %v544
        %v561 = vadd.f32 %v560, %v545
        %v562 = vadd.f32 %v561, %v546
        %v563 = vadd.f32 %v562, %v547
        %v564 = vadd.f32 %v563, %v548
        %v565 = vadd.f32 %v564, %v549
        %v566 = vadd.f32 %v565, %v550
        %v567 = vadd.f32 %v566, %v551
        %v568 = vadd.f32 %v567, %v552
        %v569 = vrot.slane %v568, 4
        %v570 = vadd.f32 %v568, %v569
        %v571 = vrot.slane %v570, 2
        %v572 = vadd.f32 %v570, %v571
        %v573 = vrot.slane %v572, 1
        %v574 = vadd.f32 %v572, %v573
        %v575 = vadd.f32 %v553, %v574
        %576 = vst [vmem:[#allocation2] sm:$0x1] %v575
        %v577 = vld [vmem:[#allocation3] sm:$0x1]
        %v578 = vmul.f32 %v537, %v537
        %v579 = vmul.f32 %v538, %v538
        %v580 = vmul.f32 %v539, %v539
        %v581 = vmul.f32 %v540, %v540
        %v582 = vmul.f32 %v541, %v541
        %v583 = vmul.f32 %v542, %v542
        %v584 = vmul.f32 %v543, %v543
        %v585 = vmul.f32 %v544, %v544
        %v586 = vmul.f32 %v545, %v545
        %v587 = vmul.f32 %v546, %v546
        %v588 = vmul.f32 %v547, %v547
        %v589 = vmul.f32 %v548, %v548
        %v590 = vmul.f32 %v549, %v549
        %v591 = vmul.f32 %v550, %v550
        %v592 = vmul.f32 %v551, %v551
        %v593 = vmul.f32 %v552, %v552
        %v594 = vadd.f32 %v578, %v579
        %v595 = vadd.f32 %v594, %v580
        %v596 = vadd.f32 %v595, %v581
        %v597 = vadd.f32 %v596, %v582
        %v598 = vadd.f32 %v597, %v583
        %v599 = vadd.f32 %v598, %v584
        %v600 = vadd.f32 %v599, %v585
        %v601 = vadd.f32 %v600, %v586
        %v602 = vadd.f32 %v601, %v587
        %v603 = vadd.f32 %v602, %v588
        %v604 = vadd.f32 %v603, %v589
        %v605 = vadd.f32 %v604, %v590
        %v606 = vadd.f32 %v605, %v591
        %v607 = vadd.f32 %v606, %v592
        %v608 = vadd.f32 %v607, %v593
        %v609 = vrot.slane %v608, 4
        %v610 = vadd.f32 %v608, %v609
        %v611 = vrot.slane %v610, 2
        %v612 = vadd.f32 %v610, %v611
        %v613 = vrot.slane %v612, 1
        %v614 = vadd.f32 %v612, %v613
        %v615 = vadd.f32 %v577, %v614
        %616 = vst [vmem:[#allocation3] sm:$0x1] %v615
        // Predicated region
        $region45: #{mobilenet_v3_forward.9} parent=39 // pred_check
          %p617 = pneg %p448
        $region46: #{mobilenet_v3_forward.9} parent=39 // pred_check_branch
          %619 = sbr.rel (%p617) target = $region48
        $region47: #{mobilenet_v3_forward.9} parent=39 // pred_region
          %v620 = vld [vmem:[#allocation2] sm:$0x1]
          %v621 = vmul.f32 %v620, 0.0078125
          %v622 = vld [vmem:[#allocation3] sm:$0x1]
          %v623 = vmul.f32 %v622, 0.0078125
          %v624 = vmul.f32 %v621, %v621
          %v625 = vsub.f32 %v623, %v624
          %v626 = vmax.f32 %v625, 0.0
          %v627 = vld [vmem:[%s2] sm:$0x1]
          %v628 = vadd.f32 %v626, 0.001
          %v629 = vrsqrt.pop %v628
          %v630 = vmul.f32 %v627, %v629
          %631 = vst [vmem:[#allocation4] sm:$0x1] %v630
          %v632 = vld [vmem:[%s3] sm:$0x1]
          %v633 = vmul.f32 %v621, %v630
          %v634 = vsub.f32 %v632, %v633
          %635 = vst [vmem:[#allocation5] sm:$0x1] %v634
        $region48: #{mobilenet_v3_forward.9} parent=39 // pred_fallthru
          _
      $region40: #{mobilenet_v3_forward.9} parent=35 // pred_fallthru
        _
      %p636 = scmp.eq.s32.totalorder %s19, 1
      // Predicated region
      $region49: #{mobilenet_v3_forward.9} parent=35 // pred_check
        %p637 = pneg %p636
      $region50: #{mobilenet_v3_forward.9} parent=35 // pred_check_branch
        %639 = sbr.rel (%p637) target = $region52
      $region51: #{mobilenet_v3_forward.9} parent=35 // pred_region
        %v640 = vld [vmem:[#allocation4] sm:$0x1]
        %v642 = vlaneseq
        %v643 = vshrl.u32 %v642, 7
        %v644 = vsub.s32 0, %v643
        %v645 = vrot.slane %v640, %v644
        %v647 = vmul.f32 %v382, %v645
        %v648 = vmul.f32 %v385, %v645
        %v649 = vmul.f32 %v390, %v645
        %v650 = vmul.f32 %v393, %v645
        %v651 = vmul.f32 %v398, %v645
        %v652 = vmul.f32 %v401, %v645
        %v653 = vmul.f32 %v406, %v645
        %v654 = vmul.f32 %v409, %v645
        %v655 = vmul.f32 %v414, %v645
        %v656 = vmul.f32 %v417, %v645
        %v657 = vmul.f32 %v422, %v645
        %v658 = vmul.f32 %v425, %v645
        %v659 = vmul.f32 %v430, %v645
        %v660 = vmul.f32 %v433, %v645
        %v661 = vmul.f32 %v438, %v645
        %v662 = vmul.f32 %v441, %v645
        %v663 = vld [vmem:[#allocation5] sm:$0x1]
        %v665 = vlaneseq
        %v666 = vshrl.u32 %v665, 7
        %v667 = vsub.s32 0, %v666
        %v668 = vrot.slane %v663, %v667
        %v670 = vadd.f32 %v647, %v668
        %v671 = vadd.f32 %v648, %v668
        %v672 = vadd.f32 %v649, %v668
        %v673 = vadd.f32 %v650, %v668
        %v674 = vadd.f32 %v651, %v668
        %v675 = vadd.f32 %v652, %v668
        %v676 = vadd.f32 %v653, %v668
        %v677 = vadd.f32 %v654, %v668
        %v678 = vadd.f32 %v655, %v668
        %v679 = vadd.f32 %v656, %v668
        %v680 = vadd.f32 %v657, %v668
        %v681 = vadd.f32 %v658, %v668
        %v682 = vadd.f32 %v659, %v668
        %v683 = vadd.f32 %v660, %v668
        %v684 = vadd.f32 %v661, %v668
        %v685 = vadd.f32 %v662, %v668
        %v686 = vpack.c.bf16 %v671, %v670
        %v687 = vpack.c.bf16 %v673, %v672
        %v688 = vpack.c.bf16 %v675, %v674
        %v689 = vpack.c.bf16 %v677, %v676
        %v690 = vpack.c.bf16 %v679, %v678
        %v691 = vpack.c.bf16 %v681, %v680
        %v692 = vpack.c.bf16 %v683, %v682
        %v693 = vpack.c.bf16 %v685, %v684
        %v702 = vunpack.c.l.b16 %v686
        %v703 = vunpack.c.h.b16 %v686
        %v704 = vunpack.c.l.b16 %v687
        %v705 = vunpack.c.h.b16 %v687
        %v706 = vunpack.c.l.b16 %v688
        %v707 = vunpack.c.h.b16 %v688
        %v708 = vunpack.c.l.b16 %v689
        %v709 = vunpack.c.h.b16 %v689
        %v710 = vunpack.c.l.b16 %v690
        %v711 = vunpack.c.h.b16 %v690
        %v712 = vunpack.c.l.b16 %v691
        %v713 = vunpack.c.h.b16 %v691
        %v714 = vunpack.c.l.b16 %v692
        %v715 = vunpack.c.h.b16 %v692
        %v716 = vunpack.c.l.b16 %v693
        %v717 = vunpack.c.h.b16 %v693
        %v718 = vpack.c.b16 %v702, %v702
        %v719 = vpack.c.b16 %v703, %v703
        %v720 = vpack.c.b16 %v704, %v704
        %v721 = vpack.c.b16 %v705, %v705
        %v722 = vpack.c.b16 %v706, %v706
        %v723 = vpack.c.b16 %v707, %v707
        %v724 = vpack.c.b16 %v708, %v708
        %v725 = vpack.c.b16 %v709, %v709
        %v726 = vpack.c.b16 %v710, %v710
        %v727 = vpack.c.b16 %v711, %v711
        %v728 = vpack.c.b16 %v712, %v712
        %v729 = vpack.c.b16 %v713, %v713
        %v730 = vpack.c.b16 %v714, %v714
        %v731 = vpack.c.b16 %v715, %v715
        %v732 = vpack.c.b16 %v716, %v716
        %v733 = vpack.c.b16 %v717, %v717
        %750 = vst [vmem:[%s215] sm:$0xf] %v718
        %751 = vst [vmem:[%s215 + $0x4] sm:$0xf] %v719
        %752 = vst [vmem:[%s215 + $0x8] sm:$0xf] %v720
        %753 = vst [vmem:[%s215 + $0xc] sm:$0xf] %v721
        %754 = vst [vmem:[%s215 + $0x10] sm:$0xf] %v722
        %755 = vst [vmem:[%s215 + $0x14] sm:$0xf] %v723
        %756 = vst [vmem:[%s215 + $0x18] sm:$0xf] %v724
        %757 = vst [vmem:[%s215 + $0x1c] sm:$0xf] %v725
        %758 = vst [vmem:[%s215 + $0x20] sm:$0xf] %v726
        %759 = vst [vmem:[%s215 + $0x24] sm:$0xf] %v727
        %760 = vst [vmem:[%s215 + $0x28] sm:$0xf] %v728
        %761 = vst [vmem:[%s215 + $0x2c] sm:$0xf] %v729
        %762 = vst [vmem:[%s215 + $0x30] sm:$0xf] %v730
        %763 = vst [vmem:[%s215 + $0x34] sm:$0xf] %v731
        %764 = vst [vmem:[%s215 + $0x38] sm:$0xf] %v732
        %765 = vst [vmem:[%s215 + $0x3c] sm:$0xf] %v733
      $region52: #{mobilenet_v3_forward.9} parent=35 // pred_fallthru
        _
      %s766 = smul.u32 %s20, %s19
      %s767 = smul.u32 16, %s766
      %p768 = scmp.lt.s32.totalorder %s767, 15
      %s769 = scalar_select %p768, %s767, 15
      %s770 = smul.addr %s769, 4
      %s771 = scalar_lea.vmem %s4, %s770
      // Predicated region
      $region53: #{mobilenet_v3_forward.9} parent=35 // pred_check
        %p772 = pneg %p136
      $region54: #{mobilenet_v3_forward.9} parent=35 // pred_check_branch
        %774 = sbr.rel (%p772) target = $region56
      $region55: #{mobilenet_v3_forward.9} parent=35 // pred_region
        %s775 = smul.u32 %s20, %s19
        %s776 = smul.u32 16, %s775
      $region56: #{mobilenet_v3_forward.9} parent=35 // pred_fallthru
        _
    $region36: #{mobilenet_v3_forward.9} parent=5 // pred_fallthru
      _
    %p777 = scmp.le.s32.totalorder 2, %s10
    // Predicated region
    $region57: #{mobilenet_v3_forward.9} parent=5 // pred_check
      %p778 = pneg %p777
    $region58: #{mobilenet_v3_forward.9} parent=5 // pred_check_branch
      %780 = sbr.rel (%p778) target = $region60
    $region59: #{mobilenet_v3_forward.9} parent=5 // pred_region
      %s781 = ssub.s32 %s10, 2
      // Predicated region
      $region61: #{mobilenet_v3_forward.9} parent=59 // pred_check
        %p782 = pneg %p142
      $region62: #{mobilenet_v3_forward.9} parent=59 // pred_check_branch
        %784 = sbr.rel (%p782) target = $region64
      $region63: #{mobilenet_v3_forward.9} parent=59 // pred_region
        %s785 = smul.u32 %s22, %s21
        %s786 = smul.u32 16, %s785
        %p787 = scmp.lt.s32.totalorder %s786, 15
        %s788 = scalar_select %p787, %s786, 15
        %s789 = smul.addr %s788, 4
        %s790 = scalar_lea.vmem %s4, %s789
      $region64: #{mobilenet_v3_forward.9} parent=59 // pred_fallthru
        _
    $region60: #{mobilenet_v3_forward.9} parent=5 // pred_fallthru
      _
  $region6: #{mobilenet_v3_forward.9} parent=0 // loop_footer
    %s14 = sadd.s32 1, %s10
  $region7: #{mobilenet_v3_forward.9} parent=0 // loop_footer_branch
    %9 = sbr.rel target = $region3
  $region8: #{mobilenet_v3_forward.9} parent=0 // loop_exit
    _

// kernel: mobilenet_v3_forward.12
$region0: #{mobilenet_v3_forward.12}
  #allocation0 [shape = 'u32[]', space=smem, size = 0x4, offset = 0x4, fixed_abs, tag = 'smem constant byte address 0x4 - core index']
  #allocation1 [shape = 'u32[144,128]{1,0:T(1,128)}', space=vmem, size = 0x12000, scoped, tag = 'internal scratch']
  #allocation2 [shape = 'f32[1,128]{1,0:T(1,128)}', space=vmem, size = 0x200, scoped, tag = 'scratch operand']
  #allocation3 [shape = 'f32[1,128]{1,0:T(1,128)}', space=vmem, size = 0x200, scoped, tag = 'scratch operand']
  #allocation4 [shape = 'f32[1,128]{1,0:T(1,128)}', space=vmem, size = 0x200, scoped, tag = 'scratch operand']
  #allocation5 [shape = 'f32[1,128]{1,0:T(1,128)}', space=vmem, size = 0x200, scoped, tag = 'scratch operand']
  %s0 = inlined_call_operand.vmem [shape: bf16[128,128], index: 0, kind: input, shape index: {}]
  %s1 = inlined_call_operand.vmem [shape: bf16[128,128], index: 1, kind: input, shape index: {}]
  %s2 = inlined_call_operand.vmem [shape: f32[1,128], index: 2, kind: input, shape index: {}]
  %s3 = inlined_call_operand.vmem [shape: f32[1,128], index: 3, kind: input, shape index: {}]
  %s4 = inlined_call_operand.vmem [shape: bf16[128,128], index: 4, kind: input, shape index: {}]
  %s5 = inlined_call_operand.vmem [shape: bf16[128,128], index: 5, kind: output, shape index: {}]
  %s6 = sld [smem:[#allocation0]]
  $region69: #{mobilenet_v3_forward.12} parent=0
    _
  %s8 = ssub.s32 1, %s6
  %s9 = scalar_select 0, %s8, %s6
  loop: start=0, step=1, limit=4
  $region2: #{mobilenet_v3_forward.12} parent=0 // loop_pre_header
    _
  $region3: #{mobilenet_v3_forward.12} parent=0 // loop_header
    %s11 = sphi 0, %s15
    %p12 = scmp.ge.s32.totalorder %s11, 4
    %s18 = sphi 0, %s30
    %s19 = sphi 0, %s26
    %s20 = sphi 0, %s18
    %s21 = sphi 0, %s19
    %s22 = sphi 0, %s20
    %s23 = sphi 0, %s21
    %s33 = sphi 0, %s35
    %s36 = sphi 0, %s33
    %s37 = sphi 0, %s36
    %s53 = sphi 0, %s37
    %s57 = sphi 0, %s57
    %s59 = sphi 0, %s57
    %s60 = sphi 0, %s59
    %s74 = sphi 0, %s60
    %s78 = sphi 0, %s78
    %s80 = sphi 0, %s78
    %s81 = sphi 0, %s80
    %s95 = sphi 0, %s81
    %s99 = sphi 0, %s99
    %s101 = sphi 0, %s99
    %s102 = sphi 0, %s101
    %s116 = sphi 0, %s102
    %s124 = sphi 0, %s126
    %s127 = sphi 0, %s124
    %s128 = sphi 0, %s127
    %s144 = sphi 0, %s128
    %s152 = sphi 0, %s154
    %s155 = sphi 0, %s152
    %s156 = sphi 0, %s155
    %s172 = sphi 0, %s156
  $region4: #{mobilenet_v3_forward.12} parent=0 // loop_header_branch
    %14 = sbr.rel (%p12) target = $region8
  $region5: #{mobilenet_v3_forward.12} parent=0 // loop_body
    %s16 = ssub.s32 %s11, 1
    %s17 = ssub.s32 %s11, 2
    %s24 = sadd.s32 1, %s19
    %p25 = scmp.ge.s32.totalorder %s24, 1
    %s26 = scalar_select %p25, 0, %s24
    %s27 = sadd.s32 1, %s18
    %s28 = scalar_select %p25, %s27, %s18
    %p29 = scmp.ge.s32.totalorder %s28, 2
    %s30 = scalar_select %p29, 0, %s28
    %s31 = ssub.s32 %s19, %s26
    %p32 = scmp.eq.s32.totalorder %s31, 0
    %s34 = sadd.s32 %s33, 1
    %s35 = scalar_select %p32, %s33, %s34
    %p38 = pneg %p32
    %p39 = scmp.eq.s32.totalorder %s11, 1
    %p40 = por %p38, %p39
    %p41 = scmp.ne.s32.totalorder %s33, %s36
    %p42 = scmp.eq.s32.totalorder %s11, 0
    %p43 = por %p41, %p42
    %p44 = scmp.ne.s32.totalorder %s33, %s36
    %p45 = scmp.eq.s32.totalorder %s16, 1
    %p46 = por %p44, %p45
    %p47 = scmp.ne.s32.totalorder %s36, %s37
    %p48 = scmp.eq.s32.totalorder %s16, 0
    %p49 = por %p47, %p48
    %p50 = scmp.ne.s32.totalorder %s36, %s37
    %p51 = scmp.eq.s32.totalorder %s17, 1
    %p52 = por %p50, %p51
    %p54 = scmp.ne.s32.totalorder %s37, %s53
    %p55 = scmp.eq.s32.totalorder %s17, 0
    %p56 = por %p54, %p55
    %s58 = sadd.s32 %s57, 1
    %p61 = scmp.eq.s32.totalorder %s11, 1
    %p62 = scmp.ne.s32.totalorder %s57, %s59
    %p63 = scmp.eq.s32.totalorder %s11, 0
    %p64 = por %p62, %p63
    %p65 = scmp.ne.s32.totalorder %s57, %s59
    %p66 = scmp.eq.s32.totalorder %s16, 1
    %p67 = por %p65, %p66
    %p68 = scmp.ne.s32.totalorder %s59, %s60
    %p69 = scmp.eq.s32.totalorder %s16, 0
    %p70 = por %p68, %p69
    %p71 = scmp.ne.s32.totalorder %s59, %s60
    %p72 = scmp.eq.s32.totalorder %s17, 1
    %p73 = por %p71, %p72
    %p75 = scmp.ne.s32.totalorder %s60, %s74
    %p76 = scmp.eq.s32.totalorder %s17, 0
    %p77 = por %p75, %p76
    %s79 = sadd.s32 %s78, 1
    %p82 = scmp.eq.s32.totalorder %s11, 1
    %p83 = scmp.ne.s32.totalorder %s78, %s80
    %p84 = scmp.eq.s32.totalorder %s11, 0
    %p85 = por %p83, %p84
    %p86 = scmp.ne.s32.totalorder %s78, %s80
    %p87 = scmp.eq.s32.totalorder %s16, 1
    %p88 = por %p86, %p87
    %p89 = scmp.ne.s32.totalorder %s80, %s81
    %p90 = scmp.eq.s32.totalorder %s16, 0
    %p91 = por %p89, %p90
    %p92 = scmp.ne.s32.totalorder %s80, %s81
    %p93 = scmp.eq.s32.totalorder %s17, 1
    %p94 = por %p92, %p93
    %p96 = scmp.ne.s32.totalorder %s81, %s95
    %p97 = scmp.eq.s32.totalorder %s17, 0
    %p98 = por %p96, %p97
    %s100 = sadd.s32 %s99, 1
    %p103 = scmp.eq.s32.totalorder %s11, 1
    %p104 = scmp.ne.s32.totalorder %s99, %s101
    %p105 = scmp.eq.s32.totalorder %s11, 0
    %p106 = por %p104, %p105
    %p107 = scmp.ne.s32.totalorder %s99, %s101
    %p108 = scmp.eq.s32.totalorder %s16, 1
    %p109 = por %p107, %p108
    %p110 = scmp.ne.s32.totalorder %s101, %s102
    %p111 = scmp.eq.s32.totalorder %s16, 0
    %p112 = por %p110, %p111
    %p113 = scmp.ne.s32.totalorder %s101, %s102
    %p114 = scmp.eq.s32.totalorder %s17, 1
    %p115 = por %p113, %p114
    %p117 = scmp.ne.s32.totalorder %s102, %s116
    %p118 = scmp.eq.s32.totalorder %s17, 0
    %p119 = por %p117, %p118
    %s120 = smul.u32 %s19, %s18
    %s121 = smul.u32 %s26, %s30
    %s122 = ssub.s32 %s120, %s121
    %p123 = scmp.eq.s32.totalorder %s122, 0
    %s125 = sadd.s32 %s124, 1
    %s126 = scalar_select %p123, %s124, %s125
    %p129 = pneg %p123
    %p130 = scmp.eq.s32.totalorder %s11, 1
    %p131 = por %p129, %p130
    %p132 = scmp.ne.s32.totalorder %s124, %s127
    %p133 = scmp.eq.s32.totalorder %s11, 0
    %p134 = por %p132, %p133
    %p135 = scmp.ne.s32.totalorder %s124, %s127
    %p136 = scmp.eq.s32.totalorder %s16, 1
    %p137 = por %p135, %p136
    %p138 = scmp.ne.s32.totalorder %s127, %s128
    %p139 = scmp.eq.s32.totalorder %s16, 0
    %p140 = por %p138, %p139
    %p141 = scmp.ne.s32.totalorder %s127, %s128
    %p142 = scmp.eq.s32.totalorder %s17, 1
    %p143 = por %p141, %p142
    %p145 = scmp.ne.s32.totalorder %s128, %s144
    %p146 = scmp.eq.s32.totalorder %s17, 0
    %p147 = por %p145, %p146
    %s148 = smul.u32 %s19, %s18
    %s149 = smul.u32 %s26, %s30
    %s150 = ssub.s32 %s148, %s149
    %p151 = scmp.eq.s32.totalorder %s150, 0
    %s153 = sadd.s32 %s152, 1
    %s154 = scalar_select %p151, %s152, %s153
    %p157 = pneg %p151
    %p158 = scmp.eq.s32.totalorder %s11, 1
    %p159 = por %p157, %p158
    %p160 = scmp.ne.s32.totalorder %s152, %s155
    %p161 = scmp.eq.s32.totalorder %s11, 0
    %p162 = por %p160, %p161
    %p163 = scmp.ne.s32.totalorder %s152, %s155
    %p164 = scmp.eq.s32.totalorder %s16, 1
    %p165 = por %p163, %p164
    %p166 = scmp.ne.s32.totalorder %s155, %s156
    %p167 = scmp.eq.s32.totalorder %s16, 0
    %p168 = por %p166, %p167
    %p169 = scmp.ne.s32.totalorder %s155, %s156
    %p170 = scmp.eq.s32.totalorder %s17, 1
    %p171 = por %p169, %p170
    %p173 = scmp.ne.s32.totalorder %s156, %s172
    %p174 = scmp.eq.s32.totalorder %s17, 0
    %p175 = por %p173, %p174
    %p176 = scmp.le.s32.totalorder 1, %s11
    %p177 = scmp.lt.s32.totalorder %s11, 3
    %p178 = pnand %p176, %p177
    %p179 = pneg %p178
    // Predicated region
    $region9: #{mobilenet_v3_forward.12} parent=5 // pred_check
      _
    $region10: #{mobilenet_v3_forward.12} parent=5 // pred_check_branch
      %181 = sbr.rel (%p178) target = $region12
    $region11: #{mobilenet_v3_forward.12} parent=5 // pred_region
      %s182 = ssub.s32 %s11, 1
      // Predicated region
      $region13: #{mobilenet_v3_forward.12} parent=11 // pred_check
        %p183 = pneg %p49
      $region14: #{mobilenet_v3_forward.12} parent=11 // pred_check_branch
        %185 = sbr.rel (%p183) target = $region16
      $region15: #{mobilenet_v3_forward.12} parent=11 // pred_region
        %s186 = smul.u32 16, %s21
        %p187 = scmp.lt.s32.totalorder %s186, 15
        %s188 = scalar_select %p187, %s186, 15
        %s189 = smul.addr %s188, 4
        %s190 = scalar_lea.vmem %s0, %s189
        %s191 = smul.u32 16, %s21
      $region16: #{mobilenet_v3_forward.12} parent=11 // pred_fallthru
        _
      // Predicated region
      $region17: #{mobilenet_v3_forward.12} parent=11 // pred_check
        %p192 = pneg %p70
      $region18: #{mobilenet_v3_forward.12} parent=11 // pred_check_branch
        %194 = sbr.rel (%p192) target = $region20
      $region19: #{mobilenet_v3_forward.12} parent=11 // pred_region
        _
      $region20: #{mobilenet_v3_forward.12} parent=11 // pred_fallthru
        _
      // Predicated region
      $region21: #{mobilenet_v3_forward.12} parent=11 // pred_check
        %p195 = pneg %p91
      $region22: #{mobilenet_v3_forward.12} parent=11 // pred_check_branch
        %197 = sbr.rel (%p195) target = $region24
      $region23: #{mobilenet_v3_forward.12} parent=11 // pred_region
        _
      $region24: #{mobilenet_v3_forward.12} parent=11 // pred_fallthru
        _
      // Predicated region
      $region25: #{mobilenet_v3_forward.12} parent=11 // pred_check
        %p198 = pneg %p112
      $region26: #{mobilenet_v3_forward.12} parent=11 // pred_check_branch
        %200 = sbr.rel (%p198) target = $region28
      $region27: #{mobilenet_v3_forward.12} parent=11 // pred_region
        _
      $region28: #{mobilenet_v3_forward.12} parent=11 // pred_fallthru
        _
    $region12: #{mobilenet_v3_forward.12} parent=5 // pred_fallthru
      _
    %p201 = scmp.lt.s32.totalorder %s11, 2
    // Predicated region
    $region29: #{mobilenet_v3_forward.12} parent=5 // pred_check
      %p202 = pneg %p201
    $region30: #{mobilenet_v3_forward.12} parent=5 // pred_check_branch
      %204 = sbr.rel (%p202) target = $region32
    $region31: #{mobilenet_v3_forward.12} parent=5 // pred_region
      // Predicated region
      $region33: #{mobilenet_v3_forward.12} parent=31 // pred_check
        %p205 = pneg %p134
      $region34: #{mobilenet_v3_forward.12} parent=31 // pred_check_branch
        %207 = sbr.rel (%p205) target = $region36
      $region35: #{mobilenet_v3_forward.12} parent=31 // pred_region
        %s208 = smul.u32 %s19, %s18
        %s209 = smul.u32 16, %s208
        %p210 = scmp.lt.s32.totalorder %s209, 15
        %s211 = scalar_select %p210, %s209, 15
        %s212 = smul.addr %s211, 4
        %s213 = scalar_lea.vmem %s4, %s212
        %s214 = smul.u32 %s19, %s18
        %s215 = smul.u32 16, %s214
      $region36: #{mobilenet_v3_forward.12} parent=31 // pred_fallthru
        _
    $region32: #{mobilenet_v3_forward.12} parent=5 // pred_fallthru
      _
    %p216 = scmp.le.s32.totalorder 1, %s11
    %p217 = scmp.lt.s32.totalorder %s11, 3
    %p218 = pnand %p216, %p217
    %p219 = pneg %p218
    // Predicated region
    $region37: #{mobilenet_v3_forward.12} parent=5 // pred_check
      _
    $region38: #{mobilenet_v3_forward.12} parent=5 // pred_check_branch
      %221 = sbr.rel (%p218) target = $region40
    $region39: #{mobilenet_v3_forward.12} parent=5 // pred_region
      %s222 = ssub.s32 %s11, 1
      %s223 = smul.u32 16, %s21
      %p224 = scmp.lt.s32.totalorder %s223, 15
      %s225 = scalar_select %p224, %s223, 15
      %s226 = smul.addr %s225, 4
      %s227 = scalar_lea.vmem %s0, %s226
      %p228 = pneg %p49
      %p229 = pneg %p46
      %p230 = pneg %p70
      %p231 = pneg %p67
      %p232 = pneg %p91
      %p233 = pneg %p88
      %p234 = pneg %p112
      %p235 = pneg %p109
      %s236 = smul.u32 %s21, %s20
      %s237 = smul.u32 16, %s236
      %p238 = scmp.lt.s32.totalorder %s237, 15
      %s239 = scalar_select %p238, %s237, 15
      %s240 = smul.addr %s239, 4
      %s241 = scalar_lea.vmem %s4, %s240
      %p242 = pneg %p140
      %p243 = pneg %p137
      %p244 = pneg %p168
      %p245 = pneg %p165
      %s246 = smul.u32 %s21, %s20
      %s247 = smul.u32 16, %s246
      %p248 = scmp.lt.s32.totalorder %s247, 15
      %s249 = scalar_select %p248, %s247, 15
      %s250 = smul.addr %s249, 4
      %s251 = scalar_lea.vmem %s5, %s250
      %s252 = smul.u32 16, %s21
      %p253 = scmp.lt.s32.totalorder %s252, 15
      %s254 = scalar_select %p253, %s252, 15
      %s255 = smul.addr %s254, 4
      %s256 = scalar_lea.vmem %s0, %s255
      %s257 = smul.u32 16, %s21
      %s258 = smul.u32 %s21, %s20
      %s259 = smul.u32 16, %s258
      %p260 = scmp.lt.s32.totalorder %s259, 15
      %s261 = scalar_select %p260, %s259, 15
      %s262 = smul.addr %s261, 4
      %s263 = scalar_lea.vmem %s4, %s262
      %s264 = smul.u32 %s21, %s20
      %s265 = smul.u32 16, %s264
      %s266 = smul.u32 %s21, %s20
      %s267 = smul.u32 16, %s266
      %p268 = scmp.lt.s32.totalorder %s267, 15
      %s269 = scalar_select %p268, %s267, 15
      %s270 = smul.addr %s269, 4
      %s271 = scalar_lea.vmem %s5, %s270
      %s272 = smul.u32 %s21, %s20
      %s273 = smul.u32 16, %s272
      %v275 = vld [vmem:[%s256] sm:$0xf]
      %v276 = vld [vmem:[%s256 + $0x4] sm:$0xf]
      %v277 = vld [vmem:[%s256 + $0x8] sm:$0xf]
      %v278 = vld [vmem:[%s256 + $0xc] sm:$0xf]
      %v279 = vld [vmem:[%s256 + $0x10] sm:$0xf]
      %v280 = vld [vmem:[%s256 + $0x14] sm:$0xf]
      %v281 = vld [vmem:[%s256 + $0x18] sm:$0xf]
      %v282 = vld [vmem:[%s256 + $0x1c] sm:$0xf]
      %v283 = vld [vmem:[%s256 + $0x20] sm:$0xf]
      %v284 = vld [vmem:[%s256 + $0x24] sm:$0xf]
      %v285 = vld [vmem:[%s256 + $0x28] sm:$0xf]
      %v286 = vld [vmem:[%s256 + $0x2c] sm:$0xf]
      %v287 = vld [vmem:[%s256 + $0x30] sm:$0xf]
      %v288 = vld [vmem:[%s256 + $0x34] sm:$0xf]
      %v289 = vld [vmem:[%s256 + $0x38] sm:$0xf]
      %v290 = vld [vmem:[%s256 + $0x3c] sm:$0xf]
      %v291 = vld [vmem:[%s1] sm:$0xf]
      %v292 = vld [vmem:[%s1 + $0x4] sm:$0xf]
      %v293 = vld [vmem:[%s1 + $0x8] sm:$0xf]
      %v294 = vld [vmem:[%s1 + $0xc] sm:$0xf]
      %v295 = vld [vmem:[%s1 + $0x10] sm:$0xf]
      %v296 = vld [vmem:[%s1 + $0x14] sm:$0xf]
      %v297 = vld [vmem:[%s1 + $0x18] sm:$0xf]
      %v298 = vld [vmem:[%s1 + $0x1c] sm:$0xf]
      %v299 = vld [vmem:[%s1 + $0x20] sm:$0xf]
      %v300 = vld [vmem:[%s1 + $0x24] sm:$0xf]
      %v301 = vld [vmem:[%s1 + $0x28] sm:$0xf]
      %v302 = vld [vmem:[%s1 + $0x2c] sm:$0xf]
      %v303 = vld [vmem:[%s1 + $0x30] sm:$0xf]
      %v304 = vld [vmem:[%s1 + $0x34] sm:$0xf]
      %v305 = vld [vmem:[%s1 + $0x38] sm:$0xf]
      %v306 = vld [vmem:[%s1 + $0x3c] sm:$0xf]
      %v323 = vunpack.c.l.b16 %v275
      %v324 = vunpack.c.l.b16 %v276
      %v325 = vunpack.c.l.b16 %v277
      %v326 = vunpack.c.l.b16 %v278
      %v327 = vunpack.c.l.b16 %v279
      %v328 = vunpack.c.l.b16 %v280
      %v329 = vunpack.c.l.b16 %v281
      %v330 = vunpack.c.l.b16 %v282
      %v331 = vunpack.c.l.b16 %v283
      %v332 = vunpack.c.l.b16 %v284
      %v333 = vunpack.c.l.b16 %v285
      %v334 = vunpack.c.l.b16 %v286
      %v335 = vunpack.c.l.b16 %v287
      %v336 = vunpack.c.l.b16 %v288
      %v337 = vunpack.c.l.b16 %v289
      %v338 = vunpack.c.l.b16 %v290
      %v339 = vpack.c.b16 %v324, %v323
      %v340 = vpack.c.b16 %v326, %v325
      %v341 = vpack.c.b16 %v328, %v327
      %v342 = vpack.c.b16 %v330, %v329
      %v343 = vpack.c.b16 %v332, %v331
      %v344 = vpack.c.b16 %v334, %v333
      %v345 = vpack.c.b16 %v336, %v335
      %v346 = vpack.c.b16 %v338, %v337
      %v371 = vunpack.c.l.b16 %v291
      %v372 = vunpack.c.l.b16 %v292
      %v373 = vunpack.c.l.b16 %v293
      %v374 = vunpack.c.l.b16 %v294
      %v375 = vunpack.c.l.b16 %v295
      %v376 = vunpack.c.l.b16 %v296
      %v377 = vunpack.c.l.b16 %v297
      %v378 = vunpack.c.l.b16 %v298
      %v379 = vunpack.c.l.b16 %v299
      %v380 = vunpack.c.l.b16 %v300
      %v381 = vunpack.c.l.b16 %v301
      %v382 = vunpack.c.l.b16 %v302
      %v383 = vunpack.c.l.b16 %v303
      %v384 = vunpack.c.l.b16 %v304
      %v385 = vunpack.c.l.b16 %v305
      %v386 = vunpack.c.l.b16 %v306
      %v387 = vpack.c.b16 %v372, %v371
      %v388 = vpack.c.b16 %v374, %v373
      %v389 = vpack.c.b16 %v376, %v375
      %v390 = vpack.c.b16 %v378, %v377
      %v391 = vpack.c.b16 %v380, %v379
      %v392 = vpack.c.b16 %v382, %v381
      %v393 = vpack.c.b16 %v384, %v383
      %v394 = vpack.c.b16 %v386, %v385
      %403 = vmatprep.subr.bf16.mxu0 0
      %404 = vmatpush1.bf16.msra.mxu0 %v387
      %405 = vmatprep.subr.bf16.mxu0 0
      %406 = vmatpush1.bf16.msra.mxu0 %v388
      %407 = vmatprep.subr.bf16.mxu0 0
      %408 = vmatpush1.bf16.msra.mxu0 %v389
      %409 = vmatprep.subr.bf16.mxu0 0
      %410 = vmatpush1.bf16.msra.mxu0 %v390
      %411 = vmatprep.subr.bf16.mxu0 0
      %412 = vmatpush1.bf16.msra.mxu0 %v391
      %413 = vmatprep.subr.bf16.mxu0 0
      %414 = vmatpush1.bf16.msra.mxu0 %v392
      %415 = vmatprep.subr.bf16.mxu0 0
      %416 = vmatpush1.bf16.msra.mxu0 %v393
      %417 = vmatprep.subr.bf16.mxu0 0
      %418 = vmatpush1.bf16.msra.mxu0 %v394
      %419 = vmatprep.subr.bf16.mxu0 0
      %420 = vmatpush1.bf16.msra.mxu0 0
      %421 = vmatprep.subr.bf16.mxu0 0
      %422 = vmatpush1.bf16.msra.mxu0 0
      %423 = vmatprep.subr.bf16.mxu0 0
      %424 = vmatpush1.bf16.msra.mxu0 0
      %425 = vmatprep.subr.bf16.mxu0 0
      %426 = vmatpush1.bf16.msra.mxu0 0
      %427 = vmatprep.subr.bf16.mxu0 0
      %428 = vmatpush1.bf16.msra.mxu0 0
      %429 = vmatprep.subr.bf16.mxu0 0
      %430 = vmatpush1.bf16.msra.mxu0 0
      %431 = vmatprep.subr.bf16.mxu0 0
      %432 = vmatpush1.bf16.msra.mxu0 0
      %433 = vmatprep.subr.bf16.mxu0 0
      %434 = vmatpush1.bf16.msra.mxu0 0
      %435 = vmatprep.mubr.bf16.mxu0 0
      %436 = vmatmul.mubr.bf16.gmra.mrb[0].mxu0 %v339
      %v437 = vpop.f32.mrb[0].mxu0
      %v438 = vadd.f32 0.0, %v437
      %v439 = vpop.f32.mrb[0].mxu0
      %v440 = vpop.f32.mrb[0].mxu0
      %v441 = vadd.f32 0.0, %v440
      %v442 = vpop.f32.mrb[0].mxu0
      %443 = vmatprep.mubr.bf16.mxu0 0
      %444 = vmatmul.mubr.bf16.gmra.mrb[0].mxu0 %v340
      %v445 = vpop.f32.mrb[0].mxu0
      %v446 = vadd.f32 0.0, %v445
      %v447 = vpop.f32.mrb[0].mxu0
      %v448 = vpop.f32.mrb[0].mxu0
      %v449 = vadd.f32 0.0, %v448
      %v450 = vpop.f32.mrb[0].mxu0
      %451 = vmatprep.mubr.bf16.mxu0 0
      %452 = vmatmul.mubr.bf16.gmra.mrb[0].mxu0 %v341
      %v453 = vpop.f32.mrb[0].mxu0
      %v454 = vadd.f32 0.0, %v453
      %v455 = vpop.f32.mrb[0].mxu0
      %v456 = vpop.f32.mrb[0].mxu0
      %v457 = vadd.f32 0.0, %v456
      %v458 = vpop.f32.mrb[0].mxu0
      %459 = vmatprep.mubr.bf16.mxu0 0
      %460 = vmatmul.mubr.bf16.gmra.mrb[0].mxu0 %v342
      %v461 = vpop.f32.mrb[0].mxu0
      %v462 = vadd.f32 0.0, %v461
      %v463 = vpop.f32.mrb[0].mxu0
      %v464 = vpop.f32.mrb[0].mxu0
      %v465 = vadd.f32 0.0, %v464
      %v466 = vpop.f32.mrb[0].mxu0
      %467 = vmatprep.mubr.bf16.mxu0 0
      %468 = vmatmul.mubr.bf16.gmra.mrb[0].mxu0 %v343
      %v469 = vpop.f32.mrb[0].mxu0
      %v470 = vadd.f32 0.0, %v469
      %v471 = vpop.f32.mrb[0].mxu0
      %v472 = vpop.f32.mrb[0].mxu0
      %v473 = vadd.f32 0.0, %v472
      %v474 = vpop.f32.mrb[0].mxu0
      %475 = vmatprep.mubr.bf16.mxu0 0
      %476 = vmatmul.mubr.bf16.gmra.mrb[0].mxu0 %v344
      %v477 = vpop.f32.mrb[0].mxu0
      %v478 = vadd.f32 0.0, %v477
      %v479 = vpop.f32.mrb[0].mxu0
      %v480 = vpop.f32.mrb[0].mxu0
      %v481 = vadd.f32 0.0, %v480
      %v482 = vpop.f32.mrb[0].mxu0
      %483 = vmatprep.mubr.bf16.mxu0 0
      %484 = vmatmul.mubr.bf16.gmra.mrb[0].mxu0 %v345
      %v485 = vpop.f32.mrb[0].mxu0
      %v486 = vadd.f32 0.0, %v485
      %v487 = vpop.f32.mrb[0].mxu0
      %v488 = vpop.f32.mrb[0].mxu0
      %v489 = vadd.f32 0.0, %v488
      %v490 = vpop.f32.mrb[0].mxu0
      %491 = vmatprep.mubr.bf16.mxu0 0
      %492 = vmatmul.mubr.bf16.gmra.mrb[0].mxu0 %v346
      %v493 = vpop.f32.mrb[0].mxu0
      %v494 = vadd.f32 0.0, %v493
      %v495 = vpop.f32.mrb[0].mxu0
      %v496 = vpop.f32.mrb[0].mxu0
      %v497 = vadd.f32 0.0, %v496
      %v498 = vpop.f32.mrb[0].mxu0
      %499 = vdwg.mxu0
      %p500 = scmp.eq.s32.totalorder %s20, 0
      // Predicated region
      $region41: #{mobilenet_v3_forward.12} parent=39 // pred_check
        %p501 = pneg %p500
      $region42: #{mobilenet_v3_forward.12} parent=39 // pred_check_branch
        %503 = sbr.rel (%p501) target = $region44
      $region43: #{mobilenet_v3_forward.12} parent=39 // pred_region
        %p504 = scmp.eq.s32.totalorder %s21, 0
        // Predicated region
        $region45: #{mobilenet_v3_forward.12} parent=43 // pred_check
          %p505 = pneg %p504
        $region46: #{mobilenet_v3_forward.12} parent=43 // pred_check_branch
          %507 = sbr.rel (%p505) target = $region48
        $region47: #{mobilenet_v3_forward.12} parent=43 // pred_region
          %508 = vst [vmem:[#allocation2] sm:$0x1] 0.0
          %509 = vst [vmem:[#allocation3] sm:$0x1] 0.0
        $region48: #{mobilenet_v3_forward.12} parent=43 // pred_fallthru
          _
        %s510 = smul.u32 %s21, 128
        %v511 = vlaneseq
        %v512 = vshrl.u32 %v511, 7
        %v513 = vadd.s32 %v512, 8
        %v514 = vadd.s32 %v512, 16
        %v515 = vadd.s32 %v512, 24
        %v516 = vadd.s32 %v512, 32
        %v517 = vadd.s32 %v512, 40
        %v518 = vadd.s32 %v512, 48
        %v519 = vadd.s32 %v512, 56
        %v520 = vadd.s32 %v512, 64
        %v521 = vadd.s32 %v512, 72
        %v522 = vadd.s32 %v512, 80
        %v523 = vadd.s32 %v512, 88
        %v524 = vadd.s32 %v512, 96
        %v525 = vadd.s32 %v512, 104
        %v526 = vadd.s32 %v512, 112
        %v527 = vadd.s32 %v512, 120
        %v528 = vstv %s510
        %v529 = vadd.s32 %v528, %v512
        %v530 = vadd.s32 %v528, %v513
        %v531 = vadd.s32 %v528, %v514
        %v532 = vadd.s32 %v528, %v515
        %v533 = vadd.s32 %v528, %v516
        %v534 = vadd.s32 %v528, %v517
        %v535 = vadd.s32 %v528, %v518
        %v536 = vadd.s32 %v528, %v519
        %v537 = vadd.s32 %v528, %v520
        %v538 = vadd.s32 %v528, %v521
        %v539 = vadd.s32 %v528, %v522
        %v540 = vadd.s32 %v528, %v523
        %v541 = vadd.s32 %v528, %v524
        %v542 = vadd.s32 %v528, %v525
        %v543 = vadd.s32 %v528, %v526
        %v544 = vadd.s32 %v528, %v527
        %vm545 = vcmp.lt.s32.totalorder %v529, 128
        %vm546 = vcmp.lt.s32.totalorder %v530, 128
        %vm547 = vcmp.lt.s32.totalorder %v531, 128
        %vm548 = vcmp.lt.s32.totalorder %v532, 128
        %vm549 = vcmp.lt.s32.totalorder %v533, 128
        %vm550 = vcmp.lt.s32.totalorder %v534, 128
        %vm551 = vcmp.lt.s32.totalorder %v535, 128
        %vm552 = vcmp.lt.s32.totalorder %v536, 128
        %vm553 = vcmp.lt.s32.totalorder %v537, 128
        %vm554 = vcmp.lt.s32.totalorder %v538, 128
        %vm555 = vcmp.lt.s32.totalorder %v539, 128
        %vm556 = vcmp.lt.s32.totalorder %v540, 128
        %vm557 = vcmp.lt.s32.totalorder %v541, 128
        %vm558 = vcmp.lt.s32.totalorder %v542, 128
        %vm559 = vcmp.lt.s32.totalorder %v543, 128
        %vm560 = vcmp.lt.s32.totalorder %v544, 128
        %v561 = vsel %vm545, 1, 0
        %v562 = vsel %vm546, 1, 0
        %v563 = vsel %vm547, 1, 0
        %v564 = vsel %vm548, 1, 0
        %v565 = vsel %vm549, 1, 0
        %v566 = vsel %vm550, 1, 0
        %v567 = vsel %vm551, 1, 0
        %v568 = vsel %vm552, 1, 0
        %v569 = vsel %vm553, 1, 0
        %v570 = vsel %vm554, 1, 0
        %v571 = vsel %vm555, 1, 0
        %v572 = vsel %vm556, 1, 0
        %v573 = vsel %vm557, 1, 0
        %v574 = vsel %vm558, 1, 0
        %v575 = vsel %vm559, 1, 0
        %v576 = vsel %vm560, 1, 0
        %vm577 = vcmp.eq.s32.totalorder %v561, 1
        %vm578 = vcmp.eq.s32.totalorder %v562, 1
        %vm579 = vcmp.eq.s32.totalorder %v563, 1
        %vm580 = vcmp.eq.s32.totalorder %v564, 1
        %vm581 = vcmp.eq.s32.totalorder %v565, 1
        %vm582 = vcmp.eq.s32.totalorder %v566, 1
        %vm583 = vcmp.eq.s32.totalorder %v567, 1
        %vm584 = vcmp.eq.s32.totalorder %v568, 1
        %vm585 = vcmp.eq.s32.totalorder %v569, 1
        %vm586 = vcmp.eq.s32.totalorder %v570, 1
        %vm587 = vcmp.eq.s32.totalorder %v571, 1
        %vm588 = vcmp.eq.s32.totalorder %v572, 1
        %vm589 = vcmp.eq.s32.totalorder %v573, 1
        %vm590 = vcmp.eq.s32.totalorder %v574, 1
        %vm591 = vcmp.eq.s32.totalorder %v575, 1
        %vm592 = vcmp.eq.s32.totalorder %v576, 1
        %v593 = vsel %vm577, %v438, 0.0
        %v594 = vsel %vm578, %v441, 0.0
        %v595 = vsel %vm579, %v446, 0.0
        %v596 = vsel %vm580, %v449, 0.0
        %v597 = vsel %vm581, %v454, 0.0
        %v598 = vsel %vm582, %v457, 0.0
        %v599 = vsel %vm583, %v462, 0.0
        %v600 = vsel %vm584, %v465, 0.0
        %v601 = vsel %vm585, %v470, 0.0
        %v602 = vsel %vm586, %v473, 0.0
        %v603 = vsel %vm587, %v478, 0.0
        %v604 = vsel %vm588, %v481, 0.0
        %v605 = vsel %vm589, %v486, 0.0
        %v606 = vsel %vm590, %v489, 0.0
        %v607 = vsel %vm591, %v494, 0.0
        %v608 = vsel %vm592, %v497, 0.0
        %v609 = vld [vmem:[#allocation2] sm:$0x1]
        %v610 = vadd.f32 %v593, %v594
        %v611 = vadd.f32 %v610, %v595
        %v612 = vadd.f32 %v611, %v596
        %v613 = vadd.f32 %v612, %v597
        %v614 = vadd.f32 %v613, %v598
        %v615 = vadd.f32 %v614, %v599
        %v616 = vadd.f32 %v615, %v600
        %v617 = vadd.f32 %v616, %v601
        %v618 = vadd.f32 %v617, %v602
        %v619 = vadd.f32 %v618, %v603
        %v620 = vadd.f32 %v619, %v604
        %v621 = vadd.f32 %v620, %v605
        %v622 = vadd.f32 %v621, %v606
        %v623 = vadd.f32 %v622, %v607
        %v624 = vadd.f32 %v623, %v608
        %v625 = vrot.slane %v624, 4
        %v626 = vadd.f32 %v624, %v625
        %v627 = vrot.slane %v626, 2
        %v628 = vadd.f32 %v626, %v627
        %v629 = vrot.slane %v628, 1
        %v630 = vadd.f32 %v628, %v629
        %v631 = vadd.f32 %v609, %v630
        %632 = vst [vmem:[#allocation2] sm:$0x1] %v631
        %v633 = vld [vmem:[#allocation3] sm:$0x1]
        %v634 = vmul.f32 %v593, %v593
        %v635 = vmul.f32 %v594, %v594
        %v636 = vmul.f32 %v595, %v595
        %v637 = vmul.f32 %v596, %v596
        %v638 = vmul.f32 %v597, %v597
        %v639 = vmul.f32 %v598, %v598
        %v640 = vmul.f32 %v599, %v599
        %v641 = vmul.f32 %v600, %v600
        %v642 = vmul.f32 %v601, %v601
        %v643 = vmul.f32 %v602, %v602
        %v644 = vmul.f32 %v603, %v603
        %v645 = vmul.f32 %v604, %v604
        %v646 = vmul.f32 %v605, %v605
        %v647 = vmul.f32 %v606, %v606
        %v648 = vmul.f32 %v607, %v607
        %v649 = vmul.f32 %v608, %v608
        %v650 = vadd.f32 %v634, %v635
        %v651 = vadd.f32 %v650, %v636
        %v652 = vadd.f32 %v651, %v637
        %v653 = vadd.f32 %v652, %v638
        %v654 = vadd.f32 %v653, %v639
        %v655 = vadd.f32 %v654, %v640
        %v656 = vadd.f32 %v655, %v641
        %v657 = vadd.f32 %v656, %v642
        %v658 = vadd.f32 %v657, %v643
        %v659 = vadd.f32 %v658, %v644
        %v660 = vadd.f32 %v659, %v645
        %v661 = vadd.f32 %v660, %v646
        %v662 = vadd.f32 %v661, %v647
        %v663 = vadd.f32 %v662, %v648
        %v664 = vadd.f32 %v663, %v649
        %v665 = vrot.slane %v664, 4
        %v666 = vadd.f32 %v664, %v665
        %v667 = vrot.slane %v666, 2
        %v668 = vadd.f32 %v666, %v667
        %v669 = vrot.slane %v668, 1
        %v670 = vadd.f32 %v668, %v669
        %v671 = vadd.f32 %v633, %v670
        %672 = vst [vmem:[#allocation3] sm:$0x1] %v671
        // Predicated region
        $region49: #{mobilenet_v3_forward.12} parent=43 // pred_check
          %p673 = pneg %p504
        $region50: #{mobilenet_v3_forward.12} parent=43 // pred_check_branch
          %675 = sbr.rel (%p673) target = $region52
        $region51: #{mobilenet_v3_forward.12} parent=43 // pred_region
          %v676 = vld [vmem:[#allocation2] sm:$0x1]
          %v677 = vmul.f32 %v676, 0.0078125
          %v678 = vld [vmem:[#allocation3] sm:$0x1]
          %v679 = vmul.f32 %v678, 0.0078125
          %v680 = vmul.f32 %v677, %v677
          %v681 = vsub.f32 %v679, %v680
          %v682 = vmax.f32 %v681, 0.0
          %v683 = vld [vmem:[%s2] sm:$0x1]
          %v684 = vadd.f32 %v682, 0.001
          %v685 = vrsqrt.pop %v684
          %v686 = vmul.f32 %v683, %v685
          %687 = vst [vmem:[#allocation4] sm:$0x1] %v686
          %v688 = vld [vmem:[%s3] sm:$0x1]
          %v689 = vmul.f32 %v677, %v686
          %v690 = vsub.f32 %v688, %v689
          %691 = vst [vmem:[#allocation5] sm:$0x1] %v690
        $region52: #{mobilenet_v3_forward.12} parent=43 // pred_fallthru
          _
      $region44: #{mobilenet_v3_forward.12} parent=39 // pred_fallthru
        _
      %p692 = scmp.eq.s32.totalorder %s20, 1
      // Predicated region
      $region53: #{mobilenet_v3_forward.12} parent=39 // pred_check
        %p693 = pneg %p692
      $region54: #{mobilenet_v3_forward.12} parent=39 // pred_check_branch
        %695 = sbr.rel (%p693) target = $region56
      $region55: #{mobilenet_v3_forward.12} parent=39 // pred_region
        %v696 = vld [vmem:[#allocation4] sm:$0x1]
        %v698 = vlaneseq
        %v699 = vshrl.u32 %v698, 7
        %v700 = vsub.s32 0, %v699
        %v701 = vrot.slane %v696, %v700
        %v703 = vmul.f32 %v438, %v701
        %v704 = vmul.f32 %v441, %v701
        %v705 = vmul.f32 %v446, %v701
        %v706 = vmul.f32 %v449, %v701
        %v707 = vmul.f32 %v454, %v701
        %v708 = vmul.f32 %v457, %v701
        %v709 = vmul.f32 %v462, %v701
        %v710 = vmul.f32 %v465, %v701
        %v711 = vmul.f32 %v470, %v701
        %v712 = vmul.f32 %v473, %v701
        %v713 = vmul.f32 %v478, %v701
        %v714 = vmul.f32 %v481, %v701
        %v715 = vmul.f32 %v486, %v701
        %v716 = vmul.f32 %v489, %v701
        %v717 = vmul.f32 %v494, %v701
        %v718 = vmul.f32 %v497, %v701
        %v719 = vld [vmem:[#allocation5] sm:$0x1]
        %v721 = vlaneseq
        %v722 = vshrl.u32 %v721, 7
        %v723 = vsub.s32 0, %v722
        %v724 = vrot.slane %v719, %v723
        %v726 = vadd.f32 %v703, %v724
        %v727 = vadd.f32 %v704, %v724
        %v728 = vadd.f32 %v705, %v724
        %v729 = vadd.f32 %v706, %v724
        %v730 = vadd.f32 %v707, %v724
        %v731 = vadd.f32 %v708, %v724
        %v732 = vadd.f32 %v709, %v724
        %v733 = vadd.f32 %v710, %v724
        %v734 = vadd.f32 %v711, %v724
        %v735 = vadd.f32 %v712, %v724
        %v736 = vadd.f32 %v713, %v724
        %v737 = vadd.f32 %v714, %v724
        %v738 = vadd.f32 %v715, %v724
        %v739 = vadd.f32 %v716, %v724
        %v740 = vadd.f32 %v717, %v724
        %v741 = vadd.f32 %v718, %v724
        %v742 = vld [vmem:[%s263] sm:$0xf]
        %v743 = vld [vmem:[%s263 + $0x4] sm:$0xf]
        %v744 = vld [vmem:[%s263 + $0x8] sm:$0xf]
        %v745 = vld [vmem:[%s263 + $0xc] sm:$0xf]
        %v746 = vld [vmem:[%s263 + $0x10] sm:$0xf]
        %v747 = vld [vmem:[%s263 + $0x14] sm:$0xf]
        %v748 = vld [vmem:[%s263 + $0x18] sm:$0xf]
        %v749 = vld [vmem:[%s263 + $0x1c] sm:$0xf]
        %v750 = vld [vmem:[%s263 + $0x20] sm:$0xf]
        %v751 = vld [vmem:[%s263 + $0x24] sm:$0xf]
        %v752 = vld [vmem:[%s263 + $0x28] sm:$0xf]
        %v753 = vld [vmem:[%s263 + $0x2c] sm:$0xf]
        %v754 = vld [vmem:[%s263 + $0x30] sm:$0xf]
        %v755 = vld [vmem:[%s263 + $0x34] sm:$0xf]
        %v756 = vld [vmem:[%s263 + $0x38] sm:$0xf]
        %v757 = vld [vmem:[%s263 + $0x3c] sm:$0xf]
        %v758 = vunpack.c.l.bf16 %v742
        %v759 = vunpack.c.l.bf16 %v743
        %v760 = vunpack.c.l.bf16 %v744
        %v761 = vunpack.c.l.bf16 %v745
        %v762 = vunpack.c.l.bf16 %v746
        %v763 = vunpack.c.l.bf16 %v747
        %v764 = vunpack.c.l.bf16 %v748
        %v765 = vunpack.c.l.bf16 %v749
        %v766 = vunpack.c.l.bf16 %v750
        %v767 = vunpack.c.l.bf16 %v751
        %v768 = vunpack.c.l.bf16 %v752
        %v769 = vunpack.c.l.bf16 %v753
        %v770 = vunpack.c.l.bf16 %v754
        %v771 = vunpack.c.l.bf16 %v755
        %v772 = vunpack.c.l.bf16 %v756
        %v773 = vunpack.c.l.bf16 %v757
        %v774 = vadd.f32 %v726, %v758
        %v775 = vadd.f32 %v727, %v759
        %v776 = vadd.f32 %v728, %v760
        %v777 = vadd.f32 %v729, %v761
        %v778 = vadd.f32 %v730, %v762
        %v779 = vadd.f32 %v731, %v763
        %v780 = vadd.f32 %v732, %v764
        %v781 = vadd.f32 %v733, %v765
        %v782 = vadd.f32 %v734, %v766
        %v783 = vadd.f32 %v735, %v767
        %v784 = vadd.f32 %v736, %v768
        %v785 = vadd.f32 %v737, %v769
        %v786 = vadd.f32 %v738, %v770
        %v787 = vadd.f32 %v739, %v771
        %v788 = vadd.f32 %v740, %v772
        %v789 = vadd.f32 %v741, %v773
        %v790 = vpack.c.bf16 %v775, %v774
        %v791 = vpack.c.bf16 %v777, %v776
        %v792 = vpack.c.bf16 %v779, %v778
        %v793 = vpack.c.bf16 %v781, %v780
        %v794 = vpack.c.bf16 %v783, %v782
        %v795 = vpack.c.bf16 %v785, %v784
        %v796 = vpack.c.bf16 %v787, %v786
        %v797 = vpack.c.bf16 %v789, %v788
        %v806 = vunpack.c.l.b16 %v790
        %v807 = vunpack.c.h.b16 %v790
        %v808 = vunpack.c.l.b16 %v791
        %v809 = vunpack.c.h.b16 %v791
        %v810 = vunpack.c.l.b16 %v792
        %v811 = vunpack.c.h.b16 %v792
        %v812 = vunpack.c.l.b16 %v793
        %v813 = vunpack.c.h.b16 %v793
        %v814 = vunpack.c.l.b16 %v794
        %v815 = vunpack.c.h.b16 %v794
        %v816 = vunpack.c.l.b16 %v795
        %v817 = vunpack.c.h.b16 %v795
        %v818 = vunpack.c.l.b16 %v796
        %v819 = vunpack.c.h.b16 %v796
        %v820 = vunpack.c.l.b16 %v797
        %v821 = vunpack.c.h.b16 %v797
        %v822 = vpack.c.b16 %v806, %v806
        %v823 = vpack.c.b16 %v807, %v807
        %v824 = vpack.c.b16 %v808, %v808
        %v825 = vpack.c.b16 %v809, %v809
        %v826 = vpack.c.b16 %v810, %v810
        %v827 = vpack.c.b16 %v811, %v811
        %v828 = vpack.c.b16 %v812, %v812
        %v829 = vpack.c.b16 %v813, %v813
        %v830 = vpack.c.b16 %v814, %v814
        %v831 = vpack.c.b16 %v815, %v815
        %v832 = vpack.c.b16 %v816, %v816
        %v833 = vpack.c.b16 %v817, %v817
        %v834 = vpack.c.b16 %v818, %v818
        %v835 = vpack.c.b16 %v819, %v819
        %v836 = vpack.c.b16 %v820, %v820
        %v837 = vpack.c.b16 %v821, %v821
        %854 = vst [vmem:[%s271] sm:$0xf] %v822
        %855 = vst [vmem:[%s271 + $0x4] sm:$0xf] %v823
        %856 = vst [vmem:[%s271 + $0x8] sm:$0xf] %v824
        %857 = vst [vmem:[%s271 + $0xc] sm:$0xf] %v825
        %858 = vst [vmem:[%s271 + $0x10] sm:$0xf] %v826
        %859 = vst [vmem:[%s271 + $0x14] sm:$0xf] %v827
        %860 = vst [vmem:[%s271 + $0x18] sm:$0xf] %v828
        %861 = vst [vmem:[%s271 + $0x1c] sm:$0xf] %v829
        %862 = vst [vmem:[%s271 + $0x20] sm:$0xf] %v830
        %863 = vst [vmem:[%s271 + $0x24] sm:$0xf] %v831
        %864 = vst [vmem:[%s271 + $0x28] sm:$0xf] %v832
        %865 = vst [vmem:[%s271 + $0x2c] sm:$0xf] %v833
        %866 = vst [vmem:[%s271 + $0x30] sm:$0xf] %v834
        %867 = vst [vmem:[%s271 + $0x34] sm:$0xf] %v835
        %868 = vst [vmem:[%s271 + $0x38] sm:$0xf] %v836
        %869 = vst [vmem:[%s271 + $0x3c] sm:$0xf] %v837
      $region56: #{mobilenet_v3_forward.12} parent=39 // pred_fallthru
        _
      %s870 = smul.u32 %s21, %s20
      %s871 = smul.u32 16, %s870
      %p872 = scmp.lt.s32.totalorder %s871, 15
      %s873 = scalar_select %p872, %s871, 15
      %s874 = smul.addr %s873, 4
      %s875 = scalar_lea.vmem %s5, %s874
      // Predicated region
      $region57: #{mobilenet_v3_forward.12} parent=39 // pred_check
        %p876 = pneg %p165
      $region58: #{mobilenet_v3_forward.12} parent=39 // pred_check_branch
        %878 = sbr.rel (%p876) target = $region60
      $region59: #{mobilenet_v3_forward.12} parent=39 // pred_region
        %s879 = smul.u32 %s21, %s20
        %s880 = smul.u32 16, %s879
      $region60: #{mobilenet_v3_forward.12} parent=39 // pred_fallthru
        _
    $region40: #{mobilenet_v3_forward.12} parent=5 // pred_fallthru
      _
    %p881 = scmp.le.s32.totalorder 2, %s11
    // Predicated region
    $region61: #{mobilenet_v3_forward.12} parent=5 // pred_check
      %p882 = pneg %p881
    $region62: #{mobilenet_v3_forward.12} parent=5 // pred_check_branch
      %884 = sbr.rel (%p882) target = $region64
    $region63: #{mobilenet_v3_forward.12} parent=5 // pred_region
      %s885 = ssub.s32 %s11, 2
      // Predicated region
      $region65: #{mobilenet_v3_forward.12} parent=63 // pred_check
        %p886 = pneg %p171
      $region66: #{mobilenet_v3_forward.12} parent=63 // pred_check_branch
        %888 = sbr.rel (%p886) target = $region68
      $region67: #{mobilenet_v3_forward.12} parent=63 // pred_region
        %s889 = smul.u32 %s23, %s22
        %s890 = smul.u32 16, %s889
        %p891 = scmp.lt.s32.totalorder %s890, 15
        %s892 = scalar_select %p891, %s890, 15
        %s893 = smul.addr %s892, 4
        %s894 = scalar_lea.vmem %s5, %s893
      $region68: #{mobilenet_v3_forward.12} parent=63 // pred_fallthru
        _
    $region64: #{mobilenet_v3_forward.12} parent=5 // pred_fallthru
      _
  $region6: #{mobilenet_v3_forward.12} parent=0 // loop_footer
    %s15 = sadd.s32 1, %s11
  $region7: #{mobilenet_v3_forward.12} parent=0 // loop_footer_branch
    %10 = sbr.rel target = $region3
  $region8: #{mobilenet_v3_forward.12} parent=0 // loop_exit
    _

// kernel: mobilenet_v3_forward.11
$region0: #{mobilenet_v3_forward.11}
  #allocation0 [shape = 'u32[]', space=smem, size = 0x4, offset = 0x4, fixed_abs, tag = 'smem constant byte address 0x4 - core index']
  #allocation1 [shape = 'u32[144,128]{1,0:T(1,128)}', space=vmem, size = 0x12000, scoped, tag = 'internal scratch']
  #allocation2 [shape = 'f32[1,128]{1,0:T(1,128)}', space=vmem, size = 0x200, scoped, tag = 'scratch operand']
  #allocation3 [shape = 'f32[1,128]{1,0:T(1,128)}', space=vmem, size = 0x200, scoped, tag = 'scratch operand']
  #allocation4 [shape = 'f32[1,128]{1,0:T(1,128)}', space=vmem, size = 0x200, scoped, tag = 'scratch operand']
  #allocation5 [shape = 'f32[1,128]{1,0:T(1,128)}', space=vmem, size = 0x200, scoped, tag = 'scratch operand']
  %s0 = inlined_call_operand.vmem [shape: bf16[1,2,10,10,128], index: 0, kind: input, shape index: {}]
  %s1 = inlined_call_operand.vmem [shape: f32[9,128], index: 1, kind: input, shape index: {}]
  %s2 = inlined_call_operand.vmem [shape: f32[1,128], index: 2, kind: input, shape index: {}]
  %s3 = inlined_call_operand.vmem [shape: f32[1,128], index: 3, kind: input, shape index: {}]
  %s4 = inlined_call_operand.vmem [shape: bf16[2,8,8,128], index: 4, kind: output, shape index: {}]
  %s5 = sld [smem:[#allocation0]]
  $region65: #{mobilenet_v3_forward.11} parent=0
    _
  %s7 = ssub.s32 1, %s5
  %s8 = scalar_select 0, %s7, %s5
  loop: start=0, step=1, limit=6
  $region2: #{mobilenet_v3_forward.11} parent=0 // loop_pre_header
    _
  $region3: #{mobilenet_v3_forward.11} parent=0 // loop_header
    %s10 = sphi 0, %s14
    %p11 = scmp.ge.s32.totalorder %s10, 6
    %s17 = sphi 0, %s29
    %s18 = sphi 0, %s25
    %s19 = sphi 0, %s17
    %s20 = sphi 0, %s18
    %s21 = sphi 0, %s19
    %s22 = sphi 0, %s20
    %s32 = sphi 0, %s34
    %s35 = sphi 0, %s32
    %s36 = sphi 0, %s35
    %s52 = sphi 0, %s36
    %s56 = sphi 0, %s56
    %s58 = sphi 0, %s56
    %s59 = sphi 0, %s58
    %s73 = sphi 0, %s59
    %s77 = sphi 0, %s77
    %s79 = sphi 0, %s77
    %s80 = sphi 0, %s79
    %s94 = sphi 0, %s80
    %s98 = sphi 0, %s98
    %s100 = sphi 0, %s98
    %s101 = sphi 0, %s100
    %s115 = sphi 0, %s101
    %s123 = sphi 0, %s125
    %s126 = sphi 0, %s123
    %s127 = sphi 0, %s126
    %s143 = sphi 0, %s127
  $region4: #{mobilenet_v3_forward.11} parent=0 // loop_header_branch
    %13 = sbr.rel (%p11) target = $region8
  $region5: #{mobilenet_v3_forward.11} parent=0 // loop_body
    %s15 = ssub.s32 %s10, 1
    %s16 = ssub.s32 %s10, 2
    %s23 = sadd.s32 1, %s18
    %p24 = scmp.ge.s32.totalorder %s23, 2
    %s25 = scalar_select %p24, 0, %s23
    %s26 = sadd.s32 1, %s17
    %s27 = scalar_select %p24, %s26, %s17
    %p28 = scmp.ge.s32.totalorder %s27, 2
    %s29 = scalar_select %p28, 0, %s27
    %s30 = ssub.s32 %s18, %s25
    %p31 = scmp.eq.s32.totalorder %s30, 0
    %s33 = sadd.s32 %s32, 1
    %s34 = scalar_select %p31, %s32, %s33
    %p37 = pneg %p31
    %p38 = scmp.eq.s32.totalorder %s10, 3
    %p39 = por %p37, %p38
    %p40 = scmp.ne.s32.totalorder %s32, %s35
    %p41 = scmp.eq.s32.totalorder %s10, 0
    %p42 = por %p40, %p41
    %p43 = scmp.ne.s32.totalorder %s32, %s35
    %p44 = scmp.eq.s32.totalorder %s15, 3
    %p45 = por %p43, %p44
    %p46 = scmp.ne.s32.totalorder %s35, %s36
    %p47 = scmp.eq.s32.totalorder %s15, 0
    %p48 = por %p46, %p47
    %p49 = scmp.ne.s32.totalorder %s35, %s36
    %p50 = scmp.eq.s32.totalorder %s16, 3
    %p51 = por %p49, %p50
    %p53 = scmp.ne.s32.totalorder %s36, %s52
    %p54 = scmp.eq.s32.totalorder %s16, 0
    %p55 = por %p53, %p54
    %s57 = sadd.s32 %s56, 1
    %p60 = scmp.eq.s32.totalorder %s10, 3
    %p61 = scmp.ne.s32.totalorder %s56, %s58
    %p62 = scmp.eq.s32.totalorder %s10, 0
    %p63 = por %p61, %p62
    %p64 = scmp.ne.s32.totalorder %s56, %s58
    %p65 = scmp.eq.s32.totalorder %s15, 3
    %p66 = por %p64, %p65
    %p67 = scmp.ne.s32.totalorder %s58, %s59
    %p68 = scmp.eq.s32.totalorder %s15, 0
    %p69 = por %p67, %p68
    %p70 = scmp.ne.s32.totalorder %s58, %s59
    %p71 = scmp.eq.s32.totalorder %s16, 3
    %p72 = por %p70, %p71
    %p74 = scmp.ne.s32.totalorder %s59, %s73
    %p75 = scmp.eq.s32.totalorder %s16, 0
    %p76 = por %p74, %p75
    %s78 = sadd.s32 %s77, 1
    %p81 = scmp.eq.s32.totalorder %s10, 3
    %p82 = scmp.ne.s32.totalorder %s77, %s79
    %p83 = scmp.eq.s32.totalorder %s10, 0
    %p84 = por %p82, %p83
    %p85 = scmp.ne.s32.totalorder %s77, %s79
    %p86 = scmp.eq.s32.totalorder %s15, 3
    %p87 = por %p85, %p86
    %p88 = scmp.ne.s32.totalorder %s79, %s80
    %p89 = scmp.eq.s32.totalorder %s15, 0
    %p90 = por %p88, %p89
    %p91 = scmp.ne.s32.totalorder %s79, %s80
    %p92 = scmp.eq.s32.totalorder %s16, 3
    %p93 = por %p91, %p92
    %p95 = scmp.ne.s32.totalorder %s80, %s94
    %p96 = scmp.eq.s32.totalorder %s16, 0
    %p97 = por %p95, %p96
    %s99 = sadd.s32 %s98, 1
    %p102 = scmp.eq.s32.totalorder %s10, 3
    %p103 = scmp.ne.s32.totalorder %s98, %s100
    %p104 = scmp.eq.s32.totalorder %s10, 0
    %p105 = por %p103, %p104
    %p106 = scmp.ne.s32.totalorder %s98, %s100
    %p107 = scmp.eq.s32.totalorder %s15, 3
    %p108 = por %p106, %p107
    %p109 = scmp.ne.s32.totalorder %s100, %s101
    %p110 = scmp.eq.s32.totalorder %s15, 0
    %p111 = por %p109, %p110
    %p112 = scmp.ne.s32.totalorder %s100, %s101
    %p113 = scmp.eq.s32.totalorder %s16, 3
    %p114 = por %p112, %p113
    %p116 = scmp.ne.s32.totalorder %s101, %s115
    %p117 = scmp.eq.s32.totalorder %s16, 0
    %p118 = por %p116, %p117
    %s119 = smul.u32 %s18, %s17
    %s120 = smul.u32 %s25, %s29
    %s121 = ssub.s32 %s119, %s120
    %p122 = scmp.eq.s32.totalorder %s121, 0
    %s124 = sadd.s32 %s123, 1
    %s125 = scalar_select %p122, %s123, %s124
    %p128 = pneg %p122
    %p129 = scmp.eq.s32.totalorder %s10, 3
    %p130 = por %p128, %p129
    %p131 = scmp.ne.s32.totalorder %s123, %s126
    %p132 = scmp.eq.s32.totalorder %s10, 0
    %p133 = por %p131, %p132
    %p134 = scmp.ne.s32.totalorder %s123, %s126
    %p135 = scmp.eq.s32.totalorder %s15, 3
    %p136 = por %p134, %p135
    %p137 = scmp.ne.s32.totalorder %s126, %s127
    %p138 = scmp.eq.s32.totalorder %s15, 0
    %p139 = por %p137, %p138
    %p140 = scmp.ne.s32.totalorder %s126, %s127
    %p141 = scmp.eq.s32.totalorder %s16, 3
    %p142 = por %p140, %p141
    %p144 = scmp.ne.s32.totalorder %s127, %s143
    %p145 = scmp.eq.s32.totalorder %s16, 0
    %p146 = por %p144, %p145
    %p147 = scmp.le.s32.totalorder 1, %s10
    %p148 = scmp.lt.s32.totalorder %s10, 5
    %p149 = pnand %p147, %p148
    %p150 = pneg %p149
    // Predicated region
    $region9: #{mobilenet_v3_forward.11} parent=5 // pred_check
      _
    $region10: #{mobilenet_v3_forward.11} parent=5 // pred_check_branch
      %152 = sbr.rel (%p149) target = $region12
    $region11: #{mobilenet_v3_forward.11} parent=5 // pred_region
      %s153 = ssub.s32 %s10, 1
      // Predicated region
      $region13: #{mobilenet_v3_forward.11} parent=11 // pred_check
        %p154 = pneg %p69
      $region14: #{mobilenet_v3_forward.11} parent=11 // pred_check_branch
        %156 = sbr.rel (%p154) target = $region16
      $region15: #{mobilenet_v3_forward.11} parent=11 // pred_region
        _
      $region16: #{mobilenet_v3_forward.11} parent=11 // pred_fallthru
        _
      // Predicated region
      $region17: #{mobilenet_v3_forward.11} parent=11 // pred_check
        %p157 = pneg %p90
      $region18: #{mobilenet_v3_forward.11} parent=11 // pred_check_branch
        %159 = sbr.rel (%p157) target = $region20
      $region19: #{mobilenet_v3_forward.11} parent=11 // pred_region
        _
      $region20: #{mobilenet_v3_forward.11} parent=11 // pred_fallthru
        _
      // Predicated region
      $region21: #{mobilenet_v3_forward.11} parent=11 // pred_check
        %p160 = pneg %p111
      $region22: #{mobilenet_v3_forward.11} parent=11 // pred_check_branch
        %162 = sbr.rel (%p160) target = $region24
      $region23: #{mobilenet_v3_forward.11} parent=11 // pred_region
        _
      $region24: #{mobilenet_v3_forward.11} parent=11 // pred_fallthru
        _
    $region12: #{mobilenet_v3_forward.11} parent=5 // pred_fallthru
      _
    %p163 = scmp.lt.s32.totalorder %s10, 4
    // Predicated region
    $region25: #{mobilenet_v3_forward.11} parent=5 // pred_check
      %p164 = pneg %p163
    $region26: #{mobilenet_v3_forward.11} parent=5 // pred_check_branch
      %166 = sbr.rel (%p164) target = $region28
    $region27: #{mobilenet_v3_forward.11} parent=5 // pred_region
      // Predicated region
      $region29: #{mobilenet_v3_forward.11} parent=27 // pred_check
        %p167 = pneg %p42
      $region30: #{mobilenet_v3_forward.11} parent=27 // pred_check_branch
        %169 = sbr.rel (%p167) target = $region32
      $region31: #{mobilenet_v3_forward.11} parent=27 // pred_region
        %p170 = scmp.lt.s32.totalorder %s18, 1
        %s171 = scalar_select %p170, %s18, 1
        %s172 = smul.addr %s171, 20
        %s173 = smul.addr %s172, 4
        %s174 = scalar_lea.vmem %s0, %s173
      $region32: #{mobilenet_v3_forward.11} parent=27 // pred_fallthru
        _
    $region28: #{mobilenet_v3_forward.11} parent=5 // pred_fallthru
      _
    %p175 = scmp.le.s32.totalorder 1, %s10
    %p176 = scmp.lt.s32.totalorder %s10, 5
    %p177 = pnand %p175, %p176
    %p178 = pneg %p177
    // Predicated region
    $region33: #{mobilenet_v3_forward.11} parent=5 // pred_check
      _
    $region34: #{mobilenet_v3_forward.11} parent=5 // pred_check_branch
      %180 = sbr.rel (%p177) target = $region36
    $region35: #{mobilenet_v3_forward.11} parent=5 // pred_region
      %s181 = ssub.s32 %s10, 1
      %p182 = scmp.lt.s32.totalorder %s20, 1
      %s183 = scalar_select %p182, %s20, 1
      %s184 = smul.addr %s183, 20
      %s185 = smul.addr %s184, 4
      %s186 = scalar_lea.vmem %s0, %s185
      %p187 = pneg %p48
      %p188 = pneg %p45
      %p189 = pneg %p69
      %p190 = pneg %p66
      %p191 = pneg %p90
      %p192 = pneg %p87
      %p193 = pneg %p111
      %p194 = pneg %p108
      %p195 = pneg %p139
      %p196 = pneg %p136
      %s197 = smul.u32 %s20, %s19
      %p198 = scmp.lt.s32.totalorder %s197, 1
      %s199 = scalar_select %p198, %s197, 1
      %s200 = smul.addr %s199, 8
      %s201 = smul.addr %s200, 4
      %s202 = scalar_lea.vmem %s4, %s201
      %p203 = scmp.lt.s32.totalorder %s20, 1
      %s204 = scalar_select %p203, %s20, 1
      %s205 = smul.addr %s204, 20
      %s206 = smul.addr %s205, 4
      %s207 = scalar_lea.vmem %s0, %s206
      %s208 = smul.u32 %s20, %s19
      %p209 = scmp.lt.s32.totalorder %s208, 1
      %s210 = scalar_select %p209, %s208, 1
      %s211 = smul.addr %s210, 8
      %s212 = smul.addr %s211, 4
      %s213 = scalar_lea.vmem %s4, %s212
      %s214 = smul.u32 %s20, %s19
      %v215 = vld [vmem:[%s1] sm:$0xff]
      %v216 = vld [vmem:[%s1 + $0x8] sm:$0x1]
      %v217 = vld [vmem:[%s207] sm:$0xf]
      %v218 = vld [vmem:[%s207 + $0x8] sm:$0xf]
      %v219 = vld [vmem:[%s207 + $0x10] sm:$0xf]
      %v220 = vld [vmem:[%s207 + $0x18] sm:$0xf]
      %v221 = vld [vmem:[%s207 + $0x20] sm:$0xf]
      %v222 = vld [vmem:[%s207 + $0x28] sm:$0xf]
      %v223 = vld [vmem:[%s207 + $0x30] sm:$0xf]
      %v224 = vld [vmem:[%s207 + $0x38] sm:$0xf]
      %v225 = vunpack.c.l.bf16 %v217
      %v226 = vunpack.c.l.bf16 %v218
      %v227 = vunpack.c.l.bf16 %v219
      %v228 = vunpack.c.l.bf16 %v220
      %v229 = vunpack.c.l.bf16 %v221
      %v230 = vunpack.c.l.bf16 %v222
      %v231 = vunpack.c.l.bf16 %v223
      %v232 = vunpack.c.l.bf16 %v224
      %v233 = vlaneseq
      %v234 = vshrl.u32 %v233, 7
      %v235 = vsub.s32 0, %v234
      %v236 = vrot.slane %v215, %v235
      %v237 = vmul.f32 %v225, %v236
      %v238 = vmul.f32 %v226, %v236
      %v239 = vmul.f32 %v227, %v236
      %v240 = vmul.f32 %v228, %v236
      %v241 = vmul.f32 %v229, %v236
      %v242 = vmul.f32 %v230, %v236
      %v243 = vmul.f32 %v231, %v236
      %v244 = vmul.f32 %v232, %v236
      %v245 = vadd.f32 %v237, 0.0
      %v246 = vadd.f32 %v238, 0.0
      %v247 = vadd.f32 %v239, 0.0
      %v248 = vadd.f32 %v240, 0.0
      %v249 = vadd.f32 %v241, 0.0
      %v250 = vadd.f32 %v242, 0.0
      %v251 = vadd.f32 %v243, 0.0
      %v252 = vadd.f32 %v244, 0.0
      %v253 = vld [vmem:[%s207 + $0x4] sm:$0x1]
      %v254 = vld [vmem:[%s207 + $0xc] sm:$0x1]
      %v255 = vld [vmem:[%s207 + $0x14] sm:$0x1]
      %v256 = vld [vmem:[%s207 + $0x1c] sm:$0x1]
      %v257 = vld [vmem:[%s207 + $0x24] sm:$0x1]
      %v258 = vld [vmem:[%s207 + $0x2c] sm:$0x1]
      %v259 = vld [vmem:[%s207 + $0x34] sm:$0x1]
      %v260 = vld [vmem:[%s207 + $0x3c] sm:$0x1]
      %v261 = vunpack.c.l.bf16 %v253
      %v262 = vunpack.c.l.bf16 %v254
      %v263 = vunpack.c.l.bf16 %v255
      %v264 = vunpack.c.l.bf16 %v256
      %v265 = vunpack.c.l.bf16 %v257
      %v266 = vunpack.c.l.bf16 %v258
      %v267 = vunpack.c.l.bf16 %v259
      %v268 = vunpack.c.l.bf16 %v260
      %v269 = vlaneseq
      %v270 = vshrl.u32 %v269, 7
      %v271 = vsub.s32 1, %v270
      %v272 = vrot.slane %v215, %v271
      %v273 = vmul.f32 %v225, %v272
      %v274 = vmul.f32 %v261, %v272
      %v275 = vmul.f32 %v226, %v272
      %v276 = vmul.f32 %v262, %v272
      %v277 = vmul.f32 %v227, %v272
      %v278 = vmul.f32 %v263, %v272
      %v279 = vmul.f32 %v228, %v272
      %v280 = vmul.f32 %v264, %v272
      %v281 = vmul.f32 %v229, %v272
      %v282 = vmul.f32 %v265, %v272
      %v283 = vmul.f32 %v230, %v272
      %v284 = vmul.f32 %v266, %v272
      %v285 = vmul.f32 %v231, %v272
      %v286 = vmul.f32 %v267, %v272
      %v287 = vmul.f32 %v232, %v272
      %v288 = vmul.f32 %v268, %v272
      %vm305 = vcmask 1046528
      %v306 = vrot.slane %v273, 1
      %v307 = vrot.slane %v274, 1
      %v308 = vsel %vm305, %v306, %v307
      %v309 = vrot.slane %v275, 1
      %v310 = vrot.slane %v276, 1
      %v311 = vsel %vm305, %v309, %v310
      %v312 = vrot.slane %v277, 1
      %v313 = vrot.slane %v278, 1
      %v314 = vsel %vm305, %v312, %v313
      %v315 = vrot.slane %v279, 1
      %v316 = vrot.slane %v280, 1
      %v317 = vsel %vm305, %v315, %v316
      %v318 = vrot.slane %v281, 1
      %v319 = vrot.slane %v282, 1
      %v320 = vsel %vm305, %v318, %v319
      %v321 = vrot.slane %v283, 1
      %v322 = vrot.slane %v284, 1
      %v323 = vsel %vm305, %v321, %v322
      %v324 = vrot.slane %v285, 1
      %v325 = vrot.slane %v286, 1
      %v326 = vsel %vm305, %v324, %v325
      %v327 = vrot.slane %v287, 1
      %v328 = vrot.slane %v288, 1
      %v329 = vsel %vm305, %v327, %v328
      %v338 = vadd.f32 %v245, %v308
      %v339 = vadd.f32 %v246, %v311
      %v340 = vadd.f32 %v247, %v314
      %v341 = vadd.f32 %v248, %v317
      %v342 = vadd.f32 %v249, %v320
      %v343 = vadd.f32 %v250, %v323
      %v344 = vadd.f32 %v251, %v326
      %v345 = vadd.f32 %v252, %v329
      %v346 = vld [vmem:[%s207] sm:$0xe]
      %v347 = vld [vmem:[%s207 + $0x8] sm:$0xe]
      %v348 = vld [vmem:[%s207 + $0x10] sm:$0xe]
      %v349 = vld [vmem:[%s207 + $0x18] sm:$0xe]
      %v350 = vld [vmem:[%s207 + $0x20] sm:$0xe]
      %v351 = vld [vmem:[%s207 + $0x28] sm:$0xe]
      %v352 = vld [vmem:[%s207 + $0x30] sm:$0xe]
      %v353 = vld [vmem:[%s207 + $0x38] sm:$0xe]
      %v354 = vunpack.c.l.bf16 %v346
      %v355 = vunpack.c.l.bf16 %v347
      %v356 = vunpack.c.l.bf16 %v348
      %v357 = vunpack.c.l.bf16 %v349
      %v358 = vunpack.c.l.bf16 %v350
      %v359 = vunpack.c.l.bf16 %v351
      %v360 = vunpack.c.l.bf16 %v352
      %v361 = vunpack.c.l.bf16 %v353
      %v362 = vlaneseq
      %v363 = vshrl.u32 %v362, 7
      %v364 = vsub.s32 2, %v363
      %v365 = vrot.slane %v215, %v364
      %v366 = vmul.f32 %v354, %v365
      %v367 = vmul.f32 %v261, %v365
      %v368 = vmul.f32 %v355, %v365
      %v369 = vmul.f32 %v262, %v365
      %v370 = vmul.f32 %v356, %v365
      %v371 = vmul.f32 %v263, %v365
      %v372 = vmul.f32 %v357, %v365
      %v373 = vmul.f32 %v264, %v365
      %v374 = vmul.f32 %v358, %v365
      %v375 = vmul.f32 %v265, %v365
      %v376 = vmul.f32 %v359, %v365
      %v377 = vmul.f32 %v266, %v365
      %v378 = vmul.f32 %v360, %v365
      %v379 = vmul.f32 %v267, %v365
      %v380 = vmul.f32 %v361, %v365
      %v381 = vmul.f32 %v268, %v365
      %vm398 = vcmask 1045504
      %v399 = vrot.slane %v366, 2
      %v400 = vrot.slane %v367, 2
      %v401 = vsel %vm398, %v399, %v400
      %v402 = vrot.slane %v368, 2
      %v403 = vrot.slane %v369, 2
      %v404 = vsel %vm398, %v402, %v403
      %v405 = vrot.slane %v370, 2
      %v406 = vrot.slane %v371, 2
      %v407 = vsel %vm398, %v405, %v406
      %v408 = vrot.slane %v372, 2
      %v409 = vrot.slane %v373, 2
      %v410 = vsel %vm398, %v408, %v409
      %v411 = vrot.slane %v374, 2
      %v412 = vrot.slane %v375, 2
      %v413 = vsel %vm398, %v411, %v412
      %v414 = vrot.slane %v376, 2
      %v415 = vrot.slane %v377, 2
      %v416 = vsel %vm398, %v414, %v415
      %v417 = vrot.slane %v378, 2
      %v418 = vrot.slane %v379, 2
      %v419 = vsel %vm398, %v417, %v418
      %v420 = vrot.slane %v380, 2
      %v421 = vrot.slane %v381, 2
      %v422 = vsel %vm398, %v420, %v421
      %v431 = vadd.f32 %v338, %v401
      %v432 = vadd.f32 %v339, %v404
      %v433 = vadd.f32 %v340, %v407
      %v434 = vadd.f32 %v341, %v410
      %v435 = vadd.f32 %v342, %v413
      %v436 = vadd.f32 %v343, %v416
      %v437 = vadd.f32 %v344, %v419
      %v438 = vadd.f32 %v345, %v422
      %s439 = scalar_lea.vmem %s207, 8
      %v440 = vld [vmem:[%s439] sm:$0xf]
      %v441 = vld [vmem:[%s439 + $0x8] sm:$0xf]
      %v442 = vld [vmem:[%s439 + $0x10] sm:$0xf]
      %v443 = vld [vmem:[%s439 + $0x18] sm:$0xf]
      %v444 = vld [vmem:[%s439 + $0x20] sm:$0xf]
      %v445 = vld [vmem:[%s439 + $0x28] sm:$0xf]
      %v446 = vld [vmem:[%s439 + $0x30] sm:$0xf]
      %v447 = vld [vmem:[%s439 + $0x38] sm:$0xf]
      %v448 = vunpack.c.l.bf16 %v440
      %v449 = vunpack.c.l.bf16 %v441
      %v450 = vunpack.c.l.bf16 %v442
      %v451 = vunpack.c.l.bf16 %v443
      %v452 = vunpack.c.l.bf16 %v444
      %v453 = vunpack.c.l.bf16 %v445
      %v454 = vunpack.c.l.bf16 %v446
      %v455 = vunpack.c.l.bf16 %v447
      %v456 = vlaneseq
      %v457 = vshrl.u32 %v456, 7
      %v458 = vsub.s32 3, %v457
      %v459 = vrot.slane %v215, %v458
      %v460 = vmul.f32 %v448, %v459
      %v461 = vmul.f32 %v449, %v459
      %v462 = vmul.f32 %v450, %v459
      %v463 = vmul.f32 %v451, %v459
      %v464 = vmul.f32 %v452, %v459
      %v465 = vmul.f32 %v453, %v459
      %v466 = vmul.f32 %v454, %v459
      %v467 = vmul.f32 %v455, %v459
      %v468 = vadd.f32 %v431, %v460
      %v469 = vadd.f32 %v432, %v461
      %v470 = vadd.f32 %v433, %v462
      %v471 = vadd.f32 %v434, %v463
      %v472 = vadd.f32 %v435, %v464
      %v473 = vadd.f32 %v436, %v465
      %v474 = vadd.f32 %v437, %v466
      %v475 = vadd.f32 %v438, %v467
      %v476 = vld [vmem:[%s439 + $0x4] sm:$0x1]
      %v477 = vld [vmem:[%s439 + $0xc] sm:$0x1]
      %v478 = vld [vmem:[%s439 + $0x14] sm:$0x1]
      %v479 = vld [vmem:[%s439 + $0x1c] sm:$0x1]
      %v480 = vld [vmem:[%s439 + $0x24] sm:$0x1]
      %v481 = vld [vmem:[%s439 + $0x2c] sm:$0x1]
      %v482 = vld [vmem:[%s439 + $0x34] sm:$0x1]
      %v483 = vld [vmem:[%s439 + $0x3c] sm:$0x1]
      %v484 = vunpack.c.l.bf16 %v476
      %v485 = vunpack.c.l.bf16 %v477
      %v486 = vunpack.c.l.bf16 %v478
      %v487 = vunpack.c.l.bf16 %v479
      %v488 = vunpack.c.l.bf16 %v480
      %v489 = vunpack.c.l.bf16 %v481
      %v490 = vunpack.c.l.bf16 %v482
      %v491 = vunpack.c.l.bf16 %v483
      %v492 = vlaneseq
      %v493 = vshrl.u32 %v492, 7
      %v494 = vsub.s32 4, %v493
      %v495 = vrot.slane %v215, %v494
      %v496 = vmul.f32 %v448, %v495
      %v497 = vmul.f32 %v484, %v495
      %v498 = vmul.f32 %v449, %v495
      %v499 = vmul.f32 %v485, %v495
      %v500 = vmul.f32 %v450, %v495
      %v501 = vmul.f32 %v486, %v495
      %v502 = vmul.f32 %v451, %v495
      %v503 = vmul.f32 %v487, %v495
      %v504 = vmul.f32 %v452, %v495
      %v505 = vmul.f32 %v488, %v495
      %v506 = vmul.f32 %v453, %v495
      %v507 = vmul.f32 %v489, %v495
      %v508 = vmul.f32 %v454, %v495
      %v509 = vmul.f32 %v490, %v495
      %v510 = vmul.f32 %v455, %v495
      %v511 = vmul.f32 %v491, %v495
      %v528 = vrot.slane %v496, 1
      %v529 = vrot.slane %v497, 1
      %v530 = vsel %vm305, %v528, %v529
      %v531 = vrot.slane %v498, 1
      %v532 = vrot.slane %v499, 1
      %v533 = vsel %vm305, %v531, %v532
      %v534 = vrot.slane %v500, 1
      %v535 = vrot.slane %v501, 1
      %v536 = vsel %vm305, %v534, %v535
      %v537 = vrot.slane %v502, 1
      %v538 = vrot.slane %v503, 1
      %v539 = vsel %vm305, %v537, %v538
      %v540 = vrot.slane %v504, 1
      %v541 = vrot.slane %v505, 1
      %v542 = vsel %vm305, %v540, %v541
      %v543 = vrot.slane %v506, 1
      %v544 = vrot.slane %v507, 1
      %v545 = vsel %vm305, %v543, %v544
      %v546 = vrot.slane %v508, 1
      %v547 = vrot.slane %v509, 1
      %v548 = vsel %vm305, %v546, %v547
      %v549 = vrot.slane %v510, 1
      %v550 = vrot.slane %v511, 1
      %v551 = vsel %vm305, %v549, %v550
      %v560 = vadd.f32 %v468, %v530
      %v561 = vadd.f32 %v469, %v533
      %v562 = vadd.f32 %v470, %v536
      %v563 = vadd.f32 %v471, %v539
      %v564 = vadd.f32 %v472, %v542
      %v565 = vadd.f32 %v473, %v545
      %v566 = vadd.f32 %v474, %v548
      %v567 = vadd.f32 %v475, %v551
      %v568 = vld [vmem:[%s439] sm:$0xe]
      %v569 = vld [vmem:[%s439 + $0x8] sm:$0xe]
      %v570 = vld [vmem:[%s439 + $0x10] sm:$0xe]
      %v571 = vld [vmem:[%s439 + $0x18] sm:$0xe]
      %v572 = vld [vmem:[%s439 + $0x20] sm:$0xe]
      %v573 = vld [vmem:[%s439 + $0x28] sm:$0xe]
      %v574 = vld [vmem:[%s439 + $0x30] sm:$0xe]
      %v575 = vld [vmem:[%s439 + $0x38] sm:$0xe]
      %v576 = vunpack.c.l.bf16 %v568
      %v577 = vunpack.c.l.bf16 %v569
      %v578 = vunpack.c.l.bf16 %v570
      %v579 = vunpack.c.l.bf16 %v571
      %v580 = vunpack.c.l.bf16 %v572
      %v581 = vunpack.c.l.bf16 %v573
      %v582 = vunpack.c.l.bf16 %v574
      %v583 = vunpack.c.l.bf16 %v575
      %v584 = vlaneseq
      %v585 = vshrl.u32 %v584, 7
      %v586 = vsub.s32 5, %v585
      %v587 = vrot.slane %v215, %v586
      %v588 = vmul.f32 %v576, %v587
      %v589 = vmul.f32 %v484, %v587
      %v590 = vmul.f32 %v577, %v587
      %v591 = vmul.f32 %v485, %v587
      %v592 = vmul.f32 %v578, %v587
      %v593 = vmul.f32 %v486, %v587
      %v594 = vmul.f32 %v579, %v587
      %v595 = vmul.f32 %v487, %v587
      %v596 = vmul.f32 %v580, %v587
      %v597 = vmul.f32 %v488, %v587
      %v598 = vmul.f32 %v581, %v587
      %v599 = vmul.f32 %v489, %v587
      %v600 = vmul.f32 %v582, %v587
      %v601 = vmul.f32 %v490, %v587
      %v602 = vmul.f32 %v583, %v587
      %v603 = vmul.f32 %v491, %v587
      %v620 = vrot.slane %v588, 2
      %v621 = vrot.slane %v589, 2
      %v622 = vsel %vm398, %v620, %v621
      %v623 = vrot.slane %v590, 2
      %v624 = vrot.slane %v591, 2
      %v625 = vsel %vm398, %v623, %v624
      %v626 = vrot.slane %v592, 2
      %v627 = vrot.slane %v593, 2
      %v628 = vsel %vm398, %v626, %v627
      %v629 = vrot.slane %v594, 2
      %v630 = vrot.slane %v595, 2
      %v631 = vsel %vm398, %v629, %v630
      %v632 = vrot.slane %v596, 2
      %v633 = vrot.slane %v597, 2
      %v634 = vsel %vm398, %v632, %v633
      %v635 = vrot.slane %v598, 2
      %v636 = vrot.slane %v599, 2
      %v637 = vsel %vm398, %v635, %v636
      %v638 = vrot.slane %v600, 2
      %v639 = vrot.slane %v601, 2
      %v640 = vsel %vm398, %v638, %v639
      %v641 = vrot.slane %v602, 2
      %v642 = vrot.slane %v603, 2
      %v643 = vsel %vm398, %v641, %v642
      %v652 = vadd.f32 %v560, %v622
      %v653 = vadd.f32 %v561, %v625
      %v654 = vadd.f32 %v562, %v628
      %v655 = vadd.f32 %v563, %v631
      %v656 = vadd.f32 %v564, %v634
      %v657 = vadd.f32 %v565, %v637
      %v658 = vadd.f32 %v566, %v640
      %v659 = vadd.f32 %v567, %v643
      %s660 = scalar_lea.vmem %s207, 16
      %v661 = vld [vmem:[%s660] sm:$0xf]
      %v662 = vld [vmem:[%s660 + $0x8] sm:$0xf]
      %v663 = vld [vmem:[%s660 + $0x10] sm:$0xf]
      %v664 = vld [vmem:[%s660 + $0x18] sm:$0xf]
      %v665 = vld [vmem:[%s660 + $0x20] sm:$0xf]
      %v666 = vld [vmem:[%s660 + $0x28] sm:$0xf]
      %v667 = vld [vmem:[%s660 + $0x30] sm:$0xf]
      %v668 = vld [vmem:[%s660 + $0x38] sm:$0xf]
      %v669 = vunpack.c.l.bf16 %v661
      %v670 = vunpack.c.l.bf16 %v662
      %v671 = vunpack.c.l.bf16 %v663
      %v672 = vunpack.c.l.bf16 %v664
      %v673 = vunpack.c.l.bf16 %v665
      %v674 = vunpack.c.l.bf16 %v666
      %v675 = vunpack.c.l.bf16 %v667
      %v676 = vunpack.c.l.bf16 %v668
      %v677 = vlaneseq
      %v678 = vshrl.u32 %v677, 7
      %v679 = vsub.s32 6, %v678
      %v680 = vrot.slane %v215, %v679
      %v681 = vmul.f32 %v669, %v680
      %v682 = vmul.f32 %v670, %v680
      %v683 = vmul.f32 %v671, %v680
      %v684 = vmul.f32 %v672, %v680
      %v685 = vmul.f32 %v673, %v680
      %v686 = vmul.f32 %v674, %v680
      %v687 = vmul.f32 %v675, %v680
      %v688 = vmul.f32 %v676, %v680
      %v689 = vadd.f32 %v652, %v681
      %v690 = vadd.f32 %v653, %v682
      %v691 = vadd.f32 %v654, %v683
      %v692 = vadd.f32 %v655, %v684
      %v693 = vadd.f32 %v656, %v685
      %v694 = vadd.f32 %v657, %v686
      %v695 = vadd.f32 %v658, %v687
      %v696 = vadd.f32 %v659, %v688
      %v697 = vld [vmem:[%s660 + $0x4] sm:$0x1]
      %v698 = vld [vmem:[%s660 + $0xc] sm:$0x1]
      %v699 = vld [vmem:[%s660 + $0x14] sm:$0x1]
      %v700 = vld [vmem:[%s660 + $0x1c] sm:$0x1]
      %v701 = vld [vmem:[%s660 + $0x24] sm:$0x1]
      %v702 = vld [vmem:[%s660 + $0x2c] sm:$0x1]
      %v703 = vld [vmem:[%s660 + $0x34] sm:$0x1]
      %v704 = vld [vmem:[%s660 + $0x3c] sm:$0x1]
      %v705 = vunpack.c.l.bf16 %v697
      %v706 = vunpack.c.l.bf16 %v698
      %v707 = vunpack.c.l.bf16 %v699
      %v708 = vunpack.c.l.bf16 %v700
      %v709 = vunpack.c.l.bf16 %v701
      %v710 = vunpack.c.l.bf16 %v702
      %v711 = vunpack.c.l.bf16 %v703
      %v712 = vunpack.c.l.bf16 %v704
      %v713 = vlaneseq
      %v714 = vshrl.u32 %v713, 7
      %v715 = vsub.s32 7, %v714
      %v716 = vrot.slane %v215, %v715
      %v717 = vmul.f32 %v669, %v716
      %v718 = vmul.f32 %v705, %v716
      %v719 = vmul.f32 %v670, %v716
      %v720 = vmul.f32 %v706, %v716
      %v721 = vmul.f32 %v671, %v716
      %v722 = vmul.f32 %v707, %v716
      %v723 = vmul.f32 %v672, %v716
      %v724 = vmul.f32 %v708, %v716
      %v725 = vmul.f32 %v673, %v716
      %v726 = vmul.f32 %v709, %v716
      %v727 = vmul.f32 %v674, %v716
      %v728 = vmul.f32 %v710, %v716
      %v729 = vmul.f32 %v675, %v716
      %v730 = vmul.f32 %v711, %v716
      %v731 = vmul.f32 %v676, %v716
      %v732 = vmul.f32 %v712, %v716
      %v749 = vrot.slane %v717, 1
      %v750 = vrot.slane %v718, 1
      %v751 = vsel %vm305, %v749, %v750
      %v752 = vrot.slane %v719, 1
      %v753 = vrot.slane %v720, 1
      %v754 = vsel %vm305, %v752, %v753
      %v755 = vrot.slane %v721, 1
      %v756 = vrot.slane %v722, 1
      %v757 = vsel %vm305, %v755, %v756
      %v758 = vrot.slane %v723, 1
      %v759 = vrot.slane %v724, 1
      %v760 = vsel %vm305, %v758, %v759
      %v761 = vrot.slane %v725, 1
      %v762 = vrot.slane %v726, 1
      %v763 = vsel %vm305, %v761, %v762
      %v764 = vrot.slane %v727, 1
      %v765 = vrot.slane %v728, 1
      %v766 = vsel %vm305, %v764, %v765
      %v767 = vrot.slane %v729, 1
      %v768 = vrot.slane %v730, 1
      %v769 = vsel %vm305, %v767, %v768
      %v770 = vrot.slane %v731, 1
      %v771 = vrot.slane %v732, 1
      %v772 = vsel %vm305, %v770, %v771
      %v781 = vadd.f32 %v689, %v751
      %v782 = vadd.f32 %v690, %v754
      %v783 = vadd.f32 %v691, %v757
      %v784 = vadd.f32 %v692, %v760
      %v785 = vadd.f32 %v693, %v763
      %v786 = vadd.f32 %v694, %v766
      %v787 = vadd.f32 %v695, %v769
      %v788 = vadd.f32 %v696, %v772
      %v789 = vld [vmem:[%s660] sm:$0xe]
      %v790 = vld [vmem:[%s660 + $0x8] sm:$0xe]
      %v791 = vld [vmem:[%s660 + $0x10] sm:$0xe]
      %v792 = vld [vmem:[%s660 + $0x18] sm:$0xe]
      %v793 = vld [vmem:[%s660 + $0x20] sm:$0xe]
      %v794 = vld [vmem:[%s660 + $0x28] sm:$0xe]
      %v795 = vld [vmem:[%s660 + $0x30] sm:$0xe]
      %v796 = vld [vmem:[%s660 + $0x38] sm:$0xe]
      %v797 = vunpack.c.l.bf16 %v789
      %v798 = vunpack.c.l.bf16 %v790
      %v799 = vunpack.c.l.bf16 %v791
      %v800 = vunpack.c.l.bf16 %v792
      %v801 = vunpack.c.l.bf16 %v793
      %v802 = vunpack.c.l.bf16 %v794
      %v803 = vunpack.c.l.bf16 %v795
      %v804 = vunpack.c.l.bf16 %v796
      %v805 = vlaneseq
      %v806 = vshrl.u32 %v805, 7
      %v807 = vsub.s32 0, %v806
      %v808 = vrot.slane %v216, %v807
      %v809 = vmul.f32 %v797, %v808
      %v810 = vmul.f32 %v705, %v808
      %v811 = vmul.f32 %v798, %v808
      %v812 = vmul.f32 %v706, %v808
      %v813 = vmul.f32 %v799, %v808
      %v814 = vmul.f32 %v707, %v808
      %v815 = vmul.f32 %v800, %v808
      %v816 = vmul.f32 %v708, %v808
      %v817 = vmul.f32 %v801, %v808
      %v818 = vmul.f32 %v709, %v808
      %v819 = vmul.f32 %v802, %v808
      %v820 = vmul.f32 %v710, %v808
      %v821 = vmul.f32 %v803, %v808
      %v822 = vmul.f32 %v711, %v808
      %v823 = vmul.f32 %v804, %v808
      %v824 = vmul.f32 %v712, %v808
      %v841 = vrot.slane %v809, 2
      %v842 = vrot.slane %v810, 2
      %v843 = vsel %vm398, %v841, %v842
      %v844 = vrot.slane %v811, 2
      %v845 = vrot.slane %v812, 2
      %v846 = vsel %vm398, %v844, %v845
      %v847 = vrot.slane %v813, 2
      %v848 = vrot.slane %v814, 2
      %v849 = vsel %vm398, %v847, %v848
      %v850 = vrot.slane %v815, 2
      %v851 = vrot.slane %v816, 2
      %v852 = vsel %vm398, %v850, %v851
      %v853 = vrot.slane %v817, 2
      %v854 = vrot.slane %v818, 2
      %v855 = vsel %vm398, %v853, %v854
      %v856 = vrot.slane %v819, 2
      %v857 = vrot.slane %v820, 2
      %v858 = vsel %vm398, %v856, %v857
      %v859 = vrot.slane %v821, 2
      %v860 = vrot.slane %v822, 2
      %v861 = vsel %vm398, %v859, %v860
      %v862 = vrot.slane %v823, 2
      %v863 = vrot.slane %v824, 2
      %v864 = vsel %vm398, %v862, %v863
      %v873 = vadd.f32 %v781, %v843
      %v874 = vadd.f32 %v782, %v846
      %v875 = vadd.f32 %v783, %v849
      %v876 = vadd.f32 %v784, %v852
      %v877 = vadd.f32 %v785, %v855
      %v878 = vadd.f32 %v786, %v858
      %v879 = vadd.f32 %v787, %v861
      %v880 = vadd.f32 %v788, %v864
      %p881 = scmp.eq.s32.totalorder %s19, 0
      // Predicated region
      $region37: #{mobilenet_v3_forward.11} parent=35 // pred_check
        %p882 = pneg %p881
      $region38: #{mobilenet_v3_forward.11} parent=35 // pred_check_branch
        %884 = sbr.rel (%p882) target = $region40
      $region39: #{mobilenet_v3_forward.11} parent=35 // pred_region
        %p885 = scmp.eq.s32.totalorder %s20, 0
        // Predicated region
        $region41: #{mobilenet_v3_forward.11} parent=39 // pred_check
          %p886 = pneg %p885
        $region42: #{mobilenet_v3_forward.11} parent=39 // pred_check_branch
          %888 = sbr.rel (%p886) target = $region44
        $region43: #{mobilenet_v3_forward.11} parent=39 // pred_region
          %889 = vst [vmem:[#allocation2] sm:$0x1] 0.0
          %890 = vst [vmem:[#allocation3] sm:$0x1] 0.0
        $region44: #{mobilenet_v3_forward.11} parent=39 // pred_fallthru
          _
        %v891 = vld [vmem:[#allocation2] sm:$0x1]
        %v892 = vadd.f32 %v873, %v874
        %v893 = vadd.f32 %v892, %v875
        %v894 = vadd.f32 %v893, %v876
        %v895 = vadd.f32 %v894, %v877
        %v896 = vadd.f32 %v895, %v878
        %v897 = vadd.f32 %v896, %v879
        %v898 = vadd.f32 %v897, %v880
        %v899 = vrot.slane %v898, 4
        %v900 = vadd.f32 %v898, %v899
        %v901 = vrot.slane %v900, 2
        %v902 = vadd.f32 %v900, %v901
        %v903 = vrot.slane %v902, 1
        %v904 = vadd.f32 %v902, %v903
        %v905 = vadd.f32 %v891, %v904
        %906 = vst [vmem:[#allocation2] sm:$0x1] %v905
        %v907 = vld [vmem:[#allocation3] sm:$0x1]
        %v908 = vmul.f32 %v873, %v873
        %v909 = vmul.f32 %v874, %v874
        %v910 = vmul.f32 %v875, %v875
        %v911 = vmul.f32 %v876, %v876
        %v912 = vmul.f32 %v877, %v877
        %v913 = vmul.f32 %v878, %v878
        %v914 = vmul.f32 %v879, %v879
        %v915 = vmul.f32 %v880, %v880
        %v916 = vadd.f32 %v908, %v909
        %v917 = vadd.f32 %v916, %v910
        %v918 = vadd.f32 %v917, %v911
        %v919 = vadd.f32 %v918, %v912
        %v920 = vadd.f32 %v919, %v913
        %v921 = vadd.f32 %v920, %v914
        %v922 = vadd.f32 %v921, %v915
        %v923 = vrot.slane %v922, 4
        %v924 = vadd.f32 %v922, %v923
        %v925 = vrot.slane %v924, 2
        %v926 = vadd.f32 %v924, %v925
        %v927 = vrot.slane %v926, 1
        %v928 = vadd.f32 %v926, %v927
        %v929 = vadd.f32 %v907, %v928
        %930 = vst [vmem:[#allocation3] sm:$0x1] %v929
        %p931 = scmp.eq.s32.totalorder %s20, 1
        // Predicated region
        $region45: #{mobilenet_v3_forward.11} parent=39 // pred_check
          %p932 = pneg %p931
        $region46: #{mobilenet_v3_forward.11} parent=39 // pred_check_branch
          %934 = sbr.rel (%p932) target = $region48
        $region47: #{mobilenet_v3_forward.11} parent=39 // pred_region
          %v935 = vld [vmem:[#allocation2] sm:$0x1]
          %v936 = vmul.f32 %v935, 0.0078125
          %v937 = vld [vmem:[#allocation3] sm:$0x1]
          %v938 = vmul.f32 %v937, 0.0078125
          %v939 = vmul.f32 %v936, %v936
          %v940 = vsub.f32 %v938, %v939
          %v941 = vmax.f32 %v940, 0.0
          %v942 = vld [vmem:[%s2] sm:$0x1]
          %v943 = vadd.f32 %v941, 0.001
          %v944 = vrsqrt.pop %v943
          %v945 = vmul.f32 %v942, %v944
          %946 = vst [vmem:[#allocation4] sm:$0x1] %v945
          %v947 = vld [vmem:[%s3] sm:$0x1]
          %v948 = vmul.f32 %v936, %v945
          %v949 = vsub.f32 %v947, %v948
          %950 = vst [vmem:[#allocation5] sm:$0x1] %v949
        $region48: #{mobilenet_v3_forward.11} parent=39 // pred_fallthru
          _
      $region40: #{mobilenet_v3_forward.11} parent=35 // pred_fallthru
        _
      %p951 = scmp.eq.s32.totalorder %s19, 1
      // Predicated region
      $region49: #{mobilenet_v3_forward.11} parent=35 // pred_check
        %p952 = pneg %p951
      $region50: #{mobilenet_v3_forward.11} parent=35 // pred_check_branch
        %954 = sbr.rel (%p952) target = $region52
      $region51: #{mobilenet_v3_forward.11} parent=35 // pred_region
        %v955 = vld [vmem:[#allocation4] sm:$0x1]
        %v957 = vlaneseq
        %v958 = vshrl.u32 %v957, 7
        %v959 = vsub.s32 0, %v958
        %v960 = vrot.slane %v955, %v959
        %v962 = vmul.f32 %v873, %v960
        %v963 = vmul.f32 %v874, %v960
        %v964 = vmul.f32 %v875, %v960
        %v965 = vmul.f32 %v876, %v960
        %v966 = vmul.f32 %v877, %v960
        %v967 = vmul.f32 %v878, %v960
        %v968 = vmul.f32 %v879, %v960
        %v969 = vmul.f32 %v880, %v960
        %v970 = vld [vmem:[#allocation5] sm:$0x1]
        %v972 = vlaneseq
        %v973 = vshrl.u32 %v972, 7
        %v974 = vsub.s32 0, %v973
        %v975 = vrot.slane %v970, %v974
        %v977 = vadd.f32 %v962, %v975
        %v978 = vadd.f32 %v963, %v975
        %v979 = vadd.f32 %v964, %v975
        %v980 = vadd.f32 %v965, %v975
        %v981 = vadd.f32 %v966, %v975
        %v982 = vadd.f32 %v967, %v975
        %v983 = vadd.f32 %v968, %v975
        %v984 = vadd.f32 %v969, %v975
        %v985 = vadd.f32 %v977, 3.0
        %v986 = vadd.f32 %v978, 3.0
        %v987 = vadd.f32 %v979, 3.0
        %v988 = vadd.f32 %v980, 3.0
        %v989 = vadd.f32 %v981, 3.0
        %v990 = vadd.f32 %v982, 3.0
        %v991 = vadd.f32 %v983, 3.0
        %v992 = vadd.f32 %v984, 3.0
        %v993 = vmax.f32 %v985, 0.0
        %v994 = vmax.f32 %v986, 0.0
        %v995 = vmax.f32 %v987, 0.0
        %v996 = vmax.f32 %v988, 0.0
        %v997 = vmax.f32 %v989, 0.0
        %v998 = vmax.f32 %v990, 0.0
        %v999 = vmax.f32 %v991, 0.0
        %v1000 = vmax.f32 %v992, 0.0
        %v1001 = vmin.f32 %v993, 6.0
        %v1002 = vmin.f32 %v994, 6.0
        %v1003 = vmin.f32 %v995, 6.0
        %v1004 = vmin.f32 %v996, 6.0
        %v1005 = vmin.f32 %v997, 6.0
        %v1006 = vmin.f32 %v998, 6.0
        %v1007 = vmin.f32 %v999, 6.0
        %v1008 = vmin.f32 %v1000, 6.0
        %v1009 = vmul.f32 %v977, %v1001
        %v1010 = vmul.f32 %v978, %v1002
        %v1011 = vmul.f32 %v979, %v1003
        %v1012 = vmul.f32 %v980, %v1004
        %v1013 = vmul.f32 %v981, %v1005
        %v1014 = vmul.f32 %v982, %v1006
        %v1015 = vmul.f32 %v983, %v1007
        %v1016 = vmul.f32 %v984, %v1008
        %v1017 = vmul.f32 %v1009, 0.16666667
        %v1018 = vmul.f32 %v1010, 0.16666667
        %v1019 = vmul.f32 %v1011, 0.16666667
        %v1020 = vmul.f32 %v1012, 0.16666667
        %v1021 = vmul.f32 %v1013, 0.16666667
        %v1022 = vmul.f32 %v1014, 0.16666667
        %v1023 = vmul.f32 %v1015, 0.16666667
        %v1024 = vmul.f32 %v1016, 0.16666667
        %v1025 = vpack.c.bf16 %v1017, %v1017
        %v1026 = vpack.c.bf16 %v1018, %v1018
        %v1027 = vpack.c.bf16 %v1019, %v1019
        %v1028 = vpack.c.bf16 %v1020, %v1020
        %v1029 = vpack.c.bf16 %v1021, %v1021
        %v1030 = vpack.c.bf16 %v1022, %v1022
        %v1031 = vpack.c.bf16 %v1023, %v1023
        %v1032 = vpack.c.bf16 %v1024, %v1024
        %1033 = vst [vmem:[%s213] sm:$0xf] %v1025
        %1034 = vst [vmem:[%s213 + $0x4] sm:$0xf] %v1026
        %1035 = vst [vmem:[%s213 + $0x8] sm:$0xf] %v1027
        %1036 = vst [vmem:[%s213 + $0xc] sm:$0xf] %v1028
        %1037 = vst [vmem:[%s213 + $0x10] sm:$0xf] %v1029
        %1038 = vst [vmem:[%s213 + $0x14] sm:$0xf] %v1030
        %1039 = vst [vmem:[%s213 + $0x18] sm:$0xf] %v1031
        %1040 = vst [vmem:[%s213 + $0x1c] sm:$0xf] %v1032
      $region52: #{mobilenet_v3_forward.11} parent=35 // pred_fallthru
        _
      %s1041 = smul.u32 %s20, %s19
      %p1042 = scmp.lt.s32.totalorder %s1041, 1
      %s1043 = scalar_select %p1042, %s1041, 1
      %s1044 = smul.addr %s1043, 8
      %s1045 = smul.addr %s1044, 4
      %s1046 = scalar_lea.vmem %s4, %s1045
      // Predicated region
      $region53: #{mobilenet_v3_forward.11} parent=35 // pred_check
        %p1047 = pneg %p136
      $region54: #{mobilenet_v3_forward.11} parent=35 // pred_check_branch
        %1049 = sbr.rel (%p1047) target = $region56
      $region55: #{mobilenet_v3_forward.11} parent=35 // pred_region
        %s1050 = smul.u32 %s20, %s19
      $region56: #{mobilenet_v3_forward.11} parent=35 // pred_fallthru
        _
    $region36: #{mobilenet_v3_forward.11} parent=5 // pred_fallthru
      _
    %p1051 = scmp.le.s32.totalorder 2, %s10
    // Predicated region
    $region57: #{mobilenet_v3_forward.11} parent=5 // pred_check
      %p1052 = pneg %p1051
    $region58: #{mobilenet_v3_forward.11} parent=5 // pred_check_branch
      %1054 = sbr.rel (%p1052) target = $region60
    $region59: #{mobilenet_v3_forward.11} parent=5 // pred_region
      %s1055 = ssub.s32 %s10, 2
      // Predicated region
      $region61: #{mobilenet_v3_forward.11} parent=59 // pred_check
        %p1056 = pneg %p142
      $region62: #{mobilenet_v3_forward.11} parent=59 // pred_check_branch
        %1058 = sbr.rel (%p1056) target = $region64
      $region63: #{mobilenet_v3_forward.11} parent=59 // pred_region
        %s1059 = smul.u32 %s22, %s21
        %p1060 = scmp.lt.s32.totalorder %s1059, 1
        %s1061 = scalar_select %p1060, %s1059, 1
        %s1062 = smul.addr %s1061, 8
        %s1063 = smul.addr %s1062, 4
        %s1064 = scalar_lea.vmem %s4, %s1063
      $region64: #{mobilenet_v3_forward.11} parent=59 // pred_fallthru
        _
    $region60: #{mobilenet_v3_forward.11} parent=5 // pred_fallthru
      _
  $region6: #{mobilenet_v3_forward.11} parent=0 // loop_footer
    %s14 = sadd.s32 1, %s10
  $region7: #{mobilenet_v3_forward.11} parent=0 // loop_footer_branch
    %9 = sbr.rel target = $region3
  $region8: #{mobilenet_v3_forward.11} parent=0 // loop_exit
    _

</llo_original>
